<compile_context>
chip_gen: v7x
topology: tpu7x:2x2x1
jax: 0.10.0
libtpu: 0.0.40
codegen_flags: <defaults>
</compile_context>

<pallas_src>
import functools

import numpy as np
import jax
import jax.numpy as jnp
from jax import lax
from jax.experimental import pallas as pl
from jax.experimental.pallas import tpu as pltpu


def _per_class_err_fg(x_channels, lab, c, ignore_label):
    """Per-pixel softmax prob of class c, foreground indicator, error |fg - p_c|.

    `x_channels` is a list of C same-shaped per-channel arrays.  Every op is
    elementwise with a fixed explicit evaluation order so the row (1, P) and
    column (TJ, 1) instantiations produce bitwise identical per-pixel values
    (the rank comparison relies on exact consistency between the two layouts).
    """
    num_classes = len(x_channels)
    m = x_channels[0]
    for k in range(1, num_classes):
        m = jnp.maximum(m, x_channels[k])
    exs = [jnp.exp(xk - m) for xk in x_channels]
    den = exs[0]
    for k in range(1, num_classes):
        den = den + exs[k]
    num = exs[0] * (c == 0).astype(jnp.float32)
    for k in range(1, num_classes):
        num = num + exs[k] * (c == k).astype(jnp.float32)   # exact: adds 0.0 / picks exs[c]
    p_c = num / den
    valid = lab != ignore_label
    fg = jnp.where(jnp.logical_and(valid, lab == c), 1.0, 0.0).astype(jnp.float32)
    # invalid pixels get error -1 so they never precede a valid pixel in the
    # descending rank order and are trivially masked out of the loss.
    err = jnp.where(valid, jnp.abs(fg - p_c), -1.0).astype(jnp.float32)
    return err, fg


def _lovasz_softmax_kernel(logits_r_ref, labels_r_ref, logits_c_ref, labels_c_ref,
                           out_ref,
                           err_row, fg_row, r_acc, cf_acc, total, count,
                           *, num_classes, ignore_label, tj):
    c = pl.program_id(0)            # class axis (outer, reduction -> "arbitrary")
    jb = pl.program_id(1)           # pixel j-block axis (inner reduction)
    nj = pl.num_programs(1)
    p_pad = err_row.shape[-1]

    @pl.when(jnp.logical_and(c == 0, jb == 0))
    def _init_totals():
        total[...] = jnp.zeros_like(total)
        count[...] = jnp.zeros_like(count)

    @pl.when(jb == 0)
    def _class_setup():
        # row-form errors / fg for the whole pixel range (lane-dense (1, P))
        x = logits_r_ref[...].astype(jnp.float32)            # (C, P)
        lab = labels_r_ref[...]                               # (1, P)
        err, fg = _per_class_err_fg(
            [x[k:k + 1, :] for k in range(num_classes)], lab, c, ignore_label)
        err_row[...] = err
        fg_row[...] = fg
        r_acc[...] = jnp.zeros_like(r_acc)
        cf_acc[...] = jnp.zeros_like(cf_acc)

    # ---- per j-block: rank / fg-prefix accumulation (VPU compare + reduce) ----
    xc = logits_c_ref[...].astype(jnp.float32)                # (tj, C)
    labc = labels_c_ref[...]                                  # (tj, 1)
    e_j, f_j = _per_class_err_fg(
        [xc[:, k:k + 1] for k in range(num_classes)], labc, c, ignore_label)
    e_i = err_row[...]                                        # (1, P)
    j0 = jb * tj
    jj = lax.broadcasted_iota(jnp.int32, (tj, p_pad), 0) + j0
    ii = lax.broadcasted_iota(jnp.int32, (tj, p_pad), 1)
    # strict[jj, i] == 1  <=>  rank(j0+jj) < rank(i)  (stable descending order)
    precedes = jnp.logical_or(e_j > e_i,
                              jnp.logical_and(e_j == e_i, jj < ii))
    strict = jnp.where(precedes, 1.0, 0.0).astype(jnp.float32)
    r_acc[...] = r_acc[...] + jnp.sum(strict, axis=0, keepdims=True)
    cf_acc[...] = cf_acc[...] + jnp.sum(strict * f_j, axis=0, keepdims=True)

    @pl.when(jb == nj - 1)
    def _class_finish():
        e = err_row[...]                                      # (1, P)
        fg = fg_row[...]                                      # (1, P)
        gts = jnp.sum(fg, axis=1, keepdims=True)              # (1, 1)
        r = r_acc[...]                                        # rank_i
        cf = cf_acc[...] + fg                                 # cumsum(fg_sorted) at pos rank_i
        inter = gts - cf
        union = gts + (r + 1.0) - cf                          # cumsum(1-fg_sorted) identity
        jacc = 1.0 - inter / union
        # Jaccard at the previous sorted position, reconstructed in place:
        cf_p = cf - fg
        union_p = gts + r - cf_p
        jacc_p = jnp.where(r > 0.0, 1.0 - (gts - cf_p) / union_p, 0.0)
        grad = jacc - jacc_p
        contrib = jnp.where(e >= 0.0, e, 0.0) * grad          # invalid pixels have e == -1
        loss_c = jnp.sum(contrib, axis=1, keepdims=True)      # (1, 1)
        present = gts > 0.0                                   # 'present' classes only
        total[...] = total[...] + jnp.where(present, loss_c, 0.0)
        count[...] = count[...] + jnp.where(present, 1.0, 0.0)

    @pl.when(jnp.logical_and(c == num_classes - 1, jb == nj - 1))
    def _write_out():
        cnt = count[...]
        out_ref[...] = jnp.where(cnt > 0.0,
                                 total[...] / jnp.maximum(cnt, 1.0), 0.0)


def _pick_block_j(p_pad):
    for t in (512, 256, 128):
        if t <= p_pad and p_pad % t == 0 and 8 * t * p_pad * 4 <= 24 * (1 << 20):
            return t
    return 128


def lovasz_softmax_loss(pre, gt, ignore_label=0):
    """pre: (B, C, H, W) float logits; gt: (B, H, W) int labels. Returns scalar loss."""
    B, C, H, W = pre.shape
    P = B * H * W
    # NCHW -> (C, P); pixel order is irrelevant (the loss is rank-based per class)
    logits_r = jnp.transpose(pre, (1, 0, 2, 3)).reshape(C, P).astype(jnp.float32)
    labels_r = gt.reshape(1, P).astype(jnp.int32)

    pad = (-P) % 128
    if pad:
        logits_r = jnp.pad(logits_r, ((0, 0), (0, pad)))
        labels_r = jnp.pad(labels_r, ((0, 0), (0, pad)),
                           constant_values=ignore_label)
    p_pad = P + pad

    # Column-layout copies (same values, transposed in XLA) so the kernel never
    # has to transpose (1,P) rows into (P,1) columns on chip.
    logits_c = logits_r.T            # (P, C)
    labels_c = labels_r.T            # (P, 1)

    tj = _pick_block_j(p_pad)
    nj = p_pad // tj
    # TODO(synk): for very large images (P >> ~8K) the i (lane) axis of the
    # pairwise-rank comparison should be tiled as a third grid axis as well.

    kernel = functools.partial(_lovasz_softmax_kernel, num_classes=C,
                               ignore_label=int(ignore_label), tj=tj)

    vmem_est = (8 * tj * p_pad + 8 * C * p_pad + 32 * p_pad) * 4 + (2 << 20)
    vmem_limit = int(min(64 * (1 << 20), max(32 * (1 << 20), vmem_est)))

    out = pl.pallas_call(
        kernel,
        out_shape=jax.ShapeDtypeStruct((1, 1), jnp.float32),
        grid_spec=pltpu.PrefetchScalarGridSpec(
            num_scalar_prefetch=0,
            grid=(C, nj),
            in_specs=[
                pl.BlockSpec((C, p_pad), lambda c, j: (0, 0)),   # logits (row form, resident)
                pl.BlockSpec((1, p_pad), lambda c, j: (0, 0)),   # labels (row form, resident)
                pl.BlockSpec((tj, C), lambda c, j: (j, 0)),      # logits (col form, pipelined)
                pl.BlockSpec((tj, 1), lambda c, j: (j, 0)),      # labels (col form, pipelined)
            ],
            out_specs=pl.BlockSpec((1, 1), lambda c, j: (0, 0)),
            scratch_shapes=[
                pltpu.VMEM((1, p_pad), jnp.float32),   # err_row
                pltpu.VMEM((1, p_pad), jnp.float32),   # fg_row
                pltpu.VMEM((1, p_pad), jnp.float32),   # r_acc (rank per pixel)
                pltpu.VMEM((1, p_pad), jnp.float32),   # cf_acc (fg prefix count per pixel)
                pltpu.VMEM((1, 1), jnp.float32),       # total
                pltpu.VMEM((1, 1), jnp.float32),       # count
            ],
        ),
        compiler_params=pltpu.CompilerParams(
            # both axes accumulate into scratch -> "arbitrary" (class-parallel
            # megacore split is traded away for the scalar-accumulator finalize)
            dimension_semantics=("arbitrary", "arbitrary"),
            vmem_limit_bytes=vmem_limit,
        ),
    )(logits_r, labels_r, logits_c, labels_c)
    return out[0, 0]


def _reference_numpy(pre, gt, ignore=0):
    """Pure-numpy reproduction of lovasz_softmax(softmax(pre), gt, ignore=ignore)."""
    pre = np.asarray(pre, np.float64)
    gt = np.asarray(gt)
    B, C, H, W = pre.shape
    x = pre - pre.max(axis=1, keepdims=True)
    ex = np.exp(x)
    probs = ex / ex.sum(axis=1, keepdims=True)
    probas = probs.transpose(0, 2, 3, 1).reshape(-1, C)
    labels = gt.reshape(-1)
    valid = labels != ignore
    vp, vl = probas[valid], labels[valid]
    if vl.size == 0:
        return 0.0
    losses = []
    for c in range(C):
        fg = (vl == c).astype(np.float64)
        if fg.sum() == 0:
            continue
        errors = np.abs(fg - vp[:, c])
        order = np.argsort(-errors, kind="stable")
        es, fs = errors[order], fg[order]
        gts = fs.sum()
        inter = gts - np.cumsum(fs)
        union = gts + np.cumsum(1.0 - fs)
        jac = 1.0 - inter / union
        grad = jac.copy()
        grad[1:] = jac[1:] - jac[:-1]
        losses.append(float(np.dot(es, grad)))
    return float(np.mean(losses)) if losses else 0.0


if __name__ == "__main__":
    key = jax.random.PRNGKey(0)
    k1, k2, k3, k4 = jax.random.split(key, 4)

    # Case 1: B=2, C=4, 16x16 (P = 512, lane-aligned)
    B, C, H, W = 2, 4, 16, 16
    pre = jax.random.normal(k1, (B, C, H, W), dtype=jnp.float32)
    gt = jax.random.randint(k2, (B, H, W), minval=0, maxval=C, dtype=jnp.int32)
    loss = jax.block_until_ready(lovasz_softmax_loss(pre, gt, ignore_label=0))
    ref = _reference_numpy(np.asarray(pre), np.asarray(gt), ignore=0)
    assert np.isfinite(float(loss)), "kernel produced non-finite loss"
    assert abs(float(loss) - ref) < 1e-4, f"case1 mismatch: kernel={float(loss)} ref={ref}"

    # Case 2: odd spatial size exercising the lane-padding path (P=100 -> 128)
    B2, C2, H2, W2 = 1, 3, 10, 10
    pre2 = jax.random.normal(k3, (B2, C2, H2, W2), dtype=jnp.float32)
    gt2 = jax.random.randint(k4, (B2, H2, W2), minval=0, maxval=C2, dtype=jnp.int32)
    loss2 = jax.block_until_ready(lovasz_softmax_loss(pre2, gt2, ignore_label=0))
    ref2 = _reference_numpy(np.asarray(pre2), np.asarray(gt2), ignore=0)
    assert np.isfinite(float(loss2)), "kernel produced non-finite loss (case 2)"
    assert abs(float(loss2) - ref2) < 1e-4, f"case2 mismatch: kernel={float(loss2)} ref={ref2}"

    print("KERNEL_OK")
</pallas_src>

<mosaic_0001>
module attributes {stable_mosaic.version = 11 : i64} {
  func.func @_lovasz_softmax_kernel(%arg0: i32, %arg1: i32, %arg2: memref<4x512xf32, #tpu.memory_space<vmem>>, %arg3: memref<1x512xi32, #tpu.memory_space<vmem>>, %arg4: memref<512x4xf32, #tpu.memory_space<vmem>>, %arg5: memref<512x1xi32, #tpu.memory_space<vmem>>, %arg6: memref<1x1xf32, #tpu.memory_space<vmem>>, %arg7: memref<1x512xf32, #tpu.memory_space<vmem>>, %arg8: memref<1x512xf32, #tpu.memory_space<vmem>>, %arg9: memref<1x512xf32, #tpu.memory_space<vmem>>, %arg10: memref<1x512xf32, #tpu.memory_space<vmem>>, %arg11: memref<1x1xf32, #tpu.memory_space<vmem>>, %arg12: memref<1x1xf32, #tpu.memory_space<vmem>>) attributes {dimension_semantics = [#tpu.dimension_semantics<arbitrary>, #tpu.dimension_semantics<arbitrary>], iteration_bounds = array<i64: 4, 1>, scalar_prefetch = 0 : i64, scratch_operands = 6 : i64, tpu.core_type = #tpu.core_type<tc>, window_params = [{pipeline_mode = #tpu.pipeline_mode<synchronous>, transform_indices = @transform_0, window_bounds = array<i64: 4, 512>}, {pipeline_mode = #tpu.pipeline_mode<synchronous>, transform_indices = @transform_1, window_bounds = array<i64: 1, 512>}, {transform_indices = @transform_2, window_bounds = array<i64: 512, 4>}, {transform_indices = @transform_3, window_bounds = array<i64: 512, 1>}, {pipeline_mode = #tpu.pipeline_mode<synchronous>, transform_indices = @transform_4, window_bounds = array<i64: 1, 1>}]} {
    %c0_i32 = arith.constant 0 : i32
    %0 = arith.cmpi eq, %arg0, %c0_i32 : i32
    %c0_i32_0 = arith.constant 0 : i32
    %1 = arith.cmpi eq, %arg1, %c0_i32_0 : i32
    %2 = arith.andi %0, %1 : i1
    %3 = arith.extui %2 : i1 to i32
    %c0_i32_1 = arith.constant 0 : i32
    %4 = arith.cmpi ne, %3, %c0_i32_1 : i32
    scf.if %4 {
      %cst_30 = arith.constant 0.000000e+00 : f32
      %102 = vector.broadcast %cst_30 : f32 to vector<1x1xf32>
      %c0_31 = arith.constant 0 : index
      %c0_32 = arith.constant 0 : index
      %103 = vector.load %arg11[%c0_31, %c0_32] : memref<1x1xf32, #tpu.memory_space<vmem>>, vector<1x1xf32>
      tpu.vector_store %arg11[%c0_31, %c0_32], %102 {strides = array<i32>} : memref<1x1xf32, #tpu.memory_space<vmem>>, vector<1x1xf32>,
      %cst_33 = arith.constant 0.000000e+00 : f32
      %104 = vector.broadcast %cst_33 : f32 to vector<1x1xf32>
      %c0_34 = arith.constant 0 : index
      %c0_35 = arith.constant 0 : index
      %105 = vector.load %arg12[%c0_34, %c0_35] : memref<1x1xf32, #tpu.memory_space<vmem>>, vector<1x1xf32>
      tpu.vector_store %arg12[%c0_34, %c0_35], %104 {strides = array<i32>} : memref<1x1xf32, #tpu.memory_space<vmem>>, vector<1x1xf32>,
    } else {
    }
    %c0_i32_2 = arith.constant 0 : i32
    %5 = arith.cmpi eq, %arg1, %c0_i32_2 : i32
    %6 = arith.extui %5 : i1 to i32
    %c0_i32_3 = arith.constant 0 : i32
    %7 = arith.cmpi ne, %6, %c0_i32_3 : i32
    scf.if %7 {
      %c0_30 = arith.constant 0 : index
      %c0_31 = arith.constant 0 : index
      %102 = vector.load %arg2[%c0_30, %c0_31] : memref<4x512xf32, #tpu.memory_space<vmem>>, vector<4x512xf32>
      %c0_32 = arith.constant 0 : index
      %c0_33 = arith.constant 0 : index
      %103 = vector.load %arg3[%c0_32, %c0_33] : memref<1x512xi32, #tpu.memory_space<vmem>>, vector<1x512xi32>
      %104 = vector.extract_strided_slice %102 {offsets = [0, 0], sizes = [1, 512], strides = [1, 1]} : vector<4x512xf32> to vector<1x512xf32>
      %105 = vector.extract_strided_slice %102 {offsets = [1, 0], sizes = [1, 512], strides = [1, 1]} : vector<4x512xf32> to vector<1x512xf32>
      %106 = vector.extract_strided_slice %102 {offsets = [2, 0], sizes = [1, 512], strides = [1, 1]} : vector<4x512xf32> to vector<1x512xf32>
      %107 = vector.extract_strided_slice %102 {offsets = [3, 0], sizes = [1, 512], strides = [1, 1]} : vector<4x512xf32> to vector<1x512xf32>
      %108 = arith.maximumf %104, %105 : vector<1x512xf32>
      %109 = arith.maximumf %108, %106 : vector<1x512xf32>
      %110 = arith.maximumf %109, %107 : vector<1x512xf32>
      %111 = arith.subf %104, %110 : vector<1x512xf32>
      %112 = math.exp %111 : vector<1x512xf32>
      %113 = arith.subf %105, %110 : vector<1x512xf32>
      %114 = math.exp %113 : vector<1x512xf32>
      %115 = arith.subf %106, %110 : vector<1x512xf32>
      %116 = math.exp %115 : vector<1x512xf32>
      %117 = arith.subf %107, %110 : vector<1x512xf32>
      %118 = math.exp %117 : vector<1x512xf32>
      %119 = arith.addf %112, %114 : vector<1x512xf32>
      %120 = arith.addf %119, %116 : vector<1x512xf32>
      %121 = arith.addf %120, %118 : vector<1x512xf32>
      %c0_i32_34 = arith.constant 0 : i32
      %122 = arith.cmpi eq, %arg0, %c0_i32_34 : i32
      %123 = arith.extui %122 : i1 to i32
      %124 = arith.sitofp %123 : i32 to f32
      %125 = vector.broadcast %124 : f32 to vector<1x512xf32>
      %126 = arith.mulf %112, %125 : vector<1x512xf32>
      %c1_i32_35 = arith.constant 1 : i32
      %127 = arith.cmpi eq, %arg0, %c1_i32_35 : i32
      %128 = arith.extui %127 : i1 to i32
      %129 = arith.sitofp %128 : i32 to f32
      %130 = vector.broadcast %129 : f32 to vector<1x512xf32>
      %131 = arith.mulf %114, %130 : vector<1x512xf32>
      %132 = arith.addf %126, %131 : vector<1x512xf32>
      %c2_i32_36 = arith.constant 2 : i32
      %133 = arith.cmpi eq, %arg0, %c2_i32_36 : i32
      %134 = arith.extui %133 : i1 to i32
      %135 = arith.sitofp %134 : i32 to f32
      %136 = vector.broadcast %135 : f32 to vector<1x512xf32>
      %137 = arith.mulf %116, %136 : vector<1x512xf32>
      %138 = arith.addf %132, %137 : vector<1x512xf32>
      %c3_i32_37 = arith.constant 3 : i32
      %139 = arith.cmpi eq, %arg0, %c3_i32_37 : i32
      %140 = arith.extui %139 : i1 to i32
      %141 = arith.sitofp %140 : i32 to f32
      %142 = vector.broadcast %141 : f32 to vector<1x512xf32>
      %143 = arith.mulf %118, %142 : vector<1x512xf32>
      %144 = arith.addf %138, %143 : vector<1x512xf32>
      %145 = arith.divf %144, %121 : vector<1x512xf32>
      %c0_i32_38 = arith.constant 0 : i32
      %146 = vector.broadcast %c0_i32_38 : i32 to vector<1x512xi32>
      %147 = arith.cmpi ne, %103, %146 : vector<1x512xi32>
      %148 = vector.broadcast %arg0 : i32 to vector<1x512xi32>
      %149 = arith.cmpi eq, %103, %148 : vector<1x512xi32>
      %150 = arith.andi %147, %149 : vector<1x512xi1>
      %cst_39 = arith.constant 1.000000e+00 : f32
      %cst_40 = arith.constant 0.000000e+00 : f32
      %151 = vector.broadcast %cst_39 : f32 to vector<1x512xf32>
      %152 = vector.broadcast %cst_40 : f32 to vector<1x512xf32>
      %153 = arith.select %150, %151, %152 : vector<1x512xi1>, vector<1x512xf32>
      %154 = arith.subf %153, %145 : vector<1x512xf32>
      %155 = math.absf %154 : vector<1x512xf32>
      %cst_41 = arith.constant -1.000000e+00 : f32
      %156 = vector.broadcast %cst_41 : f32 to vector<1x512xf32>
      %157 = arith.select %147, %155, %156 : vector<1x512xi1>, vector<1x512xf32>
      %c0_42 = arith.constant 0 : index
      %c0_43 = arith.constant 0 : index
      %158 = vector.load %arg7[%c0_42, %c0_43] : memref<1x512xf32, #tpu.memory_space<vmem>>, vector<1x512xf32>
      tpu.vector_store %arg7[%c0_42, %c0_43], %157 {strides = array<i32>} : memref<1x512xf32, #tpu.memory_space<vmem>>, vector<1x512xf32>,
      %c0_44 = arith.constant 0 : index
      %c0_45 = arith.constant 0 : index
      %159 = vector.load %arg8[%c0_44, %c0_45] : memref<1x512xf32, #tpu.memory_space<vmem>>, vector<1x512xf32>
      tpu.vector_store %arg8[%c0_44, %c0_45], %153 {strides = array<i32>} : memref<1x512xf32, #tpu.memory_space<vmem>>, vector<1x512xf32>,
      %cst_46 = arith.constant 0.000000e+00 : f32
      %160 = vector.broadcast %cst_46 : f32 to vector<1x512xf32>
      %c0_47 = arith.constant 0 : index
      %c0_48 = arith.constant 0 : index
      %161 = vector.load %arg9[%c0_47, %c0_48] : memref<1x512xf32, #tpu.memory_space<vmem>>, vector<1x512xf32>
      tpu.vector_store %arg9[%c0_47, %c0_48], %160 {strides = array<i32>} : memref<1x512xf32, #tpu.memory_space<vmem>>, vector<1x512xf32>,
      %cst_49 = arith.constant 0.000000e+00 : f32
      %162 = vector.broadcast %cst_49 : f32 to vector<1x512xf32>
      %c0_50 = arith.constant 0 : index
      %c0_51 = arith.constant 0 : index
      %163 = vector.load %arg10[%c0_50, %c0_51] : memref<1x512xf32, #tpu.memory_space<vmem>>, vector<1x512xf32>
      tpu.vector_store %arg10[%c0_50, %c0_51], %162 {strides = array<i32>} : memref<1x512xf32, #tpu.memory_space<vmem>>, vector<1x512xf32>,
    } else {
    }
    %c0 = arith.constant 0 : index
    %c0_4 = arith.constant 0 : index
    %8 = vector.load %arg4[%c0, %c0_4] : memref<512x4xf32, #tpu.memory_space<vmem>>, vector<512x4xf32>
    %c0_5 = arith.constant 0 : index
    %c0_6 = arith.constant 0 : index
    %9 = vector.load %arg5[%c0_5, %c0_6] : memref<512x1xi32, #tpu.memory_space<vmem>>, vector<512x1xi32>
    %10 = vector.extract_strided_slice %8 {offsets = [0, 0], sizes = [512, 1], strides = [1, 1]} : vector<512x4xf32> to vector<512x1xf32>
    %11 = vector.extract_strided_slice %8 {offsets = [0, 1], sizes = [512, 1], strides = [1, 1]} : vector<512x4xf32> to vector<512x1xf32>
    %12 = vector.extract_strided_slice %8 {offsets = [0, 2], sizes = [512, 1], strides = [1, 1]} : vector<512x4xf32> to vector<512x1xf32>
    %13 = vector.extract_strided_slice %8 {offsets = [0, 3], sizes = [512, 1], strides = [1, 1]} : vector<512x4xf32> to vector<512x1xf32>
    %14 = arith.maximumf %10, %11 : vector<512x1xf32>
    %15 = arith.maximumf %14, %12 : vector<512x1xf32>
    %16 = arith.maximumf %15, %13 : vector<512x1xf32>
    %17 = arith.subf %10, %16 : vector<512x1xf32>
    %18 = math.exp %17 : vector<512x1xf32>
    %19 = arith.subf %11, %16 : vector<512x1xf32>
    %20 = math.exp %19 : vector<512x1xf32>
    %21 = arith.subf %12, %16 : vector<512x1xf32>
    %22 = math.exp %21 : vector<512x1xf32>
    %23 = arith.subf %13, %16 : vector<512x1xf32>
    %24 = math.exp %23 : vector<512x1xf32>
    %25 = arith.addf %18, %20 : vector<512x1xf32>
    %26 = arith.addf %25, %22 : vector<512x1xf32>
    %27 = arith.addf %26, %24 : vector<512x1xf32>
    %c0_i32_7 = arith.constant 0 : i32
    %28 = arith.cmpi eq, %arg0, %c0_i32_7 : i32
    %29 = arith.extui %28 : i1 to i32
    %30 = arith.sitofp %29 : i32 to f32
    %31 = vector.broadcast %30 : f32 to vector<512x1xf32>
    %32 = arith.mulf %18, %31 : vector<512x1xf32>
    %c1_i32 = arith.constant 1 : i32
    %33 = arith.cmpi eq, %arg0, %c1_i32 : i32
    %34 = arith.extui %33 : i1 to i32
    %35 = arith.sitofp %34 : i32 to f32
    %36 = vector.broadcast %35 : f32 to vector<512x1xf32>
    %37 = arith.mulf %20, %36 : vector<512x1xf32>
    %38 = arith.addf %32, %37 : vector<512x1xf32>
    %c2_i32 = arith.constant 2 : i32
    %39 = arith.cmpi eq, %arg0, %c2_i32 : i32
    %40 = arith.extui %39 : i1 to i32
    %41 = arith.sitofp %40 : i32 to f32
    %42 = vector.broadcast %41 : f32 to vector<512x1xf32>
    %43 = arith.mulf %22, %42 : vector<512x1xf32>
    %44 = arith.addf %38, %43 : vector<512x1xf32>
    %c3_i32 = arith.constant 3 : i32
    %45 = arith.cmpi eq, %arg0, %c3_i32 : i32
    %46 = arith.extui %45 : i1 to i32
    %47 = arith.sitofp %46 : i32 to f32
    %48 = vector.broadcast %47 : f32 to vector<512x1xf32>
    %49 = arith.mulf %24, %48 : vector<512x1xf32>
    %50 = arith.addf %44, %49 : vector<512x1xf32>
    %51 = arith.divf %50, %27 : vector<512x1xf32>
    %c0_i32_8 = arith.constant 0 : i32
    %52 = vector.broadcast %c0_i32_8 : i32 to vector<512x1xi32>
    %53 = arith.cmpi ne, %9, %52 : vector<512x1xi32>
    %54 = vector.broadcast %arg0 : i32 to vector<512x1xi32>
    %55 = arith.cmpi eq, %9, %54 : vector<512x1xi32>
    %56 = arith.andi %53, %55 : vector<512x1xi1>
    %cst = arith.constant 1.000000e+00 : f32
    %cst_9 = arith.constant 0.000000e+00 : f32
    %57 = vector.broadcast %cst : f32 to vector<512x1xf32>
    %58 = vector.broadcast %cst_9 : f32 to vector<512x1xf32>
    %59 = arith.select %56, %57, %58 : vector<512x1xi1>, vector<512x1xf32>
    %60 = arith.subf %59, %51 : vector<512x1xf32>
    %61 = math.absf %60 : vector<512x1xf32>
    %cst_10 = arith.constant -1.000000e+00 : f32
    %62 = vector.broadcast %cst_10 : f32 to vector<512x1xf32>
    %63 = arith.select %53, %61, %62 : vector<512x1xi1>, vector<512x1xf32>
    %c0_11 = arith.constant 0 : index
    %c0_12 = arith.constant 0 : index
    %64 = vector.load %arg7[%c0_11, %c0_12] : memref<1x512xf32, #tpu.memory_space<vmem>>, vector<1x512xf32>
    %c512_i32 = arith.constant 512 : i32
    %65 = arith.muli %arg1, %c512_i32 : i32
    %66 = tpu.iota {dimensions = array<i32: 0>} : vector<512x512xi32>
    %67 = vector.broadcast %65 : i32 to vector<512x512xi32>
    %68 = arith.addi %66, %67 : vector<512x512xi32>
    %69 = tpu.iota {dimensions = array<i32: 1>} : vector<512x512xi32>
    %70 = vector.broadcast %63 : vector<512x1xf32> to vector<512x512xf32>
    %71 = vector.broadcast %64 : vector<1x512xf32> to vector<512x512xf32>
    %72 = arith.cmpf ogt, %70, %71 : vector<512x512xf32>
    %73 = vector.broadcast %63 : vector<512x1xf32> to vector<512x512xf32>
    %74 = vector.broadcast %64 : vector<1x512xf32> to vector<512x512xf32>
    %75 = arith.cmpf oeq, %73, %74 : vector<512x512xf32>
    %76 = arith.cmpi slt, %68, %69 : vector<512x512xi32>
    %77 = arith.andi %75, %76 : vector<512x512xi1>
    %78 = arith.ori %72, %77 : vector<512x512xi1>
    %cst_13 = arith.constant 1.000000e+00 : f32
    %cst_14 = arith.constant 0.000000e+00 : f32
    %79 = vector.broadcast %cst_13 : f32 to vector<512x512xf32>
    %80 = vector.broadcast %cst_14 : f32 to vector<512x512xf32>
    %81 = arith.select %78, %79, %80 : vector<512x512xi1>, vector<512x512xf32>
    %c0_15 = arith.constant 0 : index
    %c0_16 = arith.constant 0 : index
    %82 = vector.load %arg9[%c0_15, %c0_16] : memref<1x512xf32, #tpu.memory_space<vmem>>, vector<1x512xf32>
    %cst_17 = arith.constant dense<0.000000e+00> : vector<512xf32>
    %83 = vector.multi_reduction <add>, %81, %cst_17 [0] : vector<512x512xf32> to vector<512xf32>
    %84 = vector.shape_cast %83 : vector<512xf32> to vector<1x512xf32>
    %85 = arith.addf %82, %84 : vector<1x512xf32>
    %c0_18 = arith.constant 0 : index
    %c0_19 = arith.constant 0 : index
    %86 = vector.load %arg9[%c0_18, %c0_19] : memref<1x512xf32, #tpu.memory_space<vmem>>, vector<1x512xf32>
    tpu.vector_store %arg9[%c0_18, %c0_19], %85 {strides = array<i32>} : memref<1x512xf32, #tpu.memory_space<vmem>>, vector<1x512xf32>,
    %c0_20 = arith.constant 0 : index
    %c0_21 = arith.constant 0 : index
    %87 = vector.load %arg10[%c0_20, %c0_21] : memref<1x512xf32, #tpu.memory_space<vmem>>, vector<1x512xf32>
    %88 = vector.broadcast %59 : vector<512x1xf32> to vector<512x512xf32>
    %89 = arith.mulf %81, %88 : vector<512x512xf32>
    %cst_22 = arith.constant dense<0.000000e+00> : vector<512xf32>
    %90 = vector.multi_reduction <add>, %89, %cst_22 [0] : vector<512x512xf32> to vector<512xf32>
    %91 = vector.shape_cast %90 : vector<512xf32> to vector<1x512xf32>
    %92 = arith.addf %87, %91 : vector<1x512xf32>
    %c0_23 = arith.constant 0 : index
    %c0_24 = arith.constant 0 : index
    %93 = vector.load %arg10[%c0_23, %c0_24] : memref<1x512xf32, #tpu.memory_space<vmem>>, vector<1x512xf32>
    tpu.vector_store %arg10[%c0_23, %c0_24], %92 {strides = array<i32>} : memref<1x512xf32, #tpu.memory_space<vmem>>, vector<1x512xf32>,
    %c0_i32_25 = arith.constant 0 : i32
    %94 = arith.cmpi eq, %arg1, %c0_i32_25 : i32
    %95 = arith.extui %94 : i1 to i32
    %c0_i32_26 = arith.constant 0 : i32
    %96 = arith.cmpi ne, %95, %c0_i32_26 : i32
    scf.if %96 {
      %c0_30 = arith.constant 0 : index
      %c0_31 = arith.constant 0 : index
      %102 = vector.load %arg7[%c0_30, %c0_31] : memref<1x512xf32, #tpu.memory_space<vmem>>, vector<1x512xf32>
      %c0_32 = arith.constant 0 : index
      %c0_33 = arith.constant 0 : index
      %103 = vector.load %arg8[%c0_32, %c0_33] : memref<1x512xf32, #tpu.memory_space<vmem>>, vector<1x512xf32>
      %cst_34 = arith.constant dense<0.000000e+00> : vector<1xf32>
      %104 = vector.multi_reduction <add>, %103, %cst_34 [1] : vector<1x512xf32> to vector<1xf32>
      %105 = vector.shape_cast %104 : vector<1xf32> to vector<1x1xf32>
      %c0_35 = arith.constant 0 : index
      %c0_36 = arith.constant 0 : index
      %106 = vector.load %arg9[%c0_35, %c0_36] : memref<1x512xf32, #tpu.memory_space<vmem>>, vector<1x512xf32>
      %c0_37 = arith.constant 0 : index
      %c0_38 = arith.constant 0 : index
      %107 = vector.load %arg10[%c0_37, %c0_38] : memref<1x512xf32, #tpu.memory_space<vmem>>, vector<1x512xf32>
      %108 = arith.addf %107, %103 : vector<1x512xf32>
      %109 = vector.broadcast %105 : vector<1x1xf32> to vector<1x512xf32>
      %110 = arith.subf %109, %108 : vector<1x512xf32>
      %cst_39 = arith.constant 1.000000e+00 : f32
      %111 = vector.broadcast %cst_39 : f32 to vector<1x512xf32>
      %112 = arith.addf %106, %111 : vector<1x512xf32>
      %113 = vector.broadcast %105 : vector<1x1xf32> to vector<1x512xf32>
      %114 = arith.addf %113, %112 : vector<1x512xf32>
      %115 = arith.subf %114, %108 : vector<1x512xf32>
      %116 = arith.divf %110, %115 : vector<1x512xf32>
      %cst_40 = arith.constant 1.000000e+00 : f32
      %117 = vector.broadcast %cst_40 : f32 to vector<1x512xf32>
      %118 = arith.subf %117, %116 : vector<1x512xf32>
      %119 = arith.subf %108, %103 : vector<1x512xf32>
      %120 = vector.broadcast %105 : vector<1x1xf32> to vector<1x512xf32>
      %121 = arith.addf %120, %106 : vector<1x512xf32>
      %122 = arith.subf %121, %119 : vector<1x512xf32>
      %cst_41 = arith.constant 0.000000e+00 : f32
      %123 = vector.broadcast %cst_41 : f32 to vector<1x512xf32>
      %124 = arith.cmpf ogt, %106, %123 : vector<1x512xf32>
      %125 = vector.broadcast %105 : vector<1x1xf32> to vector<1x512xf32>
      %126 = arith.subf %125, %119 : vector<1x512xf32>
      %127 = arith.divf %126, %122 : vector<1x512xf32>
      %cst_42 = arith.constant 1.000000e+00 : f32
      %128 = vector.broadcast %cst_42 : f32 to vector<1x512xf32>
      %129 = arith.subf %128, %127 : vector<1x512xf32>
      %cst_43 = arith.constant 0.000000e+00 : f32
      %130 = vector.broadcast %cst_43 : f32 to vector<1x512xf32>
      %131 = arith.select %124, %129, %130 : vector<1x512xi1>, vector<1x512xf32>
      %132 = arith.subf %118, %131 : vector<1x512xf32>
      %cst_44 = arith.constant 0.000000e+00 : f32
      %133 = vector.broadcast %cst_44 : f32 to vector<1x512xf32>
      %134 = arith.cmpf oge, %102, %133 : vector<1x512xf32>
      %cst_45 = arith.constant 0.000000e+00 : f32
      %135 = vector.broadcast %cst_45 : f32 to vector<1x512xf32>
      %136 = arith.select %134, %102, %135 : vector<1x512xi1>, vector<1x512xf32>
      %137 = arith.mulf %136, %132 : vector<1x512xf32>
      %cst_46 = arith.constant dense<0.000000e+00> : vector<1xf32>
      %138 = vector.multi_reduction <add>, %137, %cst_46 [1] : vector<1x512xf32> to vector<1xf32>
      %139 = vector.shape_cast %138 : vector<1xf32> to vector<1x1xf32>
      %cst_47 = arith.constant 0.000000e+00 : f32
      %140 = vector.broadcast %cst_47 : f32 to vector<1x1xf32>
      %141 = arith.cmpf ogt, %105, %140 : vector<1x1xf32>
      %c0_48 = arith.constant 0 : index
      %c0_49 = arith.constant 0 : index
      %142 = vector.load %arg11[%c0_48, %c0_49] : memref<1x1xf32, #tpu.memory_space<vmem>>, vector<1x1xf32>
      %cst_50 = arith.constant 0.000000e+00 : f32
      %143 = vector.broadcast %cst_50 : f32 to vector<1x1xf32>
      %144 = arith.select %141, %139, %143 : vector<1x1xi1>, vector<1x1xf32>
      %145 = arith.addf %142, %144 : vector<1x1xf32>
      %c0_51 = arith.constant 0 : index
      %c0_52 = arith.constant 0 : index
      %146 = vector.load %arg11[%c0_51, %c0_52] : memref<1x1xf32, #tpu.memory_space<vmem>>, vector<1x1xf32>
      tpu.vector_store %arg11[%c0_51, %c0_52], %145 {strides = array<i32>} : memref<1x1xf32, #tpu.memory_space<vmem>>, vector<1x1xf32>,
      %c0_53 = arith.constant 0 : index
      %c0_54 = arith.constant 0 : index
      %147 = vector.load %arg12[%c0_53, %c0_54] : memref<1x1xf32, #tpu.memory_space<vmem>>, vector<1x1xf32>
      %cst_55 = arith.constant 1.000000e+00 : f32
      %cst_56 = arith.constant 0.000000e+00 : f32
      %148 = vector.broadcast %cst_55 : f32 to vector<1x1xf32>
      %149 = vector.broadcast %cst_56 : f32 to vector<1x1xf32>
      %150 = arith.select %141, %148, %149 : vector<1x1xi1>, vector<1x1xf32>
      %151 = arith.addf %147, %150 : vector<1x1xf32>
      %c0_57 = arith.constant 0 : index
      %c0_58 = arith.constant 0 : index
      %152 = vector.load %arg12[%c0_57, %c0_58] : memref<1x1xf32, #tpu.memory_space<vmem>>, vector<1x1xf32>
      tpu.vector_store %arg12[%c0_57, %c0_58], %151 {strides = array<i32>} : memref<1x1xf32, #tpu.memory_space<vmem>>, vector<1x1xf32>,
    } else {
    }
    %c3_i32_27 = arith.constant 3 : i32
    %97 = arith.cmpi eq, %arg0, %c3_i32_27 : i32
    %c0_i32_28 = arith.constant 0 : i32
    %98 = arith.cmpi eq, %arg1, %c0_i32_28 : i32
    %99 = arith.andi %97, %98 : i1
    %100 = arith.extui %99 : i1 to i32
    %c0_i32_29 = arith.constant 0 : i32
    %101 = arith.cmpi ne, %100, %c0_i32_29 : i32
    scf.if %101 {
      %c0_30 = arith.constant 0 : index
      %c0_31 = arith.constant 0 : index
      %102 = vector.load %arg12[%c0_30, %c0_31] : memref<1x1xf32, #tpu.memory_space<vmem>>, vector<1x1xf32>
      %cst_32 = arith.constant 0.000000e+00 : f32
      %103 = vector.broadcast %cst_32 : f32 to vector<1x1xf32>
      %104 = arith.cmpf ogt, %102, %103 : vector<1x1xf32>
      %c0_33 = arith.constant 0 : index
      %c0_34 = arith.constant 0 : index
      %105 = vector.load %arg11[%c0_33, %c0_34] : memref<1x1xf32, #tpu.memory_space<vmem>>, vector<1x1xf32>
      %cst_35 = arith.constant 1.000000e+00 : f32
      %106 = vector.broadcast %cst_35 : f32 to vector<1x1xf32>
      %107 = arith.maximumf %102, %106 : vector<1x1xf32>
      %108 = arith.divf %105, %107 : vector<1x1xf32>
      %cst_36 = arith.constant 0.000000e+00 : f32
      %109 = vector.broadcast %cst_36 : f32 to vector<1x1xf32>
      %110 = arith.select %104, %108, %109 : vector<1x1xi1>, vector<1x1xf32>
      %c0_37 = arith.constant 0 : index
      %c0_38 = arith.constant 0 : index
      %111 = vector.load %arg6[%c0_37, %c0_38] : memref<1x1xf32, #tpu.memory_space<vmem>>, vector<1x1xf32>
      tpu.vector_store %arg6[%c0_37, %c0_38], %110 {strides = array<i32>} : memref<1x1xf32, #tpu.memory_space<vmem>>, vector<1x1xf32>,
    } else {
    }
    return
  }
  func.func @transform_0(%arg0: i32, %arg1: i32) -> (i32, i32) {
    %c0_i32 = arith.constant 0 : i32
    %c0_i32_0 = arith.constant 0 : i32
    %c0_i32_1 = arith.constant 0 : i32
    return %c0_i32, %c0_i32_0 : i32, i32
  }
  func.func @transform_1(%arg0: i32, %arg1: i32) -> (i32, i32) {
    %c0_i32 = arith.constant 0 : i32
    %c0_i32_0 = arith.constant 0 : i32
    %c0_i32_1 = arith.constant 0 : i32
    return %c0_i32, %c0_i32_0 : i32, i32
  }
  func.func @transform_2(%arg0: i32, %arg1: i32) -> (i32, i32) {
    %c0_i32 = arith.constant 0 : i32
    %c0_i32_0 = arith.constant 0 : i32
    return %arg1, %c0_i32 : i32, i32
  }
  func.func @transform_3(%arg0: i32, %arg1: i32) -> (i32, i32) {
    %c0_i32 = arith.constant 0 : i32
    %c0_i32_0 = arith.constant 0 : i32
    return %arg1, %c0_i32 : i32, i32
  }
  func.func @transform_4(%arg0: i32, %arg1: i32) -> (i32, i32) {
    %c0_i32 = arith.constant 0 : i32
    %c0_i32_0 = arith.constant 0 : i32
    %c0_i32_1 = arith.constant 0 : i32
    return %c0_i32, %c0_i32_0 : i32, i32
  }
}

</mosaic_0001>

<llo_original>
// kernel: tpu_custom_call.1
$region0: #{tpu_custom_call.1}
  #allocation0 [shape = 'u32[]', space=smem, size = 0x4, offset = 0x4, fixed_abs, tag = 'smem constant byte address 0x4 - core index']
  #allocation1 [shape = 'u32[144,128]{1,0:T(1,128)}', space=vmem, size = 0x12000, scoped, tag = 'internal scratch']
  #allocation2 [shape = 'f32[1,512]{1,0:T(1,128)}', space=vmem, size = 0x800, scoped, tag = 'scratch operand']
  #allocation3 [shape = 'f32[1,512]{1,0:T(1,128)}', space=vmem, size = 0x800, scoped, tag = 'scratch operand']
  #allocation4 [shape = 'f32[1,512]{1,0:T(1,128)}', space=vmem, size = 0x800, scoped, tag = 'scratch operand']
  #allocation5 [shape = 'f32[1,512]{1,0:T(1,128)}', space=vmem, size = 0x800, scoped, tag = 'scratch operand']
  #allocation6 [shape = 'f32[1,1]{1,0:T(1,128)}', space=vmem, size = 0x200, scoped, tag = 'scratch operand']
  #allocation7 [shape = 'f32[1,1]{1,0:T(1,128)}', space=vmem, size = 0x200, scoped, tag = 'scratch operand']
  %s0 = inlined_call_operand.vmem [shape: f32[4,512], index: 0, kind: input, shape index: {}]
  %s1 = inlined_call_operand.vmem [shape: s32[1,512], index: 1, kind: input, shape index: {}]
  %s2 = inlined_call_operand.vmem [shape: f32[512,4], index: 2, kind: input, shape index: {}]
  %s3 = inlined_call_operand.vmem [shape: s32[512,1], index: 3, kind: input, shape index: {}]
  %s4 = inlined_call_operand.hbm [shape: f32[1,1], index: 4, kind: output, shape index: {}]
  %s5 = sld [smem:[#allocation0]]
  $region65: #{tpu_custom_call.1} parent=0
    _
  %s7 = ssub.s32 1, %s5
  %s8 = scalar_select 0, %s7, %s5
  $region1: #{tpu_custom_call.1} parent=0
    #allocation8 [shape = 'u8[512]{0}', space=vmem, size = 0x400, scoped, tag = 'output window, operand 0, single buffered']
    #allocation9 [shape = 's32[2]{0}', space=sflag, size = 0x8, scoped, tag = 'scoped memory for tpu_custom_call.1']
    %9 = vsyncpa [#allocation9], 0
    loop: start=0, step=1, limit=6
    $region2: #{tpu_custom_call.1} parent=1 // loop_pre_header
      _
    $region3: #{tpu_custom_call.1} parent=1 // loop_header
      %s11 = sphi 0, %s15
      %p12 = scmp.ge.s32.totalorder %s11, 6
      %s18 = sphi 0, %s30
      %s19 = sphi 0, %s26
      %s20 = sphi 0, %s18
      %s21 = sphi 0, %s19
      %s22 = sphi 0, %s20
      %s23 = sphi 0, %s21
      %s31 = sphi 0, %s31
      %s33 = sphi 0, %s31
      %s34 = sphi 0, %s33
      %s48 = sphi 0, %s34
      %s52 = sphi 0, %s52
      %s54 = sphi 0, %s52
      %s55 = sphi 0, %s54
      %s69 = sphi 0, %s55
      %s75 = sphi 0, %s77
      %s78 = sphi 0, %s75
      %s79 = sphi 0, %s78
      %s95 = sphi 0, %s79
      %s101 = sphi 0, %s103
      %s104 = sphi 0, %s101
      %s105 = sphi 0, %s104
      %s121 = sphi 0, %s105
      %s125 = sphi 0, %s125
      %s127 = sphi 0, %s125
      %s128 = sphi 0, %s127
      %s142 = sphi 0, %s128
    $region4: #{tpu_custom_call.1} parent=1 // loop_header_branch
      %14 = sbr.rel (%p12) target = $region8
    $region5: #{tpu_custom_call.1} parent=1 // loop_body
      %s16 = ssub.s32 %s11, 1
      %s17 = ssub.s32 %s11, 2
      %s24 = sadd.s32 1, %s19
      %p25 = scmp.ge.s32.totalorder %s24, 1
      %s26 = scalar_select %p25, 0, %s24
      %s27 = sadd.s32 1, %s18
      %s28 = scalar_select %p25, %s27, %s18
      %p29 = scmp.ge.s32.totalorder %s28, 4
      %s30 = scalar_select %p29, 0, %s28
      %s32 = sadd.s32 %s31, 1
      %p35 = scmp.eq.s32.totalorder %s11, 3
      %p36 = scmp.ne.s32.totalorder %s31, %s33
      %p37 = scmp.eq.s32.totalorder %s11, 0
      %p38 = por %p36, %p37
      %p39 = scmp.ne.s32.totalorder %s31, %s33
      %p40 = scmp.eq.s32.totalorder %s16, 3
      %p41 = por %p39, %p40
      %p42 = scmp.ne.s32.totalorder %s33, %s34
      %p43 = scmp.eq.s32.totalorder %s16, 0
      %p44 = por %p42, %p43
      %p45 = scmp.ne.s32.totalorder %s33, %s34
      %p46 = scmp.eq.s32.totalorder %s17, 3
      %p47 = por %p45, %p46
      %p49 = scmp.ne.s32.totalorder %s34, %s48
      %p50 = scmp.eq.s32.totalorder %s17, 0
      %p51 = por %p49, %p50
      %s53 = sadd.s32 %s52, 1
      %p56 = scmp.eq.s32.totalorder %s11, 3
      %p57 = scmp.ne.s32.totalorder %s52, %s54
      %p58 = scmp.eq.s32.totalorder %s11, 0
      %p59 = por %p57, %p58
      %p60 = scmp.ne.s32.totalorder %s52, %s54
      %p61 = scmp.eq.s32.totalorder %s16, 3
      %p62 = por %p60, %p61
      %p63 = scmp.ne.s32.totalorder %s54, %s55
      %p64 = scmp.eq.s32.totalorder %s16, 0
      %p65 = por %p63, %p64
      %p66 = scmp.ne.s32.totalorder %s54, %s55
      %p67 = scmp.eq.s32.totalorder %s17, 3
      %p68 = por %p66, %p67
      %p70 = scmp.ne.s32.totalorder %s55, %s69
      %p71 = scmp.eq.s32.totalorder %s17, 0
      %p72 = por %p70, %p71
      %s73 = ssub.s32 %s19, %s26
      %p74 = scmp.eq.s32.totalorder %s73, 0
      %s76 = sadd.s32 %s75, 1
      %s77 = scalar_select %p74, %s75, %s76
      %p80 = pneg %p74
      %p81 = scmp.eq.s32.totalorder %s11, 3
      %p82 = por %p80, %p81
      %p83 = scmp.ne.s32.totalorder %s75, %s78
      %p84 = scmp.eq.s32.totalorder %s11, 0
      %p85 = por %p83, %p84
      %p86 = scmp.ne.s32.totalorder %s75, %s78
      %p87 = scmp.eq.s32.totalorder %s16, 3
      %p88 = por %p86, %p87
      %p89 = scmp.ne.s32.totalorder %s78, %s79
      %p90 = scmp.eq.s32.totalorder %s16, 0
      %p91 = por %p89, %p90
      %p92 = scmp.ne.s32.totalorder %s78, %s79
      %p93 = scmp.eq.s32.totalorder %s17, 3
      %p94 = por %p92, %p93
      %p96 = scmp.ne.s32.totalorder %s79, %s95
      %p97 = scmp.eq.s32.totalorder %s17, 0
      %p98 = por %p96, %p97
      %s99 = ssub.s32 %s19, %s26
      %p100 = scmp.eq.s32.totalorder %s99, 0
      %s102 = sadd.s32 %s101, 1
      %s103 = scalar_select %p100, %s101, %s102
      %p106 = pneg %p100
      %p107 = scmp.eq.s32.totalorder %s11, 3
      %p108 = por %p106, %p107
      %p109 = scmp.ne.s32.totalorder %s101, %s104
      %p110 = scmp.eq.s32.totalorder %s11, 0
      %p111 = por %p109, %p110
      %p112 = scmp.ne.s32.totalorder %s101, %s104
      %p113 = scmp.eq.s32.totalorder %s16, 3
      %p114 = por %p112, %p113
      %p115 = scmp.ne.s32.totalorder %s104, %s105
      %p116 = scmp.eq.s32.totalorder %s16, 0
      %p117 = por %p115, %p116
      %p118 = scmp.ne.s32.totalorder %s104, %s105
      %p119 = scmp.eq.s32.totalorder %s17, 3
      %p120 = por %p118, %p119
      %p122 = scmp.ne.s32.totalorder %s105, %s121
      %p123 = scmp.eq.s32.totalorder %s17, 0
      %p124 = por %p122, %p123
      %s126 = sadd.s32 %s125, 1
      %p129 = scmp.eq.s32.totalorder %s11, 3
      %p130 = scmp.ne.s32.totalorder %s125, %s127
      %p131 = scmp.eq.s32.totalorder %s11, 0
      %p132 = por %p130, %p131
      %p133 = scmp.ne.s32.totalorder %s125, %s127
      %p134 = scmp.eq.s32.totalorder %s16, 3
      %p135 = por %p133, %p134
      %p136 = scmp.ne.s32.totalorder %s127, %s128
      %p137 = scmp.eq.s32.totalorder %s16, 0
      %p138 = por %p136, %p137
      %p139 = scmp.ne.s32.totalorder %s127, %s128
      %p140 = scmp.eq.s32.totalorder %s17, 3
      %p141 = por %p139, %p140
      %p143 = scmp.ne.s32.totalorder %s128, %s142
      %p144 = scmp.eq.s32.totalorder %s17, 0
      %p145 = por %p143, %p144
      %p146 = scmp.le.s32.totalorder 1, %s11
      %p147 = scmp.lt.s32.totalorder %s11, 5
      %p148 = pnand %p146, %p147
      %p149 = pneg %p148
      // Predicated region
      $region9: #{tpu_custom_call.1} parent=5 // pred_check
        _
      $region10: #{tpu_custom_call.1} parent=5 // pred_check_branch
        %151 = sbr.rel (%p148) target = $region12
      $region11: #{tpu_custom_call.1} parent=5 // pred_region
        %s152 = ssub.s32 %s11, 1
        // Predicated region
        $region13: #{tpu_custom_call.1} parent=11 // pred_check
          %p153 = pneg %p44
        $region14: #{tpu_custom_call.1} parent=11 // pred_check_branch
          %155 = sbr.rel (%p153) target = $region16
        $region15: #{tpu_custom_call.1} parent=11 // pred_region
          _
        $region16: #{tpu_custom_call.1} parent=11 // pred_fallthru
          _
        // Predicated region
        $region17: #{tpu_custom_call.1} parent=11 // pred_check
          %p156 = pneg %p65
        $region18: #{tpu_custom_call.1} parent=11 // pred_check_branch
          %158 = sbr.rel (%p156) target = $region20
        $region19: #{tpu_custom_call.1} parent=11 // pred_region
          _
        $region20: #{tpu_custom_call.1} parent=11 // pred_fallthru
          _
        // Predicated region
        $region21: #{tpu_custom_call.1} parent=11 // pred_check
          %p159 = pneg %p91
        $region22: #{tpu_custom_call.1} parent=11 // pred_check_branch
          %161 = sbr.rel (%p159) target = $region24
        $region23: #{tpu_custom_call.1} parent=11 // pred_region
          %s162 = smul.u32 64, %s21
          %p163 = scmp.lt.s32.totalorder %s162, 63
          %s164 = scalar_select %p163, %s162, 63
          %s165 = smul.addr %s164, 8
          %s166 = scalar_lea.vmem %s2, %s165
          %s167 = smul.u32 64, %s21
        $region24: #{tpu_custom_call.1} parent=11 // pred_fallthru
          _
        // Predicated region
        $region25: #{tpu_custom_call.1} parent=11 // pred_check
          %p168 = pneg %p117
        $region26: #{tpu_custom_call.1} parent=11 // pred_check_branch
          %170 = sbr.rel (%p168) target = $region28
        $region27: #{tpu_custom_call.1} parent=11 // pred_region
          %s171 = smul.u32 64, %s21
          %p172 = scmp.lt.s32.totalorder %s171, 63
          %s173 = scalar_select %p172, %s171, 63
          %s174 = smul.addr %s173, 8
          %s175 = scalar_lea.vmem %s3, %s174
          %s176 = smul.u32 64, %s21
        $region28: #{tpu_custom_call.1} parent=11 // pred_fallthru
          _
      $region12: #{tpu_custom_call.1} parent=5 // pred_fallthru
        _
      %p177 = scmp.lt.s32.totalorder %s11, 4
      // Predicated region
      $region29: #{tpu_custom_call.1} parent=5 // pred_check
        %p178 = pneg %p177
      $region30: #{tpu_custom_call.1} parent=5 // pred_check_branch
        %180 = sbr.rel (%p178) target = $region32
      $region31: #{tpu_custom_call.1} parent=5 // pred_region
        _
      $region32: #{tpu_custom_call.1} parent=5 // pred_fallthru
        _
      %p181 = scmp.le.s32.totalorder 1, %s11
      %p182 = scmp.lt.s32.totalorder %s11, 5
      %p183 = pnand %p181, %p182
      %p184 = pneg %p183
      // Predicated region
      $region33: #{tpu_custom_call.1} parent=5 // pred_check
        _
      $region34: #{tpu_custom_call.1} parent=5 // pred_check_branch
        %186 = sbr.rel (%p183) target = $region36
      $region35: #{tpu_custom_call.1} parent=5 // pred_region
        %s187 = ssub.s32 %s11, 1
        %p188 = pneg %p44
        %p189 = pneg %p41
        %p190 = pneg %p65
        %p191 = pneg %p62
        %s192 = smul.u32 64, %s21
        %p193 = scmp.lt.s32.totalorder %s192, 63
        %s194 = scalar_select %p193, %s192, 63
        %s195 = smul.addr %s194, 8
        %s196 = scalar_lea.vmem %s2, %s195
        %p197 = pneg %p91
        %p198 = pneg %p88
        %s199 = smul.u32 64, %s21
        %p200 = scmp.lt.s32.totalorder %s199, 63
        %s201 = scalar_select %p200, %s199, 63
        %s202 = smul.addr %s201, 8
        %s203 = scalar_lea.vmem %s3, %s202
        %p204 = pneg %p117
        %p205 = pneg %p114
        %p206 = pneg %p138
        %p207 = pneg %p135
        %s208 = smul.u32 64, %s21
        %p209 = scmp.lt.s32.totalorder %s208, 63
        %s210 = scalar_select %p209, %s208, 63
        %s211 = smul.addr %s210, 8
        %s212 = scalar_lea.vmem %s2, %s211
        %s213 = smul.u32 64, %s21
        %s214 = smul.u32 64, %s21
        %p215 = scmp.lt.s32.totalorder %s214, 63
        %s216 = scalar_select %p215, %s214, 63
        %s217 = smul.addr %s216, 8
        %s218 = scalar_lea.vmem %s3, %s217
        %s219 = smul.u32 64, %s21
        %p220 = scmp.eq.s32.totalorder %s20, 0
        %p221 = scmp.eq.s32.totalorder %s21, 0
        %p222 = pnand %p220, %p221
        %p223 = pneg %p222
        // Predicated region
        $region37: #{tpu_custom_call.1} parent=35 // pred_check
          _
        $region38: #{tpu_custom_call.1} parent=35 // pred_check_branch
          %225 = sbr.rel (%p222) target = $region40
        $region39: #{tpu_custom_call.1} parent=35 // pred_region
          %vm226 = vcmask 0
          %227 = vst.msk [vmem:[#allocation6] sm:$0x1] %vm226, 0.0
          %228 = vst.msk [vmem:[#allocation7] sm:$0x1] %vm226, 0.0
        $region40: #{tpu_custom_call.1} parent=35 // pred_fallthru
          _
        // Predicated region
        $region41: #{tpu_custom_call.1} parent=35 // pred_check
          %p229 = pneg %p221
        $region42: #{tpu_custom_call.1} parent=35 // pred_check_branch
          %231 = sbr.rel (%p229) target = $region44
        $region43: #{tpu_custom_call.1} parent=35 // pred_region
          %v232 = vld [vmem:[%s0] sm:$0xff]
          %v233 = vld [vmem:[%s0 + $0x8] sm:$0xff]
          %v234 = vld [vmem:[%s1] sm:$0xf]
          %v237 = vrot.slane %v232, 5
          %v238 = vrot.slane %v237, 4
          %v239 = vrot.slane %v233, 5
          %v240 = vrot.slane %v239, 4
          %v243 = vmax.f32 %v232, %v238
          %v244 = vmax.f32 %v233, %v240
          %v245 = vrot.slane %v232, 6
          %v246 = vrot.slane %v245, 4
          %v247 = vrot.slane %v233, 6
          %v248 = vrot.slane %v247, 4
          %v251 = vmax.f32 %v243, %v246
          %v252 = vmax.f32 %v244, %v248
          %v253 = vrot.slane %v232, 7
          %v254 = vrot.slane %v253, 4
          %v255 = vrot.slane %v233, 7
          %v256 = vrot.slane %v255, 4
          %v259 = vmax.f32 %v251, %v254
          %v260 = vmax.f32 %v252, %v256
          %v261 = vsub.f32 %v232, %v259
          %v262 = vsub.f32 %v233, %v260
          %v263 = vmul.f32 %v261, 1.442695
          %v264 = vpow.pop %v263
          %v265 = vmul.f32 %v262, 1.442695
          %v266 = vpow.pop %v265
          %v269 = vrot.slane %v259, 7
          %v270 = vrot.slane %v260, 7
          %v273 = vsub.f32 %v232, %v269
          %v274 = vsub.f32 %v233, %v270
          %v275 = vmul.f32 %v273, 1.442695
          %v276 = vpow.pop %v275
          %v277 = vmul.f32 %v274, 1.442695
          %v278 = vpow.pop %v277
          %v279 = vrot.slane %v259, 6
          %v280 = vrot.slane %v260, 6
          %v283 = vsub.f32 %v232, %v279
          %v284 = vsub.f32 %v233, %v280
          %v285 = vmul.f32 %v283, 1.442695
          %v286 = vpow.pop %v285
          %v287 = vmul.f32 %v284, 1.442695
          %v288 = vpow.pop %v287
          %v289 = vrot.slane %v259, 5
          %v290 = vrot.slane %v260, 5
          %v293 = vsub.f32 %v232, %v289
          %v294 = vsub.f32 %v233, %v290
          %v295 = vmul.f32 %v293, 1.442695
          %v296 = vpow.pop %v295
          %v297 = vmul.f32 %v294, 1.442695
          %v298 = vpow.pop %v297
          %v301 = vrot.slane %v276, 5
          %v302 = vrot.slane %v301, 4
          %v303 = vrot.slane %v278, 5
          %v304 = vrot.slane %v303, 4
          %v307 = vadd.f32 %v264, %v302
          %v308 = vadd.f32 %v266, %v304
          %v311 = vrot.slane %v286, 6
          %v312 = vrot.slane %v311, 4
          %v313 = vrot.slane %v288, 6
          %v314 = vrot.slane %v313, 4
          %v317 = vadd.f32 %v307, %v312
          %v318 = vadd.f32 %v308, %v314
          %v321 = vrot.slane %v296, 7
          %v322 = vrot.slane %v321, 4
          %v323 = vrot.slane %v298, 7
          %v324 = vrot.slane %v323, 4
          %v327 = vadd.f32 %v317, %v322
          %v328 = vadd.f32 %v318, %v324
          %s329 = scalar_select %p220, 1, 0
          %s330 = scvt.s32.f32 %s329
          %v331 = vstv %s330
          %v332 = vmul.f32 %v264, %v331
          %v333 = vmul.f32 %v266, %v331
          %p334 = scmp.eq.s32.totalorder %s20, 1
          %s335 = scalar_select %p334, 1, 0
          %s336 = scvt.s32.f32 %s335
          %v337 = vstv %s336
          %v338 = vmul.f32 %v276, %v337
          %v339 = vmul.f32 %v278, %v337
          %v342 = vrot.slane %v338, 5
          %v343 = vrot.slane %v342, 4
          %v344 = vrot.slane %v339, 5
          %v345 = vrot.slane %v344, 4
          %v348 = vadd.f32 %v332, %v343
          %v349 = vadd.f32 %v333, %v345
          %p350 = scmp.eq.s32.totalorder %s20, 2
          %s351 = scalar_select %p350, 1, 0
          %s352 = scvt.s32.f32 %s351
          %v353 = vstv %s352
          %v354 = vmul.f32 %v286, %v353
          %v355 = vmul.f32 %v288, %v353
          %v358 = vrot.slane %v354, 6
          %v359 = vrot.slane %v358, 4
          %v360 = vrot.slane %v355, 6
          %v361 = vrot.slane %v360, 4
          %v364 = vadd.f32 %v348, %v359
          %v365 = vadd.f32 %v349, %v361
          %p366 = scmp.eq.s32.totalorder %s20, 3
          %s367 = scalar_select %p366, 1, 0
          %s368 = scvt.s32.f32 %s367
          %v369 = vstv %s368
          %v370 = vmul.f32 %v296, %v369
          %v371 = vmul.f32 %v298, %v369
          %v374 = vrot.slane %v370, 7
          %v375 = vrot.slane %v374, 4
          %v376 = vrot.slane %v371, 7
          %v377 = vrot.slane %v376, 4
          %v380 = vadd.f32 %v364, %v375
          %v381 = vadd.f32 %v365, %v377
          %v382 = vrcp.pop %v327
          %v383 = vmul.f32 %v380, %v382
          %v384 = vrcp.pop %v328
          %v385 = vmul.f32 %v381, %v384
          %vm386 = vcmp.ne.s32.totalorder %v234, 0
          %v387 = vstv %s20
          %vm388 = vcmp.eq.s32.totalorder %v234, %v387
          %vm389 = vmand %vm386, %vm388
          %v390 = vsel %vm389, 1.0, 0.0
          %v394 = vunpack.c.l.s4 1966171168
          %v395 = vunpack.c.0.s8 %v394
          %v396 = vlaneseq
          %v397 = vshrl.u32 %v396, 7
          %v398 = vsub.s32 %v395, %v397
          %v399 = vrot.slane %v383, %v398
          %v401 = vunpack.c.l.s4 1966171168
          %v402 = vunpack.c.0.s8 %v401
          %v403 = vlaneseq
          %v404 = vshrl.u32 %v403, 7
          %v405 = vsub.s32 %v402, %v404
          %v406 = vrot.slane %v385, %v405
          %v407 = vcombine.low %v399, %v406
          %v409 = vunpack.c.l.s4 1966171168
          %v410 = vunpack.c.0.s8 %v409
          %v411 = vlaneseq
          %v412 = vshrl.u32 %v411, 7
          %v413 = vsub.s32 %v410, %v412
          %v414 = vrot.slane %v407, %v413
          %v416 = vsub.f32 %v390, %v414
          %v417 = vand.u32 2147483647, %v416
          %v418 = vsel %vm386, %v417, -1.0
          %v419 = vlaneseq
          %vm420 = vcmp.ge.s32.totalorder %v419, 0
          %vm421 = vcmp.lt.s32.totalorder %v419, 512
          %vm422 = vmand %vm420, %vm421
          %423 = vst.msk [vmem:[#allocation2] sm:$0xf] %vm422, %v418
          %424 = vst.msk [vmem:[#allocation3] sm:$0xf] %vm422, %v390
          %425 = vst.msk [vmem:[#allocation4] sm:$0xf] %vm422, 0.0
          %426 = vst.msk [vmem:[#allocation5] sm:$0xf] %vm422, 0.0
        $region44: #{tpu_custom_call.1} parent=35 // pred_fallthru
          _
        %v427 = vld [vmem:[%s212] sm:$0xff]
        %v428 = vld [vmem:[%s212 + $0x8] sm:$0xff]
        %v429 = vld [vmem:[%s212 + $0x10] sm:$0xff]
        %v430 = vld [vmem:[%s212 + $0x18] sm:$0xff]
        %v431 = vld [vmem:[%s212 + $0x20] sm:$0xff]
        %v432 = vld [vmem:[%s212 + $0x28] sm:$0xff]
        %v433 = vld [vmem:[%s212 + $0x30] sm:$0xff]
        %v434 = vld [vmem:[%s212 + $0x38] sm:$0xff]
        %v435 = vld [vmem:[%s212 + $0x40] sm:$0xff]
        %v436 = vld [vmem:[%s212 + $0x48] sm:$0xff]
        %v437 = vld [vmem:[%s212 + $0x50] sm:$0xff]
        %v438 = vld [vmem:[%s212 + $0x58] sm:$0xff]
        %v439 = vld [vmem:[%s212 + $0x60] sm:$0xff]
        %v440 = vld [vmem:[%s212 + $0x68] sm:$0xff]
        %v441 = vld [vmem:[%s212 + $0x70] sm:$0xff]
        %v442 = vld [vmem:[%s212 + $0x78] sm:$0xff]
        %v443 = vld [vmem:[%s212 + $0x80] sm:$0xff]
        %v444 = vld [vmem:[%s212 + $0x88] sm:$0xff]
        %v445 = vld [vmem:[%s212 + $0x90] sm:$0xff]
        %v446 = vld [vmem:[%s212 + $0x98] sm:$0xff]
        %v447 = vld [vmem:[%s212 + $0xa0] sm:$0xff]
        %v448 = vld [vmem:[%s212 + $0xa8] sm:$0xff]
        %v449 = vld [vmem:[%s212 + $0xb0] sm:$0xff]
        %v450 = vld [vmem:[%s212 + $0xb8] sm:$0xff]
        %v451 = vld [vmem:[%s212 + $0xc0] sm:$0xff]
        %v452 = vld [vmem:[%s212 + $0xc8] sm:$0xff]
        %v453 = vld [vmem:[%s212 + $0xd0] sm:$0xff]
        %v454 = vld [vmem:[%s212 + $0xd8] sm:$0xff]
        %v455 = vld [vmem:[%s212 + $0xe0] sm:$0xff]
        %v456 = vld [vmem:[%s212 + $0xe8] sm:$0xff]
        %v457 = vld [vmem:[%s212 + $0xf0] sm:$0xff]
        %v458 = vld [vmem:[%s212 + $0xf8] sm:$0xff]
        %v459 = vld [vmem:[%s212 + $0x100] sm:$0xff]
        %v460 = vld [vmem:[%s212 + $0x108] sm:$0xff]
        %v461 = vld [vmem:[%s212 + $0x110] sm:$0xff]
        %v462 = vld [vmem:[%s212 + $0x118] sm:$0xff]
        %v463 = vld [vmem:[%s212 + $0x120] sm:$0xff]
        %v464 = vld [vmem:[%s212 + $0x128] sm:$0xff]
        %v465 = vld [vmem:[%s212 + $0x130] sm:$0xff]
        %v466 = vld [vmem:[%s212 + $0x138] sm:$0xff]
        %v467 = vld [vmem:[%s212 + $0x140] sm:$0xff]
        %v468 = vld [vmem:[%s212 + $0x148] sm:$0xff]
        %v469 = vld [vmem:[%s212 + $0x150] sm:$0xff]
        %v470 = vld [vmem:[%s212 + $0x158] sm:$0xff]
        %v471 = vld [vmem:[%s212 + $0x160] sm:$0xff]
        %v472 = vld [vmem:[%s212 + $0x168] sm:$0xff]
        %v473 = vld [vmem:[%s212 + $0x170] sm:$0xff]
        %v474 = vld [vmem:[%s212 + $0x178] sm:$0xff]
        %v475 = vld [vmem:[%s212 + $0x180] sm:$0xff]
        %v476 = vld [vmem:[%s212 + $0x188] sm:$0xff]
        %v477 = vld [vmem:[%s212 + $0x190] sm:$0xff]
        %v478 = vld [vmem:[%s212 + $0x198] sm:$0xff]
        %v479 = vld [vmem:[%s212 + $0x1a0] sm:$0xff]
        %v480 = vld [vmem:[%s212 + $0x1a8] sm:$0xff]
        %v481 = vld [vmem:[%s212 + $0x1b0] sm:$0xff]
        %v482 = vld [vmem:[%s212 + $0x1b8] sm:$0xff]
        %v483 = vld [vmem:[%s212 + $0x1c0] sm:$0xff]
        %v484 = vld [vmem:[%s212 + $0x1c8] sm:$0xff]
        %v485 = vld [vmem:[%s212 + $0x1d0] sm:$0xff]
        %v486 = vld [vmem:[%s212 + $0x1d8] sm:$0xff]
        %v487 = vld [vmem:[%s212 + $0x1e0] sm:$0xff]
        %v488 = vld [vmem:[%s212 + $0x1e8] sm:$0xff]
        %v489 = vld [vmem:[%s212 + $0x1f0] sm:$0xff]
        %v490 = vld [vmem:[%s212 + $0x1f8] sm:$0xff]
        %v491 = vld [vmem:[%s218] sm:$0xff]
        %v492 = vld [vmem:[%s218 + $0x8] sm:$0xff]
        %v493 = vld [vmem:[%s218 + $0x10] sm:$0xff]
        %v494 = vld [vmem:[%s218 + $0x18] sm:$0xff]
        %v495 = vld [vmem:[%s218 + $0x20] sm:$0xff]
        %v496 = vld [vmem:[%s218 + $0x28] sm:$0xff]
        %v497 = vld [vmem:[%s218 + $0x30] sm:$0xff]
        %v498 = vld [vmem:[%s218 + $0x38] sm:$0xff]
        %v499 = vld [vmem:[%s218 + $0x40] sm:$0xff]
        %v500 = vld [vmem:[%s218 + $0x48] sm:$0xff]
        %v501 = vld [vmem:[%s218 + $0x50] sm:$0xff]
        %v502 = vld [vmem:[%s218 + $0x58] sm:$0xff]
        %v503 = vld [vmem:[%s218 + $0x60] sm:$0xff]
        %v504 = vld [vmem:[%s218 + $0x68] sm:$0xff]
        %v505 = vld [vmem:[%s218 + $0x70] sm:$0xff]
        %v506 = vld [vmem:[%s218 + $0x78] sm:$0xff]
        %v507 = vld [vmem:[%s218 + $0x80] sm:$0xff]
        %v508 = vld [vmem:[%s218 + $0x88] sm:$0xff]
        %v509 = vld [vmem:[%s218 + $0x90] sm:$0xff]
        %v510 = vld [vmem:[%s218 + $0x98] sm:$0xff]
        %v511 = vld [vmem:[%s218 + $0xa0] sm:$0xff]
        %v512 = vld [vmem:[%s218 + $0xa8] sm:$0xff]
        %v513 = vld [vmem:[%s218 + $0xb0] sm:$0xff]
        %v514 = vld [vmem:[%s218 + $0xb8] sm:$0xff]
        %v515 = vld [vmem:[%s218 + $0xc0] sm:$0xff]
        %v516 = vld [vmem:[%s218 + $0xc8] sm:$0xff]
        %v517 = vld [vmem:[%s218 + $0xd0] sm:$0xff]
        %v518 = vld [vmem:[%s218 + $0xd8] sm:$0xff]
        %v519 = vld [vmem:[%s218 + $0xe0] sm:$0xff]
        %v520 = vld [vmem:[%s218 + $0xe8] sm:$0xff]
        %v521 = vld [vmem:[%s218 + $0xf0] sm:$0xff]
        %v522 = vld [vmem:[%s218 + $0xf8] sm:$0xff]
        %v523 = vld [vmem:[%s218 + $0x100] sm:$0xff]
        %v524 = vld [vmem:[%s218 + $0x108] sm:$0xff]
        %v525 = vld [vmem:[%s218 + $0x110] sm:$0xff]
        %v526 = vld [vmem:[%s218 + $0x118] sm:$0xff]
        %v527 = vld [vmem:[%s218 + $0x120] sm:$0xff]
        %v528 = vld [vmem:[%s218 + $0x128] sm:$0xff]
        %v529 = vld [vmem:[%s218 + $0x130] sm:$0xff]
        %v530 = vld [vmem:[%s218 + $0x138] sm:$0xff]
        %v531 = vld [vmem:[%s218 + $0x140] sm:$0xff]
        %v532 = vld [vmem:[%s218 + $0x148] sm:$0xff]
        %v533 = vld [vmem:[%s218 + $0x150] sm:$0xff]
        %v534 = vld [vmem:[%s218 + $0x158] sm:$0xff]
        %v535 = vld [vmem:[%s218 + $0x160] sm:$0xff]
        %v536 = vld [vmem:[%s218 + $0x168] sm:$0xff]
        %v537 = vld [vmem:[%s218 + $0x170] sm:$0xff]
        %v538 = vld [vmem:[%s218 + $0x178] sm:$0xff]
        %v539 = vld [vmem:[%s218 + $0x180] sm:$0xff]
        %v540 = vld [vmem:[%s218 + $0x188] sm:$0xff]
        %v541 = vld [vmem:[%s218 + $0x190] sm:$0xff]
        %v542 = vld [vmem:[%s218 + $0x198] sm:$0xff]
        %v543 = vld [vmem:[%s218 + $0x1a0] sm:$0xff]
        %v544 = vld [vmem:[%s218 + $0x1a8] sm:$0xff]
        %v545 = vld [vmem:[%s218 + $0x1b0] sm:$0xff]
        %v546 = vld [vmem:[%s218 + $0x1b8] sm:$0xff]
        %v547 = vld [vmem:[%s218 + $0x1c0] sm:$0xff]
        %v548 = vld [vmem:[%s218 + $0x1c8] sm:$0xff]
        %v549 = vld [vmem:[%s218 + $0x1d0] sm:$0xff]
        %v550 = vld [vmem:[%s218 + $0x1d8] sm:$0xff]
        %v551 = vld [vmem:[%s218 + $0x1e0] sm:$0xff]
        %v552 = vld [vmem:[%s218 + $0x1e8] sm:$0xff]
        %v553 = vld [vmem:[%s218 + $0x1f0] sm:$0xff]
        %v554 = vld [vmem:[%s218 + $0x1f8] sm:$0xff]
        %619 = vrot.lane.b32.xlu0 %v427, 127
        %v620 = vpop.permute.xlu0 %619
        %621 = vrot.lane.b32.xlu0 %v428, 127
        %v622 = vpop.permute.xlu0 %621
        %623 = vrot.lane.b32.xlu0 %v429, 127
        %v624 = vpop.permute.xlu0 %623
        %625 = vrot.lane.b32.xlu0 %v430, 127
        %v626 = vpop.permute.xlu0 %625
        %627 = vrot.lane.b32.xlu0 %v431, 127
        %v628 = vpop.permute.xlu0 %627
        %629 = vrot.lane.b32.xlu0 %v432, 127
        %v630 = vpop.permute.xlu0 %629
        %631 = vrot.lane.b32.xlu0 %v433, 127
        %v632 = vpop.permute.xlu0 %631
        %633 = vrot.lane.b32.xlu0 %v434, 127
        %v634 = vpop.permute.xlu0 %633
        %635 = vrot.lane.b32.xlu0 %v435, 127
        %v636 = vpop.permute.xlu0 %635
        %637 = vrot.lane.b32.xlu0 %v436, 127
        %v638 = vpop.permute.xlu0 %637
        %639 = vrot.lane.b32.xlu0 %v437, 127
        %v640 = vpop.permute.xlu0 %639
        %641 = vrot.lane.b32.xlu0 %v438, 127
        %v642 = vpop.permute.xlu0 %641
        %643 = vrot.lane.b32.xlu0 %v439, 127
        %v644 = vpop.permute.xlu0 %643
        %645 = vrot.lane.b32.xlu0 %v440, 127
        %v646 = vpop.permute.xlu0 %645
        %647 = vrot.lane.b32.xlu0 %v441, 127
        %v648 = vpop.permute.xlu0 %647
        %649 = vrot.lane.b32.xlu0 %v442, 127
        %v650 = vpop.permute.xlu0 %649
        %651 = vrot.lane.b32.xlu0 %v443, 127
        %v652 = vpop.permute.xlu0 %651
        %653 = vrot.lane.b32.xlu0 %v444, 127
        %v654 = vpop.permute.xlu0 %653
        %655 = vrot.lane.b32.xlu0 %v445, 127
        %v656 = vpop.permute.xlu0 %655
        %657 = vrot.lane.b32.xlu0 %v446, 127
        %v658 = vpop.permute.xlu0 %657
        %659 = vrot.lane.b32.xlu0 %v447, 127
        %v660 = vpop.permute.xlu0 %659
        %661 = vrot.lane.b32.xlu0 %v448, 127
        %v662 = vpop.permute.xlu0 %661
        %663 = vrot.lane.b32.xlu0 %v449, 127
        %v664 = vpop.permute.xlu0 %663
        %665 = vrot.lane.b32.xlu0 %v450, 127
        %v666 = vpop.permute.xlu0 %665
        %667 = vrot.lane.b32.xlu0 %v451, 127
        %v668 = vpop.permute.xlu0 %667
        %669 = vrot.lane.b32.xlu0 %v452, 127
        %v670 = vpop.permute.xlu0 %669
        %671 = vrot.lane.b32.xlu0 %v453, 127
        %v672 = vpop.permute.xlu0 %671
        %673 = vrot.lane.b32.xlu0 %v454, 127
        %v674 = vpop.permute.xlu0 %673
        %675 = vrot.lane.b32.xlu0 %v455, 127
        %v676 = vpop.permute.xlu0 %675
        %677 = vrot.lane.b32.xlu0 %v456, 127
        %v678 = vpop.permute.xlu0 %677
        %679 = vrot.lane.b32.xlu0 %v457, 127
        %v680 = vpop.permute.xlu0 %679
        %681 = vrot.lane.b32.xlu0 %v458, 127
        %v682 = vpop.permute.xlu0 %681
        %683 = vrot.lane.b32.xlu0 %v459, 127
        %v684 = vpop.permute.xlu0 %683
        %685 = vrot.lane.b32.xlu0 %v460, 127
        %v686 = vpop.permute.xlu0 %685
        %687 = vrot.lane.b32.xlu0 %v461, 127
        %v688 = vpop.permute.xlu0 %687
        %689 = vrot.lane.b32.xlu0 %v462, 127
        %v690 = vpop.permute.xlu0 %689
        %691 = vrot.lane.b32.xlu0 %v463, 127
        %v692 = vpop.permute.xlu0 %691
        %693 = vrot.lane.b32.xlu0 %v464, 127
        %v694 = vpop.permute.xlu0 %693
        %695 = vrot.lane.b32.xlu0 %v465, 127
        %v696 = vpop.permute.xlu0 %695
        %697 = vrot.lane.b32.xlu0 %v466, 127
        %v698 = vpop.permute.xlu0 %697
        %699 = vrot.lane.b32.xlu0 %v467, 127
        %v700 = vpop.permute.xlu0 %699
        %701 = vrot.lane.b32.xlu0 %v468, 127
        %v702 = vpop.permute.xlu0 %701
        %703 = vrot.lane.b32.xlu0 %v469, 127
        %v704 = vpop.permute.xlu0 %703
        %705 = vrot.lane.b32.xlu0 %v470, 127
        %v706 = vpop.permute.xlu0 %705
        %707 = vrot.lane.b32.xlu0 %v471, 127
        %v708 = vpop.permute.xlu0 %707
        %709 = vrot.lane.b32.xlu0 %v472, 127
        %v710 = vpop.permute.xlu0 %709
        %711 = vrot.lane.b32.xlu0 %v473, 127
        %v712 = vpop.permute.xlu0 %711
        %713 = vrot.lane.b32.xlu0 %v474, 127
        %v714 = vpop.permute.xlu0 %713
        %715 = vrot.lane.b32.xlu0 %v475, 127
        %v716 = vpop.permute.xlu0 %715
        %717 = vrot.lane.b32.xlu0 %v476, 127
        %v718 = vpop.permute.xlu0 %717
        %719 = vrot.lane.b32.xlu0 %v477, 127
        %v720 = vpop.permute.xlu0 %719
        %721 = vrot.lane.b32.xlu0 %v478, 127
        %v722 = vpop.permute.xlu0 %721
        %723 = vrot.lane.b32.xlu0 %v479, 127
        %v724 = vpop.permute.xlu0 %723
        %725 = vrot.lane.b32.xlu0 %v480, 127
        %v726 = vpop.permute.xlu0 %725
        %727 = vrot.lane.b32.xlu0 %v481, 127
        %v728 = vpop.permute.xlu0 %727
        %729 = vrot.lane.b32.xlu0 %v482, 127
        %v730 = vpop.permute.xlu0 %729
        %731 = vrot.lane.b32.xlu0 %v483, 127
        %v732 = vpop.permute.xlu0 %731
        %733 = vrot.lane.b32.xlu0 %v484, 127
        %v734 = vpop.permute.xlu0 %733
        %735 = vrot.lane.b32.xlu0 %v485, 127
        %v736 = vpop.permute.xlu0 %735
        %737 = vrot.lane.b32.xlu0 %v486, 127
        %v738 = vpop.permute.xlu0 %737
        %739 = vrot.lane.b32.xlu0 %v487, 127
        %v740 = vpop.permute.xlu0 %739
        %741 = vrot.lane.b32.xlu0 %v488, 127
        %v742 = vpop.permute.xlu0 %741
        %743 = vrot.lane.b32.xlu0 %v489, 127
        %v744 = vpop.permute.xlu0 %743
        %745 = vrot.lane.b32.xlu0 %v490, 127
        %v746 = vpop.permute.xlu0 %745
        %v811 = vmax.f32 %v427, %v620
        %v812 = vmax.f32 %v428, %v622
        %v813 = vmax.f32 %v429, %v624
        %v814 = vmax.f32 %v430, %v626
        %v815 = vmax.f32 %v431, %v628
        %v816 = vmax.f32 %v432, %v630
        %v817 = vmax.f32 %v433, %v632
        %v818 = vmax.f32 %v434, %v634
        %v819 = vmax.f32 %v435, %v636
        %v820 = vmax.f32 %v436, %v638
        %v821 = vmax.f32 %v437, %v640
        %v822 = vmax.f32 %v438, %v642
        %v823 = vmax.f32 %v439, %v644
        %v824 = vmax.f32 %v440, %v646
        %v825 = vmax.f32 %v441, %v648
        %v826 = vmax.f32 %v442, %v650
        %v827 = vmax.f32 %v443, %v652
        %v828 = vmax.f32 %v444, %v654
        %v829 = vmax.f32 %v445, %v656
        %v830 = vmax.f32 %v446, %v658
        %v831 = vmax.f32 %v447, %v660
        %v832 = vmax.f32 %v448, %v662
        %v833 = vmax.f32 %v449, %v664
        %v834 = vmax.f32 %v450, %v666
        %v835 = vmax.f32 %v451, %v668
        %v836 = vmax.f32 %v452, %v670
        %v837 = vmax.f32 %v453, %v672
        %v838 = vmax.f32 %v454, %v674
        %v839 = vmax.f32 %v455, %v676
        %v840 = vmax.f32 %v456, %v678
        %v841 = vmax.f32 %v457, %v680
        %v842 = vmax.f32 %v458, %v682
        %v843 = vmax.f32 %v459, %v684
        %v844 = vmax.f32 %v460, %v686
        %v845 = vmax.f32 %v461, %v688
        %v846 = vmax.f32 %v462, %v690
        %v847 = vmax.f32 %v463, %v692
        %v848 = vmax.f32 %v464, %v694
        %v849 = vmax.f32 %v465, %v696
        %v850 = vmax.f32 %v466, %v698
        %v851 = vmax.f32 %v467, %v700
        %v852 = vmax.f32 %v468, %v702
        %v853 = vmax.f32 %v469, %v704
        %v854 = vmax.f32 %v470, %v706
        %v855 = vmax.f32 %v471, %v708
        %v856 = vmax.f32 %v472, %v710
        %v857 = vmax.f32 %v473, %v712
        %v858 = vmax.f32 %v474, %v714
        %v859 = vmax.f32 %v475, %v716
        %v860 = vmax.f32 %v476, %v718
        %v861 = vmax.f32 %v477, %v720
        %v862 = vmax.f32 %v478, %v722
        %v863 = vmax.f32 %v479, %v724
        %v864 = vmax.f32 %v480, %v726
        %v865 = vmax.f32 %v481, %v728
        %v866 = vmax.f32 %v482, %v730
        %v867 = vmax.f32 %v483, %v732
        %v868 = vmax.f32 %v484, %v734
        %v869 = vmax.f32 %v485, %v736
        %v870 = vmax.f32 %v486, %v738
        %v871 = vmax.f32 %v487, %v740
        %v872 = vmax.f32 %v488, %v742
        %v873 = vmax.f32 %v489, %v744
        %v874 = vmax.f32 %v490, %v746
        %875 = vrot.lane.b32.xlu0 %v427, 126
        %v876 = vpop.permute.xlu0 %875
        %877 = vrot.lane.b32.xlu0 %v428, 126
        %v878 = vpop.permute.xlu0 %877
        %879 = vrot.lane.b32.xlu0 %v429, 126
        %v880 = vpop.permute.xlu0 %879
        %881 = vrot.lane.b32.xlu0 %v430, 126
        %v882 = vpop.permute.xlu0 %881
        %883 = vrot.lane.b32.xlu0 %v431, 126
        %v884 = vpop.permute.xlu0 %883
        %885 = vrot.lane.b32.xlu0 %v432, 126
        %v886 = vpop.permute.xlu0 %885
        %887 = vrot.lane.b32.xlu0 %v433, 126
        %v888 = vpop.permute.xlu0 %887
        %889 = vrot.lane.b32.xlu0 %v434, 126
        %v890 = vpop.permute.xlu0 %889
        %891 = vrot.lane.b32.xlu0 %v435, 126
        %v892 = vpop.permute.xlu0 %891
        %893 = vrot.lane.b32.xlu0 %v436, 126
        %v894 = vpop.permute.xlu0 %893
        %895 = vrot.lane.b32.xlu0 %v437, 126
        %v896 = vpop.permute.xlu0 %895
        %897 = vrot.lane.b32.xlu0 %v438, 126
        %v898 = vpop.permute.xlu0 %897
        %899 = vrot.lane.b32.xlu0 %v439, 126
        %v900 = vpop.permute.xlu0 %899
        %901 = vrot.lane.b32.xlu0 %v440, 126
        %v902 = vpop.permute.xlu0 %901
        %903 = vrot.lane.b32.xlu0 %v441, 126
        %v904 = vpop.permute.xlu0 %903
        %905 = vrot.lane.b32.xlu0 %v442, 126
        %v906 = vpop.permute.xlu0 %905
        %907 = vrot.lane.b32.xlu0 %v443, 126
        %v908 = vpop.permute.xlu0 %907
        %909 = vrot.lane.b32.xlu0 %v444, 126
        %v910 = vpop.permute.xlu0 %909
        %911 = vrot.lane.b32.xlu0 %v445, 126
        %v912 = vpop.permute.xlu0 %911
        %913 = vrot.lane.b32.xlu0 %v446, 126
        %v914 = vpop.permute.xlu0 %913
        %915 = vrot.lane.b32.xlu0 %v447, 126
        %v916 = vpop.permute.xlu0 %915
        %917 = vrot.lane.b32.xlu0 %v448, 126
        %v918 = vpop.permute.xlu0 %917
        %919 = vrot.lane.b32.xlu0 %v449, 126
        %v920 = vpop.permute.xlu0 %919
        %921 = vrot.lane.b32.xlu0 %v450, 126
        %v922 = vpop.permute.xlu0 %921
        %923 = vrot.lane.b32.xlu0 %v451, 126
        %v924 = vpop.permute.xlu0 %923
        %925 = vrot.lane.b32.xlu0 %v452, 126
        %v926 = vpop.permute.xlu0 %925
        %927 = vrot.lane.b32.xlu0 %v453, 126
        %v928 = vpop.permute.xlu0 %927
        %929 = vrot.lane.b32.xlu0 %v454, 126
        %v930 = vpop.permute.xlu0 %929
        %931 = vrot.lane.b32.xlu0 %v455, 126
        %v932 = vpop.permute.xlu0 %931
        %933 = vrot.lane.b32.xlu0 %v456, 126
        %v934 = vpop.permute.xlu0 %933
        %935 = vrot.lane.b32.xlu0 %v457, 126
        %v936 = vpop.permute.xlu0 %935
        %937 = vrot.lane.b32.xlu0 %v458, 126
        %v938 = vpop.permute.xlu0 %937
        %939 = vrot.lane.b32.xlu0 %v459, 126
        %v940 = vpop.permute.xlu0 %939
        %941 = vrot.lane.b32.xlu0 %v460, 126
        %v942 = vpop.permute.xlu0 %941
        %943 = vrot.lane.b32.xlu0 %v461, 126
        %v944 = vpop.permute.xlu0 %943
        %945 = vrot.lane.b32.xlu0 %v462, 126
        %v946 = vpop.permute.xlu0 %945
        %947 = vrot.lane.b32.xlu0 %v463, 126
        %v948 = vpop.permute.xlu0 %947
        %949 = vrot.lane.b32.xlu0 %v464, 126
        %v950 = vpop.permute.xlu0 %949
        %951 = vrot.lane.b32.xlu0 %v465, 126
        %v952 = vpop.permute.xlu0 %951
        %953 = vrot.lane.b32.xlu0 %v466, 126
        %v954 = vpop.permute.xlu0 %953
        %955 = vrot.lane.b32.xlu0 %v467, 126
        %v956 = vpop.permute.xlu0 %955
        %957 = vrot.lane.b32.xlu0 %v468, 126
        %v958 = vpop.permute.xlu0 %957
        %959 = vrot.lane.b32.xlu0 %v469, 126
        %v960 = vpop.permute.xlu0 %959
        %961 = vrot.lane.b32.xlu0 %v470, 126
        %v962 = vpop.permute.xlu0 %961
        %963 = vrot.lane.b32.xlu0 %v471, 126
        %v964 = vpop.permute.xlu0 %963
        %965 = vrot.lane.b32.xlu0 %v472, 126
        %v966 = vpop.permute.xlu0 %965
        %967 = vrot.lane.b32.xlu0 %v473, 126
        %v968 = vpop.permute.xlu0 %967
        %969 = vrot.lane.b32.xlu0 %v474, 126
        %v970 = vpop.permute.xlu0 %969
        %971 = vrot.lane.b32.xlu0 %v475, 126
        %v972 = vpop.permute.xlu0 %971
        %973 = vrot.lane.b32.xlu0 %v476, 126
        %v974 = vpop.permute.xlu0 %973
        %975 = vrot.lane.b32.xlu0 %v477, 126
        %v976 = vpop.permute.xlu0 %975
        %977 = vrot.lane.b32.xlu0 %v478, 126
        %v978 = vpop.permute.xlu0 %977
        %979 = vrot.lane.b32.xlu0 %v479, 126
        %v980 = vpop.permute.xlu0 %979
        %981 = vrot.lane.b32.xlu0 %v480, 126
        %v982 = vpop.permute.xlu0 %981
        %983 = vrot.lane.b32.xlu0 %v481, 126
        %v984 = vpop.permute.xlu0 %983
        %985 = vrot.lane.b32.xlu0 %v482, 126
        %v986 = vpop.permute.xlu0 %985
        %987 = vrot.lane.b32.xlu0 %v483, 126
        %v988 = vpop.permute.xlu0 %987
        %989 = vrot.lane.b32.xlu0 %v484, 126
        %v990 = vpop.permute.xlu0 %989
        %991 = vrot.lane.b32.xlu0 %v485, 126
        %v992 = vpop.permute.xlu0 %991
        %993 = vrot.lane.b32.xlu0 %v486, 126
        %v994 = vpop.permute.xlu0 %993
        %995 = vrot.lane.b32.xlu0 %v487, 126
        %v996 = vpop.permute.xlu0 %995
        %997 = vrot.lane.b32.xlu0 %v488, 126
        %v998 = vpop.permute.xlu0 %997
        %999 = vrot.lane.b32.xlu0 %v489, 126
        %v1000 = vpop.permute.xlu0 %999
        %1001 = vrot.lane.b32.xlu0 %v490, 126
        %v1002 = vpop.permute.xlu0 %1001
        %v1067 = vmax.f32 %v811, %v876
        %v1068 = vmax.f32 %v812, %v878
        %v1069 = vmax.f32 %v813, %v880
        %v1070 = vmax.f32 %v814, %v882
        %v1071 = vmax.f32 %v815, %v884
        %v1072 = vmax.f32 %v816, %v886
        %v1073 = vmax.f32 %v817, %v888
        %v1074 = vmax.f32 %v818, %v890
        %v1075 = vmax.f32 %v819, %v892
        %v1076 = vmax.f32 %v820, %v894
        %v1077 = vmax.f32 %v821, %v896
        %v1078 = vmax.f32 %v822, %v898
        %v1079 = vmax.f32 %v823, %v900
        %v1080 = vmax.f32 %v824, %v902
        %v1081 = vmax.f32 %v825, %v904
        %v1082 = vmax.f32 %v826, %v906
        %v1083 = vmax.f32 %v827, %v908
        %v1084 = vmax.f32 %v828, %v910
        %v1085 = vmax.f32 %v829, %v912
        %v1086 = vmax.f32 %v830, %v914
        %v1087 = vmax.f32 %v831, %v916
        %v1088 = vmax.f32 %v832, %v918
        %v1089 = vmax.f32 %v833, %v920
        %v1090 = vmax.f32 %v834, %v922
        %v1091 = vmax.f32 %v835, %v924
        %v1092 = vmax.f32 %v836, %v926
        %v1093 = vmax.f32 %v837, %v928
        %v1094 = vmax.f32 %v838, %v930
        %v1095 = vmax.f32 %v839, %v932
        %v1096 = vmax.f32 %v840, %v934
        %v1097 = vmax.f32 %v841, %v936
        %v1098 = vmax.f32 %v842, %v938
        %v1099 = vmax.f32 %v843, %v940
        %v1100 = vmax.f32 %v844, %v942
        %v1101 = vmax.f32 %v845, %v944
        %v1102 = vmax.f32 %v846, %v946
        %v1103 = vmax.f32 %v847, %v948
        %v1104 = vmax.f32 %v848, %v950
        %v1105 = vmax.f32 %v849, %v952
        %v1106 = vmax.f32 %v850, %v954
        %v1107 = vmax.f32 %v851, %v956
        %v1108 = vmax.f32 %v852, %v958
        %v1109 = vmax.f32 %v853, %v960
        %v1110 = vmax.f32 %v854, %v962
        %v1111 = vmax.f32 %v855, %v964
        %v1112 = vmax.f32 %v856, %v966
        %v1113 = vmax.f32 %v857, %v968
        %v1114 = vmax.f32 %v858, %v970
        %v1115 = vmax.f32 %v859, %v972
        %v1116 = vmax.f32 %v860, %v974
        %v1117 = vmax.f32 %v861, %v976
        %v1118 = vmax.f32 %v862, %v978
        %v1119 = vmax.f32 %v863, %v980
        %v1120 = vmax.f32 %v864, %v982
        %v1121 = vmax.f32 %v865, %v984
        %v1122 = vmax.f32 %v866, %v986
        %v1123 = vmax.f32 %v867, %v988
        %v1124 = vmax.f32 %v868, %v990
        %v1125 = vmax.f32 %v869, %v992
        %v1126 = vmax.f32 %v870, %v994
        %v1127 = vmax.f32 %v871, %v996
        %v1128 = vmax.f32 %v872, %v998
        %v1129 = vmax.f32 %v873, %v1000
        %v1130 = vmax.f32 %v874, %v1002
        %1131 = vrot.lane.b32.xlu0 %v427, 125
        %v1132 = vpop.permute.xlu0 %1131
        %1133 = vrot.lane.b32.xlu0 %v428, 125
        %v1134 = vpop.permute.xlu0 %1133
        %1135 = vrot.lane.b32.xlu0 %v429, 125
        %v1136 = vpop.permute.xlu0 %1135
        %1137 = vrot.lane.b32.xlu0 %v430, 125
        %v1138 = vpop.permute.xlu0 %1137
        %1139 = vrot.lane.b32.xlu0 %v431, 125
        %v1140 = vpop.permute.xlu0 %1139
        %1141 = vrot.lane.b32.xlu0 %v432, 125
        %v1142 = vpop.permute.xlu0 %1141
        %1143 = vrot.lane.b32.xlu0 %v433, 125
        %v1144 = vpop.permute.xlu0 %1143
        %1145 = vrot.lane.b32.xlu0 %v434, 125
        %v1146 = vpop.permute.xlu0 %1145
        %1147 = vrot.lane.b32.xlu0 %v435, 125
        %v1148 = vpop.permute.xlu0 %1147
        %1149 = vrot.lane.b32.xlu0 %v436, 125
        %v1150 = vpop.permute.xlu0 %1149
        %1151 = vrot.lane.b32.xlu0 %v437, 125
        %v1152 = vpop.permute.xlu0 %1151
        %1153 = vrot.lane.b32.xlu0 %v438, 125
        %v1154 = vpop.permute.xlu0 %1153
        %1155 = vrot.lane.b32.xlu0 %v439, 125
        %v1156 = vpop.permute.xlu0 %1155
        %1157 = vrot.lane.b32.xlu0 %v440, 125
        %v1158 = vpop.permute.xlu0 %1157
        %1159 = vrot.lane.b32.xlu0 %v441, 125
        %v1160 = vpop.permute.xlu0 %1159
        %1161 = vrot.lane.b32.xlu0 %v442, 125
        %v1162 = vpop.permute.xlu0 %1161
        %1163 = vrot.lane.b32.xlu0 %v443, 125
        %v1164 = vpop.permute.xlu0 %1163
        %1165 = vrot.lane.b32.xlu0 %v444, 125
        %v1166 = vpop.permute.xlu0 %1165
        %1167 = vrot.lane.b32.xlu0 %v445, 125
        %v1168 = vpop.permute.xlu0 %1167
        %1169 = vrot.lane.b32.xlu0 %v446, 125
        %v1170 = vpop.permute.xlu0 %1169
        %1171 = vrot.lane.b32.xlu0 %v447, 125
        %v1172 = vpop.permute.xlu0 %1171
        %1173 = vrot.lane.b32.xlu0 %v448, 125
        %v1174 = vpop.permute.xlu0 %1173
        %1175 = vrot.lane.b32.xlu0 %v449, 125
        %v1176 = vpop.permute.xlu0 %1175
        %1177 = vrot.lane.b32.xlu0 %v450, 125
        %v1178 = vpop.permute.xlu0 %1177
        %1179 = vrot.lane.b32.xlu0 %v451, 125
        %v1180 = vpop.permute.xlu0 %1179
        %1181 = vrot.lane.b32.xlu0 %v452, 125
        %v1182 = vpop.permute.xlu0 %1181
        %1183 = vrot.lane.b32.xlu0 %v453, 125
        %v1184 = vpop.permute.xlu0 %1183
        %1185 = vrot.lane.b32.xlu0 %v454, 125
        %v1186 = vpop.permute.xlu0 %1185
        %1187 = vrot.lane.b32.xlu0 %v455, 125
        %v1188 = vpop.permute.xlu0 %1187
        %1189 = vrot.lane.b32.xlu0 %v456, 125
        %v1190 = vpop.permute.xlu0 %1189
        %1191 = vrot.lane.b32.xlu0 %v457, 125
        %v1192 = vpop.permute.xlu0 %1191
        %1193 = vrot.lane.b32.xlu0 %v458, 125
        %v1194 = vpop.permute.xlu0 %1193
        %1195 = vrot.lane.b32.xlu0 %v459, 125
        %v1196 = vpop.permute.xlu0 %1195
        %1197 = vrot.lane.b32.xlu0 %v460, 125
        %v1198 = vpop.permute.xlu0 %1197
        %1199 = vrot.lane.b32.xlu0 %v461, 125
        %v1200 = vpop.permute.xlu0 %1199
        %1201 = vrot.lane.b32.xlu0 %v462, 125
        %v1202 = vpop.permute.xlu0 %1201
        %1203 = vrot.lane.b32.xlu0 %v463, 125
        %v1204 = vpop.permute.xlu0 %1203
        %1205 = vrot.lane.b32.xlu0 %v464, 125
        %v1206 = vpop.permute.xlu0 %1205
        %1207 = vrot.lane.b32.xlu0 %v465, 125
        %v1208 = vpop.permute.xlu0 %1207
        %1209 = vrot.lane.b32.xlu0 %v466, 125
        %v1210 = vpop.permute.xlu0 %1209
        %1211 = vrot.lane.b32.xlu0 %v467, 125
        %v1212 = vpop.permute.xlu0 %1211
        %1213 = vrot.lane.b32.xlu0 %v468, 125
        %v1214 = vpop.permute.xlu0 %1213
        %1215 = vrot.lane.b32.xlu0 %v469, 125
        %v1216 = vpop.permute.xlu0 %1215
        %1217 = vrot.lane.b32.xlu0 %v470, 125
        %v1218 = vpop.permute.xlu0 %1217
        %1219 = vrot.lane.b32.xlu0 %v471, 125
        %v1220 = vpop.permute.xlu0 %1219
        %1221 = vrot.lane.b32.xlu0 %v472, 125
        %v1222 = vpop.permute.xlu0 %1221
        %1223 = vrot.lane.b32.xlu0 %v473, 125
        %v1224 = vpop.permute.xlu0 %1223
        %1225 = vrot.lane.b32.xlu0 %v474, 125
        %v1226 = vpop.permute.xlu0 %1225
        %1227 = vrot.lane.b32.xlu0 %v475, 125
        %v1228 = vpop.permute.xlu0 %1227
        %1229 = vrot.lane.b32.xlu0 %v476, 125
        %v1230 = vpop.permute.xlu0 %1229
        %1231 = vrot.lane.b32.xlu0 %v477, 125
        %v1232 = vpop.permute.xlu0 %1231
        %1233 = vrot.lane.b32.xlu0 %v478, 125
        %v1234 = vpop.permute.xlu0 %1233
        %1235 = vrot.lane.b32.xlu0 %v479, 125
        %v1236 = vpop.permute.xlu0 %1235
        %1237 = vrot.lane.b32.xlu0 %v480, 125
        %v1238 = vpop.permute.xlu0 %1237
        %1239 = vrot.lane.b32.xlu0 %v481, 125
        %v1240 = vpop.permute.xlu0 %1239
        %1241 = vrot.lane.b32.xlu0 %v482, 125
        %v1242 = vpop.permute.xlu0 %1241
        %1243 = vrot.lane.b32.xlu0 %v483, 125
        %v1244 = vpop.permute.xlu0 %1243
        %1245 = vrot.lane.b32.xlu0 %v484, 125
        %v1246 = vpop.permute.xlu0 %1245
        %1247 = vrot.lane.b32.xlu0 %v485, 125
        %v1248 = vpop.permute.xlu0 %1247
        %1249 = vrot.lane.b32.xlu0 %v486, 125
        %v1250 = vpop.permute.xlu0 %1249
        %1251 = vrot.lane.b32.xlu0 %v487, 125
        %v1252 = vpop.permute.xlu0 %1251
        %1253 = vrot.lane.b32.xlu0 %v488, 125
        %v1254 = vpop.permute.xlu0 %1253
        %1255 = vrot.lane.b32.xlu0 %v489, 125
        %v1256 = vpop.permute.xlu0 %1255
        %1257 = vrot.lane.b32.xlu0 %v490, 125
        %v1258 = vpop.permute.xlu0 %1257
        %v1323 = vmax.f32 %v1067, %v1132
        %v1324 = vmax.f32 %v1068, %v1134
        %v1325 = vmax.f32 %v1069, %v1136
        %v1326 = vmax.f32 %v1070, %v1138
        %v1327 = vmax.f32 %v1071, %v1140
        %v1328 = vmax.f32 %v1072, %v1142
        %v1329 = vmax.f32 %v1073, %v1144
        %v1330 = vmax.f32 %v1074, %v1146
        %v1331 = vmax.f32 %v1075, %v1148
        %v1332 = vmax.f32 %v1076, %v1150
        %v1333 = vmax.f32 %v1077, %v1152
        %v1334 = vmax.f32 %v1078, %v1154
        %v1335 = vmax.f32 %v1079, %v1156
        %v1336 = vmax.f32 %v1080, %v1158
        %v1337 = vmax.f32 %v1081, %v1160
        %v1338 = vmax.f32 %v1082, %v1162
        %v1339 = vmax.f32 %v1083, %v1164
        %v1340 = vmax.f32 %v1084, %v1166
        %v1341 = vmax.f32 %v1085, %v1168
        %v1342 = vmax.f32 %v1086, %v1170
        %v1343 = vmax.f32 %v1087, %v1172
        %v1344 = vmax.f32 %v1088, %v1174
        %v1345 = vmax.f32 %v1089, %v1176
        %v1346 = vmax.f32 %v1090, %v1178
        %v1347 = vmax.f32 %v1091, %v1180
        %v1348 = vmax.f32 %v1092, %v1182
        %v1349 = vmax.f32 %v1093, %v1184
        %v1350 = vmax.f32 %v1094, %v1186
        %v1351 = vmax.f32 %v1095, %v1188
        %v1352 = vmax.f32 %v1096, %v1190
        %v1353 = vmax.f32 %v1097, %v1192
        %v1354 = vmax.f32 %v1098, %v1194
        %v1355 = vmax.f32 %v1099, %v1196
        %v1356 = vmax.f32 %v1100, %v1198
        %v1357 = vmax.f32 %v1101, %v1200
        %v1358 = vmax.f32 %v1102, %v1202
        %v1359 = vmax.f32 %v1103, %v1204
        %v1360 = vmax.f32 %v1104, %v1206
        %v1361 = vmax.f32 %v1105, %v1208
        %v1362 = vmax.f32 %v1106, %v1210
        %v1363 = vmax.f32 %v1107, %v1212
        %v1364 = vmax.f32 %v1108, %v1214
        %v1365 = vmax.f32 %v1109, %v1216
        %v1366 = vmax.f32 %v1110, %v1218
        %v1367 = vmax.f32 %v1111, %v1220
        %v1368 = vmax.f32 %v1112, %v1222
        %v1369 = vmax.f32 %v1113, %v1224
        %v1370 = vmax.f32 %v1114, %v1226
        %v1371 = vmax.f32 %v1115, %v1228
        %v1372 = vmax.f32 %v1116, %v1230
        %v1373 = vmax.f32 %v1117, %v1232
        %v1374 = vmax.f32 %v1118, %v1234
        %v1375 = vmax.f32 %v1119, %v1236
        %v1376 = vmax.f32 %v1120, %v1238
        %v1377 = vmax.f32 %v1121, %v1240
        %v1378 = vmax.f32 %v1122, %v1242
        %v1379 = vmax.f32 %v1123, %v1244
        %v1380 = vmax.f32 %v1124, %v1246
        %v1381 = vmax.f32 %v1125, %v1248
        %v1382 = vmax.f32 %v1126, %v1250
        %v1383 = vmax.f32 %v1127, %v1252
        %v1384 = vmax.f32 %v1128, %v1254
        %v1385 = vmax.f32 %v1129, %v1256
        %v1386 = vmax.f32 %v1130, %v1258
        %v1387 = vsub.f32 %v427, %v1323
        %v1388 = vsub.f32 %v428, %v1324
        %v1389 = vsub.f32 %v429, %v1325
        %v1390 = vsub.f32 %v430, %v1326
        %v1391 = vsub.f32 %v431, %v1327
        %v1392 = vsub.f32 %v432, %v1328
        %v1393 = vsub.f32 %v433, %v1329
        %v1394 = vsub.f32 %v434, %v1330
        %v1395 = vsub.f32 %v435, %v1331
        %v1396 = vsub.f32 %v436, %v1332
        %v1397 = vsub.f32 %v437, %v1333
        %v1398 = vsub.f32 %v438, %v1334
        %v1399 = vsub.f32 %v439, %v1335
        %v1400 = vsub.f32 %v440, %v1336
        %v1401 = vsub.f32 %v441, %v1337
        %v1402 = vsub.f32 %v442, %v1338
        %v1403 = vsub.f32 %v443, %v1339
        %v1404 = vsub.f32 %v444, %v1340
        %v1405 = vsub.f32 %v445, %v1341
        %v1406 = vsub.f32 %v446, %v1342
        %v1407 = vsub.f32 %v447, %v1343
        %v1408 = vsub.f32 %v448, %v1344
        %v1409 = vsub.f32 %v449, %v1345
        %v1410 = vsub.f32 %v450, %v1346
        %v1411 = vsub.f32 %v451, %v1347
        %v1412 = vsub.f32 %v452, %v1348
        %v1413 = vsub.f32 %v453, %v1349
        %v1414 = vsub.f32 %v454, %v1350
        %v1415 = vsub.f32 %v455, %v1351
        %v1416 = vsub.f32 %v456, %v1352
        %v1417 = vsub.f32 %v457, %v1353
        %v1418 = vsub.f32 %v458, %v1354
        %v1419 = vsub.f32 %v459, %v1355
        %v1420 = vsub.f32 %v460, %v1356
        %v1421 = vsub.f32 %v461, %v1357
        %v1422 = vsub.f32 %v462, %v1358
        %v1423 = vsub.f32 %v463, %v1359
        %v1424 = vsub.f32 %v464, %v1360
        %v1425 = vsub.f32 %v465, %v1361
        %v1426 = vsub.f32 %v466, %v1362
        %v1427 = vsub.f32 %v467, %v1363
        %v1428 = vsub.f32 %v468, %v1364
        %v1429 = vsub.f32 %v469, %v1365
        %v1430 = vsub.f32 %v470, %v1366
        %v1431 = vsub.f32 %v471, %v1367
        %v1432 = vsub.f32 %v472, %v1368
        %v1433 = vsub.f32 %v473, %v1369
        %v1434 = vsub.f32 %v474, %v1370
        %v1435 = vsub.f32 %v475, %v1371
        %v1436 = vsub.f32 %v476, %v1372
        %v1437 = vsub.f32 %v477, %v1373
        %v1438 = vsub.f32 %v478, %v1374
        %v1439 = vsub.f32 %v479, %v1375
        %v1440 = vsub.f32 %v480, %v1376
        %v1441 = vsub.f32 %v481, %v1377
        %v1442 = vsub.f32 %v482, %v1378
        %v1443 = vsub.f32 %v483, %v1379
        %v1444 = vsub.f32 %v484, %v1380
        %v1445 = vsub.f32 %v485, %v1381
        %v1446 = vsub.f32 %v486, %v1382
        %v1447 = vsub.f32 %v487, %v1383
        %v1448 = vsub.f32 %v488, %v1384
        %v1449 = vsub.f32 %v489, %v1385
        %v1450 = vsub.f32 %v490, %v1386
        %v1451 = vmul.f32 %v1387, 1.442695
        %v1452 = vpow.pop %v1451
        %v1453 = vmul.f32 %v1388, 1.442695
        %v1454 = vpow.pop %v1453
        %v1455 = vmul.f32 %v1389, 1.442695
        %v1456 = vpow.pop %v1455
        %v1457 = vmul.f32 %v1390, 1.442695
        %v1458 = vpow.pop %v1457
        %v1459 = vmul.f32 %v1391, 1.442695
        %v1460 = vpow.pop %v1459
        %v1461 = vmul.f32 %v1392, 1.442695
        %v1462 = vpow.pop %v1461
        %v1463 = vmul.f32 %v1393, 1.442695
        %v1464 = vpow.pop %v1463
        %v1465 = vmul.f32 %v1394, 1.442695
        %v1466 = vpow.pop %v1465
        %v1467 = vmul.f32 %v1395, 1.442695
        %v1468 = vpow.pop %v1467
        %v1469 = vmul.f32 %v1396, 1.442695
        %v1470 = vpow.pop %v1469
        %v1471 = vmul.f32 %v1397, 1.442695
        %v1472 = vpow.pop %v1471
        %v1473 = vmul.f32 %v1398, 1.442695
        %v1474 = vpow.pop %v1473
        %v1475 = vmul.f32 %v1399, 1.442695
        %v1476 = vpow.pop %v1475
        %v1477 = vmul.f32 %v1400, 1.442695
        %v1478 = vpow.pop %v1477
        %v1479 = vmul.f32 %v1401, 1.442695
        %v1480 = vpow.pop %v1479
        %v1481 = vmul.f32 %v1402, 1.442695
        %v1482 = vpow.pop %v1481
        %v1483 = vmul.f32 %v1403, 1.442695
        %v1484 = vpow.pop %v1483
        %v1485 = vmul.f32 %v1404, 1.442695
        %v1486 = vpow.pop %v1485
        %v1487 = vmul.f32 %v1405, 1.442695
        %v1488 = vpow.pop %v1487
        %v1489 = vmul.f32 %v1406, 1.442695
        %v1490 = vpow.pop %v1489
        %v1491 = vmul.f32 %v1407, 1.442695
        %v1492 = vpow.pop %v1491
        %v1493 = vmul.f32 %v1408, 1.442695
        %v1494 = vpow.pop %v1493
        %v1495 = vmul.f32 %v1409, 1.442695
        %v1496 = vpow.pop %v1495
        %v1497 = vmul.f32 %v1410, 1.442695
        %v1498 = vpow.pop %v1497
        %v1499 = vmul.f32 %v1411, 1.442695
        %v1500 = vpow.pop %v1499
        %v1501 = vmul.f32 %v1412, 1.442695
        %v1502 = vpow.pop %v1501
        %v1503 = vmul.f32 %v1413, 1.442695
        %v1504 = vpow.pop %v1503
        %v1505 = vmul.f32 %v1414, 1.442695
        %v1506 = vpow.pop %v1505
        %v1507 = vmul.f32 %v1415, 1.442695
        %v1508 = vpow.pop %v1507
        %v1509 = vmul.f32 %v1416, 1.442695
        %v1510 = vpow.pop %v1509
        %v1511 = vmul.f32 %v1417, 1.442695
        %v1512 = vpow.pop %v1511
        %v1513 = vmul.f32 %v1418, 1.442695
        %v1514 = vpow.pop %v1513
        %v1515 = vmul.f32 %v1419, 1.442695
        %v1516 = vpow.pop %v1515
        %v1517 = vmul.f32 %v1420, 1.442695
        %v1518 = vpow.pop %v1517
        %v1519 = vmul.f32 %v1421, 1.442695
        %v1520 = vpow.pop %v1519
        %v1521 = vmul.f32 %v1422, 1.442695
        %v1522 = vpow.pop %v1521
        %v1523 = vmul.f32 %v1423, 1.442695
        %v1524 = vpow.pop %v1523
        %v1525 = vmul.f32 %v1424, 1.442695
        %v1526 = vpow.pop %v1525
        %v1527 = vmul.f32 %v1425, 1.442695
        %v1528 = vpow.pop %v1527
        %v1529 = vmul.f32 %v1426, 1.442695
        %v1530 = vpow.pop %v1529
        %v1531 = vmul.f32 %v1427, 1.442695
        %v1532 = vpow.pop %v1531
        %v1533 = vmul.f32 %v1428, 1.442695
        %v1534 = vpow.pop %v1533
        %v1535 = vmul.f32 %v1429, 1.442695
        %v1536 = vpow.pop %v1535
        %v1537 = vmul.f32 %v1430, 1.442695
        %v1538 = vpow.pop %v1537
        %v1539 = vmul.f32 %v1431, 1.442695
        %v1540 = vpow.pop %v1539
        %v1541 = vmul.f32 %v1432, 1.442695
        %v1542 = vpow.pop %v1541
        %v1543 = vmul.f32 %v1433, 1.442695
        %v1544 = vpow.pop %v1543
        %v1545 = vmul.f32 %v1434, 1.442695
        %v1546 = vpow.pop %v1545
        %v1547 = vmul.f32 %v1435, 1.442695
        %v1548 = vpow.pop %v1547
        %v1549 = vmul.f32 %v1436, 1.442695
        %v1550 = vpow.pop %v1549
        %v1551 = vmul.f32 %v1437, 1.442695
        %v1552 = vpow.pop %v1551
        %v1553 = vmul.f32 %v1438, 1.442695
        %v1554 = vpow.pop %v1553
        %v1555 = vmul.f32 %v1439, 1.442695
        %v1556 = vpow.pop %v1555
        %v1557 = vmul.f32 %v1440, 1.442695
        %v1558 = vpow.pop %v1557
        %v1559 = vmul.f32 %v1441, 1.442695
        %v1560 = vpow.pop %v1559
        %v1561 = vmul.f32 %v1442, 1.442695
        %v1562 = vpow.pop %v1561
        %v1563 = vmul.f32 %v1443, 1.442695
        %v1564 = vpow.pop %v1563
        %v1565 = vmul.f32 %v1444, 1.442695
        %v1566 = vpow.pop %v1565
        %v1567 = vmul.f32 %v1445, 1.442695
        %v1568 = vpow.pop %v1567
        %v1569 = vmul.f32 %v1446, 1.442695
        %v1570 = vpow.pop %v1569
        %v1571 = vmul.f32 %v1447, 1.442695
        %v1572 = vpow.pop %v1571
        %v1573 = vmul.f32 %v1448, 1.442695
        %v1574 = vpow.pop %v1573
        %v1575 = vmul.f32 %v1449, 1.442695
        %v1576 = vpow.pop %v1575
        %v1577 = vmul.f32 %v1450, 1.442695
        %v1578 = vpow.pop %v1577
        %1643 = vrot.lane.b32.xlu0 %v1323, 1
        %v1644 = vpop.permute.xlu0 %1643
        %1645 = vrot.lane.b32.xlu0 %v1324, 1
        %v1646 = vpop.permute.xlu0 %1645
        %1647 = vrot.lane.b32.xlu0 %v1325, 1
        %v1648 = vpop.permute.xlu0 %1647
        %1649 = vrot.lane.b32.xlu0 %v1326, 1
        %v1650 = vpop.permute.xlu0 %1649
        %1651 = vrot.lane.b32.xlu0 %v1327, 1
        %v1652 = vpop.permute.xlu0 %1651
        %1653 = vrot.lane.b32.xlu0 %v1328, 1
        %v1654 = vpop.permute.xlu0 %1653
        %1655 = vrot.lane.b32.xlu0 %v1329, 1
        %v1656 = vpop.permute.xlu0 %1655
        %1657 = vrot.lane.b32.xlu0 %v1330, 1
        %v1658 = vpop.permute.xlu0 %1657
        %1659 = vrot.lane.b32.xlu0 %v1331, 1
        %v1660 = vpop.permute.xlu0 %1659
        %1661 = vrot.lane.b32.xlu0 %v1332, 1
        %v1662 = vpop.permute.xlu0 %1661
        %1663 = vrot.lane.b32.xlu0 %v1333, 1
        %v1664 = vpop.permute.xlu0 %1663
        %1665 = vrot.lane.b32.xlu0 %v1334, 1
        %v1666 = vpop.permute.xlu0 %1665
        %1667 = vrot.lane.b32.xlu0 %v1335, 1
        %v1668 = vpop.permute.xlu0 %1667
        %1669 = vrot.lane.b32.xlu0 %v1336, 1
        %v1670 = vpop.permute.xlu0 %1669
        %1671 = vrot.lane.b32.xlu0 %v1337, 1
        %v1672 = vpop.permute.xlu0 %1671
        %1673 = vrot.lane.b32.xlu0 %v1338, 1
        %v1674 = vpop.permute.xlu0 %1673
        %1675 = vrot.lane.b32.xlu0 %v1339, 1
        %v1676 = vpop.permute.xlu0 %1675
        %1677 = vrot.lane.b32.xlu0 %v1340, 1
        %v1678 = vpop.permute.xlu0 %1677
        %1679 = vrot.lane.b32.xlu0 %v1341, 1
        %v1680 = vpop.permute.xlu0 %1679
        %1681 = vrot.lane.b32.xlu0 %v1342, 1
        %v1682 = vpop.permute.xlu0 %1681
        %1683 = vrot.lane.b32.xlu0 %v1343, 1
        %v1684 = vpop.permute.xlu0 %1683
        %1685 = vrot.lane.b32.xlu0 %v1344, 1
        %v1686 = vpop.permute.xlu0 %1685
        %1687 = vrot.lane.b32.xlu0 %v1345, 1
        %v1688 = vpop.permute.xlu0 %1687
        %1689 = vrot.lane.b32.xlu0 %v1346, 1
        %v1690 = vpop.permute.xlu0 %1689
        %1691 = vrot.lane.b32.xlu0 %v1347, 1
        %v1692 = vpop.permute.xlu0 %1691
        %1693 = vrot.lane.b32.xlu0 %v1348, 1
        %v1694 = vpop.permute.xlu0 %1693
        %1695 = vrot.lane.b32.xlu0 %v1349, 1
        %v1696 = vpop.permute.xlu0 %1695
        %1697 = vrot.lane.b32.xlu0 %v1350, 1
        %v1698 = vpop.permute.xlu0 %1697
        %1699 = vrot.lane.b32.xlu0 %v1351, 1
        %v1700 = vpop.permute.xlu0 %1699
        %1701 = vrot.lane.b32.xlu0 %v1352, 1
        %v1702 = vpop.permute.xlu0 %1701
        %1703 = vrot.lane.b32.xlu0 %v1353, 1
        %v1704 = vpop.permute.xlu0 %1703
        %1705 = vrot.lane.b32.xlu0 %v1354, 1
        %v1706 = vpop.permute.xlu0 %1705
        %1707 = vrot.lane.b32.xlu0 %v1355, 1
        %v1708 = vpop.permute.xlu0 %1707
        %1709 = vrot.lane.b32.xlu0 %v1356, 1
        %v1710 = vpop.permute.xlu0 %1709
        %1711 = vrot.lane.b32.xlu0 %v1357, 1
        %v1712 = vpop.permute.xlu0 %1711
        %1713 = vrot.lane.b32.xlu0 %v1358, 1
        %v1714 = vpop.permute.xlu0 %1713
        %1715 = vrot.lane.b32.xlu0 %v1359, 1
        %v1716 = vpop.permute.xlu0 %1715
        %1717 = vrot.lane.b32.xlu0 %v1360, 1
        %v1718 = vpop.permute.xlu0 %1717
        %1719 = vrot.lane.b32.xlu0 %v1361, 1
        %v1720 = vpop.permute.xlu0 %1719
        %1721 = vrot.lane.b32.xlu0 %v1362, 1
        %v1722 = vpop.permute.xlu0 %1721
        %1723 = vrot.lane.b32.xlu0 %v1363, 1
        %v1724 = vpop.permute.xlu0 %1723
        %1725 = vrot.lane.b32.xlu0 %v1364, 1
        %v1726 = vpop.permute.xlu0 %1725
        %1727 = vrot.lane.b32.xlu0 %v1365, 1
        %v1728 = vpop.permute.xlu0 %1727
        %1729 = vrot.lane.b32.xlu0 %v1366, 1
        %v1730 = vpop.permute.xlu0 %1729
        %1731 = vrot.lane.b32.xlu0 %v1367, 1
        %v1732 = vpop.permute.xlu0 %1731
        %1733 = vrot.lane.b32.xlu0 %v1368, 1
        %v1734 = vpop.permute.xlu0 %1733
        %1735 = vrot.lane.b32.xlu0 %v1369, 1
        %v1736 = vpop.permute.xlu0 %1735
        %1737 = vrot.lane.b32.xlu0 %v1370, 1
        %v1738 = vpop.permute.xlu0 %1737
        %1739 = vrot.lane.b32.xlu0 %v1371, 1
        %v1740 = vpop.permute.xlu0 %1739
        %1741 = vrot.lane.b32.xlu0 %v1372, 1
        %v1742 = vpop.permute.xlu0 %1741
        %1743 = vrot.lane.b32.xlu0 %v1373, 1
        %v1744 = vpop.permute.xlu0 %1743
        %1745 = vrot.lane.b32.xlu0 %v1374, 1
        %v1746 = vpop.permute.xlu0 %1745
        %1747 = vrot.lane.b32.xlu0 %v1375, 1
        %v1748 = vpop.permute.xlu0 %1747
        %1749 = vrot.lane.b32.xlu0 %v1376, 1
        %v1750 = vpop.permute.xlu0 %1749
        %1751 = vrot.lane.b32.xlu0 %v1377, 1
        %v1752 = vpop.permute.xlu0 %1751
        %1753 = vrot.lane.b32.xlu0 %v1378, 1
        %v1754 = vpop.permute.xlu0 %1753
        %1755 = vrot.lane.b32.xlu0 %v1379, 1
        %v1756 = vpop.permute.xlu0 %1755
        %1757 = vrot.lane.b32.xlu0 %v1380, 1
        %v1758 = vpop.permute.xlu0 %1757
        %1759 = vrot.lane.b32.xlu0 %v1381, 1
        %v1760 = vpop.permute.xlu0 %1759
        %1761 = vrot.lane.b32.xlu0 %v1382, 1
        %v1762 = vpop.permute.xlu0 %1761
        %1763 = vrot.lane.b32.xlu0 %v1383, 1
        %v1764 = vpop.permute.xlu0 %1763
        %1765 = vrot.lane.b32.xlu0 %v1384, 1
        %v1766 = vpop.permute.xlu0 %1765
        %1767 = vrot.lane.b32.xlu0 %v1385, 1
        %v1768 = vpop.permute.xlu0 %1767
        %1769 = vrot.lane.b32.xlu0 %v1386, 1
        %v1770 = vpop.permute.xlu0 %1769
        %v1835 = vsub.f32 %v427, %v1644
        %v1836 = vsub.f32 %v428, %v1646
        %v1837 = vsub.f32 %v429, %v1648
        %v1838 = vsub.f32 %v430, %v1650
        %v1839 = vsub.f32 %v431, %v1652
        %v1840 = vsub.f32 %v432, %v1654
        %v1841 = vsub.f32 %v433, %v1656
        %v1842 = vsub.f32 %v434, %v1658
        %v1843 = vsub.f32 %v435, %v1660
        %v1844 = vsub.f32 %v436, %v1662
        %v1845 = vsub.f32 %v437, %v1664
        %v1846 = vsub.f32 %v438, %v1666
        %v1847 = vsub.f32 %v439, %v1668
        %v1848 = vsub.f32 %v440, %v1670
        %v1849 = vsub.f32 %v441, %v1672
        %v1850 = vsub.f32 %v442, %v1674
        %v1851 = vsub.f32 %v443, %v1676
        %v1852 = vsub.f32 %v444, %v1678
        %v1853 = vsub.f32 %v445, %v1680
        %v1854 = vsub.f32 %v446, %v1682
        %v1855 = vsub.f32 %v447, %v1684
        %v1856 = vsub.f32 %v448, %v1686
        %v1857 = vsub.f32 %v449, %v1688
        %v1858 = vsub.f32 %v450, %v1690
        %v1859 = vsub.f32 %v451, %v1692
        %v1860 = vsub.f32 %v452, %v1694
        %v1861 = vsub.f32 %v453, %v1696
        %v1862 = vsub.f32 %v454, %v1698
        %v1863 = vsub.f32 %v455, %v1700
        %v1864 = vsub.f32 %v456, %v1702
        %v1865 = vsub.f32 %v457, %v1704
        %v1866 = vsub.f32 %v458, %v1706
        %v1867 = vsub.f32 %v459, %v1708
        %v1868 = vsub.f32 %v460, %v1710
        %v1869 = vsub.f32 %v461, %v1712
        %v1870 = vsub.f32 %v462, %v1714
        %v1871 = vsub.f32 %v463, %v1716
        %v1872 = vsub.f32 %v464, %v1718
        %v1873 = vsub.f32 %v465, %v1720
        %v1874 = vsub.f32 %v466, %v1722
        %v1875 = vsub.f32 %v467, %v1724
        %v1876 = vsub.f32 %v468, %v1726
        %v1877 = vsub.f32 %v469, %v1728
        %v1878 = vsub.f32 %v470, %v1730
        %v1879 = vsub.f32 %v471, %v1732
        %v1880 = vsub.f32 %v472, %v1734
        %v1881 = vsub.f32 %v473, %v1736
        %v1882 = vsub.f32 %v474, %v1738
        %v1883 = vsub.f32 %v475, %v1740
        %v1884 = vsub.f32 %v476, %v1742
        %v1885 = vsub.f32 %v477, %v1744
        %v1886 = vsub.f32 %v478, %v1746
        %v1887 = vsub.f32 %v479, %v1748
        %v1888 = vsub.f32 %v480, %v1750
        %v1889 = vsub.f32 %v481, %v1752
        %v1890 = vsub.f32 %v482, %v1754
        %v1891 = vsub.f32 %v483, %v1756
        %v1892 = vsub.f32 %v484, %v1758
        %v1893 = vsub.f32 %v485, %v1760
        %v1894 = vsub.f32 %v486, %v1762
        %v1895 = vsub.f32 %v487, %v1764
        %v1896 = vsub.f32 %v488, %v1766
        %v1897 = vsub.f32 %v489, %v1768
        %v1898 = vsub.f32 %v490, %v1770
        %v1899 = vmul.f32 %v1835, 1.442695
        %v1900 = vpow.pop %v1899
        %v1901 = vmul.f32 %v1836, 1.442695
        %v1902 = vpow.pop %v1901
        %v1903 = vmul.f32 %v1837, 1.442695
        %v1904 = vpow.pop %v1903
        %v1905 = vmul.f32 %v1838, 1.442695
        %v1906 = vpow.pop %v1905
        %v1907 = vmul.f32 %v1839, 1.442695
        %v1908 = vpow.pop %v1907
        %v1909 = vmul.f32 %v1840, 1.442695
        %v1910 = vpow.pop %v1909
        %v1911 = vmul.f32 %v1841, 1.442695
        %v1912 = vpow.pop %v1911
        %v1913 = vmul.f32 %v1842, 1.442695
        %v1914 = vpow.pop %v1913
        %v1915 = vmul.f32 %v1843, 1.442695
        %v1916 = vpow.pop %v1915
        %v1917 = vmul.f32 %v1844, 1.442695
        %v1918 = vpow.pop %v1917
        %v1919 = vmul.f32 %v1845, 1.442695
        %v1920 = vpow.pop %v1919
        %v1921 = vmul.f32 %v1846, 1.442695
        %v1922 = vpow.pop %v1921
        %v1923 = vmul.f32 %v1847, 1.442695
        %v1924 = vpow.pop %v1923
        %v1925 = vmul.f32 %v1848, 1.442695
        %v1926 = vpow.pop %v1925
        %v1927 = vmul.f32 %v1849, 1.442695
        %v1928 = vpow.pop %v1927
        %v1929 = vmul.f32 %v1850, 1.442695
        %v1930 = vpow.pop %v1929
        %v1931 = vmul.f32 %v1851, 1.442695
        %v1932 = vpow.pop %v1931
        %v1933 = vmul.f32 %v1852, 1.442695
        %v1934 = vpow.pop %v1933
        %v1935 = vmul.f32 %v1853, 1.442695
        %v1936 = vpow.pop %v1935
        %v1937 = vmul.f32 %v1854, 1.442695
        %v1938 = vpow.pop %v1937
        %v1939 = vmul.f32 %v1855, 1.442695
        %v1940 = vpow.pop %v1939
        %v1941 = vmul.f32 %v1856, 1.442695
        %v1942 = vpow.pop %v1941
        %v1943 = vmul.f32 %v1857, 1.442695
        %v1944 = vpow.pop %v1943
        %v1945 = vmul.f32 %v1858, 1.442695
        %v1946 = vpow.pop %v1945
        %v1947 = vmul.f32 %v1859, 1.442695
        %v1948 = vpow.pop %v1947
        %v1949 = vmul.f32 %v1860, 1.442695
        %v1950 = vpow.pop %v1949
        %v1951 = vmul.f32 %v1861, 1.442695
        %v1952 = vpow.pop %v1951
        %v1953 = vmul.f32 %v1862, 1.442695
        %v1954 = vpow.pop %v1953
        %v1955 = vmul.f32 %v1863, 1.442695
        %v1956 = vpow.pop %v1955
        %v1957 = vmul.f32 %v1864, 1.442695
        %v1958 = vpow.pop %v1957
        %v1959 = vmul.f32 %v1865, 1.442695
        %v1960 = vpow.pop %v1959
        %v1961 = vmul.f32 %v1866, 1.442695
        %v1962 = vpow.pop %v1961
        %v1963 = vmul.f32 %v1867, 1.442695
        %v1964 = vpow.pop %v1963
        %v1965 = vmul.f32 %v1868, 1.442695
        %v1966 = vpow.pop %v1965
        %v1967 = vmul.f32 %v1869, 1.442695
        %v1968 = vpow.pop %v1967
        %v1969 = vmul.f32 %v1870, 1.442695
        %v1970 = vpow.pop %v1969
        %v1971 = vmul.f32 %v1871, 1.442695
        %v1972 = vpow.pop %v1971
        %v1973 = vmul.f32 %v1872, 1.442695
        %v1974 = vpow.pop %v1973
        %v1975 = vmul.f32 %v1873, 1.442695
        %v1976 = vpow.pop %v1975
        %v1977 = vmul.f32 %v1874, 1.442695
        %v1978 = vpow.pop %v1977
        %v1979 = vmul.f32 %v1875, 1.442695
        %v1980 = vpow.pop %v1979
        %v1981 = vmul.f32 %v1876, 1.442695
        %v1982 = vpow.pop %v1981
        %v1983 = vmul.f32 %v1877, 1.442695
        %v1984 = vpow.pop %v1983
        %v1985 = vmul.f32 %v1878, 1.442695
        %v1986 = vpow.pop %v1985
        %v1987 = vmul.f32 %v1879, 1.442695
        %v1988 = vpow.pop %v1987
        %v1989 = vmul.f32 %v1880, 1.442695
        %v1990 = vpow.pop %v1989
        %v1991 = vmul.f32 %v1881, 1.442695
        %v1992 = vpow.pop %v1991
        %v1993 = vmul.f32 %v1882, 1.442695
        %v1994 = vpow.pop %v1993
        %v1995 = vmul.f32 %v1883, 1.442695
        %v1996 = vpow.pop %v1995
        %v1997 = vmul.f32 %v1884, 1.442695
        %v1998 = vpow.pop %v1997
        %v1999 = vmul.f32 %v1885, 1.442695
        %v2000 = vpow.pop %v1999
        %v2001 = vmul.f32 %v1886, 1.442695
        %v2002 = vpow.pop %v2001
        %v2003 = vmul.f32 %v1887, 1.442695
        %v2004 = vpow.pop %v2003
        %v2005 = vmul.f32 %v1888, 1.442695
        %v2006 = vpow.pop %v2005
        %v2007 = vmul.f32 %v1889, 1.442695
        %v2008 = vpow.pop %v2007
        %v2009 = vmul.f32 %v1890, 1.442695
        %v2010 = vpow.pop %v2009
        %v2011 = vmul.f32 %v1891, 1.442695
        %v2012 = vpow.pop %v2011
        %v2013 = vmul.f32 %v1892, 1.442695
        %v2014 = vpow.pop %v2013
        %v2015 = vmul.f32 %v1893, 1.442695
        %v2016 = vpow.pop %v2015
        %v2017 = vmul.f32 %v1894, 1.442695
        %v2018 = vpow.pop %v2017
        %v2019 = vmul.f32 %v1895, 1.442695
        %v2020 = vpow.pop %v2019
        %v2021 = vmul.f32 %v1896, 1.442695
        %v2022 = vpow.pop %v2021
        %v2023 = vmul.f32 %v1897, 1.442695
        %v2024 = vpow.pop %v2023
        %v2025 = vmul.f32 %v1898, 1.442695
        %v2026 = vpow.pop %v2025
        %2027 = vrot.lane.b32.xlu0 %v1323, 2
        %v2028 = vpop.permute.xlu0 %2027
        %2029 = vrot.lane.b32.xlu0 %v1324, 2
        %v2030 = vpop.permute.xlu0 %2029
        %2031 = vrot.lane.b32.xlu0 %v1325, 2
        %v2032 = vpop.permute.xlu0 %2031
        %2033 = vrot.lane.b32.xlu0 %v1326, 2
        %v2034 = vpop.permute.xlu0 %2033
        %2035 = vrot.lane.b32.xlu0 %v1327, 2
        %v2036 = vpop.permute.xlu0 %2035
        %2037 = vrot.lane.b32.xlu0 %v1328, 2
        %v2038 = vpop.permute.xlu0 %2037
        %2039 = vrot.lane.b32.xlu0 %v1329, 2
        %v2040 = vpop.permute.xlu0 %2039
        %2041 = vrot.lane.b32.xlu0 %v1330, 2
        %v2042 = vpop.permute.xlu0 %2041
        %2043 = vrot.lane.b32.xlu0 %v1331, 2
        %v2044 = vpop.permute.xlu0 %2043
        %2045 = vrot.lane.b32.xlu0 %v1332, 2
        %v2046 = vpop.permute.xlu0 %2045
        %2047 = vrot.lane.b32.xlu0 %v1333, 2
        %v2048 = vpop.permute.xlu0 %2047
        %2049 = vrot.lane.b32.xlu0 %v1334, 2
        %v2050 = vpop.permute.xlu0 %2049
        %2051 = vrot.lane.b32.xlu0 %v1335, 2
        %v2052 = vpop.permute.xlu0 %2051
        %2053 = vrot.lane.b32.xlu0 %v1336, 2
        %v2054 = vpop.permute.xlu0 %2053
        %2055 = vrot.lane.b32.xlu0 %v1337, 2
        %v2056 = vpop.permute.xlu0 %2055
        %2057 = vrot.lane.b32.xlu0 %v1338, 2
        %v2058 = vpop.permute.xlu0 %2057
        %2059 = vrot.lane.b32.xlu0 %v1339, 2
        %v2060 = vpop.permute.xlu0 %2059
        %2061 = vrot.lane.b32.xlu0 %v1340, 2
        %v2062 = vpop.permute.xlu0 %2061
        %2063 = vrot.lane.b32.xlu0 %v1341, 2
        %v2064 = vpop.permute.xlu0 %2063
        %2065 = vrot.lane.b32.xlu0 %v1342, 2
        %v2066 = vpop.permute.xlu0 %2065
        %2067 = vrot.lane.b32.xlu0 %v1343, 2
        %v2068 = vpop.permute.xlu0 %2067
        %2069 = vrot.lane.b32.xlu0 %v1344, 2
        %v2070 = vpop.permute.xlu0 %2069
        %2071 = vrot.lane.b32.xlu0 %v1345, 2
        %v2072 = vpop.permute.xlu0 %2071
        %2073 = vrot.lane.b32.xlu0 %v1346, 2
        %v2074 = vpop.permute.xlu0 %2073
        %2075 = vrot.lane.b32.xlu0 %v1347, 2
        %v2076 = vpop.permute.xlu0 %2075
        %2077 = vrot.lane.b32.xlu0 %v1348, 2
        %v2078 = vpop.permute.xlu0 %2077
        %2079 = vrot.lane.b32.xlu0 %v1349, 2
        %v2080 = vpop.permute.xlu0 %2079
        %2081 = vrot.lane.b32.xlu0 %v1350, 2
        %v2082 = vpop.permute.xlu0 %2081
        %2083 = vrot.lane.b32.xlu0 %v1351, 2
        %v2084 = vpop.permute.xlu0 %2083
        %2085 = vrot.lane.b32.xlu0 %v1352, 2
        %v2086 = vpop.permute.xlu0 %2085
        %2087 = vrot.lane.b32.xlu0 %v1353, 2
        %v2088 = vpop.permute.xlu0 %2087
        %2089 = vrot.lane.b32.xlu0 %v1354, 2
        %v2090 = vpop.permute.xlu0 %2089
        %2091 = vrot.lane.b32.xlu0 %v1355, 2
        %v2092 = vpop.permute.xlu0 %2091
        %2093 = vrot.lane.b32.xlu0 %v1356, 2
        %v2094 = vpop.permute.xlu0 %2093
        %2095 = vrot.lane.b32.xlu0 %v1357, 2
        %v2096 = vpop.permute.xlu0 %2095
        %2097 = vrot.lane.b32.xlu0 %v1358, 2
        %v2098 = vpop.permute.xlu0 %2097
        %2099 = vrot.lane.b32.xlu0 %v1359, 2
        %v2100 = vpop.permute.xlu0 %2099
        %2101 = vrot.lane.b32.xlu0 %v1360, 2
        %v2102 = vpop.permute.xlu0 %2101
        %2103 = vrot.lane.b32.xlu0 %v1361, 2
        %v2104 = vpop.permute.xlu0 %2103
        %2105 = vrot.lane.b32.xlu0 %v1362, 2
        %v2106 = vpop.permute.xlu0 %2105
        %2107 = vrot.lane.b32.xlu0 %v1363, 2
        %v2108 = vpop.permute.xlu0 %2107
        %2109 = vrot.lane.b32.xlu0 %v1364, 2
        %v2110 = vpop.permute.xlu0 %2109
        %2111 = vrot.lane.b32.xlu0 %v1365, 2
        %v2112 = vpop.permute.xlu0 %2111
        %2113 = vrot.lane.b32.xlu0 %v1366, 2
        %v2114 = vpop.permute.xlu0 %2113
        %2115 = vrot.lane.b32.xlu0 %v1367, 2
        %v2116 = vpop.permute.xlu0 %2115
        %2117 = vrot.lane.b32.xlu0 %v1368, 2
        %v2118 = vpop.permute.xlu0 %2117
        %2119 = vrot.lane.b32.xlu0 %v1369, 2
        %v2120 = vpop.permute.xlu0 %2119
        %2121 = vrot.lane.b32.xlu0 %v1370, 2
        %v2122 = vpop.permute.xlu0 %2121
        %2123 = vrot.lane.b32.xlu0 %v1371, 2
        %v2124 = vpop.permute.xlu0 %2123
        %2125 = vrot.lane.b32.xlu0 %v1372, 2
        %v2126 = vpop.permute.xlu0 %2125
        %2127 = vrot.lane.b32.xlu0 %v1373, 2
        %v2128 = vpop.permute.xlu0 %2127
        %2129 = vrot.lane.b32.xlu0 %v1374, 2
        %v2130 = vpop.permute.xlu0 %2129
        %2131 = vrot.lane.b32.xlu0 %v1375, 2
        %v2132 = vpop.permute.xlu0 %2131
        %2133 = vrot.lane.b32.xlu0 %v1376, 2
        %v2134 = vpop.permute.xlu0 %2133
        %2135 = vrot.lane.b32.xlu0 %v1377, 2
        %v2136 = vpop.permute.xlu0 %2135
        %2137 = vrot.lane.b32.xlu0 %v1378, 2
        %v2138 = vpop.permute.xlu0 %2137
        %2139 = vrot.lane.b32.xlu0 %v1379, 2
        %v2140 = vpop.permute.xlu0 %2139
        %2141 = vrot.lane.b32.xlu0 %v1380, 2
        %v2142 = vpop.permute.xlu0 %2141
        %2143 = vrot.lane.b32.xlu0 %v1381, 2
        %v2144 = vpop.permute.xlu0 %2143
        %2145 = vrot.lane.b32.xlu0 %v1382, 2
        %v2146 = vpop.permute.xlu0 %2145
        %2147 = vrot.lane.b32.xlu0 %v1383, 2
        %v2148 = vpop.permute.xlu0 %2147
        %2149 = vrot.lane.b32.xlu0 %v1384, 2
        %v2150 = vpop.permute.xlu0 %2149
        %2151 = vrot.lane.b32.xlu0 %v1385, 2
        %v2152 = vpop.permute.xlu0 %2151
        %2153 = vrot.lane.b32.xlu0 %v1386, 2
        %v2154 = vpop.permute.xlu0 %2153
        %v2219 = vsub.f32 %v427, %v2028
        %v2220 = vsub.f32 %v428, %v2030
        %v2221 = vsub.f32 %v429, %v2032
        %v2222 = vsub.f32 %v430, %v2034
        %v2223 = vsub.f32 %v431, %v2036
        %v2224 = vsub.f32 %v432, %v2038
        %v2225 = vsub.f32 %v433, %v2040
        %v2226 = vsub.f32 %v434, %v2042
        %v2227 = vsub.f32 %v435, %v2044
        %v2228 = vsub.f32 %v436, %v2046
        %v2229 = vsub.f32 %v437, %v2048
        %v2230 = vsub.f32 %v438, %v2050
        %v2231 = vsub.f32 %v439, %v2052
        %v2232 = vsub.f32 %v440, %v2054
        %v2233 = vsub.f32 %v441, %v2056
        %v2234 = vsub.f32 %v442, %v2058
        %v2235 = vsub.f32 %v443, %v2060
        %v2236 = vsub.f32 %v444, %v2062
        %v2237 = vsub.f32 %v445, %v2064
        %v2238 = vsub.f32 %v446, %v2066
        %v2239 = vsub.f32 %v447, %v2068
        %v2240 = vsub.f32 %v448, %v2070
        %v2241 = vsub.f32 %v449, %v2072
        %v2242 = vsub.f32 %v450, %v2074
        %v2243 = vsub.f32 %v451, %v2076
        %v2244 = vsub.f32 %v452, %v2078
        %v2245 = vsub.f32 %v453, %v2080
        %v2246 = vsub.f32 %v454, %v2082
        %v2247 = vsub.f32 %v455, %v2084
        %v2248 = vsub.f32 %v456, %v2086
        %v2249 = vsub.f32 %v457, %v2088
        %v2250 = vsub.f32 %v458, %v2090
        %v2251 = vsub.f32 %v459, %v2092
        %v2252 = vsub.f32 %v460, %v2094
        %v2253 = vsub.f32 %v461, %v2096
        %v2254 = vsub.f32 %v462, %v2098
        %v2255 = vsub.f32 %v463, %v2100
        %v2256 = vsub.f32 %v464, %v2102
        %v2257 = vsub.f32 %v465, %v2104
        %v2258 = vsub.f32 %v466, %v2106
        %v2259 = vsub.f32 %v467, %v2108
        %v2260 = vsub.f32 %v468, %v2110
        %v2261 = vsub.f32 %v469, %v2112
        %v2262 = vsub.f32 %v470, %v2114
        %v2263 = vsub.f32 %v471, %v2116
        %v2264 = vsub.f32 %v472, %v2118
        %v2265 = vsub.f32 %v473, %v2120
        %v2266 = vsub.f32 %v474, %v2122
        %v2267 = vsub.f32 %v475, %v2124
        %v2268 = vsub.f32 %v476, %v2126
        %v2269 = vsub.f32 %v477, %v2128
        %v2270 = vsub.f32 %v478, %v2130
        %v2271 = vsub.f32 %v479, %v2132
        %v2272 = vsub.f32 %v480, %v2134
        %v2273 = vsub.f32 %v481, %v2136
        %v2274 = vsub.f32 %v482, %v2138
        %v2275 = vsub.f32 %v483, %v2140
        %v2276 = vsub.f32 %v484, %v2142
        %v2277 = vsub.f32 %v485, %v2144
        %v2278 = vsub.f32 %v486, %v2146
        %v2279 = vsub.f32 %v487, %v2148
        %v2280 = vsub.f32 %v488, %v2150
        %v2281 = vsub.f32 %v489, %v2152
        %v2282 = vsub.f32 %v490, %v2154
        %v2283 = vmul.f32 %v2219, 1.442695
        %v2284 = vpow.pop %v2283
        %v2285 = vmul.f32 %v2220, 1.442695
        %v2286 = vpow.pop %v2285
        %v2287 = vmul.f32 %v2221, 1.442695
        %v2288 = vpow.pop %v2287
        %v2289 = vmul.f32 %v2222, 1.442695
        %v2290 = vpow.pop %v2289
        %v2291 = vmul.f32 %v2223, 1.442695
        %v2292 = vpow.pop %v2291
        %v2293 = vmul.f32 %v2224, 1.442695
        %v2294 = vpow.pop %v2293
        %v2295 = vmul.f32 %v2225, 1.442695
        %v2296 = vpow.pop %v2295
        %v2297 = vmul.f32 %v2226, 1.442695
        %v2298 = vpow.pop %v2297
        %v2299 = vmul.f32 %v2227, 1.442695
        %v2300 = vpow.pop %v2299
        %v2301 = vmul.f32 %v2228, 1.442695
        %v2302 = vpow.pop %v2301
        %v2303 = vmul.f32 %v2229, 1.442695
        %v2304 = vpow.pop %v2303
        %v2305 = vmul.f32 %v2230, 1.442695
        %v2306 = vpow.pop %v2305
        %v2307 = vmul.f32 %v2231, 1.442695
        %v2308 = vpow.pop %v2307
        %v2309 = vmul.f32 %v2232, 1.442695
        %v2310 = vpow.pop %v2309
        %v2311 = vmul.f32 %v2233, 1.442695
        %v2312 = vpow.pop %v2311
        %v2313 = vmul.f32 %v2234, 1.442695
        %v2314 = vpow.pop %v2313
        %v2315 = vmul.f32 %v2235, 1.442695
        %v2316 = vpow.pop %v2315
        %v2317 = vmul.f32 %v2236, 1.442695
        %v2318 = vpow.pop %v2317
        %v2319 = vmul.f32 %v2237, 1.442695
        %v2320 = vpow.pop %v2319
        %v2321 = vmul.f32 %v2238, 1.442695
        %v2322 = vpow.pop %v2321
        %v2323 = vmul.f32 %v2239, 1.442695
        %v2324 = vpow.pop %v2323
        %v2325 = vmul.f32 %v2240, 1.442695
        %v2326 = vpow.pop %v2325
        %v2327 = vmul.f32 %v2241, 1.442695
        %v2328 = vpow.pop %v2327
        %v2329 = vmul.f32 %v2242, 1.442695
        %v2330 = vpow.pop %v2329
        %v2331 = vmul.f32 %v2243, 1.442695
        %v2332 = vpow.pop %v2331
        %v2333 = vmul.f32 %v2244, 1.442695
        %v2334 = vpow.pop %v2333
        %v2335 = vmul.f32 %v2245, 1.442695
        %v2336 = vpow.pop %v2335
        %v2337 = vmul.f32 %v2246, 1.442695
        %v2338 = vpow.pop %v2337
        %v2339 = vmul.f32 %v2247, 1.442695
        %v2340 = vpow.pop %v2339
        %v2341 = vmul.f32 %v2248, 1.442695
        %v2342 = vpow.pop %v2341
        %v2343 = vmul.f32 %v2249, 1.442695
        %v2344 = vpow.pop %v2343
        %v2345 = vmul.f32 %v2250, 1.442695
        %v2346 = vpow.pop %v2345
        %v2347 = vmul.f32 %v2251, 1.442695
        %v2348 = vpow.pop %v2347
        %v2349 = vmul.f32 %v2252, 1.442695
        %v2350 = vpow.pop %v2349
        %v2351 = vmul.f32 %v2253, 1.442695
        %v2352 = vpow.pop %v2351
        %v2353 = vmul.f32 %v2254, 1.442695
        %v2354 = vpow.pop %v2353
        %v2355 = vmul.f32 %v2255, 1.442695
        %v2356 = vpow.pop %v2355
        %v2357 = vmul.f32 %v2256, 1.442695
        %v2358 = vpow.pop %v2357
        %v2359 = vmul.f32 %v2257, 1.442695
        %v2360 = vpow.pop %v2359
        %v2361 = vmul.f32 %v2258, 1.442695
        %v2362 = vpow.pop %v2361
        %v2363 = vmul.f32 %v2259, 1.442695
        %v2364 = vpow.pop %v2363
        %v2365 = vmul.f32 %v2260, 1.442695
        %v2366 = vpow.pop %v2365
        %v2367 = vmul.f32 %v2261, 1.442695
        %v2368 = vpow.pop %v2367
        %v2369 = vmul.f32 %v2262, 1.442695
        %v2370 = vpow.pop %v2369
        %v2371 = vmul.f32 %v2263, 1.442695
        %v2372 = vpow.pop %v2371
        %v2373 = vmul.f32 %v2264, 1.442695
        %v2374 = vpow.pop %v2373
        %v2375 = vmul.f32 %v2265, 1.442695
        %v2376 = vpow.pop %v2375
        %v2377 = vmul.f32 %v2266, 1.442695
        %v2378 = vpow.pop %v2377
        %v2379 = vmul.f32 %v2267, 1.442695
        %v2380 = vpow.pop %v2379
        %v2381 = vmul.f32 %v2268, 1.442695
        %v2382 = vpow.pop %v2381
        %v2383 = vmul.f32 %v2269, 1.442695
        %v2384 = vpow.pop %v2383
        %v2385 = vmul.f32 %v2270, 1.442695
        %v2386 = vpow.pop %v2385
        %v2387 = vmul.f32 %v2271, 1.442695
        %v2388 = vpow.pop %v2387
        %v2389 = vmul.f32 %v2272, 1.442695
        %v2390 = vpow.pop %v2389
        %v2391 = vmul.f32 %v2273, 1.442695
        %v2392 = vpow.pop %v2391
        %v2393 = vmul.f32 %v2274, 1.442695
        %v2394 = vpow.pop %v2393
        %v2395 = vmul.f32 %v2275, 1.442695
        %v2396 = vpow.pop %v2395
        %v2397 = vmul.f32 %v2276, 1.442695
        %v2398 = vpow.pop %v2397
        %v2399 = vmul.f32 %v2277, 1.442695
        %v2400 = vpow.pop %v2399
        %v2401 = vmul.f32 %v2278, 1.442695
        %v2402 = vpow.pop %v2401
        %v2403 = vmul.f32 %v2279, 1.442695
        %v2404 = vpow.pop %v2403
        %v2405 = vmul.f32 %v2280, 1.442695
        %v2406 = vpow.pop %v2405
        %v2407 = vmul.f32 %v2281, 1.442695
        %v2408 = vpow.pop %v2407
        %v2409 = vmul.f32 %v2282, 1.442695
        %v2410 = vpow.pop %v2409
        %2411 = vrot.lane.b32.xlu0 %v1323, 3
        %v2412 = vpop.permute.xlu0 %2411
        %2413 = vrot.lane.b32.xlu0 %v1324, 3
        %v2414 = vpop.permute.xlu0 %2413
        %2415 = vrot.lane.b32.xlu0 %v1325, 3
        %v2416 = vpop.permute.xlu0 %2415
        %2417 = vrot.lane.b32.xlu0 %v1326, 3
        %v2418 = vpop.permute.xlu0 %2417
        %2419 = vrot.lane.b32.xlu0 %v1327, 3
        %v2420 = vpop.permute.xlu0 %2419
        %2421 = vrot.lane.b32.xlu0 %v1328, 3
        %v2422 = vpop.permute.xlu0 %2421
        %2423 = vrot.lane.b32.xlu0 %v1329, 3
        %v2424 = vpop.permute.xlu0 %2423
        %2425 = vrot.lane.b32.xlu0 %v1330, 3
        %v2426 = vpop.permute.xlu0 %2425
        %2427 = vrot.lane.b32.xlu0 %v1331, 3
        %v2428 = vpop.permute.xlu0 %2427
        %2429 = vrot.lane.b32.xlu0 %v1332, 3
        %v2430 = vpop.permute.xlu0 %2429
        %2431 = vrot.lane.b32.xlu0 %v1333, 3
        %v2432 = vpop.permute.xlu0 %2431
        %2433 = vrot.lane.b32.xlu0 %v1334, 3
        %v2434 = vpop.permute.xlu0 %2433
        %2435 = vrot.lane.b32.xlu0 %v1335, 3
        %v2436 = vpop.permute.xlu0 %2435
        %2437 = vrot.lane.b32.xlu0 %v1336, 3
        %v2438 = vpop.permute.xlu0 %2437
        %2439 = vrot.lane.b32.xlu0 %v1337, 3
        %v2440 = vpop.permute.xlu0 %2439
        %2441 = vrot.lane.b32.xlu0 %v1338, 3
        %v2442 = vpop.permute.xlu0 %2441
        %2443 = vrot.lane.b32.xlu0 %v1339, 3
        %v2444 = vpop.permute.xlu0 %2443
        %2445 = vrot.lane.b32.xlu0 %v1340, 3
        %v2446 = vpop.permute.xlu0 %2445
        %2447 = vrot.lane.b32.xlu0 %v1341, 3
        %v2448 = vpop.permute.xlu0 %2447
        %2449 = vrot.lane.b32.xlu0 %v1342, 3
        %v2450 = vpop.permute.xlu0 %2449
        %2451 = vrot.lane.b32.xlu0 %v1343, 3
        %v2452 = vpop.permute.xlu0 %2451
        %2453 = vrot.lane.b32.xlu0 %v1344, 3
        %v2454 = vpop.permute.xlu0 %2453
        %2455 = vrot.lane.b32.xlu0 %v1345, 3
        %v2456 = vpop.permute.xlu0 %2455
        %2457 = vrot.lane.b32.xlu0 %v1346, 3
        %v2458 = vpop.permute.xlu0 %2457
        %2459 = vrot.lane.b32.xlu0 %v1347, 3
        %v2460 = vpop.permute.xlu0 %2459
        %2461 = vrot.lane.b32.xlu0 %v1348, 3
        %v2462 = vpop.permute.xlu0 %2461
        %2463 = vrot.lane.b32.xlu0 %v1349, 3
        %v2464 = vpop.permute.xlu0 %2463
        %2465 = vrot.lane.b32.xlu0 %v1350, 3
        %v2466 = vpop.permute.xlu0 %2465
        %2467 = vrot.lane.b32.xlu0 %v1351, 3
        %v2468 = vpop.permute.xlu0 %2467
        %2469 = vrot.lane.b32.xlu0 %v1352, 3
        %v2470 = vpop.permute.xlu0 %2469
        %2471 = vrot.lane.b32.xlu0 %v1353, 3
        %v2472 = vpop.permute.xlu0 %2471
        %2473 = vrot.lane.b32.xlu0 %v1354, 3
        %v2474 = vpop.permute.xlu0 %2473
        %2475 = vrot.lane.b32.xlu0 %v1355, 3
        %v2476 = vpop.permute.xlu0 %2475
        %2477 = vrot.lane.b32.xlu0 %v1356, 3
        %v2478 = vpop.permute.xlu0 %2477
        %2479 = vrot.lane.b32.xlu0 %v1357, 3
        %v2480 = vpop.permute.xlu0 %2479
        %2481 = vrot.lane.b32.xlu0 %v1358, 3
        %v2482 = vpop.permute.xlu0 %2481
        %2483 = vrot.lane.b32.xlu0 %v1359, 3
        %v2484 = vpop.permute.xlu0 %2483
        %2485 = vrot.lane.b32.xlu0 %v1360, 3
        %v2486 = vpop.permute.xlu0 %2485
        %2487 = vrot.lane.b32.xlu0 %v1361, 3
        %v2488 = vpop.permute.xlu0 %2487
        %2489 = vrot.lane.b32.xlu0 %v1362, 3
        %v2490 = vpop.permute.xlu0 %2489
        %2491 = vrot.lane.b32.xlu0 %v1363, 3
        %v2492 = vpop.permute.xlu0 %2491
        %2493 = vrot.lane.b32.xlu0 %v1364, 3
        %v2494 = vpop.permute.xlu0 %2493
        %2495 = vrot.lane.b32.xlu0 %v1365, 3
        %v2496 = vpop.permute.xlu0 %2495
        %2497 = vrot.lane.b32.xlu0 %v1366, 3
        %v2498 = vpop.permute.xlu0 %2497
        %2499 = vrot.lane.b32.xlu0 %v1367, 3
        %v2500 = vpop.permute.xlu0 %2499
        %2501 = vrot.lane.b32.xlu0 %v1368, 3
        %v2502 = vpop.permute.xlu0 %2501
        %2503 = vrot.lane.b32.xlu0 %v1369, 3
        %v2504 = vpop.permute.xlu0 %2503
        %2505 = vrot.lane.b32.xlu0 %v1370, 3
        %v2506 = vpop.permute.xlu0 %2505
        %2507 = vrot.lane.b32.xlu0 %v1371, 3
        %v2508 = vpop.permute.xlu0 %2507
        %2509 = vrot.lane.b32.xlu0 %v1372, 3
        %v2510 = vpop.permute.xlu0 %2509
        %2511 = vrot.lane.b32.xlu0 %v1373, 3
        %v2512 = vpop.permute.xlu0 %2511
        %2513 = vrot.lane.b32.xlu0 %v1374, 3
        %v2514 = vpop.permute.xlu0 %2513
        %2515 = vrot.lane.b32.xlu0 %v1375, 3
        %v2516 = vpop.permute.xlu0 %2515
        %2517 = vrot.lane.b32.xlu0 %v1376, 3
        %v2518 = vpop.permute.xlu0 %2517
        %2519 = vrot.lane.b32.xlu0 %v1377, 3
        %v2520 = vpop.permute.xlu0 %2519
        %2521 = vrot.lane.b32.xlu0 %v1378, 3
        %v2522 = vpop.permute.xlu0 %2521
        %2523 = vrot.lane.b32.xlu0 %v1379, 3
        %v2524 = vpop.permute.xlu0 %2523
        %2525 = vrot.lane.b32.xlu0 %v1380, 3
        %v2526 = vpop.permute.xlu0 %2525
        %2527 = vrot.lane.b32.xlu0 %v1381, 3
        %v2528 = vpop.permute.xlu0 %2527
        %2529 = vrot.lane.b32.xlu0 %v1382, 3
        %v2530 = vpop.permute.xlu0 %2529
        %2531 = vrot.lane.b32.xlu0 %v1383, 3
        %v2532 = vpop.permute.xlu0 %2531
        %2533 = vrot.lane.b32.xlu0 %v1384, 3
        %v2534 = vpop.permute.xlu0 %2533
        %2535 = vrot.lane.b32.xlu0 %v1385, 3
        %v2536 = vpop.permute.xlu0 %2535
        %2537 = vrot.lane.b32.xlu0 %v1386, 3
        %v2538 = vpop.permute.xlu0 %2537
        %v2603 = vsub.f32 %v427, %v2412
        %v2604 = vsub.f32 %v428, %v2414
        %v2605 = vsub.f32 %v429, %v2416
        %v2606 = vsub.f32 %v430, %v2418
        %v2607 = vsub.f32 %v431, %v2420
        %v2608 = vsub.f32 %v432, %v2422
        %v2609 = vsub.f32 %v433, %v2424
        %v2610 = vsub.f32 %v434, %v2426
        %v2611 = vsub.f32 %v435, %v2428
        %v2612 = vsub.f32 %v436, %v2430
        %v2613 = vsub.f32 %v437, %v2432
        %v2614 = vsub.f32 %v438, %v2434
        %v2615 = vsub.f32 %v439, %v2436
        %v2616 = vsub.f32 %v440, %v2438
        %v2617 = vsub.f32 %v441, %v2440
        %v2618 = vsub.f32 %v442, %v2442
        %v2619 = vsub.f32 %v443, %v2444
        %v2620 = vsub.f32 %v444, %v2446
        %v2621 = vsub.f32 %v445, %v2448
        %v2622 = vsub.f32 %v446, %v2450
        %v2623 = vsub.f32 %v447, %v2452
        %v2624 = vsub.f32 %v448, %v2454
        %v2625 = vsub.f32 %v449, %v2456
        %v2626 = vsub.f32 %v450, %v2458
        %v2627 = vsub.f32 %v451, %v2460
        %v2628 = vsub.f32 %v452, %v2462
        %v2629 = vsub.f32 %v453, %v2464
        %v2630 = vsub.f32 %v454, %v2466
        %v2631 = vsub.f32 %v455, %v2468
        %v2632 = vsub.f32 %v456, %v2470
        %v2633 = vsub.f32 %v457, %v2472
        %v2634 = vsub.f32 %v458, %v2474
        %v2635 = vsub.f32 %v459, %v2476
        %v2636 = vsub.f32 %v460, %v2478
        %v2637 = vsub.f32 %v461, %v2480
        %v2638 = vsub.f32 %v462, %v2482
        %v2639 = vsub.f32 %v463, %v2484
        %v2640 = vsub.f32 %v464, %v2486
        %v2641 = vsub.f32 %v465, %v2488
        %v2642 = vsub.f32 %v466, %v2490
        %v2643 = vsub.f32 %v467, %v2492
        %v2644 = vsub.f32 %v468, %v2494
        %v2645 = vsub.f32 %v469, %v2496
        %v2646 = vsub.f32 %v470, %v2498
        %v2647 = vsub.f32 %v471, %v2500
        %v2648 = vsub.f32 %v472, %v2502
        %v2649 = vsub.f32 %v473, %v2504
        %v2650 = vsub.f32 %v474, %v2506
        %v2651 = vsub.f32 %v475, %v2508
        %v2652 = vsub.f32 %v476, %v2510
        %v2653 = vsub.f32 %v477, %v2512
        %v2654 = vsub.f32 %v478, %v2514
        %v2655 = vsub.f32 %v479, %v2516
        %v2656 = vsub.f32 %v480, %v2518
        %v2657 = vsub.f32 %v481, %v2520
        %v2658 = vsub.f32 %v482, %v2522
        %v2659 = vsub.f32 %v483, %v2524
        %v2660 = vsub.f32 %v484, %v2526
        %v2661 = vsub.f32 %v485, %v2528
        %v2662 = vsub.f32 %v486, %v2530
        %v2663 = vsub.f32 %v487, %v2532
        %v2664 = vsub.f32 %v488, %v2534
        %v2665 = vsub.f32 %v489, %v2536
        %v2666 = vsub.f32 %v490, %v2538
        %v2667 = vmul.f32 %v2603, 1.442695
        %v2668 = vpow.pop %v2667
        %v2669 = vmul.f32 %v2604, 1.442695
        %v2670 = vpow.pop %v2669
        %v2671 = vmul.f32 %v2605, 1.442695
        %v2672 = vpow.pop %v2671
        %v2673 = vmul.f32 %v2606, 1.442695
        %v2674 = vpow.pop %v2673
        %v2675 = vmul.f32 %v2607, 1.442695
        %v2676 = vpow.pop %v2675
        %v2677 = vmul.f32 %v2608, 1.442695
        %v2678 = vpow.pop %v2677
        %v2679 = vmul.f32 %v2609, 1.442695
        %v2680 = vpow.pop %v2679
        %v2681 = vmul.f32 %v2610, 1.442695
        %v2682 = vpow.pop %v2681
        %v2683 = vmul.f32 %v2611, 1.442695
        %v2684 = vpow.pop %v2683
        %v2685 = vmul.f32 %v2612, 1.442695
        %v2686 = vpow.pop %v2685
        %v2687 = vmul.f32 %v2613, 1.442695
        %v2688 = vpow.pop %v2687
        %v2689 = vmul.f32 %v2614, 1.442695
        %v2690 = vpow.pop %v2689
        %v2691 = vmul.f32 %v2615, 1.442695
        %v2692 = vpow.pop %v2691
        %v2693 = vmul.f32 %v2616, 1.442695
        %v2694 = vpow.pop %v2693
        %v2695 = vmul.f32 %v2617, 1.442695
        %v2696 = vpow.pop %v2695
        %v2697 = vmul.f32 %v2618, 1.442695
        %v2698 = vpow.pop %v2697
        %v2699 = vmul.f32 %v2619, 1.442695
        %v2700 = vpow.pop %v2699
        %v2701 = vmul.f32 %v2620, 1.442695
        %v2702 = vpow.pop %v2701
        %v2703 = vmul.f32 %v2621, 1.442695
        %v2704 = vpow.pop %v2703
        %v2705 = vmul.f32 %v2622, 1.442695
        %v2706 = vpow.pop %v2705
        %v2707 = vmul.f32 %v2623, 1.442695
        %v2708 = vpow.pop %v2707
        %v2709 = vmul.f32 %v2624, 1.442695
        %v2710 = vpow.pop %v2709
        %v2711 = vmul.f32 %v2625, 1.442695
        %v2712 = vpow.pop %v2711
        %v2713 = vmul.f32 %v2626, 1.442695
        %v2714 = vpow.pop %v2713
        %v2715 = vmul.f32 %v2627, 1.442695
        %v2716 = vpow.pop %v2715
        %v2717 = vmul.f32 %v2628, 1.442695
        %v2718 = vpow.pop %v2717
        %v2719 = vmul.f32 %v2629, 1.442695
        %v2720 = vpow.pop %v2719
        %v2721 = vmul.f32 %v2630, 1.442695
        %v2722 = vpow.pop %v2721
        %v2723 = vmul.f32 %v2631, 1.442695
        %v2724 = vpow.pop %v2723
        %v2725 = vmul.f32 %v2632, 1.442695
        %v2726 = vpow.pop %v2725
        %v2727 = vmul.f32 %v2633, 1.442695
        %v2728 = vpow.pop %v2727
        %v2729 = vmul.f32 %v2634, 1.442695
        %v2730 = vpow.pop %v2729
        %v2731 = vmul.f32 %v2635, 1.442695
        %v2732 = vpow.pop %v2731
        %v2733 = vmul.f32 %v2636, 1.442695
        %v2734 = vpow.pop %v2733
        %v2735 = vmul.f32 %v2637, 1.442695
        %v2736 = vpow.pop %v2735
        %v2737 = vmul.f32 %v2638, 1.442695
        %v2738 = vpow.pop %v2737
        %v2739 = vmul.f32 %v2639, 1.442695
        %v2740 = vpow.pop %v2739
        %v2741 = vmul.f32 %v2640, 1.442695
        %v2742 = vpow.pop %v2741
        %v2743 = vmul.f32 %v2641, 1.442695
        %v2744 = vpow.pop %v2743
        %v2745 = vmul.f32 %v2642, 1.442695
        %v2746 = vpow.pop %v2745
        %v2747 = vmul.f32 %v2643, 1.442695
        %v2748 = vpow.pop %v2747
        %v2749 = vmul.f32 %v2644, 1.442695
        %v2750 = vpow.pop %v2749
        %v2751 = vmul.f32 %v2645, 1.442695
        %v2752 = vpow.pop %v2751
        %v2753 = vmul.f32 %v2646, 1.442695
        %v2754 = vpow.pop %v2753
        %v2755 = vmul.f32 %v2647, 1.442695
        %v2756 = vpow.pop %v2755
        %v2757 = vmul.f32 %v2648, 1.442695
        %v2758 = vpow.pop %v2757
        %v2759 = vmul.f32 %v2649, 1.442695
        %v2760 = vpow.pop %v2759
        %v2761 = vmul.f32 %v2650, 1.442695
        %v2762 = vpow.pop %v2761
        %v2763 = vmul.f32 %v2651, 1.442695
        %v2764 = vpow.pop %v2763
        %v2765 = vmul.f32 %v2652, 1.442695
        %v2766 = vpow.pop %v2765
        %v2767 = vmul.f32 %v2653, 1.442695
        %v2768 = vpow.pop %v2767
        %v2769 = vmul.f32 %v2654, 1.442695
        %v2770 = vpow.pop %v2769
        %v2771 = vmul.f32 %v2655, 1.442695
        %v2772 = vpow.pop %v2771
        %v2773 = vmul.f32 %v2656, 1.442695
        %v2774 = vpow.pop %v2773
        %v2775 = vmul.f32 %v2657, 1.442695
        %v2776 = vpow.pop %v2775
        %v2777 = vmul.f32 %v2658, 1.442695
        %v2778 = vpow.pop %v2777
        %v2779 = vmul.f32 %v2659, 1.442695
        %v2780 = vpow.pop %v2779
        %v2781 = vmul.f32 %v2660, 1.442695
        %v2782 = vpow.pop %v2781
        %v2783 = vmul.f32 %v2661, 1.442695
        %v2784 = vpow.pop %v2783
        %v2785 = vmul.f32 %v2662, 1.442695
        %v2786 = vpow.pop %v2785
        %v2787 = vmul.f32 %v2663, 1.442695
        %v2788 = vpow.pop %v2787
        %v2789 = vmul.f32 %v2664, 1.442695
        %v2790 = vpow.pop %v2789
        %v2791 = vmul.f32 %v2665, 1.442695
        %v2792 = vpow.pop %v2791
        %v2793 = vmul.f32 %v2666, 1.442695
        %v2794 = vpow.pop %v2793
        %2859 = vrot.lane.b32.xlu0 %v1900, 127
        %v2860 = vpop.permute.xlu0 %2859
        %2861 = vrot.lane.b32.xlu0 %v1902, 127
        %v2862 = vpop.permute.xlu0 %2861
        %2863 = vrot.lane.b32.xlu0 %v1904, 127
        %v2864 = vpop.permute.xlu0 %2863
        %2865 = vrot.lane.b32.xlu0 %v1906, 127
        %v2866 = vpop.permute.xlu0 %2865
        %2867 = vrot.lane.b32.xlu0 %v1908, 127
        %v2868 = vpop.permute.xlu0 %2867
        %2869 = vrot.lane.b32.xlu0 %v1910, 127
        %v2870 = vpop.permute.xlu0 %2869
        %2871 = vrot.lane.b32.xlu0 %v1912, 127
        %v2872 = vpop.permute.xlu0 %2871
        %2873 = vrot.lane.b32.xlu0 %v1914, 127
        %v2874 = vpop.permute.xlu0 %2873
        %2875 = vrot.lane.b32.xlu0 %v1916, 127
        %v2876 = vpop.permute.xlu0 %2875
        %2877 = vrot.lane.b32.xlu0 %v1918, 127
        %v2878 = vpop.permute.xlu0 %2877
        %2879 = vrot.lane.b32.xlu0 %v1920, 127
        %v2880 = vpop.permute.xlu0 %2879
        %2881 = vrot.lane.b32.xlu0 %v1922, 127
        %v2882 = vpop.permute.xlu0 %2881
        %2883 = vrot.lane.b32.xlu0 %v1924, 127
        %v2884 = vpop.permute.xlu0 %2883
        %2885 = vrot.lane.b32.xlu0 %v1926, 127
        %v2886 = vpop.permute.xlu0 %2885
        %2887 = vrot.lane.b32.xlu0 %v1928, 127
        %v2888 = vpop.permute.xlu0 %2887
        %2889 = vrot.lane.b32.xlu0 %v1930, 127
        %v2890 = vpop.permute.xlu0 %2889
        %2891 = vrot.lane.b32.xlu0 %v1932, 127
        %v2892 = vpop.permute.xlu0 %2891
        %2893 = vrot.lane.b32.xlu0 %v1934, 127
        %v2894 = vpop.permute.xlu0 %2893
        %2895 = vrot.lane.b32.xlu0 %v1936, 127
        %v2896 = vpop.permute.xlu0 %2895
        %2897 = vrot.lane.b32.xlu0 %v1938, 127
        %v2898 = vpop.permute.xlu0 %2897
        %2899 = vrot.lane.b32.xlu0 %v1940, 127
        %v2900 = vpop.permute.xlu0 %2899
        %2901 = vrot.lane.b32.xlu0 %v1942, 127
        %v2902 = vpop.permute.xlu0 %2901
        %2903 = vrot.lane.b32.xlu0 %v1944, 127
        %v2904 = vpop.permute.xlu0 %2903
        %2905 = vrot.lane.b32.xlu0 %v1946, 127
        %v2906 = vpop.permute.xlu0 %2905
        %2907 = vrot.lane.b32.xlu0 %v1948, 127
        %v2908 = vpop.permute.xlu0 %2907
        %2909 = vrot.lane.b32.xlu0 %v1950, 127
        %v2910 = vpop.permute.xlu0 %2909
        %2911 = vrot.lane.b32.xlu0 %v1952, 127
        %v2912 = vpop.permute.xlu0 %2911
        %2913 = vrot.lane.b32.xlu0 %v1954, 127
        %v2914 = vpop.permute.xlu0 %2913
        %2915 = vrot.lane.b32.xlu0 %v1956, 127
        %v2916 = vpop.permute.xlu0 %2915
        %2917 = vrot.lane.b32.xlu0 %v1958, 127
        %v2918 = vpop.permute.xlu0 %2917
        %2919 = vrot.lane.b32.xlu0 %v1960, 127
        %v2920 = vpop.permute.xlu0 %2919
        %2921 = vrot.lane.b32.xlu0 %v1962, 127
        %v2922 = vpop.permute.xlu0 %2921
        %2923 = vrot.lane.b32.xlu0 %v1964, 127
        %v2924 = vpop.permute.xlu0 %2923
        %2925 = vrot.lane.b32.xlu0 %v1966, 127
        %v2926 = vpop.permute.xlu0 %2925
        %2927 = vrot.lane.b32.xlu0 %v1968, 127
        %v2928 = vpop.permute.xlu0 %2927
        %2929 = vrot.lane.b32.xlu0 %v1970, 127
        %v2930 = vpop.permute.xlu0 %2929
        %2931 = vrot.lane.b32.xlu0 %v1972, 127
        %v2932 = vpop.permute.xlu0 %2931
        %2933 = vrot.lane.b32.xlu0 %v1974, 127
        %v2934 = vpop.permute.xlu0 %2933
        %2935 = vrot.lane.b32.xlu0 %v1976, 127
        %v2936 = vpop.permute.xlu0 %2935
        %2937 = vrot.lane.b32.xlu0 %v1978, 127
        %v2938 = vpop.permute.xlu0 %2937
        %2939 = vrot.lane.b32.xlu0 %v1980, 127
        %v2940 = vpop.permute.xlu0 %2939
        %2941 = vrot.lane.b32.xlu0 %v1982, 127
        %v2942 = vpop.permute.xlu0 %2941
        %2943 = vrot.lane.b32.xlu0 %v1984, 127
        %v2944 = vpop.permute.xlu0 %2943
        %2945 = vrot.lane.b32.xlu0 %v1986, 127
        %v2946 = vpop.permute.xlu0 %2945
        %2947 = vrot.lane.b32.xlu0 %v1988, 127
        %v2948 = vpop.permute.xlu0 %2947
        %2949 = vrot.lane.b32.xlu0 %v1990, 127
        %v2950 = vpop.permute.xlu0 %2949
        %2951 = vrot.lane.b32.xlu0 %v1992, 127
        %v2952 = vpop.permute.xlu0 %2951
        %2953 = vrot.lane.b32.xlu0 %v1994, 127
        %v2954 = vpop.permute.xlu0 %2953
        %2955 = vrot.lane.b32.xlu0 %v1996, 127
        %v2956 = vpop.permute.xlu0 %2955
        %2957 = vrot.lane.b32.xlu0 %v1998, 127
        %v2958 = vpop.permute.xlu0 %2957
        %2959 = vrot.lane.b32.xlu0 %v2000, 127
        %v2960 = vpop.permute.xlu0 %2959
        %2961 = vrot.lane.b32.xlu0 %v2002, 127
        %v2962 = vpop.permute.xlu0 %2961
        %2963 = vrot.lane.b32.xlu0 %v2004, 127
        %v2964 = vpop.permute.xlu0 %2963
        %2965 = vrot.lane.b32.xlu0 %v2006, 127
        %v2966 = vpop.permute.xlu0 %2965
        %2967 = vrot.lane.b32.xlu0 %v2008, 127
        %v2968 = vpop.permute.xlu0 %2967
        %2969 = vrot.lane.b32.xlu0 %v2010, 127
        %v2970 = vpop.permute.xlu0 %2969
        %2971 = vrot.lane.b32.xlu0 %v2012, 127
        %v2972 = vpop.permute.xlu0 %2971
        %2973 = vrot.lane.b32.xlu0 %v2014, 127
        %v2974 = vpop.permute.xlu0 %2973
        %2975 = vrot.lane.b32.xlu0 %v2016, 127
        %v2976 = vpop.permute.xlu0 %2975
        %2977 = vrot.lane.b32.xlu0 %v2018, 127
        %v2978 = vpop.permute.xlu0 %2977
        %2979 = vrot.lane.b32.xlu0 %v2020, 127
        %v2980 = vpop.permute.xlu0 %2979
        %2981 = vrot.lane.b32.xlu0 %v2022, 127
        %v2982 = vpop.permute.xlu0 %2981
        %2983 = vrot.lane.b32.xlu0 %v2024, 127
        %v2984 = vpop.permute.xlu0 %2983
        %2985 = vrot.lane.b32.xlu0 %v2026, 127
        %v2986 = vpop.permute.xlu0 %2985
        %v3051 = vadd.f32 %v1452, %v2860
        %v3052 = vadd.f32 %v1454, %v2862
        %v3053 = vadd.f32 %v1456, %v2864
        %v3054 = vadd.f32 %v1458, %v2866
        %v3055 = vadd.f32 %v1460, %v2868
        %v3056 = vadd.f32 %v1462, %v2870
        %v3057 = vadd.f32 %v1464, %v2872
        %v3058 = vadd.f32 %v1466, %v2874
        %v3059 = vadd.f32 %v1468, %v2876
        %v3060 = vadd.f32 %v1470, %v2878
        %v3061 = vadd.f32 %v1472, %v2880
        %v3062 = vadd.f32 %v1474, %v2882
        %v3063 = vadd.f32 %v1476, %v2884
        %v3064 = vadd.f32 %v1478, %v2886
        %v3065 = vadd.f32 %v1480, %v2888
        %v3066 = vadd.f32 %v1482, %v2890
        %v3067 = vadd.f32 %v1484, %v2892
        %v3068 = vadd.f32 %v1486, %v2894
        %v3069 = vadd.f32 %v1488, %v2896
        %v3070 = vadd.f32 %v1490, %v2898
        %v3071 = vadd.f32 %v1492, %v2900
        %v3072 = vadd.f32 %v1494, %v2902
        %v3073 = vadd.f32 %v1496, %v2904
        %v3074 = vadd.f32 %v1498, %v2906
        %v3075 = vadd.f32 %v1500, %v2908
        %v3076 = vadd.f32 %v1502, %v2910
        %v3077 = vadd.f32 %v1504, %v2912
        %v3078 = vadd.f32 %v1506, %v2914
        %v3079 = vadd.f32 %v1508, %v2916
        %v3080 = vadd.f32 %v1510, %v2918
        %v3081 = vadd.f32 %v1512, %v2920
        %v3082 = vadd.f32 %v1514, %v2922
        %v3083 = vadd.f32 %v1516, %v2924
        %v3084 = vadd.f32 %v1518, %v2926
        %v3085 = vadd.f32 %v1520, %v2928
        %v3086 = vadd.f32 %v1522, %v2930
        %v3087 = vadd.f32 %v1524, %v2932
        %v3088 = vadd.f32 %v1526, %v2934
        %v3089 = vadd.f32 %v1528, %v2936
        %v3090 = vadd.f32 %v1530, %v2938
        %v3091 = vadd.f32 %v1532, %v2940
        %v3092 = vadd.f32 %v1534, %v2942
        %v3093 = vadd.f32 %v1536, %v2944
        %v3094 = vadd.f32 %v1538, %v2946
        %v3095 = vadd.f32 %v1540, %v2948
        %v3096 = vadd.f32 %v1542, %v2950
        %v3097 = vadd.f32 %v1544, %v2952
        %v3098 = vadd.f32 %v1546, %v2954
        %v3099 = vadd.f32 %v1548, %v2956
        %v3100 = vadd.f32 %v1550, %v2958
        %v3101 = vadd.f32 %v1552, %v2960
        %v3102 = vadd.f32 %v1554, %v2962
        %v3103 = vadd.f32 %v1556, %v2964
        %v3104 = vadd.f32 %v1558, %v2966
        %v3105 = vadd.f32 %v1560, %v2968
        %v3106 = vadd.f32 %v1562, %v2970
        %v3107 = vadd.f32 %v1564, %v2972
        %v3108 = vadd.f32 %v1566, %v2974
        %v3109 = vadd.f32 %v1568, %v2976
        %v3110 = vadd.f32 %v1570, %v2978
        %v3111 = vadd.f32 %v1572, %v2980
        %v3112 = vadd.f32 %v1574, %v2982
        %v3113 = vadd.f32 %v1576, %v2984
        %v3114 = vadd.f32 %v1578, %v2986
        %3179 = vrot.lane.b32.xlu0 %v2284, 126
        %v3180 = vpop.permute.xlu0 %3179
        %3181 = vrot.lane.b32.xlu0 %v2286, 126
        %v3182 = vpop.permute.xlu0 %3181
        %3183 = vrot.lane.b32.xlu0 %v2288, 126
        %v3184 = vpop.permute.xlu0 %3183
        %3185 = vrot.lane.b32.xlu0 %v2290, 126
        %v3186 = vpop.permute.xlu0 %3185
        %3187 = vrot.lane.b32.xlu0 %v2292, 126
        %v3188 = vpop.permute.xlu0 %3187
        %3189 = vrot.lane.b32.xlu0 %v2294, 126
        %v3190 = vpop.permute.xlu0 %3189
        %3191 = vrot.lane.b32.xlu0 %v2296, 126
        %v3192 = vpop.permute.xlu0 %3191
        %3193 = vrot.lane.b32.xlu0 %v2298, 126
        %v3194 = vpop.permute.xlu0 %3193
        %3195 = vrot.lane.b32.xlu0 %v2300, 126
        %v3196 = vpop.permute.xlu0 %3195
        %3197 = vrot.lane.b32.xlu0 %v2302, 126
        %v3198 = vpop.permute.xlu0 %3197
        %3199 = vrot.lane.b32.xlu0 %v2304, 126
        %v3200 = vpop.permute.xlu0 %3199
        %3201 = vrot.lane.b32.xlu0 %v2306, 126
        %v3202 = vpop.permute.xlu0 %3201
        %3203 = vrot.lane.b32.xlu0 %v2308, 126
        %v3204 = vpop.permute.xlu0 %3203
        %3205 = vrot.lane.b32.xlu0 %v2310, 126
        %v3206 = vpop.permute.xlu0 %3205
        %3207 = vrot.lane.b32.xlu0 %v2312, 126
        %v3208 = vpop.permute.xlu0 %3207
        %3209 = vrot.lane.b32.xlu0 %v2314, 126
        %v3210 = vpop.permute.xlu0 %3209
        %3211 = vrot.lane.b32.xlu0 %v2316, 126
        %v3212 = vpop.permute.xlu0 %3211
        %3213 = vrot.lane.b32.xlu0 %v2318, 126
        %v3214 = vpop.permute.xlu0 %3213
        %3215 = vrot.lane.b32.xlu0 %v2320, 126
        %v3216 = vpop.permute.xlu0 %3215
        %3217 = vrot.lane.b32.xlu0 %v2322, 126
        %v3218 = vpop.permute.xlu0 %3217
        %3219 = vrot.lane.b32.xlu0 %v2324, 126
        %v3220 = vpop.permute.xlu0 %3219
        %3221 = vrot.lane.b32.xlu0 %v2326, 126
        %v3222 = vpop.permute.xlu0 %3221
        %3223 = vrot.lane.b32.xlu0 %v2328, 126
        %v3224 = vpop.permute.xlu0 %3223
        %3225 = vrot.lane.b32.xlu0 %v2330, 126
        %v3226 = vpop.permute.xlu0 %3225
        %3227 = vrot.lane.b32.xlu0 %v2332, 126
        %v3228 = vpop.permute.xlu0 %3227
        %3229 = vrot.lane.b32.xlu0 %v2334, 126
        %v3230 = vpop.permute.xlu0 %3229
        %3231 = vrot.lane.b32.xlu0 %v2336, 126
        %v3232 = vpop.permute.xlu0 %3231
        %3233 = vrot.lane.b32.xlu0 %v2338, 126
        %v3234 = vpop.permute.xlu0 %3233
        %3235 = vrot.lane.b32.xlu0 %v2340, 126
        %v3236 = vpop.permute.xlu0 %3235
        %3237 = vrot.lane.b32.xlu0 %v2342, 126
        %v3238 = vpop.permute.xlu0 %3237
        %3239 = vrot.lane.b32.xlu0 %v2344, 126
        %v3240 = vpop.permute.xlu0 %3239
        %3241 = vrot.lane.b32.xlu0 %v2346, 126
        %v3242 = vpop.permute.xlu0 %3241
        %3243 = vrot.lane.b32.xlu0 %v2348, 126
        %v3244 = vpop.permute.xlu0 %3243
        %3245 = vrot.lane.b32.xlu0 %v2350, 126
        %v3246 = vpop.permute.xlu0 %3245
        %3247 = vrot.lane.b32.xlu0 %v2352, 126
        %v3248 = vpop.permute.xlu0 %3247
        %3249 = vrot.lane.b32.xlu0 %v2354, 126
        %v3250 = vpop.permute.xlu0 %3249
        %3251 = vrot.lane.b32.xlu0 %v2356, 126
        %v3252 = vpop.permute.xlu0 %3251
        %3253 = vrot.lane.b32.xlu0 %v2358, 126
        %v3254 = vpop.permute.xlu0 %3253
        %3255 = vrot.lane.b32.xlu0 %v2360, 126
        %v3256 = vpop.permute.xlu0 %3255
        %3257 = vrot.lane.b32.xlu0 %v2362, 126
        %v3258 = vpop.permute.xlu0 %3257
        %3259 = vrot.lane.b32.xlu0 %v2364, 126
        %v3260 = vpop.permute.xlu0 %3259
        %3261 = vrot.lane.b32.xlu0 %v2366, 126
        %v3262 = vpop.permute.xlu0 %3261
        %3263 = vrot.lane.b32.xlu0 %v2368, 126
        %v3264 = vpop.permute.xlu0 %3263
        %3265 = vrot.lane.b32.xlu0 %v2370, 126
        %v3266 = vpop.permute.xlu0 %3265
        %3267 = vrot.lane.b32.xlu0 %v2372, 126
        %v3268 = vpop.permute.xlu0 %3267
        %3269 = vrot.lane.b32.xlu0 %v2374, 126
        %v3270 = vpop.permute.xlu0 %3269
        %3271 = vrot.lane.b32.xlu0 %v2376, 126
        %v3272 = vpop.permute.xlu0 %3271
        %3273 = vrot.lane.b32.xlu0 %v2378, 126
        %v3274 = vpop.permute.xlu0 %3273
        %3275 = vrot.lane.b32.xlu0 %v2380, 126
        %v3276 = vpop.permute.xlu0 %3275
        %3277 = vrot.lane.b32.xlu0 %v2382, 126
        %v3278 = vpop.permute.xlu0 %3277
        %3279 = vrot.lane.b32.xlu0 %v2384, 126
        %v3280 = vpop.permute.xlu0 %3279
        %3281 = vrot.lane.b32.xlu0 %v2386, 126
        %v3282 = vpop.permute.xlu0 %3281
        %3283 = vrot.lane.b32.xlu0 %v2388, 126
        %v3284 = vpop.permute.xlu0 %3283
        %3285 = vrot.lane.b32.xlu0 %v2390, 126
        %v3286 = vpop.permute.xlu0 %3285
        %3287 = vrot.lane.b32.xlu0 %v2392, 126
        %v3288 = vpop.permute.xlu0 %3287
        %3289 = vrot.lane.b32.xlu0 %v2394, 126
        %v3290 = vpop.permute.xlu0 %3289
        %3291 = vrot.lane.b32.xlu0 %v2396, 126
        %v3292 = vpop.permute.xlu0 %3291
        %3293 = vrot.lane.b32.xlu0 %v2398, 126
        %v3294 = vpop.permute.xlu0 %3293
        %3295 = vrot.lane.b32.xlu0 %v2400, 126
        %v3296 = vpop.permute.xlu0 %3295
        %3297 = vrot.lane.b32.xlu0 %v2402, 126
        %v3298 = vpop.permute.xlu0 %3297
        %3299 = vrot.lane.b32.xlu0 %v2404, 126
        %v3300 = vpop.permute.xlu0 %3299
        %3301 = vrot.lane.b32.xlu0 %v2406, 126
        %v3302 = vpop.permute.xlu0 %3301
        %3303 = vrot.lane.b32.xlu0 %v2408, 126
        %v3304 = vpop.permute.xlu0 %3303
        %3305 = vrot.lane.b32.xlu0 %v2410, 126
        %v3306 = vpop.permute.xlu0 %3305
        %v3371 = vadd.f32 %v3051, %v3180
        %v3372 = vadd.f32 %v3052, %v3182
        %v3373 = vadd.f32 %v3053, %v3184
        %v3374 = vadd.f32 %v3054, %v3186
        %v3375 = vadd.f32 %v3055, %v3188
        %v3376 = vadd.f32 %v3056, %v3190
        %v3377 = vadd.f32 %v3057, %v3192
        %v3378 = vadd.f32 %v3058, %v3194
        %v3379 = vadd.f32 %v3059, %v3196
        %v3380 = vadd.f32 %v3060, %v3198
        %v3381 = vadd.f32 %v3061, %v3200
        %v3382 = vadd.f32 %v3062, %v3202
        %v3383 = vadd.f32 %v3063, %v3204
        %v3384 = vadd.f32 %v3064, %v3206
        %v3385 = vadd.f32 %v3065, %v3208
        %v3386 = vadd.f32 %v3066, %v3210
        %v3387 = vadd.f32 %v3067, %v3212
        %v3388 = vadd.f32 %v3068, %v3214
        %v3389 = vadd.f32 %v3069, %v3216
        %v3390 = vadd.f32 %v3070, %v3218
        %v3391 = vadd.f32 %v3071, %v3220
        %v3392 = vadd.f32 %v3072, %v3222
        %v3393 = vadd.f32 %v3073, %v3224
        %v3394 = vadd.f32 %v3074, %v3226
        %v3395 = vadd.f32 %v3075, %v3228
        %v3396 = vadd.f32 %v3076, %v3230
        %v3397 = vadd.f32 %v3077, %v3232
        %v3398 = vadd.f32 %v3078, %v3234
        %v3399 = vadd.f32 %v3079, %v3236
        %v3400 = vadd.f32 %v3080, %v3238
        %v3401 = vadd.f32 %v3081, %v3240
        %v3402 = vadd.f32 %v3082, %v3242
        %v3403 = vadd.f32 %v3083, %v3244
        %v3404 = vadd.f32 %v3084, %v3246
        %v3405 = vadd.f32 %v3085, %v3248
        %v3406 = vadd.f32 %v3086, %v3250
        %v3407 = vadd.f32 %v3087, %v3252
        %v3408 = vadd.f32 %v3088, %v3254
        %v3409 = vadd.f32 %v3089, %v3256
        %v3410 = vadd.f32 %v3090, %v3258
        %v3411 = vadd.f32 %v3091, %v3260
        %v3412 = vadd.f32 %v3092, %v3262
        %v3413 = vadd.f32 %v3093, %v3264
        %v3414 = vadd.f32 %v3094, %v3266
        %v3415 = vadd.f32 %v3095, %v3268
        %v3416 = vadd.f32 %v3096, %v3270
        %v3417 = vadd.f32 %v3097, %v3272
        %v3418 = vadd.f32 %v3098, %v3274
        %v3419 = vadd.f32 %v3099, %v3276
        %v3420 = vadd.f32 %v3100, %v3278
        %v3421 = vadd.f32 %v3101, %v3280
        %v3422 = vadd.f32 %v3102, %v3282
        %v3423 = vadd.f32 %v3103, %v3284
        %v3424 = vadd.f32 %v3104, %v3286
        %v3425 = vadd.f32 %v3105, %v3288
        %v3426 = vadd.f32 %v3106, %v3290
        %v3427 = vadd.f32 %v3107, %v3292
        %v3428 = vadd.f32 %v3108, %v3294
        %v3429 = vadd.f32 %v3109, %v3296
        %v3430 = vadd.f32 %v3110, %v3298
        %v3431 = vadd.f32 %v3111, %v3300
        %v3432 = vadd.f32 %v3112, %v3302
        %v3433 = vadd.f32 %v3113, %v3304
        %v3434 = vadd.f32 %v3114, %v3306
        %3499 = vrot.lane.b32.xlu0 %v2668, 125
        %v3500 = vpop.permute.xlu0 %3499
        %3501 = vrot.lane.b32.xlu0 %v2670, 125
        %v3502 = vpop.permute.xlu0 %3501
        %3503 = vrot.lane.b32.xlu0 %v2672, 125
        %v3504 = vpop.permute.xlu0 %3503
        %3505 = vrot.lane.b32.xlu0 %v2674, 125
        %v3506 = vpop.permute.xlu0 %3505
        %3507 = vrot.lane.b32.xlu0 %v2676, 125
        %v3508 = vpop.permute.xlu0 %3507
        %3509 = vrot.lane.b32.xlu0 %v2678, 125
        %v3510 = vpop.permute.xlu0 %3509
        %3511 = vrot.lane.b32.xlu0 %v2680, 125
        %v3512 = vpop.permute.xlu0 %3511
        %3513 = vrot.lane.b32.xlu0 %v2682, 125
        %v3514 = vpop.permute.xlu0 %3513
        %3515 = vrot.lane.b32.xlu0 %v2684, 125
        %v3516 = vpop.permute.xlu0 %3515
        %3517 = vrot.lane.b32.xlu0 %v2686, 125
        %v3518 = vpop.permute.xlu0 %3517
        %3519 = vrot.lane.b32.xlu0 %v2688, 125
        %v3520 = vpop.permute.xlu0 %3519
        %3521 = vrot.lane.b32.xlu0 %v2690, 125
        %v3522 = vpop.permute.xlu0 %3521
        %3523 = vrot.lane.b32.xlu0 %v2692, 125
        %v3524 = vpop.permute.xlu0 %3523
        %3525 = vrot.lane.b32.xlu0 %v2694, 125
        %v3526 = vpop.permute.xlu0 %3525
        %3527 = vrot.lane.b32.xlu0 %v2696, 125
        %v3528 = vpop.permute.xlu0 %3527
        %3529 = vrot.lane.b32.xlu0 %v2698, 125
        %v3530 = vpop.permute.xlu0 %3529
        %3531 = vrot.lane.b32.xlu0 %v2700, 125
        %v3532 = vpop.permute.xlu0 %3531
        %3533 = vrot.lane.b32.xlu0 %v2702, 125
        %v3534 = vpop.permute.xlu0 %3533
        %3535 = vrot.lane.b32.xlu0 %v2704, 125
        %v3536 = vpop.permute.xlu0 %3535
        %3537 = vrot.lane.b32.xlu0 %v2706, 125
        %v3538 = vpop.permute.xlu0 %3537
        %3539 = vrot.lane.b32.xlu0 %v2708, 125
        %v3540 = vpop.permute.xlu0 %3539
        %3541 = vrot.lane.b32.xlu0 %v2710, 125
        %v3542 = vpop.permute.xlu0 %3541
        %3543 = vrot.lane.b32.xlu0 %v2712, 125
        %v3544 = vpop.permute.xlu0 %3543
        %3545 = vrot.lane.b32.xlu0 %v2714, 125
        %v3546 = vpop.permute.xlu0 %3545
        %3547 = vrot.lane.b32.xlu0 %v2716, 125
        %v3548 = vpop.permute.xlu0 %3547
        %3549 = vrot.lane.b32.xlu0 %v2718, 125
        %v3550 = vpop.permute.xlu0 %3549
        %3551 = vrot.lane.b32.xlu0 %v2720, 125
        %v3552 = vpop.permute.xlu0 %3551
        %3553 = vrot.lane.b32.xlu0 %v2722, 125
        %v3554 = vpop.permute.xlu0 %3553
        %3555 = vrot.lane.b32.xlu0 %v2724, 125
        %v3556 = vpop.permute.xlu0 %3555
        %3557 = vrot.lane.b32.xlu0 %v2726, 125
        %v3558 = vpop.permute.xlu0 %3557
        %3559 = vrot.lane.b32.xlu0 %v2728, 125
        %v3560 = vpop.permute.xlu0 %3559
        %3561 = vrot.lane.b32.xlu0 %v2730, 125
        %v3562 = vpop.permute.xlu0 %3561
        %3563 = vrot.lane.b32.xlu0 %v2732, 125
        %v3564 = vpop.permute.xlu0 %3563
        %3565 = vrot.lane.b32.xlu0 %v2734, 125
        %v3566 = vpop.permute.xlu0 %3565
        %3567 = vrot.lane.b32.xlu0 %v2736, 125
        %v3568 = vpop.permute.xlu0 %3567
        %3569 = vrot.lane.b32.xlu0 %v2738, 125
        %v3570 = vpop.permute.xlu0 %3569
        %3571 = vrot.lane.b32.xlu0 %v2740, 125
        %v3572 = vpop.permute.xlu0 %3571
        %3573 = vrot.lane.b32.xlu0 %v2742, 125
        %v3574 = vpop.permute.xlu0 %3573
        %3575 = vrot.lane.b32.xlu0 %v2744, 125
        %v3576 = vpop.permute.xlu0 %3575
        %3577 = vrot.lane.b32.xlu0 %v2746, 125
        %v3578 = vpop.permute.xlu0 %3577
        %3579 = vrot.lane.b32.xlu0 %v2748, 125
        %v3580 = vpop.permute.xlu0 %3579
        %3581 = vrot.lane.b32.xlu0 %v2750, 125
        %v3582 = vpop.permute.xlu0 %3581
        %3583 = vrot.lane.b32.xlu0 %v2752, 125
        %v3584 = vpop.permute.xlu0 %3583
        %3585 = vrot.lane.b32.xlu0 %v2754, 125
        %v3586 = vpop.permute.xlu0 %3585
        %3587 = vrot.lane.b32.xlu0 %v2756, 125
        %v3588 = vpop.permute.xlu0 %3587
        %3589 = vrot.lane.b32.xlu0 %v2758, 125
        %v3590 = vpop.permute.xlu0 %3589
        %3591 = vrot.lane.b32.xlu0 %v2760, 125
        %v3592 = vpop.permute.xlu0 %3591
        %3593 = vrot.lane.b32.xlu0 %v2762, 125
        %v3594 = vpop.permute.xlu0 %3593
        %3595 = vrot.lane.b32.xlu0 %v2764, 125
        %v3596 = vpop.permute.xlu0 %3595
        %3597 = vrot.lane.b32.xlu0 %v2766, 125
        %v3598 = vpop.permute.xlu0 %3597
        %3599 = vrot.lane.b32.xlu0 %v2768, 125
        %v3600 = vpop.permute.xlu0 %3599
        %3601 = vrot.lane.b32.xlu0 %v2770, 125
        %v3602 = vpop.permute.xlu0 %3601
        %3603 = vrot.lane.b32.xlu0 %v2772, 125
        %v3604 = vpop.permute.xlu0 %3603
        %3605 = vrot.lane.b32.xlu0 %v2774, 125
        %v3606 = vpop.permute.xlu0 %3605
        %3607 = vrot.lane.b32.xlu0 %v2776, 125
        %v3608 = vpop.permute.xlu0 %3607
        %3609 = vrot.lane.b32.xlu0 %v2778, 125
        %v3610 = vpop.permute.xlu0 %3609
        %3611 = vrot.lane.b32.xlu0 %v2780, 125
        %v3612 = vpop.permute.xlu0 %3611
        %3613 = vrot.lane.b32.xlu0 %v2782, 125
        %v3614 = vpop.permute.xlu0 %3613
        %3615 = vrot.lane.b32.xlu0 %v2784, 125
        %v3616 = vpop.permute.xlu0 %3615
        %3617 = vrot.lane.b32.xlu0 %v2786, 125
        %v3618 = vpop.permute.xlu0 %3617
        %3619 = vrot.lane.b32.xlu0 %v2788, 125
        %v3620 = vpop.permute.xlu0 %3619
        %3621 = vrot.lane.b32.xlu0 %v2790, 125
        %v3622 = vpop.permute.xlu0 %3621
        %3623 = vrot.lane.b32.xlu0 %v2792, 125
        %v3624 = vpop.permute.xlu0 %3623
        %3625 = vrot.lane.b32.xlu0 %v2794, 125
        %v3626 = vpop.permute.xlu0 %3625
        %v3691 = vadd.f32 %v3371, %v3500
        %v3692 = vadd.f32 %v3372, %v3502
        %v3693 = vadd.f32 %v3373, %v3504
        %v3694 = vadd.f32 %v3374, %v3506
        %v3695 = vadd.f32 %v3375, %v3508
        %v3696 = vadd.f32 %v3376, %v3510
        %v3697 = vadd.f32 %v3377, %v3512
        %v3698 = vadd.f32 %v3378, %v3514
        %v3699 = vadd.f32 %v3379, %v3516
        %v3700 = vadd.f32 %v3380, %v3518
        %v3701 = vadd.f32 %v3381, %v3520
        %v3702 = vadd.f32 %v3382, %v3522
        %v3703 = vadd.f32 %v3383, %v3524
        %v3704 = vadd.f32 %v3384, %v3526
        %v3705 = vadd.f32 %v3385, %v3528
        %v3706 = vadd.f32 %v3386, %v3530
        %v3707 = vadd.f32 %v3387, %v3532
        %v3708 = vadd.f32 %v3388, %v3534
        %v3709 = vadd.f32 %v3389, %v3536
        %v3710 = vadd.f32 %v3390, %v3538
        %v3711 = vadd.f32 %v3391, %v3540
        %v3712 = vadd.f32 %v3392, %v3542
        %v3713 = vadd.f32 %v3393, %v3544
        %v3714 = vadd.f32 %v3394, %v3546
        %v3715 = vadd.f32 %v3395, %v3548
        %v3716 = vadd.f32 %v3396, %v3550
        %v3717 = vadd.f32 %v3397, %v3552
        %v3718 = vadd.f32 %v3398, %v3554
        %v3719 = vadd.f32 %v3399, %v3556
        %v3720 = vadd.f32 %v3400, %v3558
        %v3721 = vadd.f32 %v3401, %v3560
        %v3722 = vadd.f32 %v3402, %v3562
        %v3723 = vadd.f32 %v3403, %v3564
        %v3724 = vadd.f32 %v3404, %v3566
        %v3725 = vadd.f32 %v3405, %v3568
        %v3726 = vadd.f32 %v3406, %v3570
        %v3727 = vadd.f32 %v3407, %v3572
        %v3728 = vadd.f32 %v3408, %v3574
        %v3729 = vadd.f32 %v3409, %v3576
        %v3730 = vadd.f32 %v3410, %v3578
        %v3731 = vadd.f32 %v3411, %v3580
        %v3732 = vadd.f32 %v3412, %v3582
        %v3733 = vadd.f32 %v3413, %v3584
        %v3734 = vadd.f32 %v3414, %v3586
        %v3735 = vadd.f32 %v3415, %v3588
        %v3736 = vadd.f32 %v3416, %v3590
        %v3737 = vadd.f32 %v3417, %v3592
        %v3738 = vadd.f32 %v3418, %v3594
        %v3739 = vadd.f32 %v3419, %v3596
        %v3740 = vadd.f32 %v3420, %v3598
        %v3741 = vadd.f32 %v3421, %v3600
        %v3742 = vadd.f32 %v3422, %v3602
        %v3743 = vadd.f32 %v3423, %v3604
        %v3744 = vadd.f32 %v3424, %v3606
        %v3745 = vadd.f32 %v3425, %v3608
        %v3746 = vadd.f32 %v3426, %v3610
        %v3747 = vadd.f32 %v3427, %v3612
        %v3748 = vadd.f32 %v3428, %v3614
        %v3749 = vadd.f32 %v3429, %v3616
        %v3750 = vadd.f32 %v3430, %v3618
        %v3751 = vadd.f32 %v3431, %v3620
        %v3752 = vadd.f32 %v3432, %v3622
        %v3753 = vadd.f32 %v3433, %v3624
        %v3754 = vadd.f32 %v3434, %v3626
        %s3755 = scalar_select %p220, 1, 0
        %s3756 = scvt.s32.f32 %s3755
        %v3757 = vstv %s3756
        %v3758 = vmul.f32 %v1452, %v3757
        %v3759 = vmul.f32 %v1454, %v3757
        %v3760 = vmul.f32 %v1456, %v3757
        %v3761 = vmul.f32 %v1458, %v3757
        %v3762 = vmul.f32 %v1460, %v3757
        %v3763 = vmul.f32 %v1462, %v3757
        %v3764 = vmul.f32 %v1464, %v3757
        %v3765 = vmul.f32 %v1466, %v3757
        %v3766 = vmul.f32 %v1468, %v3757
        %v3767 = vmul.f32 %v1470, %v3757
        %v3768 = vmul.f32 %v1472, %v3757
        %v3769 = vmul.f32 %v1474, %v3757
        %v3770 = vmul.f32 %v1476, %v3757
        %v3771 = vmul.f32 %v1478, %v3757
        %v3772 = vmul.f32 %v1480, %v3757
        %v3773 = vmul.f32 %v1482, %v3757
        %v3774 = vmul.f32 %v1484, %v3757
        %v3775 = vmul.f32 %v1486, %v3757
        %v3776 = vmul.f32 %v1488, %v3757
        %v3777 = vmul.f32 %v1490, %v3757
        %v3778 = vmul.f32 %v1492, %v3757
        %v3779 = vmul.f32 %v1494, %v3757
        %v3780 = vmul.f32 %v1496, %v3757
        %v3781 = vmul.f32 %v1498, %v3757
        %v3782 = vmul.f32 %v1500, %v3757
        %v3783 = vmul.f32 %v1502, %v3757
        %v3784 = vmul.f32 %v1504, %v3757
        %v3785 = vmul.f32 %v1506, %v3757
        %v3786 = vmul.f32 %v1508, %v3757
        %v3787 = vmul.f32 %v1510, %v3757
        %v3788 = vmul.f32 %v1512, %v3757
        %v3789 = vmul.f32 %v1514, %v3757
        %v3790 = vmul.f32 %v1516, %v3757
        %v3791 = vmul.f32 %v1518, %v3757
        %v3792 = vmul.f32 %v1520, %v3757
        %v3793 = vmul.f32 %v1522, %v3757
        %v3794 = vmul.f32 %v1524, %v3757
        %v3795 = vmul.f32 %v1526, %v3757
        %v3796 = vmul.f32 %v1528, %v3757
        %v3797 = vmul.f32 %v1530, %v3757
        %v3798 = vmul.f32 %v1532, %v3757
        %v3799 = vmul.f32 %v1534, %v3757
        %v3800 = vmul.f32 %v1536, %v3757
        %v3801 = vmul.f32 %v1538, %v3757
        %v3802 = vmul.f32 %v1540, %v3757
        %v3803 = vmul.f32 %v1542, %v3757
        %v3804 = vmul.f32 %v1544, %v3757
        %v3805 = vmul.f32 %v1546, %v3757
        %v3806 = vmul.f32 %v1548, %v3757
        %v3807 = vmul.f32 %v1550, %v3757
        %v3808 = vmul.f32 %v1552, %v3757
        %v3809 = vmul.f32 %v1554, %v3757
        %v3810 = vmul.f32 %v1556, %v3757
        %v3811 = vmul.f32 %v1558, %v3757
        %v3812 = vmul.f32 %v1560, %v3757
        %v3813 = vmul.f32 %v1562, %v3757
        %v3814 = vmul.f32 %v1564, %v3757
        %v3815 = vmul.f32 %v1566, %v3757
        %v3816 = vmul.f32 %v1568, %v3757
        %v3817 = vmul.f32 %v1570, %v3757
        %v3818 = vmul.f32 %v1572, %v3757
        %v3819 = vmul.f32 %v1574, %v3757
        %v3820 = vmul.f32 %v1576, %v3757
        %v3821 = vmul.f32 %v1578, %v3757
        %p3822 = scmp.eq.s32.totalorder %s20, 1
        %s3823 = scalar_select %p3822, 1, 0
        %s3824 = scvt.s32.f32 %s3823
        %v3825 = vstv %s3824
        %v3826 = vmul.f32 %v1900, %v3825
        %v3827 = vmul.f32 %v1902, %v3825
        %v3828 = vmul.f32 %v1904, %v3825
        %v3829 = vmul.f32 %v1906, %v3825
        %v3830 = vmul.f32 %v1908, %v3825
        %v3831 = vmul.f32 %v1910, %v3825
        %v3832 = vmul.f32 %v1912, %v3825
        %v3833 = vmul.f32 %v1914, %v3825
        %v3834 = vmul.f32 %v1916, %v3825
        %v3835 = vmul.f32 %v1918, %v3825
        %v3836 = vmul.f32 %v1920, %v3825
        %v3837 = vmul.f32 %v1922, %v3825
        %v3838 = vmul.f32 %v1924, %v3825
        %v3839 = vmul.f32 %v1926, %v3825
        %v3840 = vmul.f32 %v1928, %v3825
        %v3841 = vmul.f32 %v1930, %v3825
        %v3842 = vmul.f32 %v1932, %v3825
        %v3843 = vmul.f32 %v1934, %v3825
        %v3844 = vmul.f32 %v1936, %v3825
        %v3845 = vmul.f32 %v1938, %v3825
        %v3846 = vmul.f32 %v1940, %v3825
        %v3847 = vmul.f32 %v1942, %v3825
        %v3848 = vmul.f32 %v1944, %v3825
        %v3849 = vmul.f32 %v1946, %v3825
        %v3850 = vmul.f32 %v1948, %v3825
        %v3851 = vmul.f32 %v1950, %v3825
        %v3852 = vmul.f32 %v1952, %v3825
        %v3853 = vmul.f32 %v1954, %v3825
        %v3854 = vmul.f32 %v1956, %v3825
        %v3855 = vmul.f32 %v1958, %v3825
        %v3856 = vmul.f32 %v1960, %v3825
        %v3857 = vmul.f32 %v1962, %v3825
        %v3858 = vmul.f32 %v1964, %v3825
        %v3859 = vmul.f32 %v1966, %v3825
        %v3860 = vmul.f32 %v1968, %v3825
        %v3861 = vmul.f32 %v1970, %v3825
        %v3862 = vmul.f32 %v1972, %v3825
        %v3863 = vmul.f32 %v1974, %v3825
        %v3864 = vmul.f32 %v1976, %v3825
        %v3865 = vmul.f32 %v1978, %v3825
        %v3866 = vmul.f32 %v1980, %v3825
        %v3867 = vmul.f32 %v1982, %v3825
        %v3868 = vmul.f32 %v1984, %v3825
        %v3869 = vmul.f32 %v1986, %v3825
        %v3870 = vmul.f32 %v1988, %v3825
        %v3871 = vmul.f32 %v1990, %v3825
        %v3872 = vmul.f32 %v1992, %v3825
        %v3873 = vmul.f32 %v1994, %v3825
        %v3874 = vmul.f32 %v1996, %v3825
        %v3875 = vmul.f32 %v1998, %v3825
        %v3876 = vmul.f32 %v2000, %v3825
        %v3877 = vmul.f32 %v2002, %v3825
        %v3878 = vmul.f32 %v2004, %v3825
        %v3879 = vmul.f32 %v2006, %v3825
        %v3880 = vmul.f32 %v2008, %v3825
        %v3881 = vmul.f32 %v2010, %v3825
        %v3882 = vmul.f32 %v2012, %v3825
        %v3883 = vmul.f32 %v2014, %v3825
        %v3884 = vmul.f32 %v2016, %v3825
        %v3885 = vmul.f32 %v2018, %v3825
        %v3886 = vmul.f32 %v2020, %v3825
        %v3887 = vmul.f32 %v2022, %v3825
        %v3888 = vmul.f32 %v2024, %v3825
        %v3889 = vmul.f32 %v2026, %v3825
        %3954 = vrot.lane.b32.xlu0 %v3826, 127
        %v3955 = vpop.permute.xlu0 %3954
        %3956 = vrot.lane.b32.xlu0 %v3827, 127
        %v3957 = vpop.permute.xlu0 %3956
        %3958 = vrot.lane.b32.xlu0 %v3828, 127
        %v3959 = vpop.permute.xlu0 %3958
        %3960 = vrot.lane.b32.xlu0 %v3829, 127
        %v3961 = vpop.permute.xlu0 %3960
        %3962 = vrot.lane.b32.xlu0 %v3830, 127
        %v3963 = vpop.permute.xlu0 %3962
        %3964 = vrot.lane.b32.xlu0 %v3831, 127
        %v3965 = vpop.permute.xlu0 %3964
        %3966 = vrot.lane.b32.xlu0 %v3832, 127
        %v3967 = vpop.permute.xlu0 %3966
        %3968 = vrot.lane.b32.xlu0 %v3833, 127
        %v3969 = vpop.permute.xlu0 %3968
        %3970 = vrot.lane.b32.xlu0 %v3834, 127
        %v3971 = vpop.permute.xlu0 %3970
        %3972 = vrot.lane.b32.xlu0 %v3835, 127
        %v3973 = vpop.permute.xlu0 %3972
        %3974 = vrot.lane.b32.xlu0 %v3836, 127
        %v3975 = vpop.permute.xlu0 %3974
        %3976 = vrot.lane.b32.xlu0 %v3837, 127
        %v3977 = vpop.permute.xlu0 %3976
        %3978 = vrot.lane.b32.xlu0 %v3838, 127
        %v3979 = vpop.permute.xlu0 %3978
        %3980 = vrot.lane.b32.xlu0 %v3839, 127
        %v3981 = vpop.permute.xlu0 %3980
        %3982 = vrot.lane.b32.xlu0 %v3840, 127
        %v3983 = vpop.permute.xlu0 %3982
        %3984 = vrot.lane.b32.xlu0 %v3841, 127
        %v3985 = vpop.permute.xlu0 %3984
        %3986 = vrot.lane.b32.xlu0 %v3842, 127
        %v3987 = vpop.permute.xlu0 %3986
        %3988 = vrot.lane.b32.xlu0 %v3843, 127
        %v3989 = vpop.permute.xlu0 %3988
        %3990 = vrot.lane.b32.xlu0 %v3844, 127
        %v3991 = vpop.permute.xlu0 %3990
        %3992 = vrot.lane.b32.xlu0 %v3845, 127
        %v3993 = vpop.permute.xlu0 %3992
        %3994 = vrot.lane.b32.xlu0 %v3846, 127
        %v3995 = vpop.permute.xlu0 %3994
        %3996 = vrot.lane.b32.xlu0 %v3847, 127
        %v3997 = vpop.permute.xlu0 %3996
        %3998 = vrot.lane.b32.xlu0 %v3848, 127
        %v3999 = vpop.permute.xlu0 %3998
        %4000 = vrot.lane.b32.xlu0 %v3849, 127
        %v4001 = vpop.permute.xlu0 %4000
        %4002 = vrot.lane.b32.xlu0 %v3850, 127
        %v4003 = vpop.permute.xlu0 %4002
        %4004 = vrot.lane.b32.xlu0 %v3851, 127
        %v4005 = vpop.permute.xlu0 %4004
        %4006 = vrot.lane.b32.xlu0 %v3852, 127
        %v4007 = vpop.permute.xlu0 %4006
        %4008 = vrot.lane.b32.xlu0 %v3853, 127
        %v4009 = vpop.permute.xlu0 %4008
        %4010 = vrot.lane.b32.xlu0 %v3854, 127
        %v4011 = vpop.permute.xlu0 %4010
        %4012 = vrot.lane.b32.xlu0 %v3855, 127
        %v4013 = vpop.permute.xlu0 %4012
        %4014 = vrot.lane.b32.xlu0 %v3856, 127
        %v4015 = vpop.permute.xlu0 %4014
        %4016 = vrot.lane.b32.xlu0 %v3857, 127
        %v4017 = vpop.permute.xlu0 %4016
        %4018 = vrot.lane.b32.xlu0 %v3858, 127
        %v4019 = vpop.permute.xlu0 %4018
        %4020 = vrot.lane.b32.xlu0 %v3859, 127
        %v4021 = vpop.permute.xlu0 %4020
        %4022 = vrot.lane.b32.xlu0 %v3860, 127
        %v4023 = vpop.permute.xlu0 %4022
        %4024 = vrot.lane.b32.xlu0 %v3861, 127
        %v4025 = vpop.permute.xlu0 %4024
        %4026 = vrot.lane.b32.xlu0 %v3862, 127
        %v4027 = vpop.permute.xlu0 %4026
        %4028 = vrot.lane.b32.xlu0 %v3863, 127
        %v4029 = vpop.permute.xlu0 %4028
        %4030 = vrot.lane.b32.xlu0 %v3864, 127
        %v4031 = vpop.permute.xlu0 %4030
        %4032 = vrot.lane.b32.xlu0 %v3865, 127
        %v4033 = vpop.permute.xlu0 %4032
        %4034 = vrot.lane.b32.xlu0 %v3866, 127
        %v4035 = vpop.permute.xlu0 %4034
        %4036 = vrot.lane.b32.xlu0 %v3867, 127
        %v4037 = vpop.permute.xlu0 %4036
        %4038 = vrot.lane.b32.xlu0 %v3868, 127
        %v4039 = vpop.permute.xlu0 %4038
        %4040 = vrot.lane.b32.xlu0 %v3869, 127
        %v4041 = vpop.permute.xlu0 %4040
        %4042 = vrot.lane.b32.xlu0 %v3870, 127
        %v4043 = vpop.permute.xlu0 %4042
        %4044 = vrot.lane.b32.xlu0 %v3871, 127
        %v4045 = vpop.permute.xlu0 %4044
        %4046 = vrot.lane.b32.xlu0 %v3872, 127
        %v4047 = vpop.permute.xlu0 %4046
        %4048 = vrot.lane.b32.xlu0 %v3873, 127
        %v4049 = vpop.permute.xlu0 %4048
        %4050 = vrot.lane.b32.xlu0 %v3874, 127
        %v4051 = vpop.permute.xlu0 %4050
        %4052 = vrot.lane.b32.xlu0 %v3875, 127
        %v4053 = vpop.permute.xlu0 %4052
        %4054 = vrot.lane.b32.xlu0 %v3876, 127
        %v4055 = vpop.permute.xlu0 %4054
        %4056 = vrot.lane.b32.xlu0 %v3877, 127
        %v4057 = vpop.permute.xlu0 %4056
        %4058 = vrot.lane.b32.xlu0 %v3878, 127
        %v4059 = vpop.permute.xlu0 %4058
        %4060 = vrot.lane.b32.xlu0 %v3879, 127
        %v4061 = vpop.permute.xlu0 %4060
        %4062 = vrot.lane.b32.xlu0 %v3880, 127
        %v4063 = vpop.permute.xlu0 %4062
        %4064 = vrot.lane.b32.xlu0 %v3881, 127
        %v4065 = vpop.permute.xlu0 %4064
        %4066 = vrot.lane.b32.xlu0 %v3882, 127
        %v4067 = vpop.permute.xlu0 %4066
        %4068 = vrot.lane.b32.xlu0 %v3883, 127
        %v4069 = vpop.permute.xlu0 %4068
        %4070 = vrot.lane.b32.xlu0 %v3884, 127
        %v4071 = vpop.permute.xlu0 %4070
        %4072 = vrot.lane.b32.xlu0 %v3885, 127
        %v4073 = vpop.permute.xlu0 %4072
        %4074 = vrot.lane.b32.xlu0 %v3886, 127
        %v4075 = vpop.permute.xlu0 %4074
        %4076 = vrot.lane.b32.xlu0 %v3887, 127
        %v4077 = vpop.permute.xlu0 %4076
        %4078 = vrot.lane.b32.xlu0 %v3888, 127
        %v4079 = vpop.permute.xlu0 %4078
        %4080 = vrot.lane.b32.xlu0 %v3889, 127
        %v4081 = vpop.permute.xlu0 %4080
        %v4146 = vadd.f32 %v3758, %v3955
        %v4147 = vadd.f32 %v3759, %v3957
        %v4148 = vadd.f32 %v3760, %v3959
        %v4149 = vadd.f32 %v3761, %v3961
        %v4150 = vadd.f32 %v3762, %v3963
        %v4151 = vadd.f32 %v3763, %v3965
        %v4152 = vadd.f32 %v3764, %v3967
        %v4153 = vadd.f32 %v3765, %v3969
        %v4154 = vadd.f32 %v3766, %v3971
        %v4155 = vadd.f32 %v3767, %v3973
        %v4156 = vadd.f32 %v3768, %v3975
        %v4157 = vadd.f32 %v3769, %v3977
        %v4158 = vadd.f32 %v3770, %v3979
        %v4159 = vadd.f32 %v3771, %v3981
        %v4160 = vadd.f32 %v3772, %v3983
        %v4161 = vadd.f32 %v3773, %v3985
        %v4162 = vadd.f32 %v3774, %v3987
        %v4163 = vadd.f32 %v3775, %v3989
        %v4164 = vadd.f32 %v3776, %v3991
        %v4165 = vadd.f32 %v3777, %v3993
        %v4166 = vadd.f32 %v3778, %v3995
        %v4167 = vadd.f32 %v3779, %v3997
        %v4168 = vadd.f32 %v3780, %v3999
        %v4169 = vadd.f32 %v3781, %v4001
        %v4170 = vadd.f32 %v3782, %v4003
        %v4171 = vadd.f32 %v3783, %v4005
        %v4172 = vadd.f32 %v3784, %v4007
        %v4173 = vadd.f32 %v3785, %v4009
        %v4174 = vadd.f32 %v3786, %v4011
        %v4175 = vadd.f32 %v3787, %v4013
        %v4176 = vadd.f32 %v3788, %v4015
        %v4177 = vadd.f32 %v3789, %v4017
        %v4178 = vadd.f32 %v3790, %v4019
        %v4179 = vadd.f32 %v3791, %v4021
        %v4180 = vadd.f32 %v3792, %v4023
        %v4181 = vadd.f32 %v3793, %v4025
        %v4182 = vadd.f32 %v3794, %v4027
        %v4183 = vadd.f32 %v3795, %v4029
        %v4184 = vadd.f32 %v3796, %v4031
        %v4185 = vadd.f32 %v3797, %v4033
        %v4186 = vadd.f32 %v3798, %v4035
        %v4187 = vadd.f32 %v3799, %v4037
        %v4188 = vadd.f32 %v3800, %v4039
        %v4189 = vadd.f32 %v3801, %v4041
        %v4190 = vadd.f32 %v3802, %v4043
        %v4191 = vadd.f32 %v3803, %v4045
        %v4192 = vadd.f32 %v3804, %v4047
        %v4193 = vadd.f32 %v3805, %v4049
        %v4194 = vadd.f32 %v3806, %v4051
        %v4195 = vadd.f32 %v3807, %v4053
        %v4196 = vadd.f32 %v3808, %v4055
        %v4197 = vadd.f32 %v3809, %v4057
        %v4198 = vadd.f32 %v3810, %v4059
        %v4199 = vadd.f32 %v3811, %v4061
        %v4200 = vadd.f32 %v3812, %v4063
        %v4201 = vadd.f32 %v3813, %v4065
        %v4202 = vadd.f32 %v3814, %v4067
        %v4203 = vadd.f32 %v3815, %v4069
        %v4204 = vadd.f32 %v3816, %v4071
        %v4205 = vadd.f32 %v3817, %v4073
        %v4206 = vadd.f32 %v3818, %v4075
        %v4207 = vadd.f32 %v3819, %v4077
        %v4208 = vadd.f32 %v3820, %v4079
        %v4209 = vadd.f32 %v3821, %v4081
        %p4210 = scmp.eq.s32.totalorder %s20, 2
        %s4211 = scalar_select %p4210, 1, 0
        %s4212 = scvt.s32.f32 %s4211
        %v4213 = vstv %s4212
        %v4214 = vmul.f32 %v2284, %v4213
        %v4215 = vmul.f32 %v2286, %v4213
        %v4216 = vmul.f32 %v2288, %v4213
        %v4217 = vmul.f32 %v2290, %v4213
        %v4218 = vmul.f32 %v2292, %v4213
        %v4219 = vmul.f32 %v2294, %v4213
        %v4220 = vmul.f32 %v2296, %v4213
        %v4221 = vmul.f32 %v2298, %v4213
        %v4222 = vmul.f32 %v2300, %v4213
        %v4223 = vmul.f32 %v2302, %v4213
        %v4224 = vmul.f32 %v2304, %v4213
        %v4225 = vmul.f32 %v2306, %v4213
        %v4226 = vmul.f32 %v2308, %v4213
        %v4227 = vmul.f32 %v2310, %v4213
        %v4228 = vmul.f32 %v2312, %v4213
        %v4229 = vmul.f32 %v2314, %v4213
        %v4230 = vmul.f32 %v2316, %v4213
        %v4231 = vmul.f32 %v2318, %v4213
        %v4232 = vmul.f32 %v2320, %v4213
        %v4233 = vmul.f32 %v2322, %v4213
        %v4234 = vmul.f32 %v2324, %v4213
        %v4235 = vmul.f32 %v2326, %v4213
        %v4236 = vmul.f32 %v2328, %v4213
        %v4237 = vmul.f32 %v2330, %v4213
        %v4238 = vmul.f32 %v2332, %v4213
        %v4239 = vmul.f32 %v2334, %v4213
        %v4240 = vmul.f32 %v2336, %v4213
        %v4241 = vmul.f32 %v2338, %v4213
        %v4242 = vmul.f32 %v2340, %v4213
        %v4243 = vmul.f32 %v2342, %v4213
        %v4244 = vmul.f32 %v2344, %v4213
        %v4245 = vmul.f32 %v2346, %v4213
        %v4246 = vmul.f32 %v2348, %v4213
        %v4247 = vmul.f32 %v2350, %v4213
        %v4248 = vmul.f32 %v2352, %v4213
        %v4249 = vmul.f32 %v2354, %v4213
        %v4250 = vmul.f32 %v2356, %v4213
        %v4251 = vmul.f32 %v2358, %v4213
        %v4252 = vmul.f32 %v2360, %v4213
        %v4253 = vmul.f32 %v2362, %v4213
        %v4254 = vmul.f32 %v2364, %v4213
        %v4255 = vmul.f32 %v2366, %v4213
        %v4256 = vmul.f32 %v2368, %v4213
        %v4257 = vmul.f32 %v2370, %v4213
        %v4258 = vmul.f32 %v2372, %v4213
        %v4259 = vmul.f32 %v2374, %v4213
        %v4260 = vmul.f32 %v2376, %v4213
        %v4261 = vmul.f32 %v2378, %v4213
        %v4262 = vmul.f32 %v2380, %v4213
        %v4263 = vmul.f32 %v2382, %v4213
        %v4264 = vmul.f32 %v2384, %v4213
        %v4265 = vmul.f32 %v2386, %v4213
        %v4266 = vmul.f32 %v2388, %v4213
        %v4267 = vmul.f32 %v2390, %v4213
        %v4268 = vmul.f32 %v2392, %v4213
        %v4269 = vmul.f32 %v2394, %v4213
        %v4270 = vmul.f32 %v2396, %v4213
        %v4271 = vmul.f32 %v2398, %v4213
        %v4272 = vmul.f32 %v2400, %v4213
        %v4273 = vmul.f32 %v2402, %v4213
        %v4274 = vmul.f32 %v2404, %v4213
        %v4275 = vmul.f32 %v2406, %v4213
        %v4276 = vmul.f32 %v2408, %v4213
        %v4277 = vmul.f32 %v2410, %v4213
        %4342 = vrot.lane.b32.xlu0 %v4214, 126
        %v4343 = vpop.permute.xlu0 %4342
        %4344 = vrot.lane.b32.xlu0 %v4215, 126
        %v4345 = vpop.permute.xlu0 %4344
        %4346 = vrot.lane.b32.xlu0 %v4216, 126
        %v4347 = vpop.permute.xlu0 %4346
        %4348 = vrot.lane.b32.xlu0 %v4217, 126
        %v4349 = vpop.permute.xlu0 %4348
        %4350 = vrot.lane.b32.xlu0 %v4218, 126
        %v4351 = vpop.permute.xlu0 %4350
        %4352 = vrot.lane.b32.xlu0 %v4219, 126
        %v4353 = vpop.permute.xlu0 %4352
        %4354 = vrot.lane.b32.xlu0 %v4220, 126
        %v4355 = vpop.permute.xlu0 %4354
        %4356 = vrot.lane.b32.xlu0 %v4221, 126
        %v4357 = vpop.permute.xlu0 %4356
        %4358 = vrot.lane.b32.xlu0 %v4222, 126
        %v4359 = vpop.permute.xlu0 %4358
        %4360 = vrot.lane.b32.xlu0 %v4223, 126
        %v4361 = vpop.permute.xlu0 %4360
        %4362 = vrot.lane.b32.xlu0 %v4224, 126
        %v4363 = vpop.permute.xlu0 %4362
        %4364 = vrot.lane.b32.xlu0 %v4225, 126
        %v4365 = vpop.permute.xlu0 %4364
        %4366 = vrot.lane.b32.xlu0 %v4226, 126
        %v4367 = vpop.permute.xlu0 %4366
        %4368 = vrot.lane.b32.xlu0 %v4227, 126
        %v4369 = vpop.permute.xlu0 %4368
        %4370 = vrot.lane.b32.xlu0 %v4228, 126
        %v4371 = vpop.permute.xlu0 %4370
        %4372 = vrot.lane.b32.xlu0 %v4229, 126
        %v4373 = vpop.permute.xlu0 %4372
        %4374 = vrot.lane.b32.xlu0 %v4230, 126
        %v4375 = vpop.permute.xlu0 %4374
        %4376 = vrot.lane.b32.xlu0 %v4231, 126
        %v4377 = vpop.permute.xlu0 %4376
        %4378 = vrot.lane.b32.xlu0 %v4232, 126
        %v4379 = vpop.permute.xlu0 %4378
        %4380 = vrot.lane.b32.xlu0 %v4233, 126
        %v4381 = vpop.permute.xlu0 %4380
        %4382 = vrot.lane.b32.xlu0 %v4234, 126
        %v4383 = vpop.permute.xlu0 %4382
        %4384 = vrot.lane.b32.xlu0 %v4235, 126
        %v4385 = vpop.permute.xlu0 %4384
        %4386 = vrot.lane.b32.xlu0 %v4236, 126
        %v4387 = vpop.permute.xlu0 %4386
        %4388 = vrot.lane.b32.xlu0 %v4237, 126
        %v4389 = vpop.permute.xlu0 %4388
        %4390 = vrot.lane.b32.xlu0 %v4238, 126
        %v4391 = vpop.permute.xlu0 %4390
        %4392 = vrot.lane.b32.xlu0 %v4239, 126
        %v4393 = vpop.permute.xlu0 %4392
        %4394 = vrot.lane.b32.xlu0 %v4240, 126
        %v4395 = vpop.permute.xlu0 %4394
        %4396 = vrot.lane.b32.xlu0 %v4241, 126
        %v4397 = vpop.permute.xlu0 %4396
        %4398 = vrot.lane.b32.xlu0 %v4242, 126
        %v4399 = vpop.permute.xlu0 %4398
        %4400 = vrot.lane.b32.xlu0 %v4243, 126
        %v4401 = vpop.permute.xlu0 %4400
        %4402 = vrot.lane.b32.xlu0 %v4244, 126
        %v4403 = vpop.permute.xlu0 %4402
        %4404 = vrot.lane.b32.xlu0 %v4245, 126
        %v4405 = vpop.permute.xlu0 %4404
        %4406 = vrot.lane.b32.xlu0 %v4246, 126
        %v4407 = vpop.permute.xlu0 %4406
        %4408 = vrot.lane.b32.xlu0 %v4247, 126
        %v4409 = vpop.permute.xlu0 %4408
        %4410 = vrot.lane.b32.xlu0 %v4248, 126
        %v4411 = vpop.permute.xlu0 %4410
        %4412 = vrot.lane.b32.xlu0 %v4249, 126
        %v4413 = vpop.permute.xlu0 %4412
        %4414 = vrot.lane.b32.xlu0 %v4250, 126
        %v4415 = vpop.permute.xlu0 %4414
        %4416 = vrot.lane.b32.xlu0 %v4251, 126
        %v4417 = vpop.permute.xlu0 %4416
        %4418 = vrot.lane.b32.xlu0 %v4252, 126
        %v4419 = vpop.permute.xlu0 %4418
        %4420 = vrot.lane.b32.xlu0 %v4253, 126
        %v4421 = vpop.permute.xlu0 %4420
        %4422 = vrot.lane.b32.xlu0 %v4254, 126
        %v4423 = vpop.permute.xlu0 %4422
        %4424 = vrot.lane.b32.xlu0 %v4255, 126
        %v4425 = vpop.permute.xlu0 %4424
        %4426 = vrot.lane.b32.xlu0 %v4256, 126
        %v4427 = vpop.permute.xlu0 %4426
        %4428 = vrot.lane.b32.xlu0 %v4257, 126
        %v4429 = vpop.permute.xlu0 %4428
        %4430 = vrot.lane.b32.xlu0 %v4258, 126
        %v4431 = vpop.permute.xlu0 %4430
        %4432 = vrot.lane.b32.xlu0 %v4259, 126
        %v4433 = vpop.permute.xlu0 %4432
        %4434 = vrot.lane.b32.xlu0 %v4260, 126
        %v4435 = vpop.permute.xlu0 %4434
        %4436 = vrot.lane.b32.xlu0 %v4261, 126
        %v4437 = vpop.permute.xlu0 %4436
        %4438 = vrot.lane.b32.xlu0 %v4262, 126
        %v4439 = vpop.permute.xlu0 %4438
        %4440 = vrot.lane.b32.xlu0 %v4263, 126
        %v4441 = vpop.permute.xlu0 %4440
        %4442 = vrot.lane.b32.xlu0 %v4264, 126
        %v4443 = vpop.permute.xlu0 %4442
        %4444 = vrot.lane.b32.xlu0 %v4265, 126
        %v4445 = vpop.permute.xlu0 %4444
        %4446 = vrot.lane.b32.xlu0 %v4266, 126
        %v4447 = vpop.permute.xlu0 %4446
        %4448 = vrot.lane.b32.xlu0 %v4267, 126
        %v4449 = vpop.permute.xlu0 %4448
        %4450 = vrot.lane.b32.xlu0 %v4268, 126
        %v4451 = vpop.permute.xlu0 %4450
        %4452 = vrot.lane.b32.xlu0 %v4269, 126
        %v4453 = vpop.permute.xlu0 %4452
        %4454 = vrot.lane.b32.xlu0 %v4270, 126
        %v4455 = vpop.permute.xlu0 %4454
        %4456 = vrot.lane.b32.xlu0 %v4271, 126
        %v4457 = vpop.permute.xlu0 %4456
        %4458 = vrot.lane.b32.xlu0 %v4272, 126
        %v4459 = vpop.permute.xlu0 %4458
        %4460 = vrot.lane.b32.xlu0 %v4273, 126
        %v4461 = vpop.permute.xlu0 %4460
        %4462 = vrot.lane.b32.xlu0 %v4274, 126
        %v4463 = vpop.permute.xlu0 %4462
        %4464 = vrot.lane.b32.xlu0 %v4275, 126
        %v4465 = vpop.permute.xlu0 %4464
        %4466 = vrot.lane.b32.xlu0 %v4276, 126
        %v4467 = vpop.permute.xlu0 %4466
        %4468 = vrot.lane.b32.xlu0 %v4277, 126
        %v4469 = vpop.permute.xlu0 %4468
        %v4534 = vadd.f32 %v4146, %v4343
        %v4535 = vadd.f32 %v4147, %v4345
        %v4536 = vadd.f32 %v4148, %v4347
        %v4537 = vadd.f32 %v4149, %v4349
        %v4538 = vadd.f32 %v4150, %v4351
        %v4539 = vadd.f32 %v4151, %v4353
        %v4540 = vadd.f32 %v4152, %v4355
        %v4541 = vadd.f32 %v4153, %v4357
        %v4542 = vadd.f32 %v4154, %v4359
        %v4543 = vadd.f32 %v4155, %v4361
        %v4544 = vadd.f32 %v4156, %v4363
        %v4545 = vadd.f32 %v4157, %v4365
        %v4546 = vadd.f32 %v4158, %v4367
        %v4547 = vadd.f32 %v4159, %v4369
        %v4548 = vadd.f32 %v4160, %v4371
        %v4549 = vadd.f32 %v4161, %v4373
        %v4550 = vadd.f32 %v4162, %v4375
        %v4551 = vadd.f32 %v4163, %v4377
        %v4552 = vadd.f32 %v4164, %v4379
        %v4553 = vadd.f32 %v4165, %v4381
        %v4554 = vadd.f32 %v4166, %v4383
        %v4555 = vadd.f32 %v4167, %v4385
        %v4556 = vadd.f32 %v4168, %v4387
        %v4557 = vadd.f32 %v4169, %v4389
        %v4558 = vadd.f32 %v4170, %v4391
        %v4559 = vadd.f32 %v4171, %v4393
        %v4560 = vadd.f32 %v4172, %v4395
        %v4561 = vadd.f32 %v4173, %v4397
        %v4562 = vadd.f32 %v4174, %v4399
        %v4563 = vadd.f32 %v4175, %v4401
        %v4564 = vadd.f32 %v4176, %v4403
        %v4565 = vadd.f32 %v4177, %v4405
        %v4566 = vadd.f32 %v4178, %v4407
        %v4567 = vadd.f32 %v4179, %v4409
        %v4568 = vadd.f32 %v4180, %v4411
        %v4569 = vadd.f32 %v4181, %v4413
        %v4570 = vadd.f32 %v4182, %v4415
        %v4571 = vadd.f32 %v4183, %v4417
        %v4572 = vadd.f32 %v4184, %v4419
        %v4573 = vadd.f32 %v4185, %v4421
        %v4574 = vadd.f32 %v4186, %v4423
        %v4575 = vadd.f32 %v4187, %v4425
        %v4576 = vadd.f32 %v4188, %v4427
        %v4577 = vadd.f32 %v4189, %v4429
        %v4578 = vadd.f32 %v4190, %v4431
        %v4579 = vadd.f32 %v4191, %v4433
        %v4580 = vadd.f32 %v4192, %v4435
        %v4581 = vadd.f32 %v4193, %v4437
        %v4582 = vadd.f32 %v4194, %v4439
        %v4583 = vadd.f32 %v4195, %v4441
        %v4584 = vadd.f32 %v4196, %v4443
        %v4585 = vadd.f32 %v4197, %v4445
        %v4586 = vadd.f32 %v4198, %v4447
        %v4587 = vadd.f32 %v4199, %v4449
        %v4588 = vadd.f32 %v4200, %v4451
        %v4589 = vadd.f32 %v4201, %v4453
        %v4590 = vadd.f32 %v4202, %v4455
        %v4591 = vadd.f32 %v4203, %v4457
        %v4592 = vadd.f32 %v4204, %v4459
        %v4593 = vadd.f32 %v4205, %v4461
        %v4594 = vadd.f32 %v4206, %v4463
        %v4595 = vadd.f32 %v4207, %v4465
        %v4596 = vadd.f32 %v4208, %v4467
        %v4597 = vadd.f32 %v4209, %v4469
        %p4598 = scmp.eq.s32.totalorder %s20, 3
        %s4599 = scalar_select %p4598, 1, 0
        %s4600 = scvt.s32.f32 %s4599
        %v4601 = vstv %s4600
        %v4602 = vmul.f32 %v2668, %v4601
        %v4603 = vmul.f32 %v2670, %v4601
        %v4604 = vmul.f32 %v2672, %v4601
        %v4605 = vmul.f32 %v2674, %v4601
        %v4606 = vmul.f32 %v2676, %v4601
        %v4607 = vmul.f32 %v2678, %v4601
        %v4608 = vmul.f32 %v2680, %v4601
        %v4609 = vmul.f32 %v2682, %v4601
        %v4610 = vmul.f32 %v2684, %v4601
        %v4611 = vmul.f32 %v2686, %v4601
        %v4612 = vmul.f32 %v2688, %v4601
        %v4613 = vmul.f32 %v2690, %v4601
        %v4614 = vmul.f32 %v2692, %v4601
        %v4615 = vmul.f32 %v2694, %v4601
        %v4616 = vmul.f32 %v2696, %v4601
        %v4617 = vmul.f32 %v2698, %v4601
        %v4618 = vmul.f32 %v2700, %v4601
        %v4619 = vmul.f32 %v2702, %v4601
        %v4620 = vmul.f32 %v2704, %v4601
        %v4621 = vmul.f32 %v2706, %v4601
        %v4622 = vmul.f32 %v2708, %v4601
        %v4623 = vmul.f32 %v2710, %v4601
        %v4624 = vmul.f32 %v2712, %v4601
        %v4625 = vmul.f32 %v2714, %v4601
        %v4626 = vmul.f32 %v2716, %v4601
        %v4627 = vmul.f32 %v2718, %v4601
        %v4628 = vmul.f32 %v2720, %v4601
        %v4629 = vmul.f32 %v2722, %v4601
        %v4630 = vmul.f32 %v2724, %v4601
        %v4631 = vmul.f32 %v2726, %v4601
        %v4632 = vmul.f32 %v2728, %v4601
        %v4633 = vmul.f32 %v2730, %v4601
        %v4634 = vmul.f32 %v2732, %v4601
        %v4635 = vmul.f32 %v2734, %v4601
        %v4636 = vmul.f32 %v2736, %v4601
        %v4637 = vmul.f32 %v2738, %v4601
        %v4638 = vmul.f32 %v2740, %v4601
        %v4639 = vmul.f32 %v2742, %v4601
        %v4640 = vmul.f32 %v2744, %v4601
        %v4641 = vmul.f32 %v2746, %v4601
        %v4642 = vmul.f32 %v2748, %v4601
        %v4643 = vmul.f32 %v2750, %v4601
        %v4644 = vmul.f32 %v2752, %v4601
        %v4645 = vmul.f32 %v2754, %v4601
        %v4646 = vmul.f32 %v2756, %v4601
        %v4647 = vmul.f32 %v2758, %v4601
        %v4648 = vmul.f32 %v2760, %v4601
        %v4649 = vmul.f32 %v2762, %v4601
        %v4650 = vmul.f32 %v2764, %v4601
        %v4651 = vmul.f32 %v2766, %v4601
        %v4652 = vmul.f32 %v2768, %v4601
        %v4653 = vmul.f32 %v2770, %v4601
        %v4654 = vmul.f32 %v2772, %v4601
        %v4655 = vmul.f32 %v2774, %v4601
        %v4656 = vmul.f32 %v2776, %v4601
        %v4657 = vmul.f32 %v2778, %v4601
        %v4658 = vmul.f32 %v2780, %v4601
        %v4659 = vmul.f32 %v2782, %v4601
        %v4660 = vmul.f32 %v2784, %v4601
        %v4661 = vmul.f32 %v2786, %v4601
        %v4662 = vmul.f32 %v2788, %v4601
        %v4663 = vmul.f32 %v2790, %v4601
        %v4664 = vmul.f32 %v2792, %v4601
        %v4665 = vmul.f32 %v2794, %v4601
        %4730 = vrot.lane.b32.xlu0 %v4602, 125
        %v4731 = vpop.permute.xlu0 %4730
        %4732 = vrot.lane.b32.xlu0 %v4603, 125
        %v4733 = vpop.permute.xlu0 %4732
        %4734 = vrot.lane.b32.xlu0 %v4604, 125
        %v4735 = vpop.permute.xlu0 %4734
        %4736 = vrot.lane.b32.xlu0 %v4605, 125
        %v4737 = vpop.permute.xlu0 %4736
        %4738 = vrot.lane.b32.xlu0 %v4606, 125
        %v4739 = vpop.permute.xlu0 %4738
        %4740 = vrot.lane.b32.xlu0 %v4607, 125
        %v4741 = vpop.permute.xlu0 %4740
        %4742 = vrot.lane.b32.xlu0 %v4608, 125
        %v4743 = vpop.permute.xlu0 %4742
        %4744 = vrot.lane.b32.xlu0 %v4609, 125
        %v4745 = vpop.permute.xlu0 %4744
        %4746 = vrot.lane.b32.xlu0 %v4610, 125
        %v4747 = vpop.permute.xlu0 %4746
        %4748 = vrot.lane.b32.xlu0 %v4611, 125
        %v4749 = vpop.permute.xlu0 %4748
        %4750 = vrot.lane.b32.xlu0 %v4612, 125
        %v4751 = vpop.permute.xlu0 %4750
        %4752 = vrot.lane.b32.xlu0 %v4613, 125
        %v4753 = vpop.permute.xlu0 %4752
        %4754 = vrot.lane.b32.xlu0 %v4614, 125
        %v4755 = vpop.permute.xlu0 %4754
        %4756 = vrot.lane.b32.xlu0 %v4615, 125
        %v4757 = vpop.permute.xlu0 %4756
        %4758 = vrot.lane.b32.xlu0 %v4616, 125
        %v4759 = vpop.permute.xlu0 %4758
        %4760 = vrot.lane.b32.xlu0 %v4617, 125
        %v4761 = vpop.permute.xlu0 %4760
        %4762 = vrot.lane.b32.xlu0 %v4618, 125
        %v4763 = vpop.permute.xlu0 %4762
        %4764 = vrot.lane.b32.xlu0 %v4619, 125
        %v4765 = vpop.permute.xlu0 %4764
        %4766 = vrot.lane.b32.xlu0 %v4620, 125
        %v4767 = vpop.permute.xlu0 %4766
        %4768 = vrot.lane.b32.xlu0 %v4621, 125
        %v4769 = vpop.permute.xlu0 %4768
        %4770 = vrot.lane.b32.xlu0 %v4622, 125
        %v4771 = vpop.permute.xlu0 %4770
        %4772 = vrot.lane.b32.xlu0 %v4623, 125
        %v4773 = vpop.permute.xlu0 %4772
        %4774 = vrot.lane.b32.xlu0 %v4624, 125
        %v4775 = vpop.permute.xlu0 %4774
        %4776 = vrot.lane.b32.xlu0 %v4625, 125
        %v4777 = vpop.permute.xlu0 %4776
        %4778 = vrot.lane.b32.xlu0 %v4626, 125
        %v4779 = vpop.permute.xlu0 %4778
        %4780 = vrot.lane.b32.xlu0 %v4627, 125
        %v4781 = vpop.permute.xlu0 %4780
        %4782 = vrot.lane.b32.xlu0 %v4628, 125
        %v4783 = vpop.permute.xlu0 %4782
        %4784 = vrot.lane.b32.xlu0 %v4629, 125
        %v4785 = vpop.permute.xlu0 %4784
        %4786 = vrot.lane.b32.xlu0 %v4630, 125
        %v4787 = vpop.permute.xlu0 %4786
        %4788 = vrot.lane.b32.xlu0 %v4631, 125
        %v4789 = vpop.permute.xlu0 %4788
        %4790 = vrot.lane.b32.xlu0 %v4632, 125
        %v4791 = vpop.permute.xlu0 %4790
        %4792 = vrot.lane.b32.xlu0 %v4633, 125
        %v4793 = vpop.permute.xlu0 %4792
        %4794 = vrot.lane.b32.xlu0 %v4634, 125
        %v4795 = vpop.permute.xlu0 %4794
        %4796 = vrot.lane.b32.xlu0 %v4635, 125
        %v4797 = vpop.permute.xlu0 %4796
        %4798 = vrot.lane.b32.xlu0 %v4636, 125
        %v4799 = vpop.permute.xlu0 %4798
        %4800 = vrot.lane.b32.xlu0 %v4637, 125
        %v4801 = vpop.permute.xlu0 %4800
        %4802 = vrot.lane.b32.xlu0 %v4638, 125
        %v4803 = vpop.permute.xlu0 %4802
        %4804 = vrot.lane.b32.xlu0 %v4639, 125
        %v4805 = vpop.permute.xlu0 %4804
        %4806 = vrot.lane.b32.xlu0 %v4640, 125
        %v4807 = vpop.permute.xlu0 %4806
        %4808 = vrot.lane.b32.xlu0 %v4641, 125
        %v4809 = vpop.permute.xlu0 %4808
        %4810 = vrot.lane.b32.xlu0 %v4642, 125
        %v4811 = vpop.permute.xlu0 %4810
        %4812 = vrot.lane.b32.xlu0 %v4643, 125
        %v4813 = vpop.permute.xlu0 %4812
        %4814 = vrot.lane.b32.xlu0 %v4644, 125
        %v4815 = vpop.permute.xlu0 %4814
        %4816 = vrot.lane.b32.xlu0 %v4645, 125
        %v4817 = vpop.permute.xlu0 %4816
        %4818 = vrot.lane.b32.xlu0 %v4646, 125
        %v4819 = vpop.permute.xlu0 %4818
        %4820 = vrot.lane.b32.xlu0 %v4647, 125
        %v4821 = vpop.permute.xlu0 %4820
        %4822 = vrot.lane.b32.xlu0 %v4648, 125
        %v4823 = vpop.permute.xlu0 %4822
        %4824 = vrot.lane.b32.xlu0 %v4649, 125
        %v4825 = vpop.permute.xlu0 %4824
        %4826 = vrot.lane.b32.xlu0 %v4650, 125
        %v4827 = vpop.permute.xlu0 %4826
        %4828 = vrot.lane.b32.xlu0 %v4651, 125
        %v4829 = vpop.permute.xlu0 %4828
        %4830 = vrot.lane.b32.xlu0 %v4652, 125
        %v4831 = vpop.permute.xlu0 %4830
        %4832 = vrot.lane.b32.xlu0 %v4653, 125
        %v4833 = vpop.permute.xlu0 %4832
        %4834 = vrot.lane.b32.xlu0 %v4654, 125
        %v4835 = vpop.permute.xlu0 %4834
        %4836 = vrot.lane.b32.xlu0 %v4655, 125
        %v4837 = vpop.permute.xlu0 %4836
        %4838 = vrot.lane.b32.xlu0 %v4656, 125
        %v4839 = vpop.permute.xlu0 %4838
        %4840 = vrot.lane.b32.xlu0 %v4657, 125
        %v4841 = vpop.permute.xlu0 %4840
        %4842 = vrot.lane.b32.xlu0 %v4658, 125
        %v4843 = vpop.permute.xlu0 %4842
        %4844 = vrot.lane.b32.xlu0 %v4659, 125
        %v4845 = vpop.permute.xlu0 %4844
        %4846 = vrot.lane.b32.xlu0 %v4660, 125
        %v4847 = vpop.permute.xlu0 %4846
        %4848 = vrot.lane.b32.xlu0 %v4661, 125
        %v4849 = vpop.permute.xlu0 %4848
        %4850 = vrot.lane.b32.xlu0 %v4662, 125
        %v4851 = vpop.permute.xlu0 %4850
        %4852 = vrot.lane.b32.xlu0 %v4663, 125
        %v4853 = vpop.permute.xlu0 %4852
        %4854 = vrot.lane.b32.xlu0 %v4664, 125
        %v4855 = vpop.permute.xlu0 %4854
        %4856 = vrot.lane.b32.xlu0 %v4665, 125
        %v4857 = vpop.permute.xlu0 %4856
        %v4922 = vadd.f32 %v4534, %v4731
        %v4923 = vadd.f32 %v4535, %v4733
        %v4924 = vadd.f32 %v4536, %v4735
        %v4925 = vadd.f32 %v4537, %v4737
        %v4926 = vadd.f32 %v4538, %v4739
        %v4927 = vadd.f32 %v4539, %v4741
        %v4928 = vadd.f32 %v4540, %v4743
        %v4929 = vadd.f32 %v4541, %v4745
        %v4930 = vadd.f32 %v4542, %v4747
        %v4931 = vadd.f32 %v4543, %v4749
        %v4932 = vadd.f32 %v4544, %v4751
        %v4933 = vadd.f32 %v4545, %v4753
        %v4934 = vadd.f32 %v4546, %v4755
        %v4935 = vadd.f32 %v4547, %v4757
        %v4936 = vadd.f32 %v4548, %v4759
        %v4937 = vadd.f32 %v4549, %v4761
        %v4938 = vadd.f32 %v4550, %v4763
        %v4939 = vadd.f32 %v4551, %v4765
        %v4940 = vadd.f32 %v4552, %v4767
        %v4941 = vadd.f32 %v4553, %v4769
        %v4942 = vadd.f32 %v4554, %v4771
        %v4943 = vadd.f32 %v4555, %v4773
        %v4944 = vadd.f32 %v4556, %v4775
        %v4945 = vadd.f32 %v4557, %v4777
        %v4946 = vadd.f32 %v4558, %v4779
        %v4947 = vadd.f32 %v4559, %v4781
        %v4948 = vadd.f32 %v4560, %v4783
        %v4949 = vadd.f32 %v4561, %v4785
        %v4950 = vadd.f32 %v4562, %v4787
        %v4951 = vadd.f32 %v4563, %v4789
        %v4952 = vadd.f32 %v4564, %v4791
        %v4953 = vadd.f32 %v4565, %v4793
        %v4954 = vadd.f32 %v4566, %v4795
        %v4955 = vadd.f32 %v4567, %v4797
        %v4956 = vadd.f32 %v4568, %v4799
        %v4957 = vadd.f32 %v4569, %v4801
        %v4958 = vadd.f32 %v4570, %v4803
        %v4959 = vadd.f32 %v4571, %v4805
        %v4960 = vadd.f32 %v4572, %v4807
        %v4961 = vadd.f32 %v4573, %v4809
        %v4962 = vadd.f32 %v4574, %v4811
        %v4963 = vadd.f32 %v4575, %v4813
        %v4964 = vadd.f32 %v4576, %v4815
        %v4965 = vadd.f32 %v4577, %v4817
        %v4966 = vadd.f32 %v4578, %v4819
        %v4967 = vadd.f32 %v4579, %v4821
        %v4968 = vadd.f32 %v4580, %v4823
        %v4969 = vadd.f32 %v4581, %v4825
        %v4970 = vadd.f32 %v4582, %v4827
        %v4971 = vadd.f32 %v4583, %v4829
        %v4972 = vadd.f32 %v4584, %v4831
        %v4973 = vadd.f32 %v4585, %v4833
        %v4974 = vadd.f32 %v4586, %v4835
        %v4975 = vadd.f32 %v4587, %v4837
        %v4976 = vadd.f32 %v4588, %v4839
        %v4977 = vadd.f32 %v4589, %v4841
        %v4978 = vadd.f32 %v4590, %v4843
        %v4979 = vadd.f32 %v4591, %v4845
        %v4980 = vadd.f32 %v4592, %v4847
        %v4981 = vadd.f32 %v4593, %v4849
        %v4982 = vadd.f32 %v4594, %v4851
        %v4983 = vadd.f32 %v4595, %v4853
        %v4984 = vadd.f32 %v4596, %v4855
        %v4985 = vadd.f32 %v4597, %v4857
        %v4986 = vrcp.pop %v3691
        %v4987 = vmul.f32 %v4922, %v4986
        %v4988 = vrcp.pop %v3692
        %v4989 = vmul.f32 %v4923, %v4988
        %v4990 = vrcp.pop %v3693
        %v4991 = vmul.f32 %v4924, %v4990
        %v4992 = vrcp.pop %v3694
        %v4993 = vmul.f32 %v4925, %v4992
        %v4994 = vrcp.pop %v3695
        %v4995 = vmul.f32 %v4926, %v4994
        %v4996 = vrcp.pop %v3696
        %v4997 = vmul.f32 %v4927, %v4996
        %v4998 = vrcp.pop %v3697
        %v4999 = vmul.f32 %v4928, %v4998
        %v5000 = vrcp.pop %v3698
        %v5001 = vmul.f32 %v4929, %v5000
        %v5002 = vrcp.pop %v3699
        %v5003 = vmul.f32 %v4930, %v5002
        %v5004 = vrcp.pop %v3700
        %v5005 = vmul.f32 %v4931, %v5004
        %v5006 = vrcp.pop %v3701
        %v5007 = vmul.f32 %v4932, %v5006
        %v5008 = vrcp.pop %v3702
        %v5009 = vmul.f32 %v4933, %v5008
        %v5010 = vrcp.pop %v3703
        %v5011 = vmul.f32 %v4934, %v5010
        %v5012 = vrcp.pop %v3704
        %v5013 = vmul.f32 %v4935, %v5012
        %v5014 = vrcp.pop %v3705
        %v5015 = vmul.f32 %v4936, %v5014
        %v5016 = vrcp.pop %v3706
        %v5017 = vmul.f32 %v4937, %v5016
        %v5018 = vrcp.pop %v3707
        %v5019 = vmul.f32 %v4938, %v5018
        %v5020 = vrcp.pop %v3708
        %v5021 = vmul.f32 %v4939, %v5020
        %v5022 = vrcp.pop %v3709
        %v5023 = vmul.f32 %v4940, %v5022
        %v5024 = vrcp.pop %v3710
        %v5025 = vmul.f32 %v4941, %v5024
        %v5026 = vrcp.pop %v3711
        %v5027 = vmul.f32 %v4942, %v5026
        %v5028 = vrcp.pop %v3712
        %v5029 = vmul.f32 %v4943, %v5028
        %v5030 = vrcp.pop %v3713
        %v5031 = vmul.f32 %v4944, %v5030
        %v5032 = vrcp.pop %v3714
        %v5033 = vmul.f32 %v4945, %v5032
        %v5034 = vrcp.pop %v3715
        %v5035 = vmul.f32 %v4946, %v5034
        %v5036 = vrcp.pop %v3716
        %v5037 = vmul.f32 %v4947, %v5036
        %v5038 = vrcp.pop %v3717
        %v5039 = vmul.f32 %v4948, %v5038
        %v5040 = vrcp.pop %v3718
        %v5041 = vmul.f32 %v4949, %v5040
        %v5042 = vrcp.pop %v3719
        %v5043 = vmul.f32 %v4950, %v5042
        %v5044 = vrcp.pop %v3720
        %v5045 = vmul.f32 %v4951, %v5044
        %v5046 = vrcp.pop %v3721
        %v5047 = vmul.f32 %v4952, %v5046
        %v5048 = vrcp.pop %v3722
        %v5049 = vmul.f32 %v4953, %v5048
        %v5050 = vrcp.pop %v3723
        %v5051 = vmul.f32 %v4954, %v5050
        %v5052 = vrcp.pop %v3724
        %v5053 = vmul.f32 %v4955, %v5052
        %v5054 = vrcp.pop %v3725
        %v5055 = vmul.f32 %v4956, %v5054
        %v5056 = vrcp.pop %v3726
        %v5057 = vmul.f32 %v4957, %v5056
        %v5058 = vrcp.pop %v3727
        %v5059 = vmul.f32 %v4958, %v5058
        %v5060 = vrcp.pop %v3728
        %v5061 = vmul.f32 %v4959, %v5060
        %v5062 = vrcp.pop %v3729
        %v5063 = vmul.f32 %v4960, %v5062
        %v5064 = vrcp.pop %v3730
        %v5065 = vmul.f32 %v4961, %v5064
        %v5066 = vrcp.pop %v3731
        %v5067 = vmul.f32 %v4962, %v5066
        %v5068 = vrcp.pop %v3732
        %v5069 = vmul.f32 %v4963, %v5068
        %v5070 = vrcp.pop %v3733
        %v5071 = vmul.f32 %v4964, %v5070
        %v5072 = vrcp.pop %v3734
        %v5073 = vmul.f32 %v4965, %v5072
        %v5074 = vrcp.pop %v3735
        %v5075 = vmul.f32 %v4966, %v5074
        %v5076 = vrcp.pop %v3736
        %v5077 = vmul.f32 %v4967, %v5076
        %v5078 = vrcp.pop %v3737
        %v5079 = vmul.f32 %v4968, %v5078
        %v5080 = vrcp.pop %v3738
        %v5081 = vmul.f32 %v4969, %v5080
        %v5082 = vrcp.pop %v3739
        %v5083 = vmul.f32 %v4970, %v5082
        %v5084 = vrcp.pop %v3740
        %v5085 = vmul.f32 %v4971, %v5084
        %v5086 = vrcp.pop %v3741
        %v5087 = vmul.f32 %v4972, %v5086
        %v5088 = vrcp.pop %v3742
        %v5089 = vmul.f32 %v4973, %v5088
        %v5090 = vrcp.pop %v3743
        %v5091 = vmul.f32 %v4974, %v5090
        %v5092 = vrcp.pop %v3744
        %v5093 = vmul.f32 %v4975, %v5092
        %v5094 = vrcp.pop %v3745
        %v5095 = vmul.f32 %v4976, %v5094
        %v5096 = vrcp.pop %v3746
        %v5097 = vmul.f32 %v4977, %v5096
        %v5098 = vrcp.pop %v3747
        %v5099 = vmul.f32 %v4978, %v5098
        %v5100 = vrcp.pop %v3748
        %v5101 = vmul.f32 %v4979, %v5100
        %v5102 = vrcp.pop %v3749
        %v5103 = vmul.f32 %v4980, %v5102
        %v5104 = vrcp.pop %v3750
        %v5105 = vmul.f32 %v4981, %v5104
        %v5106 = vrcp.pop %v3751
        %v5107 = vmul.f32 %v4982, %v5106
        %v5108 = vrcp.pop %v3752
        %v5109 = vmul.f32 %v4983, %v5108
        %v5110 = vrcp.pop %v3753
        %v5111 = vmul.f32 %v4984, %v5110
        %v5112 = vrcp.pop %v3754
        %v5113 = vmul.f32 %v4985, %v5112
        %vm5114 = vcmp.ne.s32.totalorder %v491, 0
        %vm5115 = vcmp.ne.s32.totalorder %v492, 0
        %vm5116 = vcmp.ne.s32.totalorder %v493, 0
        %vm5117 = vcmp.ne.s32.totalorder %v494, 0
        %vm5118 = vcmp.ne.s32.totalorder %v495, 0
        %vm5119 = vcmp.ne.s32.totalorder %v496, 0
        %vm5120 = vcmp.ne.s32.totalorder %v497, 0
        %vm5121 = vcmp.ne.s32.totalorder %v498, 0
        %vm5122 = vcmp.ne.s32.totalorder %v499, 0
        %vm5123 = vcmp.ne.s32.totalorder %v500, 0
        %vm5124 = vcmp.ne.s32.totalorder %v501, 0
        %vm5125 = vcmp.ne.s32.totalorder %v502, 0
        %vm5126 = vcmp.ne.s32.totalorder %v503, 0
        %vm5127 = vcmp.ne.s32.totalorder %v504, 0
        %vm5128 = vcmp.ne.s32.totalorder %v505, 0
        %vm5129 = vcmp.ne.s32.totalorder %v506, 0
        %vm5130 = vcmp.ne.s32.totalorder %v507, 0
        %vm5131 = vcmp.ne.s32.totalorder %v508, 0
        %vm5132 = vcmp.ne.s32.totalorder %v509, 0
        %vm5133 = vcmp.ne.s32.totalorder %v510, 0
        %vm5134 = vcmp.ne.s32.totalorder %v511, 0
        %vm5135 = vcmp.ne.s32.totalorder %v512, 0
        %vm5136 = vcmp.ne.s32.totalorder %v513, 0
        %vm5137 = vcmp.ne.s32.totalorder %v514, 0
        %vm5138 = vcmp.ne.s32.totalorder %v515, 0
        %vm5139 = vcmp.ne.s32.totalorder %v516, 0
        %vm5140 = vcmp.ne.s32.totalorder %v517, 0
        %vm5141 = vcmp.ne.s32.totalorder %v518, 0
        %vm5142 = vcmp.ne.s32.totalorder %v519, 0
        %vm5143 = vcmp.ne.s32.totalorder %v520, 0
        %vm5144 = vcmp.ne.s32.totalorder %v521, 0
        %vm5145 = vcmp.ne.s32.totalorder %v522, 0
        %vm5146 = vcmp.ne.s32.totalorder %v523, 0
        %vm5147 = vcmp.ne.s32.totalorder %v524, 0
        %vm5148 = vcmp.ne.s32.totalorder %v525, 0
        %vm5149 = vcmp.ne.s32.totalorder %v526, 0
        %vm5150 = vcmp.ne.s32.totalorder %v527, 0
        %vm5151 = vcmp.ne.s32.totalorder %v528, 0
        %vm5152 = vcmp.ne.s32.totalorder %v529, 0
        %vm5153 = vcmp.ne.s32.totalorder %v530, 0
        %vm5154 = vcmp.ne.s32.totalorder %v531, 0
        %vm5155 = vcmp.ne.s32.totalorder %v532, 0
        %vm5156 = vcmp.ne.s32.totalorder %v533, 0
        %vm5157 = vcmp.ne.s32.totalorder %v534, 0
        %vm5158 = vcmp.ne.s32.totalorder %v535, 0
        %vm5159 = vcmp.ne.s32.totalorder %v536, 0
        %vm5160 = vcmp.ne.s32.totalorder %v537, 0
        %vm5161 = vcmp.ne.s32.totalorder %v538, 0
        %vm5162 = vcmp.ne.s32.totalorder %v539, 0
        %vm5163 = vcmp.ne.s32.totalorder %v540, 0
        %vm5164 = vcmp.ne.s32.totalorder %v541, 0
        %vm5165 = vcmp.ne.s32.totalorder %v542, 0
        %vm5166 = vcmp.ne.s32.totalorder %v543, 0
        %vm5167 = vcmp.ne.s32.totalorder %v544, 0
        %vm5168 = vcmp.ne.s32.totalorder %v545, 0
        %vm5169 = vcmp.ne.s32.totalorder %v546, 0
        %vm5170 = vcmp.ne.s32.totalorder %v547, 0
        %vm5171 = vcmp.ne.s32.totalorder %v548, 0
        %vm5172 = vcmp.ne.s32.totalorder %v549, 0
        %vm5173 = vcmp.ne.s32.totalorder %v550, 0
        %vm5174 = vcmp.ne.s32.totalorder %v551, 0
        %vm5175 = vcmp.ne.s32.totalorder %v552, 0
        %vm5176 = vcmp.ne.s32.totalorder %v553, 0
        %vm5177 = vcmp.ne.s32.totalorder %v554, 0
        %v5178 = vstv %s20
        %vm5179 = vcmp.eq.s32.totalorder %v491, %v5178
        %vm5180 = vcmp.eq.s32.totalorder %v492, %v5178
        %vm5181 = vcmp.eq.s32.totalorder %v493, %v5178
        %vm5182 = vcmp.eq.s32.totalorder %v494, %v5178
        %vm5183 = vcmp.eq.s32.totalorder %v495, %v5178
        %vm5184 = vcmp.eq.s32.totalorder %v496, %v5178
        %vm5185 = vcmp.eq.s32.totalorder %v497, %v5178
        %vm5186 = vcmp.eq.s32.totalorder %v498, %v5178
        %vm5187 = vcmp.eq.s32.totalorder %v499, %v5178
        %vm5188 = vcmp.eq.s32.totalorder %v500, %v5178
        %vm5189 = vcmp.eq.s32.totalorder %v501, %v5178
        %vm5190 = vcmp.eq.s32.totalorder %v502, %v5178
        %vm5191 = vcmp.eq.s32.totalorder %v503, %v5178
        %vm5192 = vcmp.eq.s32.totalorder %v504, %v5178
        %vm5193 = vcmp.eq.s32.totalorder %v505, %v5178
        %vm5194 = vcmp.eq.s32.totalorder %v506, %v5178
        %vm5195 = vcmp.eq.s32.totalorder %v507, %v5178
        %vm5196 = vcmp.eq.s32.totalorder %v508, %v5178
        %vm5197 = vcmp.eq.s32.totalorder %v509, %v5178
        %vm5198 = vcmp.eq.s32.totalorder %v510, %v5178
        %vm5199 = vcmp.eq.s32.totalorder %v511, %v5178
        %vm5200 = vcmp.eq.s32.totalorder %v512, %v5178
        %vm5201 = vcmp.eq.s32.totalorder %v513, %v5178
        %vm5202 = vcmp.eq.s32.totalorder %v514, %v5178
        %vm5203 = vcmp.eq.s32.totalorder %v515, %v5178
        %vm5204 = vcmp.eq.s32.totalorder %v516, %v5178
        %vm5205 = vcmp.eq.s32.totalorder %v517, %v5178
        %vm5206 = vcmp.eq.s32.totalorder %v518, %v5178
        %vm5207 = vcmp.eq.s32.totalorder %v519, %v5178
        %vm5208 = vcmp.eq.s32.totalorder %v520, %v5178
        %vm5209 = vcmp.eq.s32.totalorder %v521, %v5178
        %vm5210 = vcmp.eq.s32.totalorder %v522, %v5178
        %vm5211 = vcmp.eq.s32.totalorder %v523, %v5178
        %vm5212 = vcmp.eq.s32.totalorder %v524, %v5178
        %vm5213 = vcmp.eq.s32.totalorder %v525, %v5178
        %vm5214 = vcmp.eq.s32.totalorder %v526, %v5178
        %vm5215 = vcmp.eq.s32.totalorder %v527, %v5178
        %vm5216 = vcmp.eq.s32.totalorder %v528, %v5178
        %vm5217 = vcmp.eq.s32.totalorder %v529, %v5178
        %vm5218 = vcmp.eq.s32.totalorder %v530, %v5178
        %vm5219 = vcmp.eq.s32.totalorder %v531, %v5178
        %vm5220 = vcmp.eq.s32.totalorder %v532, %v5178
        %vm5221 = vcmp.eq.s32.totalorder %v533, %v5178
        %vm5222 = vcmp.eq.s32.totalorder %v534, %v5178
        %vm5223 = vcmp.eq.s32.totalorder %v535, %v5178
        %vm5224 = vcmp.eq.s32.totalorder %v536, %v5178
        %vm5225 = vcmp.eq.s32.totalorder %v537, %v5178
        %vm5226 = vcmp.eq.s32.totalorder %v538, %v5178
        %vm5227 = vcmp.eq.s32.totalorder %v539, %v5178
        %vm5228 = vcmp.eq.s32.totalorder %v540, %v5178
        %vm5229 = vcmp.eq.s32.totalorder %v541, %v5178
        %vm5230 = vcmp.eq.s32.totalorder %v542, %v5178
        %vm5231 = vcmp.eq.s32.totalorder %v543, %v5178
        %vm5232 = vcmp.eq.s32.totalorder %v544, %v5178
        %vm5233 = vcmp.eq.s32.totalorder %v545, %v5178
        %vm5234 = vcmp.eq.s32.totalorder %v546, %v5178
        %vm5235 = vcmp.eq.s32.totalorder %v547, %v5178
        %vm5236 = vcmp.eq.s32.totalorder %v548, %v5178
        %vm5237 = vcmp.eq.s32.totalorder %v549, %v5178
        %vm5238 = vcmp.eq.s32.totalorder %v550, %v5178
        %vm5239 = vcmp.eq.s32.totalorder %v551, %v5178
        %vm5240 = vcmp.eq.s32.totalorder %v552, %v5178
        %vm5241 = vcmp.eq.s32.totalorder %v553, %v5178
        %vm5242 = vcmp.eq.s32.totalorder %v554, %v5178
        %vm5243 = vmand %vm5114, %vm5179
        %vm5244 = vmand %vm5115, %vm5180
        %vm5245 = vmand %vm5116, %vm5181
        %vm5246 = vmand %vm5117, %vm5182
        %vm5247 = vmand %vm5118, %vm5183
        %vm5248 = vmand %vm5119, %vm5184
        %vm5249 = vmand %vm5120, %vm5185
        %vm5250 = vmand %vm5121, %vm5186
        %vm5251 = vmand %vm5122, %vm5187
        %vm5252 = vmand %vm5123, %vm5188
        %vm5253 = vmand %vm5124, %vm5189
        %vm5254 = vmand %vm5125, %vm5190
        %vm5255 = vmand %vm5126, %vm5191
        %vm5256 = vmand %vm5127, %vm5192
        %vm5257 = vmand %vm5128, %vm5193
        %vm5258 = vmand %vm5129, %vm5194
        %vm5259 = vmand %vm5130, %vm5195
        %vm5260 = vmand %vm5131, %vm5196
        %vm5261 = vmand %vm5132, %vm5197
        %vm5262 = vmand %vm5133, %vm5198
        %vm5263 = vmand %vm5134, %vm5199
        %vm5264 = vmand %vm5135, %vm5200
        %vm5265 = vmand %vm5136, %vm5201
        %vm5266 = vmand %vm5137, %vm5202
        %vm5267 = vmand %vm5138, %vm5203
        %vm5268 = vmand %vm5139, %vm5204
        %vm5269 = vmand %vm5140, %vm5205
        %vm5270 = vmand %vm5141, %vm5206
        %vm5271 = vmand %vm5142, %vm5207
        %vm5272 = vmand %vm5143, %vm5208
        %vm5273 = vmand %vm5144, %vm5209
        %vm5274 = vmand %vm5145, %vm5210
        %vm5275 = vmand %vm5146, %vm5211
        %vm5276 = vmand %vm5147, %vm5212
        %vm5277 = vmand %vm5148, %vm5213
        %vm5278 = vmand %vm5149, %vm5214
        %vm5279 = vmand %vm5150, %vm5215
        %vm5280 = vmand %vm5151, %vm5216
        %vm5281 = vmand %vm5152, %vm5217
        %vm5282 = vmand %vm5153, %vm5218
        %vm5283 = vmand %vm5154, %vm5219
        %vm5284 = vmand %vm5155, %vm5220
        %vm5285 = vmand %vm5156, %vm5221
        %vm5286 = vmand %vm5157, %vm5222
        %vm5287 = vmand %vm5158, %vm5223
        %vm5288 = vmand %vm5159, %vm5224
        %vm5289 = vmand %vm5160, %vm5225
        %vm5290 = vmand %vm5161, %vm5226
        %vm5291 = vmand %vm5162, %vm5227
        %vm5292 = vmand %vm5163, %vm5228
        %vm5293 = vmand %vm5164, %vm5229
        %vm5294 = vmand %vm5165, %vm5230
        %vm5295 = vmand %vm5166, %vm5231
        %vm5296 = vmand %vm5167, %vm5232
        %vm5297 = vmand %vm5168, %vm5233
        %vm5298 = vmand %vm5169, %vm5234
        %vm5299 = vmand %vm5170, %vm5235
        %vm5300 = vmand %vm5171, %vm5236
        %vm5301 = vmand %vm5172, %vm5237
        %vm5302 = vmand %vm5173, %vm5238
        %vm5303 = vmand %vm5174, %vm5239
        %vm5304 = vmand %vm5175, %vm5240
        %vm5305 = vmand %vm5176, %vm5241
        %vm5306 = vmand %vm5177, %vm5242
        %v5307 = vsel %vm5243, 1.0, 0.0
        %v5308 = vsel %vm5244, 1.0, 0.0
        %v5309 = vsel %vm5245, 1.0, 0.0
        %v5310 = vsel %vm5246, 1.0, 0.0
        %v5311 = vsel %vm5247, 1.0, 0.0
        %v5312 = vsel %vm5248, 1.0, 0.0
        %v5313 = vsel %vm5249, 1.0, 0.0
        %v5314 = vsel %vm5250, 1.0, 0.0
        %v5315 = vsel %vm5251, 1.0, 0.0
        %v5316 = vsel %vm5252, 1.0, 0.0
        %v5317 = vsel %vm5253, 1.0, 0.0
        %v5318 = vsel %vm5254, 1.0, 0.0
        %v5319 = vsel %vm5255, 1.0, 0.0
        %v5320 = vsel %vm5256, 1.0, 0.0
        %v5321 = vsel %vm5257, 1.0, 0.0
        %v5322 = vsel %vm5258, 1.0, 0.0
        %v5323 = vsel %vm5259, 1.0, 0.0
        %v5324 = vsel %vm5260, 1.0, 0.0
        %v5325 = vsel %vm5261, 1.0, 0.0
        %v5326 = vsel %vm5262, 1.0, 0.0
        %v5327 = vsel %vm5263, 1.0, 0.0
        %v5328 = vsel %vm5264, 1.0, 0.0
        %v5329 = vsel %vm5265, 1.0, 0.0
        %v5330 = vsel %vm5266, 1.0, 0.0
        %v5331 = vsel %vm5267, 1.0, 0.0
        %v5332 = vsel %vm5268, 1.0, 0.0
        %v5333 = vsel %vm5269, 1.0, 0.0
        %v5334 = vsel %vm5270, 1.0, 0.0
        %v5335 = vsel %vm5271, 1.0, 0.0
        %v5336 = vsel %vm5272, 1.0, 0.0
        %v5337 = vsel %vm5273, 1.0, 0.0
        %v5338 = vsel %vm5274, 1.0, 0.0
        %v5339 = vsel %vm5275, 1.0, 0.0
        %v5340 = vsel %vm5276, 1.0, 0.0
        %v5341 = vsel %vm5277, 1.0, 0.0
        %v5342 = vsel %vm5278, 1.0, 0.0
        %v5343 = vsel %vm5279, 1.0, 0.0
        %v5344 = vsel %vm5280, 1.0, 0.0
        %v5345 = vsel %vm5281, 1.0, 0.0
        %v5346 = vsel %vm5282, 1.0, 0.0
        %v5347 = vsel %vm5283, 1.0, 0.0
        %v5348 = vsel %vm5284, 1.0, 0.0
        %v5349 = vsel %vm5285, 1.0, 0.0
        %v5350 = vsel %vm5286, 1.0, 0.0
        %v5351 = vsel %vm5287, 1.0, 0.0
        %v5352 = vsel %vm5288, 1.0, 0.0
        %v5353 = vsel %vm5289, 1.0, 0.0
        %v5354 = vsel %vm5290, 1.0, 0.0
        %v5355 = vsel %vm5291, 1.0, 0.0
        %v5356 = vsel %vm5292, 1.0, 0.0
        %v5357 = vsel %vm5293, 1.0, 0.0
        %v5358 = vsel %vm5294, 1.0, 0.0
        %v5359 = vsel %vm5295, 1.0, 0.0
        %v5360 = vsel %vm5296, 1.0, 0.0
        %v5361 = vsel %vm5297, 1.0, 0.0
        %v5362 = vsel %vm5298, 1.0, 0.0
        %v5363 = vsel %vm5299, 1.0, 0.0
        %v5364 = vsel %vm5300, 1.0, 0.0
        %v5365 = vsel %vm5301, 1.0, 0.0
        %v5366 = vsel %vm5302, 1.0, 0.0
        %v5367 = vsel %vm5303, 1.0, 0.0
        %v5368 = vsel %vm5304, 1.0, 0.0
        %v5369 = vsel %vm5305, 1.0, 0.0
        %v5370 = vsel %vm5306, 1.0, 0.0
        %v5371 = vsub.f32 %v5307, %v4987
        %v5372 = vsub.f32 %v5308, %v4989
        %v5373 = vsub.f32 %v5309, %v4991
        %v5374 = vsub.f32 %v5310, %v4993
        %v5375 = vsub.f32 %v5311, %v4995
        %v5376 = vsub.f32 %v5312, %v4997
        %v5377 = vsub.f32 %v5313, %v4999
        %v5378 = vsub.f32 %v5314, %v5001
        %v5379 = vsub.f32 %v5315, %v5003
        %v5380 = vsub.f32 %v5316, %v5005
        %v5381 = vsub.f32 %v5317, %v5007
        %v5382 = vsub.f32 %v5318, %v5009
        %v5383 = vsub.f32 %v5319, %v5011
        %v5384 = vsub.f32 %v5320, %v5013
        %v5385 = vsub.f32 %v5321, %v5015
        %v5386 = vsub.f32 %v5322, %v5017
        %v5387 = vsub.f32 %v5323, %v5019
        %v5388 = vsub.f32 %v5324, %v5021
        %v5389 = vsub.f32 %v5325, %v5023
        %v5390 = vsub.f32 %v5326, %v5025
        %v5391 = vsub.f32 %v5327, %v5027
        %v5392 = vsub.f32 %v5328, %v5029
        %v5393 = vsub.f32 %v5329, %v5031
        %v5394 = vsub.f32 %v5330, %v5033
        %v5395 = vsub.f32 %v5331, %v5035
        %v5396 = vsub.f32 %v5332, %v5037
        %v5397 = vsub.f32 %v5333, %v5039
        %v5398 = vsub.f32 %v5334, %v5041
        %v5399 = vsub.f32 %v5335, %v5043
        %v5400 = vsub.f32 %v5336, %v5045
        %v5401 = vsub.f32 %v5337, %v5047
        %v5402 = vsub.f32 %v5338, %v5049
        %v5403 = vsub.f32 %v5339, %v5051
        %v5404 = vsub.f32 %v5340, %v5053
        %v5405 = vsub.f32 %v5341, %v5055
        %v5406 = vsub.f32 %v5342, %v5057
        %v5407 = vsub.f32 %v5343, %v5059
        %v5408 = vsub.f32 %v5344, %v5061
        %v5409 = vsub.f32 %v5345, %v5063
        %v5410 = vsub.f32 %v5346, %v5065
        %v5411 = vsub.f32 %v5347, %v5067
        %v5412 = vsub.f32 %v5348, %v5069
        %v5413 = vsub.f32 %v5349, %v5071
        %v5414 = vsub.f32 %v5350, %v5073
        %v5415 = vsub.f32 %v5351, %v5075
        %v5416 = vsub.f32 %v5352, %v5077
        %v5417 = vsub.f32 %v5353, %v5079
        %v5418 = vsub.f32 %v5354, %v5081
        %v5419 = vsub.f32 %v5355, %v5083
        %v5420 = vsub.f32 %v5356, %v5085
        %v5421 = vsub.f32 %v5357, %v5087
        %v5422 = vsub.f32 %v5358, %v5089
        %v5423 = vsub.f32 %v5359, %v5091
        %v5424 = vsub.f32 %v5360, %v5093
        %v5425 = vsub.f32 %v5361, %v5095
        %v5426 = vsub.f32 %v5362, %v5097
        %v5427 = vsub.f32 %v5363, %v5099
        %v5428 = vsub.f32 %v5364, %v5101
        %v5429 = vsub.f32 %v5365, %v5103
        %v5430 = vsub.f32 %v5366, %v5105
        %v5431 = vsub.f32 %v5367, %v5107
        %v5432 = vsub.f32 %v5368, %v5109
        %v5433 = vsub.f32 %v5369, %v5111
        %v5434 = vsub.f32 %v5370, %v5113
        %v5435 = vand.u32 2147483647, %v5371
        %v5436 = vand.u32 2147483647, %v5372
        %v5437 = vand.u32 2147483647, %v5373
        %v5438 = vand.u32 2147483647, %v5374
        %v5439 = vand.u32 2147483647, %v5375
        %v5440 = vand.u32 2147483647, %v5376
        %v5441 = vand.u32 2147483647, %v5377
        %v5442 = vand.u32 2147483647, %v5378
        %v5443 = vand.u32 2147483647, %v5379
        %v5444 = vand.u32 2147483647, %v5380
        %v5445 = vand.u32 2147483647, %v5381
        %v5446 = vand.u32 2147483647, %v5382
        %v5447 = vand.u32 2147483647, %v5383
        %v5448 = vand.u32 2147483647, %v5384
        %v5449 = vand.u32 2147483647, %v5385
        %v5450 = vand.u32 2147483647, %v5386
        %v5451 = vand.u32 2147483647, %v5387
        %v5452 = vand.u32 2147483647, %v5388
        %v5453 = vand.u32 2147483647, %v5389
        %v5454 = vand.u32 2147483647, %v5390
        %v5455 = vand.u32 2147483647, %v5391
        %v5456 = vand.u32 2147483647, %v5392
        %v5457 = vand.u32 2147483647, %v5393
        %v5458 = vand.u32 2147483647, %v5394
        %v5459 = vand.u32 2147483647, %v5395
        %v5460 = vand.u32 2147483647, %v5396
        %v5461 = vand.u32 2147483647, %v5397
        %v5462 = vand.u32 2147483647, %v5398
        %v5463 = vand.u32 2147483647, %v5399
        %v5464 = vand.u32 2147483647, %v5400
        %v5465 = vand.u32 2147483647, %v5401
        %v5466 = vand.u32 2147483647, %v5402
        %v5467 = vand.u32 2147483647, %v5403
        %v5468 = vand.u32 2147483647, %v5404
        %v5469 = vand.u32 2147483647, %v5405
        %v5470 = vand.u32 2147483647, %v5406
        %v5471 = vand.u32 2147483647, %v5407
        %v5472 = vand.u32 2147483647, %v5408
        %v5473 = vand.u32 2147483647, %v5409
        %v5474 = vand.u32 2147483647, %v5410
        %v5475 = vand.u32 2147483647, %v5411
        %v5476 = vand.u32 2147483647, %v5412
        %v5477 = vand.u32 2147483647, %v5413
        %v5478 = vand.u32 2147483647, %v5414
        %v5479 = vand.u32 2147483647, %v5415
        %v5480 = vand.u32 2147483647, %v5416
        %v5481 = vand.u32 2147483647, %v5417
        %v5482 = vand.u32 2147483647, %v5418
        %v5483 = vand.u32 2147483647, %v5419
        %v5484 = vand.u32 2147483647, %v5420
        %v5485 = vand.u32 2147483647, %v5421
        %v5486 = vand.u32 2147483647, %v5422
        %v5487 = vand.u32 2147483647, %v5423
        %v5488 = vand.u32 2147483647, %v5424
        %v5489 = vand.u32 2147483647, %v5425
        %v5490 = vand.u32 2147483647, %v5426
        %v5491 = vand.u32 2147483647, %v5427
        %v5492 = vand.u32 2147483647, %v5428
        %v5493 = vand.u32 2147483647, %v5429
        %v5494 = vand.u32 2147483647, %v5430
        %v5495 = vand.u32 2147483647, %v5431
        %v5496 = vand.u32 2147483647, %v5432
        %v5497 = vand.u32 2147483647, %v5433
        %v5498 = vand.u32 2147483647, %v5434
        %v5499 = vsel %vm5114, %v5435, -1.0
        %v5500 = vsel %vm5115, %v5436, -1.0
        %v5501 = vsel %vm5116, %v5437, -1.0
        %v5502 = vsel %vm5117, %v5438, -1.0
        %v5503 = vsel %vm5118, %v5439, -1.0
        %v5504 = vsel %vm5119, %v5440, -1.0
        %v5505 = vsel %vm5120, %v5441, -1.0
        %v5506 = vsel %vm5121, %v5442, -1.0
        %v5507 = vsel %vm5122, %v5443, -1.0
        %v5508 = vsel %vm5123, %v5444, -1.0
        %v5509 = vsel %vm5124, %v5445, -1.0
        %v5510 = vsel %vm5125, %v5446, -1.0
        %v5511 = vsel %vm5126, %v5447, -1.0
        %v5512 = vsel %vm5127, %v5448, -1.0
        %v5513 = vsel %vm5128, %v5449, -1.0
        %v5514 = vsel %vm5129, %v5450, -1.0
        %v5515 = vsel %vm5130, %v5451, -1.0
        %v5516 = vsel %vm5131, %v5452, -1.0
        %v5517 = vsel %vm5132, %v5453, -1.0
        %v5518 = vsel %vm5133, %v5454, -1.0
        %v5519 = vsel %vm5134, %v5455, -1.0
        %v5520 = vsel %vm5135, %v5456, -1.0
        %v5521 = vsel %vm5136, %v5457, -1.0
        %v5522 = vsel %vm5137, %v5458, -1.0
        %v5523 = vsel %vm5138, %v5459, -1.0
        %v5524 = vsel %vm5139, %v5460, -1.0
        %v5525 = vsel %vm5140, %v5461, -1.0
        %v5526 = vsel %vm5141, %v5462, -1.0
        %v5527 = vsel %vm5142, %v5463, -1.0
        %v5528 = vsel %vm5143, %v5464, -1.0
        %v5529 = vsel %vm5144, %v5465, -1.0
        %v5530 = vsel %vm5145, %v5466, -1.0
        %v5531 = vsel %vm5146, %v5467, -1.0
        %v5532 = vsel %vm5147, %v5468, -1.0
        %v5533 = vsel %vm5148, %v5469, -1.0
        %v5534 = vsel %vm5149, %v5470, -1.0
        %v5535 = vsel %vm5150, %v5471, -1.0
        %v5536 = vsel %vm5151, %v5472, -1.0
        %v5537 = vsel %vm5152, %v5473, -1.0
        %v5538 = vsel %vm5153, %v5474, -1.0
        %v5539 = vsel %vm5154, %v5475, -1.0
        %v5540 = vsel %vm5155, %v5476, -1.0
        %v5541 = vsel %vm5156, %v5477, -1.0
        %v5542 = vsel %vm5157, %v5478, -1.0
        %v5543 = vsel %vm5158, %v5479, -1.0
        %v5544 = vsel %vm5159, %v5480, -1.0
        %v5545 = vsel %vm5160, %v5481, -1.0
        %v5546 = vsel %vm5161, %v5482, -1.0
        %v5547 = vsel %vm5162, %v5483, -1.0
        %v5548 = vsel %vm5163, %v5484, -1.0
        %v5549 = vsel %vm5164, %v5485, -1.0
        %v5550 = vsel %vm5165, %v5486, -1.0
        %v5551 = vsel %vm5166, %v5487, -1.0
        %v5552 = vsel %vm5167, %v5488, -1.0
        %v5553 = vsel %vm5168, %v5489, -1.0
        %v5554 = vsel %vm5169, %v5490, -1.0
        %v5555 = vsel %vm5170, %v5491, -1.0
        %v5556 = vsel %vm5171, %v5492, -1.0
        %v5557 = vsel %vm5172, %v5493, -1.0
        %v5558 = vsel %vm5173, %v5494, -1.0
        %v5559 = vsel %vm5174, %v5495, -1.0
        %v5560 = vsel %vm5175, %v5496, -1.0
        %v5561 = vsel %vm5176, %v5497, -1.0
        %v5562 = vsel %vm5177, %v5498, -1.0
        %v5563 = vld [vmem:[#allocation2] sm:$0xf]
        %s5564 = smul.u32 %s21, 512
        %v5565 = vlaneseq
        %v5566 = vshrl.u32 %v5565, 7
        %v5567 = vadd.s32 %v5566, 8
        %v5568 = vadd.s32 %v5566, 16
        %v5569 = vadd.s32 %v5566, 24
        %v5570 = vadd.s32 %v5566, 32
        %v5571 = vadd.s32 %v5566, 40
        %v5572 = vadd.s32 %v5566, 48
        %v5573 = vadd.s32 %v5566, 56
        %v5574 = vadd.s32 %v5566, 64
        %v5575 = vadd.s32 %v5566, 72
        %v5576 = vadd.s32 %v5566, 80
        %v5577 = vadd.s32 %v5566, 88
        %v5578 = vadd.s32 %v5566, 96
        %v5579 = vadd.s32 %v5566, 104
        %v5580 = vadd.s32 %v5566, 112
        %v5581 = vadd.s32 %v5566, 120
        %v5582 = vadd.s32 %v5566, 128
        %v5583 = vadd.s32 %v5566, 136
        %v5584 = vadd.s32 %v5566, 144
        %v5585 = vadd.s32 %v5566, 152
        %v5586 = vadd.s32 %v5566, 160
        %v5587 = vadd.s32 %v5566, 168
        %v5588 = vadd.s32 %v5566, 176
        %v5589 = vadd.s32 %v5566, 184
        %v5590 = vadd.s32 %v5566, 192
        %v5591 = vadd.s32 %v5566, 200
        %v5592 = vadd.s32 %v5566, 208
        %v5593 = vadd.s32 %v5566, 216
        %v5594 = vadd.s32 %v5566, 224
        %v5595 = vadd.s32 %v5566, 232
        %v5596 = vadd.s32 %v5566, 240
        %v5597 = vadd.s32 %v5566, 248
        %v5598 = vadd.s32 %v5566, 256
        %v5599 = vadd.s32 %v5566, 264
        %v5600 = vadd.s32 %v5566, 272
        %v5601 = vadd.s32 %v5566, 280
        %v5602 = vadd.s32 %v5566, 288
        %v5603 = vadd.s32 %v5566, 296
        %v5604 = vadd.s32 %v5566, 304
        %v5605 = vadd.s32 %v5566, 312
        %v5606 = vadd.s32 %v5566, 320
        %v5607 = vadd.s32 %v5566, 328
        %v5608 = vadd.s32 %v5566, 336
        %v5609 = vadd.s32 %v5566, 344
        %v5610 = vadd.s32 %v5566, 352
        %v5611 = vadd.s32 %v5566, 360
        %v5612 = vadd.s32 %v5566, 368
        %v5613 = vadd.s32 %v5566, 376
        %v5614 = vadd.s32 %v5566, 384
        %v5615 = vadd.s32 %v5566, 392
        %v5616 = vadd.s32 %v5566, 400
        %v5617 = vadd.s32 %v5566, 408
        %v5618 = vadd.s32 %v5566, 416
        %v5619 = vadd.s32 %v5566, 424
        %v5620 = vadd.s32 %v5566, 432
        %v5621 = vadd.s32 %v5566, 440
        %v5622 = vadd.s32 %v5566, 448
        %v5623 = vadd.s32 %v5566, 456
        %v5624 = vadd.s32 %v5566, 464
        %v5625 = vadd.s32 %v5566, 472
        %v5626 = vadd.s32 %v5566, 480
        %v5627 = vadd.s32 %v5566, 488
        %v5628 = vadd.s32 %v5566, 496
        %v5629 = vadd.s32 %v5566, 504
        %v5630 = vstv %s5564
        %v5631 = vadd.s32 %v5566, %v5630
        %v5632 = vadd.s32 %v5567, %v5630
        %v5633 = vadd.s32 %v5568, %v5630
        %v5634 = vadd.s32 %v5569, %v5630
        %v5635 = vadd.s32 %v5570, %v5630
        %v5636 = vadd.s32 %v5571, %v5630
        %v5637 = vadd.s32 %v5572, %v5630
        %v5638 = vadd.s32 %v5573, %v5630
        %v5639 = vadd.s32 %v5574, %v5630
        %v5640 = vadd.s32 %v5575, %v5630
        %v5641 = vadd.s32 %v5576, %v5630
        %v5642 = vadd.s32 %v5577, %v5630
        %v5643 = vadd.s32 %v5578, %v5630
        %v5644 = vadd.s32 %v5579, %v5630
        %v5645 = vadd.s32 %v5580, %v5630
        %v5646 = vadd.s32 %v5581, %v5630
        %v5647 = vadd.s32 %v5582, %v5630
        %v5648 = vadd.s32 %v5583, %v5630
        %v5649 = vadd.s32 %v5584, %v5630
        %v5650 = vadd.s32 %v5585, %v5630
        %v5651 = vadd.s32 %v5586, %v5630
        %v5652 = vadd.s32 %v5587, %v5630
        %v5653 = vadd.s32 %v5588, %v5630
        %v5654 = vadd.s32 %v5589, %v5630
        %v5655 = vadd.s32 %v5590, %v5630
        %v5656 = vadd.s32 %v5591, %v5630
        %v5657 = vadd.s32 %v5592, %v5630
        %v5658 = vadd.s32 %v5593, %v5630
        %v5659 = vadd.s32 %v5594, %v5630
        %v5660 = vadd.s32 %v5595, %v5630
        %v5661 = vadd.s32 %v5596, %v5630
        %v5662 = vadd.s32 %v5597, %v5630
        %v5663 = vadd.s32 %v5598, %v5630
        %v5664 = vadd.s32 %v5599, %v5630
        %v5665 = vadd.s32 %v5600, %v5630
        %v5666 = vadd.s32 %v5601, %v5630
        %v5667 = vadd.s32 %v5602, %v5630
        %v5668 = vadd.s32 %v5603, %v5630
        %v5669 = vadd.s32 %v5604, %v5630
        %v5670 = vadd.s32 %v5605, %v5630
        %v5671 = vadd.s32 %v5606, %v5630
        %v5672 = vadd.s32 %v5607, %v5630
        %v5673 = vadd.s32 %v5608, %v5630
        %v5674 = vadd.s32 %v5609, %v5630
        %v5675 = vadd.s32 %v5610, %v5630
        %v5676 = vadd.s32 %v5611, %v5630
        %v5677 = vadd.s32 %v5612, %v5630
        %v5678 = vadd.s32 %v5613, %v5630
        %v5679 = vadd.s32 %v5614, %v5630
        %v5680 = vadd.s32 %v5615, %v5630
        %v5681 = vadd.s32 %v5616, %v5630
        %v5682 = vadd.s32 %v5617, %v5630
        %v5683 = vadd.s32 %v5618, %v5630
        %v5684 = vadd.s32 %v5619, %v5630
        %v5685 = vadd.s32 %v5620, %v5630
        %v5686 = vadd.s32 %v5621, %v5630
        %v5687 = vadd.s32 %v5622, %v5630
        %v5688 = vadd.s32 %v5623, %v5630
        %v5689 = vadd.s32 %v5624, %v5630
        %v5690 = vadd.s32 %v5625, %v5630
        %v5691 = vadd.s32 %v5626, %v5630
        %v5692 = vadd.s32 %v5627, %v5630
        %v5693 = vadd.s32 %v5628, %v5630
        %v5694 = vadd.s32 %v5629, %v5630
        %v5695 = vlaneseq
        %v5696 = vand.u32 %v5695, 127
        %v5697 = vadd.s32 %v5696, 128
        %v5698 = vadd.s32 %v5696, 256
        %v5699 = vadd.s32 %v5696, 384
        %5701 = vset.pattern.permute.xlu0 0
        %5702 = vperm.xlu0 %5701, %v5499
        %v5703 = vpop.permute.xlu0 %5702
        %5706 = vset.pattern.permute.xlu0 0
        %5707 = vperm.xlu0 %5706, %v5500
        %v5708 = vpop.permute.xlu0 %5707
        %5711 = vset.pattern.permute.xlu0 0
        %5712 = vperm.xlu0 %5711, %v5501
        %v5713 = vpop.permute.xlu0 %5712
        %5716 = vset.pattern.permute.xlu0 0
        %5717 = vperm.xlu0 %5716, %v5502
        %v5718 = vpop.permute.xlu0 %5717
        %5721 = vset.pattern.permute.xlu0 0
        %5722 = vperm.xlu0 %5721, %v5503
        %v5723 = vpop.permute.xlu0 %5722
        %5726 = vset.pattern.permute.xlu0 0
        %5727 = vperm.xlu0 %5726, %v5504
        %v5728 = vpop.permute.xlu0 %5727
        %5731 = vset.pattern.permute.xlu0 0
        %5732 = vperm.xlu0 %5731, %v5505
        %v5733 = vpop.permute.xlu0 %5732
        %5736 = vset.pattern.permute.xlu0 0
        %5737 = vperm.xlu0 %5736, %v5506
        %v5738 = vpop.permute.xlu0 %5737
        %5741 = vset.pattern.permute.xlu0 0
        %5742 = vperm.xlu0 %5741, %v5507
        %v5743 = vpop.permute.xlu0 %5742
        %5746 = vset.pattern.permute.xlu0 0
        %5747 = vperm.xlu0 %5746, %v5508
        %v5748 = vpop.permute.xlu0 %5747
        %5751 = vset.pattern.permute.xlu0 0
        %5752 = vperm.xlu0 %5751, %v5509
        %v5753 = vpop.permute.xlu0 %5752
        %5756 = vset.pattern.permute.xlu0 0
        %5757 = vperm.xlu0 %5756, %v5510
        %v5758 = vpop.permute.xlu0 %5757
        %5761 = vset.pattern.permute.xlu0 0
        %5762 = vperm.xlu0 %5761, %v5511
        %v5763 = vpop.permute.xlu0 %5762
        %5766 = vset.pattern.permute.xlu0 0
        %5767 = vperm.xlu0 %5766, %v5512
        %v5768 = vpop.permute.xlu0 %5767
        %5771 = vset.pattern.permute.xlu0 0
        %5772 = vperm.xlu0 %5771, %v5513
        %v5773 = vpop.permute.xlu0 %5772
        %5776 = vset.pattern.permute.xlu0 0
        %5777 = vperm.xlu0 %5776, %v5514
        %v5778 = vpop.permute.xlu0 %5777
        %5781 = vset.pattern.permute.xlu0 0
        %5782 = vperm.xlu0 %5781, %v5515
        %v5783 = vpop.permute.xlu0 %5782
        %5786 = vset.pattern.permute.xlu0 0
        %5787 = vperm.xlu0 %5786, %v5516
        %v5788 = vpop.permute.xlu0 %5787
        %5791 = vset.pattern.permute.xlu0 0
        %5792 = vperm.xlu0 %5791, %v5517
        %v5793 = vpop.permute.xlu0 %5792
        %5796 = vset.pattern.permute.xlu0 0
        %5797 = vperm.xlu0 %5796, %v5518
        %v5798 = vpop.permute.xlu0 %5797
        %5801 = vset.pattern.permute.xlu0 0
        %5802 = vperm.xlu0 %5801, %v5519
        %v5803 = vpop.permute.xlu0 %5802
        %5806 = vset.pattern.permute.xlu0 0
        %5807 = vperm.xlu0 %5806, %v5520
        %v5808 = vpop.permute.xlu0 %5807
        %5811 = vset.pattern.permute.xlu0 0
        %5812 = vperm.xlu0 %5811, %v5521
        %v5813 = vpop.permute.xlu0 %5812
        %5816 = vset.pattern.permute.xlu0 0
        %5817 = vperm.xlu0 %5816, %v5522
        %v5818 = vpop.permute.xlu0 %5817
        %5821 = vset.pattern.permute.xlu0 0
        %5822 = vperm.xlu0 %5821, %v5523
        %v5823 = vpop.permute.xlu0 %5822
        %5826 = vset.pattern.permute.xlu0 0
        %5827 = vperm.xlu0 %5826, %v5524
        %v5828 = vpop.permute.xlu0 %5827
        %5831 = vset.pattern.permute.xlu0 0
        %5832 = vperm.xlu0 %5831, %v5525
        %v5833 = vpop.permute.xlu0 %5832
        %5836 = vset.pattern.permute.xlu0 0
        %5837 = vperm.xlu0 %5836, %v5526
        %v5838 = vpop.permute.xlu0 %5837
        %5841 = vset.pattern.permute.xlu0 0
        %5842 = vperm.xlu0 %5841, %v5527
        %v5843 = vpop.permute.xlu0 %5842
        %5846 = vset.pattern.permute.xlu0 0
        %5847 = vperm.xlu0 %5846, %v5528
        %v5848 = vpop.permute.xlu0 %5847
        %5851 = vset.pattern.permute.xlu0 0
        %5852 = vperm.xlu0 %5851, %v5529
        %v5853 = vpop.permute.xlu0 %5852
        %5856 = vset.pattern.permute.xlu0 0
        %5857 = vperm.xlu0 %5856, %v5530
        %v5858 = vpop.permute.xlu0 %5857
        %5861 = vset.pattern.permute.xlu0 0
        %5862 = vperm.xlu0 %5861, %v5531
        %v5863 = vpop.permute.xlu0 %5862
        %5866 = vset.pattern.permute.xlu0 0
        %5867 = vperm.xlu0 %5866, %v5532
        %v5868 = vpop.permute.xlu0 %5867
        %5871 = vset.pattern.permute.xlu0 0
        %5872 = vperm.xlu0 %5871, %v5533
        %v5873 = vpop.permute.xlu0 %5872
        %5876 = vset.pattern.permute.xlu0 0
        %5877 = vperm.xlu0 %5876, %v5534
        %v5878 = vpop.permute.xlu0 %5877
        %5881 = vset.pattern.permute.xlu0 0
        %5882 = vperm.xlu0 %5881, %v5535
        %v5883 = vpop.permute.xlu0 %5882
        %5886 = vset.pattern.permute.xlu0 0
        %5887 = vperm.xlu0 %5886, %v5536
        %v5888 = vpop.permute.xlu0 %5887
        %5891 = vset.pattern.permute.xlu0 0
        %5892 = vperm.xlu0 %5891, %v5537
        %v5893 = vpop.permute.xlu0 %5892
        %5896 = vset.pattern.permute.xlu0 0
        %5897 = vperm.xlu0 %5896, %v5538
        %v5898 = vpop.permute.xlu0 %5897
        %5901 = vset.pattern.permute.xlu0 0
        %5902 = vperm.xlu0 %5901, %v5539
        %v5903 = vpop.permute.xlu0 %5902
        %5906 = vset.pattern.permute.xlu0 0
        %5907 = vperm.xlu0 %5906, %v5540
        %v5908 = vpop.permute.xlu0 %5907
        %5911 = vset.pattern.permute.xlu0 0
        %5912 = vperm.xlu0 %5911, %v5541
        %v5913 = vpop.permute.xlu0 %5912
        %5916 = vset.pattern.permute.xlu0 0
        %5917 = vperm.xlu0 %5916, %v5542
        %v5918 = vpop.permute.xlu0 %5917
        %5921 = vset.pattern.permute.xlu0 0
        %5922 = vperm.xlu0 %5921, %v5543
        %v5923 = vpop.permute.xlu0 %5922
        %5926 = vset.pattern.permute.xlu0 0
        %5927 = vperm.xlu0 %5926, %v5544
        %v5928 = vpop.permute.xlu0 %5927
        %5931 = vset.pattern.permute.xlu0 0
        %5932 = vperm.xlu0 %5931, %v5545
        %v5933 = vpop.permute.xlu0 %5932
        %5936 = vset.pattern.permute.xlu0 0
        %5937 = vperm.xlu0 %5936, %v5546
        %v5938 = vpop.permute.xlu0 %5937
        %5941 = vset.pattern.permute.xlu0 0
        %5942 = vperm.xlu0 %5941, %v5547
        %v5943 = vpop.permute.xlu0 %5942
        %5946 = vset.pattern.permute.xlu0 0
        %5947 = vperm.xlu0 %5946, %v5548
        %v5948 = vpop.permute.xlu0 %5947
        %5951 = vset.pattern.permute.xlu0 0
        %5952 = vperm.xlu0 %5951, %v5549
        %v5953 = vpop.permute.xlu0 %5952
        %5956 = vset.pattern.permute.xlu0 0
        %5957 = vperm.xlu0 %5956, %v5550
        %v5958 = vpop.permute.xlu0 %5957
        %5961 = vset.pattern.permute.xlu0 0
        %5962 = vperm.xlu0 %5961, %v5551
        %v5963 = vpop.permute.xlu0 %5962
        %5966 = vset.pattern.permute.xlu0 0
        %5967 = vperm.xlu0 %5966, %v5552
        %v5968 = vpop.permute.xlu0 %5967
        %5971 = vset.pattern.permute.xlu0 0
        %5972 = vperm.xlu0 %5971, %v5553
        %v5973 = vpop.permute.xlu0 %5972
        %5976 = vset.pattern.permute.xlu0 0
        %5977 = vperm.xlu0 %5976, %v5554
        %v5978 = vpop.permute.xlu0 %5977
        %5981 = vset.pattern.permute.xlu0 0
        %5982 = vperm.xlu0 %5981, %v5555
        %v5983 = vpop.permute.xlu0 %5982
        %5986 = vset.pattern.permute.xlu0 0
        %5987 = vperm.xlu0 %5986, %v5556
        %v5988 = vpop.permute.xlu0 %5987
        %5991 = vset.pattern.permute.xlu0 0
        %5992 = vperm.xlu0 %5991, %v5557
        %v5993 = vpop.permute.xlu0 %5992
        %5996 = vset.pattern.permute.xlu0 0
        %5997 = vperm.xlu0 %5996, %v5558
        %v5998 = vpop.permute.xlu0 %5997
        %6001 = vset.pattern.permute.xlu0 0
        %6002 = vperm.xlu0 %6001, %v5559
        %v6003 = vpop.permute.xlu0 %6002
        %6006 = vset.pattern.permute.xlu0 0
        %6007 = vperm.xlu0 %6006, %v5560
        %v6008 = vpop.permute.xlu0 %6007
        %6011 = vset.pattern.permute.xlu0 0
        %6012 = vperm.xlu0 %6011, %v5561
        %v6013 = vpop.permute.xlu0 %6012
        %6016 = vset.pattern.permute.xlu0 0
        %6017 = vperm.xlu0 %6016, %v5562
        %v6018 = vpop.permute.xlu0 %6017
        %v6021 = vlaneseq
        %v6022 = vshrl.u32 %v6021, 7
        %v6023 = vsub.s32 0, %v6022
        %v6024 = vrot.slane %v5563, %v6023
        %v6025 = vlaneseq
        %v6026 = vshrl.u32 %v6025, 7
        %v6027 = vsub.s32 1, %v6026
        %v6028 = vrot.slane %v5563, %v6027
        %v6029 = vlaneseq
        %v6030 = vshrl.u32 %v6029, 7
        %v6031 = vsub.s32 2, %v6030
        %v6032 = vrot.slane %v5563, %v6031
        %v6033 = vlaneseq
        %v6034 = vshrl.u32 %v6033, 7
        %v6035 = vsub.s32 3, %v6034
        %v6036 = vrot.slane %v5563, %v6035
        %vm6041 = vcmp.gt.f32.partialorder %v5703, %v6024
        %vm6042 = vcmp.gt.f32.partialorder %v5703, %v6028
        %vm6043 = vcmp.gt.f32.partialorder %v5703, %v6032
        %vm6044 = vcmp.gt.f32.partialorder %v5703, %v6036
        %vm6045 = vcmp.gt.f32.partialorder %v5708, %v6024
        %vm6046 = vcmp.gt.f32.partialorder %v5708, %v6028
        %vm6047 = vcmp.gt.f32.partialorder %v5708, %v6032
        %vm6048 = vcmp.gt.f32.partialorder %v5708, %v6036
        %vm6049 = vcmp.gt.f32.partialorder %v5713, %v6024
        %vm6050 = vcmp.gt.f32.partialorder %v5713, %v6028
        %vm6051 = vcmp.gt.f32.partialorder %v5713, %v6032
        %vm6052 = vcmp.gt.f32.partialorder %v5713, %v6036
        %vm6053 = vcmp.gt.f32.partialorder %v5718, %v6024
        %vm6054 = vcmp.gt.f32.partialorder %v5718, %v6028
        %vm6055 = vcmp.gt.f32.partialorder %v5718, %v6032
        %vm6056 = vcmp.gt.f32.partialorder %v5718, %v6036
        %vm6057 = vcmp.gt.f32.partialorder %v5723, %v6024
        %vm6058 = vcmp.gt.f32.partialorder %v5723, %v6028
        %vm6059 = vcmp.gt.f32.partialorder %v5723, %v6032
        %vm6060 = vcmp.gt.f32.partialorder %v5723, %v6036
        %vm6061 = vcmp.gt.f32.partialorder %v5728, %v6024
        %vm6062 = vcmp.gt.f32.partialorder %v5728, %v6028
        %vm6063 = vcmp.gt.f32.partialorder %v5728, %v6032
        %vm6064 = vcmp.gt.f32.partialorder %v5728, %v6036
        %vm6065 = vcmp.gt.f32.partialorder %v5733, %v6024
        %vm6066 = vcmp.gt.f32.partialorder %v5733, %v6028
        %vm6067 = vcmp.gt.f32.partialorder %v5733, %v6032
        %vm6068 = vcmp.gt.f32.partialorder %v5733, %v6036
        %vm6069 = vcmp.gt.f32.partialorder %v5738, %v6024
        %vm6070 = vcmp.gt.f32.partialorder %v5738, %v6028
        %vm6071 = vcmp.gt.f32.partialorder %v5738, %v6032
        %vm6072 = vcmp.gt.f32.partialorder %v5738, %v6036
        %vm6073 = vcmp.gt.f32.partialorder %v5743, %v6024
        %vm6074 = vcmp.gt.f32.partialorder %v5743, %v6028
        %vm6075 = vcmp.gt.f32.partialorder %v5743, %v6032
        %vm6076 = vcmp.gt.f32.partialorder %v5743, %v6036
        %vm6077 = vcmp.gt.f32.partialorder %v5748, %v6024
        %vm6078 = vcmp.gt.f32.partialorder %v5748, %v6028
        %vm6079 = vcmp.gt.f32.partialorder %v5748, %v6032
        %vm6080 = vcmp.gt.f32.partialorder %v5748, %v6036
        %vm6081 = vcmp.gt.f32.partialorder %v5753, %v6024
        %vm6082 = vcmp.gt.f32.partialorder %v5753, %v6028
        %vm6083 = vcmp.gt.f32.partialorder %v5753, %v6032
        %vm6084 = vcmp.gt.f32.partialorder %v5753, %v6036
        %vm6085 = vcmp.gt.f32.partialorder %v5758, %v6024
        %vm6086 = vcmp.gt.f32.partialorder %v5758, %v6028
        %vm6087 = vcmp.gt.f32.partialorder %v5758, %v6032
        %vm6088 = vcmp.gt.f32.partialorder %v5758, %v6036
        %vm6089 = vcmp.gt.f32.partialorder %v5763, %v6024
        %vm6090 = vcmp.gt.f32.partialorder %v5763, %v6028
        %vm6091 = vcmp.gt.f32.partialorder %v5763, %v6032
        %vm6092 = vcmp.gt.f32.partialorder %v5763, %v6036
        %vm6093 = vcmp.gt.f32.partialorder %v5768, %v6024
        %vm6094 = vcmp.gt.f32.partialorder %v5768, %v6028
        %vm6095 = vcmp.gt.f32.partialorder %v5768, %v6032
        %vm6096 = vcmp.gt.f32.partialorder %v5768, %v6036
        %vm6097 = vcmp.gt.f32.partialorder %v5773, %v6024
        %vm6098 = vcmp.gt.f32.partialorder %v5773, %v6028
        %vm6099 = vcmp.gt.f32.partialorder %v5773, %v6032
        %vm6100 = vcmp.gt.f32.partialorder %v5773, %v6036
        %vm6101 = vcmp.gt.f32.partialorder %v5778, %v6024
        %vm6102 = vcmp.gt.f32.partialorder %v5778, %v6028
        %vm6103 = vcmp.gt.f32.partialorder %v5778, %v6032
        %vm6104 = vcmp.gt.f32.partialorder %v5778, %v6036
        %vm6105 = vcmp.gt.f32.partialorder %v5783, %v6024
        %vm6106 = vcmp.gt.f32.partialorder %v5783, %v6028
        %vm6107 = vcmp.gt.f32.partialorder %v5783, %v6032
        %vm6108 = vcmp.gt.f32.partialorder %v5783, %v6036
        %vm6109 = vcmp.gt.f32.partialorder %v5788, %v6024
        %vm6110 = vcmp.gt.f32.partialorder %v5788, %v6028
        %vm6111 = vcmp.gt.f32.partialorder %v5788, %v6032
        %vm6112 = vcmp.gt.f32.partialorder %v5788, %v6036
        %vm6113 = vcmp.gt.f32.partialorder %v5793, %v6024
        %vm6114 = vcmp.gt.f32.partialorder %v5793, %v6028
        %vm6115 = vcmp.gt.f32.partialorder %v5793, %v6032
        %vm6116 = vcmp.gt.f32.partialorder %v5793, %v6036
        %vm6117 = vcmp.gt.f32.partialorder %v5798, %v6024
        %vm6118 = vcmp.gt.f32.partialorder %v5798, %v6028
        %vm6119 = vcmp.gt.f32.partialorder %v5798, %v6032
        %vm6120 = vcmp.gt.f32.partialorder %v5798, %v6036
        %vm6121 = vcmp.gt.f32.partialorder %v5803, %v6024
        %vm6122 = vcmp.gt.f32.partialorder %v5803, %v6028
        %vm6123 = vcmp.gt.f32.partialorder %v5803, %v6032
        %vm6124 = vcmp.gt.f32.partialorder %v5803, %v6036
        %vm6125 = vcmp.gt.f32.partialorder %v5808, %v6024
        %vm6126 = vcmp.gt.f32.partialorder %v5808, %v6028
        %vm6127 = vcmp.gt.f32.partialorder %v5808, %v6032
        %vm6128 = vcmp.gt.f32.partialorder %v5808, %v6036
        %vm6129 = vcmp.gt.f32.partialorder %v5813, %v6024
        %vm6130 = vcmp.gt.f32.partialorder %v5813, %v6028
        %vm6131 = vcmp.gt.f32.partialorder %v5813, %v6032
        %vm6132 = vcmp.gt.f32.partialorder %v5813, %v6036
        %vm6133 = vcmp.gt.f32.partialorder %v5818, %v6024
        %vm6134 = vcmp.gt.f32.partialorder %v5818, %v6028
        %vm6135 = vcmp.gt.f32.partialorder %v5818, %v6032
        %vm6136 = vcmp.gt.f32.partialorder %v5818, %v6036
        %vm6137 = vcmp.gt.f32.partialorder %v5823, %v6024
        %vm6138 = vcmp.gt.f32.partialorder %v5823, %v6028
        %vm6139 = vcmp.gt.f32.partialorder %v5823, %v6032
        %vm6140 = vcmp.gt.f32.partialorder %v5823, %v6036
        %vm6141 = vcmp.gt.f32.partialorder %v5828, %v6024
        %vm6142 = vcmp.gt.f32.partialorder %v5828, %v6028
        %vm6143 = vcmp.gt.f32.partialorder %v5828, %v6032
        %vm6144 = vcmp.gt.f32.partialorder %v5828, %v6036
        %vm6145 = vcmp.gt.f32.partialorder %v5833, %v6024
        %vm6146 = vcmp.gt.f32.partialorder %v5833, %v6028
        %vm6147 = vcmp.gt.f32.partialorder %v5833, %v6032
        %vm6148 = vcmp.gt.f32.partialorder %v5833, %v6036
        %vm6149 = vcmp.gt.f32.partialorder %v5838, %v6024
        %vm6150 = vcmp.gt.f32.partialorder %v5838, %v6028
        %vm6151 = vcmp.gt.f32.partialorder %v5838, %v6032
        %vm6152 = vcmp.gt.f32.partialorder %v5838, %v6036
        %vm6153 = vcmp.gt.f32.partialorder %v5843, %v6024
        %vm6154 = vcmp.gt.f32.partialorder %v5843, %v6028
        %vm6155 = vcmp.gt.f32.partialorder %v5843, %v6032
        %vm6156 = vcmp.gt.f32.partialorder %v5843, %v6036
        %vm6157 = vcmp.gt.f32.partialorder %v5848, %v6024
        %vm6158 = vcmp.gt.f32.partialorder %v5848, %v6028
        %vm6159 = vcmp.gt.f32.partialorder %v5848, %v6032
        %vm6160 = vcmp.gt.f32.partialorder %v5848, %v6036
        %vm6161 = vcmp.gt.f32.partialorder %v5853, %v6024
        %vm6162 = vcmp.gt.f32.partialorder %v5853, %v6028
        %vm6163 = vcmp.gt.f32.partialorder %v5853, %v6032
        %vm6164 = vcmp.gt.f32.partialorder %v5853, %v6036
        %vm6165 = vcmp.gt.f32.partialorder %v5858, %v6024
        %vm6166 = vcmp.gt.f32.partialorder %v5858, %v6028
        %vm6167 = vcmp.gt.f32.partialorder %v5858, %v6032
        %vm6168 = vcmp.gt.f32.partialorder %v5858, %v6036
        %vm6169 = vcmp.gt.f32.partialorder %v5863, %v6024
        %vm6170 = vcmp.gt.f32.partialorder %v5863, %v6028
        %vm6171 = vcmp.gt.f32.partialorder %v5863, %v6032
        %vm6172 = vcmp.gt.f32.partialorder %v5863, %v6036
        %vm6173 = vcmp.gt.f32.partialorder %v5868, %v6024
        %vm6174 = vcmp.gt.f32.partialorder %v5868, %v6028
        %vm6175 = vcmp.gt.f32.partialorder %v5868, %v6032
        %vm6176 = vcmp.gt.f32.partialorder %v5868, %v6036
        %vm6177 = vcmp.gt.f32.partialorder %v5873, %v6024
        %vm6178 = vcmp.gt.f32.partialorder %v5873, %v6028
        %vm6179 = vcmp.gt.f32.partialorder %v5873, %v6032
        %vm6180 = vcmp.gt.f32.partialorder %v5873, %v6036
        %vm6181 = vcmp.gt.f32.partialorder %v5878, %v6024
        %vm6182 = vcmp.gt.f32.partialorder %v5878, %v6028
        %vm6183 = vcmp.gt.f32.partialorder %v5878, %v6032
        %vm6184 = vcmp.gt.f32.partialorder %v5878, %v6036
        %vm6185 = vcmp.gt.f32.partialorder %v5883, %v6024
        %vm6186 = vcmp.gt.f32.partialorder %v5883, %v6028
        %vm6187 = vcmp.gt.f32.partialorder %v5883, %v6032
        %vm6188 = vcmp.gt.f32.partialorder %v5883, %v6036
        %vm6189 = vcmp.gt.f32.partialorder %v5888, %v6024
        %vm6190 = vcmp.gt.f32.partialorder %v5888, %v6028
        %vm6191 = vcmp.gt.f32.partialorder %v5888, %v6032
        %vm6192 = vcmp.gt.f32.partialorder %v5888, %v6036
        %vm6193 = vcmp.gt.f32.partialorder %v5893, %v6024
        %vm6194 = vcmp.gt.f32.partialorder %v5893, %v6028
        %vm6195 = vcmp.gt.f32.partialorder %v5893, %v6032
        %vm6196 = vcmp.gt.f32.partialorder %v5893, %v6036
        %vm6197 = vcmp.gt.f32.partialorder %v5898, %v6024
        %vm6198 = vcmp.gt.f32.partialorder %v5898, %v6028
        %vm6199 = vcmp.gt.f32.partialorder %v5898, %v6032
        %vm6200 = vcmp.gt.f32.partialorder %v5898, %v6036
        %vm6201 = vcmp.gt.f32.partialorder %v5903, %v6024
        %vm6202 = vcmp.gt.f32.partialorder %v5903, %v6028
        %vm6203 = vcmp.gt.f32.partialorder %v5903, %v6032
        %vm6204 = vcmp.gt.f32.partialorder %v5903, %v6036
        %vm6205 = vcmp.gt.f32.partialorder %v5908, %v6024
        %vm6206 = vcmp.gt.f32.partialorder %v5908, %v6028
        %vm6207 = vcmp.gt.f32.partialorder %v5908, %v6032
        %vm6208 = vcmp.gt.f32.partialorder %v5908, %v6036
        %vm6209 = vcmp.gt.f32.partialorder %v5913, %v6024
        %vm6210 = vcmp.gt.f32.partialorder %v5913, %v6028
        %vm6211 = vcmp.gt.f32.partialorder %v5913, %v6032
        %vm6212 = vcmp.gt.f32.partialorder %v5913, %v6036
        %vm6213 = vcmp.gt.f32.partialorder %v5918, %v6024
        %vm6214 = vcmp.gt.f32.partialorder %v5918, %v6028
        %vm6215 = vcmp.gt.f32.partialorder %v5918, %v6032
        %vm6216 = vcmp.gt.f32.partialorder %v5918, %v6036
        %vm6217 = vcmp.gt.f32.partialorder %v5923, %v6024
        %vm6218 = vcmp.gt.f32.partialorder %v5923, %v6028
        %vm6219 = vcmp.gt.f32.partialorder %v5923, %v6032
        %vm6220 = vcmp.gt.f32.partialorder %v5923, %v6036
        %vm6221 = vcmp.gt.f32.partialorder %v5928, %v6024
        %vm6222 = vcmp.gt.f32.partialorder %v5928, %v6028
        %vm6223 = vcmp.gt.f32.partialorder %v5928, %v6032
        %vm6224 = vcmp.gt.f32.partialorder %v5928, %v6036
        %vm6225 = vcmp.gt.f32.partialorder %v5933, %v6024
        %vm6226 = vcmp.gt.f32.partialorder %v5933, %v6028
        %vm6227 = vcmp.gt.f32.partialorder %v5933, %v6032
        %vm6228 = vcmp.gt.f32.partialorder %v5933, %v6036
        %vm6229 = vcmp.gt.f32.partialorder %v5938, %v6024
        %vm6230 = vcmp.gt.f32.partialorder %v5938, %v6028
        %vm6231 = vcmp.gt.f32.partialorder %v5938, %v6032
        %vm6232 = vcmp.gt.f32.partialorder %v5938, %v6036
        %vm6233 = vcmp.gt.f32.partialorder %v5943, %v6024
        %vm6234 = vcmp.gt.f32.partialorder %v5943, %v6028
        %vm6235 = vcmp.gt.f32.partialorder %v5943, %v6032
        %vm6236 = vcmp.gt.f32.partialorder %v5943, %v6036
        %vm6237 = vcmp.gt.f32.partialorder %v5948, %v6024
        %vm6238 = vcmp.gt.f32.partialorder %v5948, %v6028
        %vm6239 = vcmp.gt.f32.partialorder %v5948, %v6032
        %vm6240 = vcmp.gt.f32.partialorder %v5948, %v6036
        %vm6241 = vcmp.gt.f32.partialorder %v5953, %v6024
        %vm6242 = vcmp.gt.f32.partialorder %v5953, %v6028
        %vm6243 = vcmp.gt.f32.partialorder %v5953, %v6032
        %vm6244 = vcmp.gt.f32.partialorder %v5953, %v6036
        %vm6245 = vcmp.gt.f32.partialorder %v5958, %v6024
        %vm6246 = vcmp.gt.f32.partialorder %v5958, %v6028
        %vm6247 = vcmp.gt.f32.partialorder %v5958, %v6032
        %vm6248 = vcmp.gt.f32.partialorder %v5958, %v6036
        %vm6249 = vcmp.gt.f32.partialorder %v5963, %v6024
        %vm6250 = vcmp.gt.f32.partialorder %v5963, %v6028
        %vm6251 = vcmp.gt.f32.partialorder %v5963, %v6032
        %vm6252 = vcmp.gt.f32.partialorder %v5963, %v6036
        %vm6253 = vcmp.gt.f32.partialorder %v5968, %v6024
        %vm6254 = vcmp.gt.f32.partialorder %v5968, %v6028
        %vm6255 = vcmp.gt.f32.partialorder %v5968, %v6032
        %vm6256 = vcmp.gt.f32.partialorder %v5968, %v6036
        %vm6257 = vcmp.gt.f32.partialorder %v5973, %v6024
        %vm6258 = vcmp.gt.f32.partialorder %v5973, %v6028
        %vm6259 = vcmp.gt.f32.partialorder %v5973, %v6032
        %vm6260 = vcmp.gt.f32.partialorder %v5973, %v6036
        %vm6261 = vcmp.gt.f32.partialorder %v5978, %v6024
        %vm6262 = vcmp.gt.f32.partialorder %v5978, %v6028
        %vm6263 = vcmp.gt.f32.partialorder %v5978, %v6032
        %vm6264 = vcmp.gt.f32.partialorder %v5978, %v6036
        %vm6265 = vcmp.gt.f32.partialorder %v5983, %v6024
        %vm6266 = vcmp.gt.f32.partialorder %v5983, %v6028
        %vm6267 = vcmp.gt.f32.partialorder %v5983, %v6032
        %vm6268 = vcmp.gt.f32.partialorder %v5983, %v6036
        %vm6269 = vcmp.gt.f32.partialorder %v5988, %v6024
        %vm6270 = vcmp.gt.f32.partialorder %v5988, %v6028
        %vm6271 = vcmp.gt.f32.partialorder %v5988, %v6032
        %vm6272 = vcmp.gt.f32.partialorder %v5988, %v6036
        %vm6273 = vcmp.gt.f32.partialorder %v5993, %v6024
        %vm6274 = vcmp.gt.f32.partialorder %v5993, %v6028
        %vm6275 = vcmp.gt.f32.partialorder %v5993, %v6032
        %vm6276 = vcmp.gt.f32.partialorder %v5993, %v6036
        %vm6277 = vcmp.gt.f32.partialorder %v5998, %v6024
        %vm6278 = vcmp.gt.f32.partialorder %v5998, %v6028
        %vm6279 = vcmp.gt.f32.partialorder %v5998, %v6032
        %vm6280 = vcmp.gt.f32.partialorder %v5998, %v6036
        %vm6281 = vcmp.gt.f32.partialorder %v6003, %v6024
        %vm6282 = vcmp.gt.f32.partialorder %v6003, %v6028
        %vm6283 = vcmp.gt.f32.partialorder %v6003, %v6032
        %vm6284 = vcmp.gt.f32.partialorder %v6003, %v6036
        %vm6285 = vcmp.gt.f32.partialorder %v6008, %v6024
        %vm6286 = vcmp.gt.f32.partialorder %v6008, %v6028
        %vm6287 = vcmp.gt.f32.partialorder %v6008, %v6032
        %vm6288 = vcmp.gt.f32.partialorder %v6008, %v6036
        %vm6289 = vcmp.gt.f32.partialorder %v6013, %v6024
        %vm6290 = vcmp.gt.f32.partialorder %v6013, %v6028
        %vm6291 = vcmp.gt.f32.partialorder %v6013, %v6032
        %vm6292 = vcmp.gt.f32.partialorder %v6013, %v6036
        %vm6293 = vcmp.gt.f32.partialorder %v6018, %v6024
        %vm6294 = vcmp.gt.f32.partialorder %v6018, %v6028
        %vm6295 = vcmp.gt.f32.partialorder %v6018, %v6032
        %vm6296 = vcmp.gt.f32.partialorder %v6018, %v6036
        %vm6297 = vcmp.eq.f32.partialorder %v5703, %v6024
        %vm6298 = vcmp.eq.f32.partialorder %v5703, %v6028
        %vm6299 = vcmp.eq.f32.partialorder %v5703, %v6032
        %vm6300 = vcmp.eq.f32.partialorder %v5703, %v6036
        %vm6301 = vcmp.eq.f32.partialorder %v5708, %v6024
        %vm6302 = vcmp.eq.f32.partialorder %v5708, %v6028
        %vm6303 = vcmp.eq.f32.partialorder %v5708, %v6032
        %vm6304 = vcmp.eq.f32.partialorder %v5708, %v6036
        %vm6305 = vcmp.eq.f32.partialorder %v5713, %v6024
        %vm6306 = vcmp.eq.f32.partialorder %v5713, %v6028
        %vm6307 = vcmp.eq.f32.partialorder %v5713, %v6032
        %vm6308 = vcmp.eq.f32.partialorder %v5713, %v6036
        %vm6309 = vcmp.eq.f32.partialorder %v5718, %v6024
        %vm6310 = vcmp.eq.f32.partialorder %v5718, %v6028
        %vm6311 = vcmp.eq.f32.partialorder %v5718, %v6032
        %vm6312 = vcmp.eq.f32.partialorder %v5718, %v6036
        %vm6313 = vcmp.eq.f32.partialorder %v5723, %v6024
        %vm6314 = vcmp.eq.f32.partialorder %v5723, %v6028
        %vm6315 = vcmp.eq.f32.partialorder %v5723, %v6032
        %vm6316 = vcmp.eq.f32.partialorder %v5723, %v6036
        %vm6317 = vcmp.eq.f32.partialorder %v5728, %v6024
        %vm6318 = vcmp.eq.f32.partialorder %v5728, %v6028
        %vm6319 = vcmp.eq.f32.partialorder %v5728, %v6032
        %vm6320 = vcmp.eq.f32.partialorder %v5728, %v6036
        %vm6321 = vcmp.eq.f32.partialorder %v5733, %v6024
        %vm6322 = vcmp.eq.f32.partialorder %v5733, %v6028
        %vm6323 = vcmp.eq.f32.partialorder %v5733, %v6032
        %vm6324 = vcmp.eq.f32.partialorder %v5733, %v6036
        %vm6325 = vcmp.eq.f32.partialorder %v5738, %v6024
        %vm6326 = vcmp.eq.f32.partialorder %v5738, %v6028
        %vm6327 = vcmp.eq.f32.partialorder %v5738, %v6032
        %vm6328 = vcmp.eq.f32.partialorder %v5738, %v6036
        %vm6329 = vcmp.eq.f32.partialorder %v5743, %v6024
        %vm6330 = vcmp.eq.f32.partialorder %v5743, %v6028
        %vm6331 = vcmp.eq.f32.partialorder %v5743, %v6032
        %vm6332 = vcmp.eq.f32.partialorder %v5743, %v6036
        %vm6333 = vcmp.eq.f32.partialorder %v5748, %v6024
        %vm6334 = vcmp.eq.f32.partialorder %v5748, %v6028
        %vm6335 = vcmp.eq.f32.partialorder %v5748, %v6032
        %vm6336 = vcmp.eq.f32.partialorder %v5748, %v6036
        %vm6337 = vcmp.eq.f32.partialorder %v5753, %v6024
        %vm6338 = vcmp.eq.f32.partialorder %v5753, %v6028
        %vm6339 = vcmp.eq.f32.partialorder %v5753, %v6032
        %vm6340 = vcmp.eq.f32.partialorder %v5753, %v6036
        %vm6341 = vcmp.eq.f32.partialorder %v5758, %v6024
        %vm6342 = vcmp.eq.f32.partialorder %v5758, %v6028
        %vm6343 = vcmp.eq.f32.partialorder %v5758, %v6032
        %vm6344 = vcmp.eq.f32.partialorder %v5758, %v6036
        %vm6345 = vcmp.eq.f32.partialorder %v5763, %v6024
        %vm6346 = vcmp.eq.f32.partialorder %v5763, %v6028
        %vm6347 = vcmp.eq.f32.partialorder %v5763, %v6032
        %vm6348 = vcmp.eq.f32.partialorder %v5763, %v6036
        %vm6349 = vcmp.eq.f32.partialorder %v5768, %v6024
        %vm6350 = vcmp.eq.f32.partialorder %v5768, %v6028
        %vm6351 = vcmp.eq.f32.partialorder %v5768, %v6032
        %vm6352 = vcmp.eq.f32.partialorder %v5768, %v6036
        %vm6353 = vcmp.eq.f32.partialorder %v5773, %v6024
        %vm6354 = vcmp.eq.f32.partialorder %v5773, %v6028
        %vm6355 = vcmp.eq.f32.partialorder %v5773, %v6032
        %vm6356 = vcmp.eq.f32.partialorder %v5773, %v6036
        %vm6357 = vcmp.eq.f32.partialorder %v5778, %v6024
        %vm6358 = vcmp.eq.f32.partialorder %v5778, %v6028
        %vm6359 = vcmp.eq.f32.partialorder %v5778, %v6032
        %vm6360 = vcmp.eq.f32.partialorder %v5778, %v6036
        %vm6361 = vcmp.eq.f32.partialorder %v5783, %v6024
        %vm6362 = vcmp.eq.f32.partialorder %v5783, %v6028
        %vm6363 = vcmp.eq.f32.partialorder %v5783, %v6032
        %vm6364 = vcmp.eq.f32.partialorder %v5783, %v6036
        %vm6365 = vcmp.eq.f32.partialorder %v5788, %v6024
        %vm6366 = vcmp.eq.f32.partialorder %v5788, %v6028
        %vm6367 = vcmp.eq.f32.partialorder %v5788, %v6032
        %vm6368 = vcmp.eq.f32.partialorder %v5788, %v6036
        %vm6369 = vcmp.eq.f32.partialorder %v5793, %v6024
        %vm6370 = vcmp.eq.f32.partialorder %v5793, %v6028
        %vm6371 = vcmp.eq.f32.partialorder %v5793, %v6032
        %vm6372 = vcmp.eq.f32.partialorder %v5793, %v6036
        %vm6373 = vcmp.eq.f32.partialorder %v5798, %v6024
        %vm6374 = vcmp.eq.f32.partialorder %v5798, %v6028
        %vm6375 = vcmp.eq.f32.partialorder %v5798, %v6032
        %vm6376 = vcmp.eq.f32.partialorder %v5798, %v6036
        %vm6377 = vcmp.eq.f32.partialorder %v5803, %v6024
        %vm6378 = vcmp.eq.f32.partialorder %v5803, %v6028
        %vm6379 = vcmp.eq.f32.partialorder %v5803, %v6032
        %vm6380 = vcmp.eq.f32.partialorder %v5803, %v6036
        %vm6381 = vcmp.eq.f32.partialorder %v5808, %v6024
        %vm6382 = vcmp.eq.f32.partialorder %v5808, %v6028
        %vm6383 = vcmp.eq.f32.partialorder %v5808, %v6032
        %vm6384 = vcmp.eq.f32.partialorder %v5808, %v6036
        %vm6385 = vcmp.eq.f32.partialorder %v5813, %v6024
        %vm6386 = vcmp.eq.f32.partialorder %v5813, %v6028
        %vm6387 = vcmp.eq.f32.partialorder %v5813, %v6032
        %vm6388 = vcmp.eq.f32.partialorder %v5813, %v6036
        %vm6389 = vcmp.eq.f32.partialorder %v5818, %v6024
        %vm6390 = vcmp.eq.f32.partialorder %v5818, %v6028
        %vm6391 = vcmp.eq.f32.partialorder %v5818, %v6032
        %vm6392 = vcmp.eq.f32.partialorder %v5818, %v6036
        %vm6393 = vcmp.eq.f32.partialorder %v5823, %v6024
        %vm6394 = vcmp.eq.f32.partialorder %v5823, %v6028
        %vm6395 = vcmp.eq.f32.partialorder %v5823, %v6032
        %vm6396 = vcmp.eq.f32.partialorder %v5823, %v6036
        %vm6397 = vcmp.eq.f32.partialorder %v5828, %v6024
        %vm6398 = vcmp.eq.f32.partialorder %v5828, %v6028
        %vm6399 = vcmp.eq.f32.partialorder %v5828, %v6032
        %vm6400 = vcmp.eq.f32.partialorder %v5828, %v6036
        %vm6401 = vcmp.eq.f32.partialorder %v5833, %v6024
        %vm6402 = vcmp.eq.f32.partialorder %v5833, %v6028
        %vm6403 = vcmp.eq.f32.partialorder %v5833, %v6032
        %vm6404 = vcmp.eq.f32.partialorder %v5833, %v6036
        %vm6405 = vcmp.eq.f32.partialorder %v5838, %v6024
        %vm6406 = vcmp.eq.f32.partialorder %v5838, %v6028
        %vm6407 = vcmp.eq.f32.partialorder %v5838, %v6032
        %vm6408 = vcmp.eq.f32.partialorder %v5838, %v6036
        %vm6409 = vcmp.eq.f32.partialorder %v5843, %v6024
        %vm6410 = vcmp.eq.f32.partialorder %v5843, %v6028
        %vm6411 = vcmp.eq.f32.partialorder %v5843, %v6032
        %vm6412 = vcmp.eq.f32.partialorder %v5843, %v6036
        %vm6413 = vcmp.eq.f32.partialorder %v5848, %v6024
        %vm6414 = vcmp.eq.f32.partialorder %v5848, %v6028
        %vm6415 = vcmp.eq.f32.partialorder %v5848, %v6032
        %vm6416 = vcmp.eq.f32.partialorder %v5848, %v6036
        %vm6417 = vcmp.eq.f32.partialorder %v5853, %v6024
        %vm6418 = vcmp.eq.f32.partialorder %v5853, %v6028
        %vm6419 = vcmp.eq.f32.partialorder %v5853, %v6032
        %vm6420 = vcmp.eq.f32.partialorder %v5853, %v6036
        %vm6421 = vcmp.eq.f32.partialorder %v5858, %v6024
        %vm6422 = vcmp.eq.f32.partialorder %v5858, %v6028
        %vm6423 = vcmp.eq.f32.partialorder %v5858, %v6032
        %vm6424 = vcmp.eq.f32.partialorder %v5858, %v6036
        %vm6425 = vcmp.eq.f32.partialorder %v5863, %v6024
        %vm6426 = vcmp.eq.f32.partialorder %v5863, %v6028
        %vm6427 = vcmp.eq.f32.partialorder %v5863, %v6032
        %vm6428 = vcmp.eq.f32.partialorder %v5863, %v6036
        %vm6429 = vcmp.eq.f32.partialorder %v5868, %v6024
        %vm6430 = vcmp.eq.f32.partialorder %v5868, %v6028
        %vm6431 = vcmp.eq.f32.partialorder %v5868, %v6032
        %vm6432 = vcmp.eq.f32.partialorder %v5868, %v6036
        %vm6433 = vcmp.eq.f32.partialorder %v5873, %v6024
        %vm6434 = vcmp.eq.f32.partialorder %v5873, %v6028
        %vm6435 = vcmp.eq.f32.partialorder %v5873, %v6032
        %vm6436 = vcmp.eq.f32.partialorder %v5873, %v6036
        %vm6437 = vcmp.eq.f32.partialorder %v5878, %v6024
        %vm6438 = vcmp.eq.f32.partialorder %v5878, %v6028
        %vm6439 = vcmp.eq.f32.partialorder %v5878, %v6032
        %vm6440 = vcmp.eq.f32.partialorder %v5878, %v6036
        %vm6441 = vcmp.eq.f32.partialorder %v5883, %v6024
        %vm6442 = vcmp.eq.f32.partialorder %v5883, %v6028
        %vm6443 = vcmp.eq.f32.partialorder %v5883, %v6032
        %vm6444 = vcmp.eq.f32.partialorder %v5883, %v6036
        %vm6445 = vcmp.eq.f32.partialorder %v5888, %v6024
        %vm6446 = vcmp.eq.f32.partialorder %v5888, %v6028
        %vm6447 = vcmp.eq.f32.partialorder %v5888, %v6032
        %vm6448 = vcmp.eq.f32.partialorder %v5888, %v6036
        %vm6449 = vcmp.eq.f32.partialorder %v5893, %v6024
        %vm6450 = vcmp.eq.f32.partialorder %v5893, %v6028
        %vm6451 = vcmp.eq.f32.partialorder %v5893, %v6032
        %vm6452 = vcmp.eq.f32.partialorder %v5893, %v6036
        %vm6453 = vcmp.eq.f32.partialorder %v5898, %v6024
        %vm6454 = vcmp.eq.f32.partialorder %v5898, %v6028
        %vm6455 = vcmp.eq.f32.partialorder %v5898, %v6032
        %vm6456 = vcmp.eq.f32.partialorder %v5898, %v6036
        %vm6457 = vcmp.eq.f32.partialorder %v5903, %v6024
        %vm6458 = vcmp.eq.f32.partialorder %v5903, %v6028
        %vm6459 = vcmp.eq.f32.partialorder %v5903, %v6032
        %vm6460 = vcmp.eq.f32.partialorder %v5903, %v6036
        %vm6461 = vcmp.eq.f32.partialorder %v5908, %v6024
        %vm6462 = vcmp.eq.f32.partialorder %v5908, %v6028
        %vm6463 = vcmp.eq.f32.partialorder %v5908, %v6032
        %vm6464 = vcmp.eq.f32.partialorder %v5908, %v6036
        %vm6465 = vcmp.eq.f32.partialorder %v5913, %v6024
        %vm6466 = vcmp.eq.f32.partialorder %v5913, %v6028
        %vm6467 = vcmp.eq.f32.partialorder %v5913, %v6032
        %vm6468 = vcmp.eq.f32.partialorder %v5913, %v6036
        %vm6469 = vcmp.eq.f32.partialorder %v5918, %v6024
        %vm6470 = vcmp.eq.f32.partialorder %v5918, %v6028
        %vm6471 = vcmp.eq.f32.partialorder %v5918, %v6032
        %vm6472 = vcmp.eq.f32.partialorder %v5918, %v6036
        %vm6473 = vcmp.eq.f32.partialorder %v5923, %v6024
        %vm6474 = vcmp.eq.f32.partialorder %v5923, %v6028
        %vm6475 = vcmp.eq.f32.partialorder %v5923, %v6032
        %vm6476 = vcmp.eq.f32.partialorder %v5923, %v6036
        %vm6477 = vcmp.eq.f32.partialorder %v5928, %v6024
        %vm6478 = vcmp.eq.f32.partialorder %v5928, %v6028
        %vm6479 = vcmp.eq.f32.partialorder %v5928, %v6032
        %vm6480 = vcmp.eq.f32.partialorder %v5928, %v6036
        %vm6481 = vcmp.eq.f32.partialorder %v5933, %v6024
        %vm6482 = vcmp.eq.f32.partialorder %v5933, %v6028
        %vm6483 = vcmp.eq.f32.partialorder %v5933, %v6032
        %vm6484 = vcmp.eq.f32.partialorder %v5933, %v6036
        %vm6485 = vcmp.eq.f32.partialorder %v5938, %v6024
        %vm6486 = vcmp.eq.f32.partialorder %v5938, %v6028
        %vm6487 = vcmp.eq.f32.partialorder %v5938, %v6032
        %vm6488 = vcmp.eq.f32.partialorder %v5938, %v6036
        %vm6489 = vcmp.eq.f32.partialorder %v5943, %v6024
        %vm6490 = vcmp.eq.f32.partialorder %v5943, %v6028
        %vm6491 = vcmp.eq.f32.partialorder %v5943, %v6032
        %vm6492 = vcmp.eq.f32.partialorder %v5943, %v6036
        %vm6493 = vcmp.eq.f32.partialorder %v5948, %v6024
        %vm6494 = vcmp.eq.f32.partialorder %v5948, %v6028
        %vm6495 = vcmp.eq.f32.partialorder %v5948, %v6032
        %vm6496 = vcmp.eq.f32.partialorder %v5948, %v6036
        %vm6497 = vcmp.eq.f32.partialorder %v5953, %v6024
        %vm6498 = vcmp.eq.f32.partialorder %v5953, %v6028
        %vm6499 = vcmp.eq.f32.partialorder %v5953, %v6032
        %vm6500 = vcmp.eq.f32.partialorder %v5953, %v6036
        %vm6501 = vcmp.eq.f32.partialorder %v5958, %v6024
        %vm6502 = vcmp.eq.f32.partialorder %v5958, %v6028
        %vm6503 = vcmp.eq.f32.partialorder %v5958, %v6032
        %vm6504 = vcmp.eq.f32.partialorder %v5958, %v6036
        %vm6505 = vcmp.eq.f32.partialorder %v5963, %v6024
        %vm6506 = vcmp.eq.f32.partialorder %v5963, %v6028
        %vm6507 = vcmp.eq.f32.partialorder %v5963, %v6032
        %vm6508 = vcmp.eq.f32.partialorder %v5963, %v6036
        %vm6509 = vcmp.eq.f32.partialorder %v5968, %v6024
        %vm6510 = vcmp.eq.f32.partialorder %v5968, %v6028
        %vm6511 = vcmp.eq.f32.partialorder %v5968, %v6032
        %vm6512 = vcmp.eq.f32.partialorder %v5968, %v6036
        %vm6513 = vcmp.eq.f32.partialorder %v5973, %v6024
        %vm6514 = vcmp.eq.f32.partialorder %v5973, %v6028
        %vm6515 = vcmp.eq.f32.partialorder %v5973, %v6032
        %vm6516 = vcmp.eq.f32.partialorder %v5973, %v6036
        %vm6517 = vcmp.eq.f32.partialorder %v5978, %v6024
        %vm6518 = vcmp.eq.f32.partialorder %v5978, %v6028
        %vm6519 = vcmp.eq.f32.partialorder %v5978, %v6032
        %vm6520 = vcmp.eq.f32.partialorder %v5978, %v6036
        %vm6521 = vcmp.eq.f32.partialorder %v5983, %v6024
        %vm6522 = vcmp.eq.f32.partialorder %v5983, %v6028
        %vm6523 = vcmp.eq.f32.partialorder %v5983, %v6032
        %vm6524 = vcmp.eq.f32.partialorder %v5983, %v6036
        %vm6525 = vcmp.eq.f32.partialorder %v5988, %v6024
        %vm6526 = vcmp.eq.f32.partialorder %v5988, %v6028
        %vm6527 = vcmp.eq.f32.partialorder %v5988, %v6032
        %vm6528 = vcmp.eq.f32.partialorder %v5988, %v6036
        %vm6529 = vcmp.eq.f32.partialorder %v5993, %v6024
        %vm6530 = vcmp.eq.f32.partialorder %v5993, %v6028
        %vm6531 = vcmp.eq.f32.partialorder %v5993, %v6032
        %vm6532 = vcmp.eq.f32.partialorder %v5993, %v6036
        %vm6533 = vcmp.eq.f32.partialorder %v5998, %v6024
        %vm6534 = vcmp.eq.f32.partialorder %v5998, %v6028
        %vm6535 = vcmp.eq.f32.partialorder %v5998, %v6032
        %vm6536 = vcmp.eq.f32.partialorder %v5998, %v6036
        %vm6537 = vcmp.eq.f32.partialorder %v6003, %v6024
        %vm6538 = vcmp.eq.f32.partialorder %v6003, %v6028
        %vm6539 = vcmp.eq.f32.partialorder %v6003, %v6032
        %vm6540 = vcmp.eq.f32.partialorder %v6003, %v6036
        %vm6541 = vcmp.eq.f32.partialorder %v6008, %v6024
        %vm6542 = vcmp.eq.f32.partialorder %v6008, %v6028
        %vm6543 = vcmp.eq.f32.partialorder %v6008, %v6032
        %vm6544 = vcmp.eq.f32.partialorder %v6008, %v6036
        %vm6545 = vcmp.eq.f32.partialorder %v6013, %v6024
        %vm6546 = vcmp.eq.f32.partialorder %v6013, %v6028
        %vm6547 = vcmp.eq.f32.partialorder %v6013, %v6032
        %vm6548 = vcmp.eq.f32.partialorder %v6013, %v6036
        %vm6549 = vcmp.eq.f32.partialorder %v6018, %v6024
        %vm6550 = vcmp.eq.f32.partialorder %v6018, %v6028
        %vm6551 = vcmp.eq.f32.partialorder %v6018, %v6032
        %vm6552 = vcmp.eq.f32.partialorder %v6018, %v6036
        %vm6553 = vcmp.lt.s32.totalorder %v5631, %v5696
        %vm6554 = vcmp.lt.s32.totalorder %v5631, %v5697
        %vm6555 = vcmp.lt.s32.totalorder %v5631, %v5698
        %vm6556 = vcmp.lt.s32.totalorder %v5631, %v5699
        %vm6557 = vcmp.lt.s32.totalorder %v5632, %v5696
        %vm6558 = vcmp.lt.s32.totalorder %v5632, %v5697
        %vm6559 = vcmp.lt.s32.totalorder %v5632, %v5698
        %vm6560 = vcmp.lt.s32.totalorder %v5632, %v5699
        %vm6561 = vcmp.lt.s32.totalorder %v5633, %v5696
        %vm6562 = vcmp.lt.s32.totalorder %v5633, %v5697
        %vm6563 = vcmp.lt.s32.totalorder %v5633, %v5698
        %vm6564 = vcmp.lt.s32.totalorder %v5633, %v5699
        %vm6565 = vcmp.lt.s32.totalorder %v5634, %v5696
        %vm6566 = vcmp.lt.s32.totalorder %v5634, %v5697
        %vm6567 = vcmp.lt.s32.totalorder %v5634, %v5698
        %vm6568 = vcmp.lt.s32.totalorder %v5634, %v5699
        %vm6569 = vcmp.lt.s32.totalorder %v5635, %v5696
        %vm6570 = vcmp.lt.s32.totalorder %v5635, %v5697
        %vm6571 = vcmp.lt.s32.totalorder %v5635, %v5698
        %vm6572 = vcmp.lt.s32.totalorder %v5635, %v5699
        %vm6573 = vcmp.lt.s32.totalorder %v5636, %v5696
        %vm6574 = vcmp.lt.s32.totalorder %v5636, %v5697
        %vm6575 = vcmp.lt.s32.totalorder %v5636, %v5698
        %vm6576 = vcmp.lt.s32.totalorder %v5636, %v5699
        %vm6577 = vcmp.lt.s32.totalorder %v5637, %v5696
        %vm6578 = vcmp.lt.s32.totalorder %v5637, %v5697
        %vm6579 = vcmp.lt.s32.totalorder %v5637, %v5698
        %vm6580 = vcmp.lt.s32.totalorder %v5637, %v5699
        %vm6581 = vcmp.lt.s32.totalorder %v5638, %v5696
        %vm6582 = vcmp.lt.s32.totalorder %v5638, %v5697
        %vm6583 = vcmp.lt.s32.totalorder %v5638, %v5698
        %vm6584 = vcmp.lt.s32.totalorder %v5638, %v5699
        %vm6585 = vcmp.lt.s32.totalorder %v5639, %v5696
        %vm6586 = vcmp.lt.s32.totalorder %v5639, %v5697
        %vm6587 = vcmp.lt.s32.totalorder %v5639, %v5698
        %vm6588 = vcmp.lt.s32.totalorder %v5639, %v5699
        %vm6589 = vcmp.lt.s32.totalorder %v5640, %v5696
        %vm6590 = vcmp.lt.s32.totalorder %v5640, %v5697
        %vm6591 = vcmp.lt.s32.totalorder %v5640, %v5698
        %vm6592 = vcmp.lt.s32.totalorder %v5640, %v5699
        %vm6593 = vcmp.lt.s32.totalorder %v5641, %v5696
        %vm6594 = vcmp.lt.s32.totalorder %v5641, %v5697
        %vm6595 = vcmp.lt.s32.totalorder %v5641, %v5698
        %vm6596 = vcmp.lt.s32.totalorder %v5641, %v5699
        %vm6597 = vcmp.lt.s32.totalorder %v5642, %v5696
        %vm6598 = vcmp.lt.s32.totalorder %v5642, %v5697
        %vm6599 = vcmp.lt.s32.totalorder %v5642, %v5698
        %vm6600 = vcmp.lt.s32.totalorder %v5642, %v5699
        %vm6601 = vcmp.lt.s32.totalorder %v5643, %v5696
        %vm6602 = vcmp.lt.s32.totalorder %v5643, %v5697
        %vm6603 = vcmp.lt.s32.totalorder %v5643, %v5698
        %vm6604 = vcmp.lt.s32.totalorder %v5643, %v5699
        %vm6605 = vcmp.lt.s32.totalorder %v5644, %v5696
        %vm6606 = vcmp.lt.s32.totalorder %v5644, %v5697
        %vm6607 = vcmp.lt.s32.totalorder %v5644, %v5698
        %vm6608 = vcmp.lt.s32.totalorder %v5644, %v5699
        %vm6609 = vcmp.lt.s32.totalorder %v5645, %v5696
        %vm6610 = vcmp.lt.s32.totalorder %v5645, %v5697
        %vm6611 = vcmp.lt.s32.totalorder %v5645, %v5698
        %vm6612 = vcmp.lt.s32.totalorder %v5645, %v5699
        %vm6613 = vcmp.lt.s32.totalorder %v5646, %v5696
        %vm6614 = vcmp.lt.s32.totalorder %v5646, %v5697
        %vm6615 = vcmp.lt.s32.totalorder %v5646, %v5698
        %vm6616 = vcmp.lt.s32.totalorder %v5646, %v5699
        %vm6617 = vcmp.lt.s32.totalorder %v5647, %v5696
        %vm6618 = vcmp.lt.s32.totalorder %v5647, %v5697
        %vm6619 = vcmp.lt.s32.totalorder %v5647, %v5698
        %vm6620 = vcmp.lt.s32.totalorder %v5647, %v5699
        %vm6621 = vcmp.lt.s32.totalorder %v5648, %v5696
        %vm6622 = vcmp.lt.s32.totalorder %v5648, %v5697
        %vm6623 = vcmp.lt.s32.totalorder %v5648, %v5698
        %vm6624 = vcmp.lt.s32.totalorder %v5648, %v5699
        %vm6625 = vcmp.lt.s32.totalorder %v5649, %v5696
        %vm6626 = vcmp.lt.s32.totalorder %v5649, %v5697
        %vm6627 = vcmp.lt.s32.totalorder %v5649, %v5698
        %vm6628 = vcmp.lt.s32.totalorder %v5649, %v5699
        %vm6629 = vcmp.lt.s32.totalorder %v5650, %v5696
        %vm6630 = vcmp.lt.s32.totalorder %v5650, %v5697
        %vm6631 = vcmp.lt.s32.totalorder %v5650, %v5698
        %vm6632 = vcmp.lt.s32.totalorder %v5650, %v5699
        %vm6633 = vcmp.lt.s32.totalorder %v5651, %v5696
        %vm6634 = vcmp.lt.s32.totalorder %v5651, %v5697
        %vm6635 = vcmp.lt.s32.totalorder %v5651, %v5698
        %vm6636 = vcmp.lt.s32.totalorder %v5651, %v5699
        %vm6637 = vcmp.lt.s32.totalorder %v5652, %v5696
        %vm6638 = vcmp.lt.s32.totalorder %v5652, %v5697
        %vm6639 = vcmp.lt.s32.totalorder %v5652, %v5698
        %vm6640 = vcmp.lt.s32.totalorder %v5652, %v5699
        %vm6641 = vcmp.lt.s32.totalorder %v5653, %v5696
        %vm6642 = vcmp.lt.s32.totalorder %v5653, %v5697
        %vm6643 = vcmp.lt.s32.totalorder %v5653, %v5698
        %vm6644 = vcmp.lt.s32.totalorder %v5653, %v5699
        %vm6645 = vcmp.lt.s32.totalorder %v5654, %v5696
        %vm6646 = vcmp.lt.s32.totalorder %v5654, %v5697
        %vm6647 = vcmp.lt.s32.totalorder %v5654, %v5698
        %vm6648 = vcmp.lt.s32.totalorder %v5654, %v5699
        %vm6649 = vcmp.lt.s32.totalorder %v5655, %v5696
        %vm6650 = vcmp.lt.s32.totalorder %v5655, %v5697
        %vm6651 = vcmp.lt.s32.totalorder %v5655, %v5698
        %vm6652 = vcmp.lt.s32.totalorder %v5655, %v5699
        %vm6653 = vcmp.lt.s32.totalorder %v5656, %v5696
        %vm6654 = vcmp.lt.s32.totalorder %v5656, %v5697
        %vm6655 = vcmp.lt.s32.totalorder %v5656, %v5698
        %vm6656 = vcmp.lt.s32.totalorder %v5656, %v5699
        %vm6657 = vcmp.lt.s32.totalorder %v5657, %v5696
        %vm6658 = vcmp.lt.s32.totalorder %v5657, %v5697
        %vm6659 = vcmp.lt.s32.totalorder %v5657, %v5698
        %vm6660 = vcmp.lt.s32.totalorder %v5657, %v5699
        %vm6661 = vcmp.lt.s32.totalorder %v5658, %v5696
        %vm6662 = vcmp.lt.s32.totalorder %v5658, %v5697
        %vm6663 = vcmp.lt.s32.totalorder %v5658, %v5698
        %vm6664 = vcmp.lt.s32.totalorder %v5658, %v5699
        %vm6665 = vcmp.lt.s32.totalorder %v5659, %v5696
        %vm6666 = vcmp.lt.s32.totalorder %v5659, %v5697
        %vm6667 = vcmp.lt.s32.totalorder %v5659, %v5698
        %vm6668 = vcmp.lt.s32.totalorder %v5659, %v5699
        %vm6669 = vcmp.lt.s32.totalorder %v5660, %v5696
        %vm6670 = vcmp.lt.s32.totalorder %v5660, %v5697
        %vm6671 = vcmp.lt.s32.totalorder %v5660, %v5698
        %vm6672 = vcmp.lt.s32.totalorder %v5660, %v5699
        %vm6673 = vcmp.lt.s32.totalorder %v5661, %v5696
        %vm6674 = vcmp.lt.s32.totalorder %v5661, %v5697
        %vm6675 = vcmp.lt.s32.totalorder %v5661, %v5698
        %vm6676 = vcmp.lt.s32.totalorder %v5661, %v5699
        %vm6677 = vcmp.lt.s32.totalorder %v5662, %v5696
        %vm6678 = vcmp.lt.s32.totalorder %v5662, %v5697
        %vm6679 = vcmp.lt.s32.totalorder %v5662, %v5698
        %vm6680 = vcmp.lt.s32.totalorder %v5662, %v5699
        %vm6681 = vcmp.lt.s32.totalorder %v5663, %v5696
        %vm6682 = vcmp.lt.s32.totalorder %v5663, %v5697
        %vm6683 = vcmp.lt.s32.totalorder %v5663, %v5698
        %vm6684 = vcmp.lt.s32.totalorder %v5663, %v5699
        %vm6685 = vcmp.lt.s32.totalorder %v5664, %v5696
        %vm6686 = vcmp.lt.s32.totalorder %v5664, %v5697
        %vm6687 = vcmp.lt.s32.totalorder %v5664, %v5698
        %vm6688 = vcmp.lt.s32.totalorder %v5664, %v5699
        %vm6689 = vcmp.lt.s32.totalorder %v5665, %v5696
        %vm6690 = vcmp.lt.s32.totalorder %v5665, %v5697
        %vm6691 = vcmp.lt.s32.totalorder %v5665, %v5698
        %vm6692 = vcmp.lt.s32.totalorder %v5665, %v5699
        %vm6693 = vcmp.lt.s32.totalorder %v5666, %v5696
        %vm6694 = vcmp.lt.s32.totalorder %v5666, %v5697
        %vm6695 = vcmp.lt.s32.totalorder %v5666, %v5698
        %vm6696 = vcmp.lt.s32.totalorder %v5666, %v5699
        %vm6697 = vcmp.lt.s32.totalorder %v5667, %v5696
        %vm6698 = vcmp.lt.s32.totalorder %v5667, %v5697
        %vm6699 = vcmp.lt.s32.totalorder %v5667, %v5698
        %vm6700 = vcmp.lt.s32.totalorder %v5667, %v5699
        %vm6701 = vcmp.lt.s32.totalorder %v5668, %v5696
        %vm6702 = vcmp.lt.s32.totalorder %v5668, %v5697
        %vm6703 = vcmp.lt.s32.totalorder %v5668, %v5698
        %vm6704 = vcmp.lt.s32.totalorder %v5668, %v5699
        %vm6705 = vcmp.lt.s32.totalorder %v5669, %v5696
        %vm6706 = vcmp.lt.s32.totalorder %v5669, %v5697
        %vm6707 = vcmp.lt.s32.totalorder %v5669, %v5698
        %vm6708 = vcmp.lt.s32.totalorder %v5669, %v5699
        %vm6709 = vcmp.lt.s32.totalorder %v5670, %v5696
        %vm6710 = vcmp.lt.s32.totalorder %v5670, %v5697
        %vm6711 = vcmp.lt.s32.totalorder %v5670, %v5698
        %vm6712 = vcmp.lt.s32.totalorder %v5670, %v5699
        %vm6713 = vcmp.lt.s32.totalorder %v5671, %v5696
        %vm6714 = vcmp.lt.s32.totalorder %v5671, %v5697
        %vm6715 = vcmp.lt.s32.totalorder %v5671, %v5698
        %vm6716 = vcmp.lt.s32.totalorder %v5671, %v5699
        %vm6717 = vcmp.lt.s32.totalorder %v5672, %v5696
        %vm6718 = vcmp.lt.s32.totalorder %v5672, %v5697
        %vm6719 = vcmp.lt.s32.totalorder %v5672, %v5698
        %vm6720 = vcmp.lt.s32.totalorder %v5672, %v5699
        %vm6721 = vcmp.lt.s32.totalorder %v5673, %v5696
        %vm6722 = vcmp.lt.s32.totalorder %v5673, %v5697
        %vm6723 = vcmp.lt.s32.totalorder %v5673, %v5698
        %vm6724 = vcmp.lt.s32.totalorder %v5673, %v5699
        %vm6725 = vcmp.lt.s32.totalorder %v5674, %v5696
        %vm6726 = vcmp.lt.s32.totalorder %v5674, %v5697
        %vm6727 = vcmp.lt.s32.totalorder %v5674, %v5698
        %vm6728 = vcmp.lt.s32.totalorder %v5674, %v5699
        %vm6729 = vcmp.lt.s32.totalorder %v5675, %v5696
        %vm6730 = vcmp.lt.s32.totalorder %v5675, %v5697
        %vm6731 = vcmp.lt.s32.totalorder %v5675, %v5698
        %vm6732 = vcmp.lt.s32.totalorder %v5675, %v5699
        %vm6733 = vcmp.lt.s32.totalorder %v5676, %v5696
        %vm6734 = vcmp.lt.s32.totalorder %v5676, %v5697
        %vm6735 = vcmp.lt.s32.totalorder %v5676, %v5698
        %vm6736 = vcmp.lt.s32.totalorder %v5676, %v5699
        %vm6737 = vcmp.lt.s32.totalorder %v5677, %v5696
        %vm6738 = vcmp.lt.s32.totalorder %v5677, %v5697
        %vm6739 = vcmp.lt.s32.totalorder %v5677, %v5698
        %vm6740 = vcmp.lt.s32.totalorder %v5677, %v5699
        %vm6741 = vcmp.lt.s32.totalorder %v5678, %v5696
        %vm6742 = vcmp.lt.s32.totalorder %v5678, %v5697
        %vm6743 = vcmp.lt.s32.totalorder %v5678, %v5698
        %vm6744 = vcmp.lt.s32.totalorder %v5678, %v5699
        %vm6745 = vcmp.lt.s32.totalorder %v5679, %v5696
        %vm6746 = vcmp.lt.s32.totalorder %v5679, %v5697
        %vm6747 = vcmp.lt.s32.totalorder %v5679, %v5698
        %vm6748 = vcmp.lt.s32.totalorder %v5679, %v5699
        %vm6749 = vcmp.lt.s32.totalorder %v5680, %v5696
        %vm6750 = vcmp.lt.s32.totalorder %v5680, %v5697
        %vm6751 = vcmp.lt.s32.totalorder %v5680, %v5698
        %vm6752 = vcmp.lt.s32.totalorder %v5680, %v5699
        %vm6753 = vcmp.lt.s32.totalorder %v5681, %v5696
        %vm6754 = vcmp.lt.s32.totalorder %v5681, %v5697
        %vm6755 = vcmp.lt.s32.totalorder %v5681, %v5698
        %vm6756 = vcmp.lt.s32.totalorder %v5681, %v5699
        %vm6757 = vcmp.lt.s32.totalorder %v5682, %v5696
        %vm6758 = vcmp.lt.s32.totalorder %v5682, %v5697
        %vm6759 = vcmp.lt.s32.totalorder %v5682, %v5698
        %vm6760 = vcmp.lt.s32.totalorder %v5682, %v5699
        %vm6761 = vcmp.lt.s32.totalorder %v5683, %v5696
        %vm6762 = vcmp.lt.s32.totalorder %v5683, %v5697
        %vm6763 = vcmp.lt.s32.totalorder %v5683, %v5698
        %vm6764 = vcmp.lt.s32.totalorder %v5683, %v5699
        %vm6765 = vcmp.lt.s32.totalorder %v5684, %v5696
        %vm6766 = vcmp.lt.s32.totalorder %v5684, %v5697
        %vm6767 = vcmp.lt.s32.totalorder %v5684, %v5698
        %vm6768 = vcmp.lt.s32.totalorder %v5684, %v5699
        %vm6769 = vcmp.lt.s32.totalorder %v5685, %v5696
        %vm6770 = vcmp.lt.s32.totalorder %v5685, %v5697
        %vm6771 = vcmp.lt.s32.totalorder %v5685, %v5698
        %vm6772 = vcmp.lt.s32.totalorder %v5685, %v5699
        %vm6773 = vcmp.lt.s32.totalorder %v5686, %v5696
        %vm6774 = vcmp.lt.s32.totalorder %v5686, %v5697
        %vm6775 = vcmp.lt.s32.totalorder %v5686, %v5698
        %vm6776 = vcmp.lt.s32.totalorder %v5686, %v5699
        %vm6777 = vcmp.lt.s32.totalorder %v5687, %v5696
        %vm6778 = vcmp.lt.s32.totalorder %v5687, %v5697
        %vm6779 = vcmp.lt.s32.totalorder %v5687, %v5698
        %vm6780 = vcmp.lt.s32.totalorder %v5687, %v5699
        %vm6781 = vcmp.lt.s32.totalorder %v5688, %v5696
        %vm6782 = vcmp.lt.s32.totalorder %v5688, %v5697
        %vm6783 = vcmp.lt.s32.totalorder %v5688, %v5698
        %vm6784 = vcmp.lt.s32.totalorder %v5688, %v5699
        %vm6785 = vcmp.lt.s32.totalorder %v5689, %v5696
        %vm6786 = vcmp.lt.s32.totalorder %v5689, %v5697
        %vm6787 = vcmp.lt.s32.totalorder %v5689, %v5698
        %vm6788 = vcmp.lt.s32.totalorder %v5689, %v5699
        %vm6789 = vcmp.lt.s32.totalorder %v5690, %v5696
        %vm6790 = vcmp.lt.s32.totalorder %v5690, %v5697
        %vm6791 = vcmp.lt.s32.totalorder %v5690, %v5698
        %vm6792 = vcmp.lt.s32.totalorder %v5690, %v5699
        %vm6793 = vcmp.lt.s32.totalorder %v5691, %v5696
        %vm6794 = vcmp.lt.s32.totalorder %v5691, %v5697
        %vm6795 = vcmp.lt.s32.totalorder %v5691, %v5698
        %vm6796 = vcmp.lt.s32.totalorder %v5691, %v5699
        %vm6797 = vcmp.lt.s32.totalorder %v5692, %v5696
        %vm6798 = vcmp.lt.s32.totalorder %v5692, %v5697
        %vm6799 = vcmp.lt.s32.totalorder %v5692, %v5698
        %vm6800 = vcmp.lt.s32.totalorder %v5692, %v5699
        %vm6801 = vcmp.lt.s32.totalorder %v5693, %v5696
        %vm6802 = vcmp.lt.s32.totalorder %v5693, %v5697
        %vm6803 = vcmp.lt.s32.totalorder %v5693, %v5698
        %vm6804 = vcmp.lt.s32.totalorder %v5693, %v5699
        %vm6805 = vcmp.lt.s32.totalorder %v5694, %v5696
        %vm6806 = vcmp.lt.s32.totalorder %v5694, %v5697
        %vm6807 = vcmp.lt.s32.totalorder %v5694, %v5698
        %vm6808 = vcmp.lt.s32.totalorder %v5694, %v5699
        %vm6809 = vmand %vm6297, %vm6553
        %vm6810 = vmand %vm6298, %vm6554
        %vm6811 = vmand %vm6299, %vm6555
        %vm6812 = vmand %vm6300, %vm6556
        %vm6813 = vmand %vm6301, %vm6557
        %vm6814 = vmand %vm6302, %vm6558
        %vm6815 = vmand %vm6303, %vm6559
        %vm6816 = vmand %vm6304, %vm6560
        %vm6817 = vmand %vm6305, %vm6561
        %vm6818 = vmand %vm6306, %vm6562
        %vm6819 = vmand %vm6307, %vm6563
        %vm6820 = vmand %vm6308, %vm6564
        %vm6821 = vmand %vm6309, %vm6565
        %vm6822 = vmand %vm6310, %vm6566
        %vm6823 = vmand %vm6311, %vm6567
        %vm6824 = vmand %vm6312, %vm6568
        %vm6825 = vmand %vm6313, %vm6569
        %vm6826 = vmand %vm6314, %vm6570
        %vm6827 = vmand %vm6315, %vm6571
        %vm6828 = vmand %vm6316, %vm6572
        %vm6829 = vmand %vm6317, %vm6573
        %vm6830 = vmand %vm6318, %vm6574
        %vm6831 = vmand %vm6319, %vm6575
        %vm6832 = vmand %vm6320, %vm6576
        %vm6833 = vmand %vm6321, %vm6577
        %vm6834 = vmand %vm6322, %vm6578
        %vm6835 = vmand %vm6323, %vm6579
        %vm6836 = vmand %vm6324, %vm6580
        %vm6837 = vmand %vm6325, %vm6581
        %vm6838 = vmand %vm6326, %vm6582
        %vm6839 = vmand %vm6327, %vm6583
        %vm6840 = vmand %vm6328, %vm6584
        %vm6841 = vmand %vm6329, %vm6585
        %vm6842 = vmand %vm6330, %vm6586
        %vm6843 = vmand %vm6331, %vm6587
        %vm6844 = vmand %vm6332, %vm6588
        %vm6845 = vmand %vm6333, %vm6589
        %vm6846 = vmand %vm6334, %vm6590
        %vm6847 = vmand %vm6335, %vm6591
        %vm6848 = vmand %vm6336, %vm6592
        %vm6849 = vmand %vm6337, %vm6593
        %vm6850 = vmand %vm6338, %vm6594
        %vm6851 = vmand %vm6339, %vm6595
        %vm6852 = vmand %vm6340, %vm6596
        %vm6853 = vmand %vm6341, %vm6597
        %vm6854 = vmand %vm6342, %vm6598
        %vm6855 = vmand %vm6343, %vm6599
        %vm6856 = vmand %vm6344, %vm6600
        %vm6857 = vmand %vm6345, %vm6601
        %vm6858 = vmand %vm6346, %vm6602
        %vm6859 = vmand %vm6347, %vm6603
        %vm6860 = vmand %vm6348, %vm6604
        %vm6861 = vmand %vm6349, %vm6605
        %vm6862 = vmand %vm6350, %vm6606
        %vm6863 = vmand %vm6351, %vm6607
        %vm6864 = vmand %vm6352, %vm6608
        %vm6865 = vmand %vm6353, %vm6609
        %vm6866 = vmand %vm6354, %vm6610
        %vm6867 = vmand %vm6355, %vm6611
        %vm6868 = vmand %vm6356, %vm6612
        %vm6869 = vmand %vm6357, %vm6613
        %vm6870 = vmand %vm6358, %vm6614
        %vm6871 = vmand %vm6359, %vm6615
        %vm6872 = vmand %vm6360, %vm6616
        %vm6873 = vmand %vm6361, %vm6617
        %vm6874 = vmand %vm6362, %vm6618
        %vm6875 = vmand %vm6363, %vm6619
        %vm6876 = vmand %vm6364, %vm6620
        %vm6877 = vmand %vm6365, %vm6621
        %vm6878 = vmand %vm6366, %vm6622
        %vm6879 = vmand %vm6367, %vm6623
        %vm6880 = vmand %vm6368, %vm6624
        %vm6881 = vmand %vm6369, %vm6625
        %vm6882 = vmand %vm6370, %vm6626
        %vm6883 = vmand %vm6371, %vm6627
        %vm6884 = vmand %vm6372, %vm6628
        %vm6885 = vmand %vm6373, %vm6629
        %vm6886 = vmand %vm6374, %vm6630
        %vm6887 = vmand %vm6375, %vm6631
        %vm6888 = vmand %vm6376, %vm6632
        %vm6889 = vmand %vm6377, %vm6633
        %vm6890 = vmand %vm6378, %vm6634
        %vm6891 = vmand %vm6379, %vm6635
        %vm6892 = vmand %vm6380, %vm6636
        %vm6893 = vmand %vm6381, %vm6637
        %vm6894 = vmand %vm6382, %vm6638
        %vm6895 = vmand %vm6383, %vm6639
        %vm6896 = vmand %vm6384, %vm6640
        %vm6897 = vmand %vm6385, %vm6641
        %vm6898 = vmand %vm6386, %vm6642
        %vm6899 = vmand %vm6387, %vm6643
        %vm6900 = vmand %vm6388, %vm6644
        %vm6901 = vmand %vm6389, %vm6645
        %vm6902 = vmand %vm6390, %vm6646
        %vm6903 = vmand %vm6391, %vm6647
        %vm6904 = vmand %vm6392, %vm6648
        %vm6905 = vmand %vm6393, %vm6649
        %vm6906 = vmand %vm6394, %vm6650
        %vm6907 = vmand %vm6395, %vm6651
        %vm6908 = vmand %vm6396, %vm6652
        %vm6909 = vmand %vm6397, %vm6653
        %vm6910 = vmand %vm6398, %vm6654
        %vm6911 = vmand %vm6399, %vm6655
        %vm6912 = vmand %vm6400, %vm6656
        %vm6913 = vmand %vm6401, %vm6657
        %vm6914 = vmand %vm6402, %vm6658
        %vm6915 = vmand %vm6403, %vm6659
        %vm6916 = vmand %vm6404, %vm6660
        %vm6917 = vmand %vm6405, %vm6661
        %vm6918 = vmand %vm6406, %vm6662
        %vm6919 = vmand %vm6407, %vm6663
        %vm6920 = vmand %vm6408, %vm6664
        %vm6921 = vmand %vm6409, %vm6665
        %vm6922 = vmand %vm6410, %vm6666
        %vm6923 = vmand %vm6411, %vm6667
        %vm6924 = vmand %vm6412, %vm6668
        %vm6925 = vmand %vm6413, %vm6669
        %vm6926 = vmand %vm6414, %vm6670
        %vm6927 = vmand %vm6415, %vm6671
        %vm6928 = vmand %vm6416, %vm6672
        %vm6929 = vmand %vm6417, %vm6673
        %vm6930 = vmand %vm6418, %vm6674
        %vm6931 = vmand %vm6419, %vm6675
        %vm6932 = vmand %vm6420, %vm6676
        %vm6933 = vmand %vm6421, %vm6677
        %vm6934 = vmand %vm6422, %vm6678
        %vm6935 = vmand %vm6423, %vm6679
        %vm6936 = vmand %vm6424, %vm6680
        %vm6937 = vmand %vm6425, %vm6681
        %vm6938 = vmand %vm6426, %vm6682
        %vm6939 = vmand %vm6427, %vm6683
        %vm6940 = vmand %vm6428, %vm6684
        %vm6941 = vmand %vm6429, %vm6685
        %vm6942 = vmand %vm6430, %vm6686
        %vm6943 = vmand %vm6431, %vm6687
        %vm6944 = vmand %vm6432, %vm6688
        %vm6945 = vmand %vm6433, %vm6689
        %vm6946 = vmand %vm6434, %vm6690
        %vm6947 = vmand %vm6435, %vm6691
        %vm6948 = vmand %vm6436, %vm6692
        %vm6949 = vmand %vm6437, %vm6693
        %vm6950 = vmand %vm6438, %vm6694
        %vm6951 = vmand %vm6439, %vm6695
        %vm6952 = vmand %vm6440, %vm6696
        %vm6953 = vmand %vm6441, %vm6697
        %vm6954 = vmand %vm6442, %vm6698
        %vm6955 = vmand %vm6443, %vm6699
        %vm6956 = vmand %vm6444, %vm6700
        %vm6957 = vmand %vm6445, %vm6701
        %vm6958 = vmand %vm6446, %vm6702
        %vm6959 = vmand %vm6447, %vm6703
        %vm6960 = vmand %vm6448, %vm6704
        %vm6961 = vmand %vm6449, %vm6705
        %vm6962 = vmand %vm6450, %vm6706
        %vm6963 = vmand %vm6451, %vm6707
        %vm6964 = vmand %vm6452, %vm6708
        %vm6965 = vmand %vm6453, %vm6709
        %vm6966 = vmand %vm6454, %vm6710
        %vm6967 = vmand %vm6455, %vm6711
        %vm6968 = vmand %vm6456, %vm6712
        %vm6969 = vmand %vm6457, %vm6713
        %vm6970 = vmand %vm6458, %vm6714
        %vm6971 = vmand %vm6459, %vm6715
        %vm6972 = vmand %vm6460, %vm6716
        %vm6973 = vmand %vm6461, %vm6717
        %vm6974 = vmand %vm6462, %vm6718
        %vm6975 = vmand %vm6463, %vm6719
        %vm6976 = vmand %vm6464, %vm6720
        %vm6977 = vmand %vm6465, %vm6721
        %vm6978 = vmand %vm6466, %vm6722
        %vm6979 = vmand %vm6467, %vm6723
        %vm6980 = vmand %vm6468, %vm6724
        %vm6981 = vmand %vm6469, %vm6725
        %vm6982 = vmand %vm6470, %vm6726
        %vm6983 = vmand %vm6471, %vm6727
        %vm6984 = vmand %vm6472, %vm6728
        %vm6985 = vmand %vm6473, %vm6729
        %vm6986 = vmand %vm6474, %vm6730
        %vm6987 = vmand %vm6475, %vm6731
        %vm6988 = vmand %vm6476, %vm6732
        %vm6989 = vmand %vm6477, %vm6733
        %vm6990 = vmand %vm6478, %vm6734
        %vm6991 = vmand %vm6479, %vm6735
        %vm6992 = vmand %vm6480, %vm6736
        %vm6993 = vmand %vm6481, %vm6737
        %vm6994 = vmand %vm6482, %vm6738
        %vm6995 = vmand %vm6483, %vm6739
        %vm6996 = vmand %vm6484, %vm6740
        %vm6997 = vmand %vm6485, %vm6741
        %vm6998 = vmand %vm6486, %vm6742
        %vm6999 = vmand %vm6487, %vm6743
        %vm7000 = vmand %vm6488, %vm6744
        %vm7001 = vmand %vm6489, %vm6745
        %vm7002 = vmand %vm6490, %vm6746
        %vm7003 = vmand %vm6491, %vm6747
        %vm7004 = vmand %vm6492, %vm6748
        %vm7005 = vmand %vm6493, %vm6749
        %vm7006 = vmand %vm6494, %vm6750
        %vm7007 = vmand %vm6495, %vm6751
        %vm7008 = vmand %vm6496, %vm6752
        %vm7009 = vmand %vm6497, %vm6753
        %vm7010 = vmand %vm6498, %vm6754
        %vm7011 = vmand %vm6499, %vm6755
        %vm7012 = vmand %vm6500, %vm6756
        %vm7013 = vmand %vm6501, %vm6757
        %vm7014 = vmand %vm6502, %vm6758
        %vm7015 = vmand %vm6503, %vm6759
        %vm7016 = vmand %vm6504, %vm6760
        %vm7017 = vmand %vm6505, %vm6761
        %vm7018 = vmand %vm6506, %vm6762
        %vm7019 = vmand %vm6507, %vm6763
        %vm7020 = vmand %vm6508, %vm6764
        %vm7021 = vmand %vm6509, %vm6765
        %vm7022 = vmand %vm6510, %vm6766
        %vm7023 = vmand %vm6511, %vm6767
        %vm7024 = vmand %vm6512, %vm6768
        %vm7025 = vmand %vm6513, %vm6769
        %vm7026 = vmand %vm6514, %vm6770
        %vm7027 = vmand %vm6515, %vm6771
        %vm7028 = vmand %vm6516, %vm6772
        %vm7029 = vmand %vm6517, %vm6773
        %vm7030 = vmand %vm6518, %vm6774
        %vm7031 = vmand %vm6519, %vm6775
        %vm7032 = vmand %vm6520, %vm6776
        %vm7033 = vmand %vm6521, %vm6777
        %vm7034 = vmand %vm6522, %vm6778
        %vm7035 = vmand %vm6523, %vm6779
        %vm7036 = vmand %vm6524, %vm6780
        %vm7037 = vmand %vm6525, %vm6781
        %vm7038 = vmand %vm6526, %vm6782
        %vm7039 = vmand %vm6527, %vm6783
        %vm7040 = vmand %vm6528, %vm6784
        %vm7041 = vmand %vm6529, %vm6785
        %vm7042 = vmand %vm6530, %vm6786
        %vm7043 = vmand %vm6531, %vm6787
        %vm7044 = vmand %vm6532, %vm6788
        %vm7045 = vmand %vm6533, %vm6789
        %vm7046 = vmand %vm6534, %vm6790
        %vm7047 = vmand %vm6535, %vm6791
        %vm7048 = vmand %vm6536, %vm6792
        %vm7049 = vmand %vm6537, %vm6793
        %vm7050 = vmand %vm6538, %vm6794
        %vm7051 = vmand %vm6539, %vm6795
        %vm7052 = vmand %vm6540, %vm6796
        %vm7053 = vmand %vm6541, %vm6797
        %vm7054 = vmand %vm6542, %vm6798
        %vm7055 = vmand %vm6543, %vm6799
        %vm7056 = vmand %vm6544, %vm6800
        %vm7057 = vmand %vm6545, %vm6801
        %vm7058 = vmand %vm6546, %vm6802
        %vm7059 = vmand %vm6547, %vm6803
        %vm7060 = vmand %vm6548, %vm6804
        %vm7061 = vmand %vm6549, %vm6805
        %vm7062 = vmand %vm6550, %vm6806
        %vm7063 = vmand %vm6551, %vm6807
        %vm7064 = vmand %vm6552, %vm6808
        %vm7065 = vmor %vm6041, %vm6809
        %vm7066 = vmor %vm6042, %vm6810
        %vm7067 = vmor %vm6043, %vm6811
        %vm7068 = vmor %vm6044, %vm6812
        %vm7069 = vmor %vm6045, %vm6813
        %vm7070 = vmor %vm6046, %vm6814
        %vm7071 = vmor %vm6047, %vm6815
        %vm7072 = vmor %vm6048, %vm6816
        %vm7073 = vmor %vm6049, %vm6817
        %vm7074 = vmor %vm6050, %vm6818
        %vm7075 = vmor %vm6051, %vm6819
        %vm7076 = vmor %vm6052, %vm6820
        %vm7077 = vmor %vm6053, %vm6821
        %vm7078 = vmor %vm6054, %vm6822
        %vm7079 = vmor %vm6055, %vm6823
        %vm7080 = vmor %vm6056, %vm6824
        %vm7081 = vmor %vm6057, %vm6825
        %vm7082 = vmor %vm6058, %vm6826
        %vm7083 = vmor %vm6059, %vm6827
        %vm7084 = vmor %vm6060, %vm6828
        %vm7085 = vmor %vm6061, %vm6829
        %vm7086 = vmor %vm6062, %vm6830
        %vm7087 = vmor %vm6063, %vm6831
        %vm7088 = vmor %vm6064, %vm6832
        %vm7089 = vmor %vm6065, %vm6833
        %vm7090 = vmor %vm6066, %vm6834
        %vm7091 = vmor %vm6067, %vm6835
        %vm7092 = vmor %vm6068, %vm6836
        %vm7093 = vmor %vm6069, %vm6837
        %vm7094 = vmor %vm6070, %vm6838
        %vm7095 = vmor %vm6071, %vm6839
        %vm7096 = vmor %vm6072, %vm6840
        %vm7097 = vmor %vm6073, %vm6841
        %vm7098 = vmor %vm6074, %vm6842
        %vm7099 = vmor %vm6075, %vm6843
        %vm7100 = vmor %vm6076, %vm6844
        %vm7101 = vmor %vm6077, %vm6845
        %vm7102 = vmor %vm6078, %vm6846
        %vm7103 = vmor %vm6079, %vm6847
        %vm7104 = vmor %vm6080, %vm6848
        %vm7105 = vmor %vm6081, %vm6849
        %vm7106 = vmor %vm6082, %vm6850
        %vm7107 = vmor %vm6083, %vm6851
        %vm7108 = vmor %vm6084, %vm6852
        %vm7109 = vmor %vm6085, %vm6853
        %vm7110 = vmor %vm6086, %vm6854
        %vm7111 = vmor %vm6087, %vm6855
        %vm7112 = vmor %vm6088, %vm6856
        %vm7113 = vmor %vm6089, %vm6857
        %vm7114 = vmor %vm6090, %vm6858
        %vm7115 = vmor %vm6091, %vm6859
        %vm7116 = vmor %vm6092, %vm6860
        %vm7117 = vmor %vm6093, %vm6861
        %vm7118 = vmor %vm6094, %vm6862
        %vm7119 = vmor %vm6095, %vm6863
        %vm7120 = vmor %vm6096, %vm6864
        %vm7121 = vmor %vm6097, %vm6865
        %vm7122 = vmor %vm6098, %vm6866
        %vm7123 = vmor %vm6099, %vm6867
        %vm7124 = vmor %vm6100, %vm6868
        %vm7125 = vmor %vm6101, %vm6869
        %vm7126 = vmor %vm6102, %vm6870
        %vm7127 = vmor %vm6103, %vm6871
        %vm7128 = vmor %vm6104, %vm6872
        %vm7129 = vmor %vm6105, %vm6873
        %vm7130 = vmor %vm6106, %vm6874
        %vm7131 = vmor %vm6107, %vm6875
        %vm7132 = vmor %vm6108, %vm6876
        %vm7133 = vmor %vm6109, %vm6877
        %vm7134 = vmor %vm6110, %vm6878
        %vm7135 = vmor %vm6111, %vm6879
        %vm7136 = vmor %vm6112, %vm6880
        %vm7137 = vmor %vm6113, %vm6881
        %vm7138 = vmor %vm6114, %vm6882
        %vm7139 = vmor %vm6115, %vm6883
        %vm7140 = vmor %vm6116, %vm6884
        %vm7141 = vmor %vm6117, %vm6885
        %vm7142 = vmor %vm6118, %vm6886
        %vm7143 = vmor %vm6119, %vm6887
        %vm7144 = vmor %vm6120, %vm6888
        %vm7145 = vmor %vm6121, %vm6889
        %vm7146 = vmor %vm6122, %vm6890
        %vm7147 = vmor %vm6123, %vm6891
        %vm7148 = vmor %vm6124, %vm6892
        %vm7149 = vmor %vm6125, %vm6893
        %vm7150 = vmor %vm6126, %vm6894
        %vm7151 = vmor %vm6127, %vm6895
        %vm7152 = vmor %vm6128, %vm6896
        %vm7153 = vmor %vm6129, %vm6897
        %vm7154 = vmor %vm6130, %vm6898
        %vm7155 = vmor %vm6131, %vm6899
        %vm7156 = vmor %vm6132, %vm6900
        %vm7157 = vmor %vm6133, %vm6901
        %vm7158 = vmor %vm6134, %vm6902
        %vm7159 = vmor %vm6135, %vm6903
        %vm7160 = vmor %vm6136, %vm6904
        %vm7161 = vmor %vm6137, %vm6905
        %vm7162 = vmor %vm6138, %vm6906
        %vm7163 = vmor %vm6139, %vm6907
        %vm7164 = vmor %vm6140, %vm6908
        %vm7165 = vmor %vm6141, %vm6909
        %vm7166 = vmor %vm6142, %vm6910
        %vm7167 = vmor %vm6143, %vm6911
        %vm7168 = vmor %vm6144, %vm6912
        %vm7169 = vmor %vm6145, %vm6913
        %vm7170 = vmor %vm6146, %vm6914
        %vm7171 = vmor %vm6147, %vm6915
        %vm7172 = vmor %vm6148, %vm6916
        %vm7173 = vmor %vm6149, %vm6917
        %vm7174 = vmor %vm6150, %vm6918
        %vm7175 = vmor %vm6151, %vm6919
        %vm7176 = vmor %vm6152, %vm6920
        %vm7177 = vmor %vm6153, %vm6921
        %vm7178 = vmor %vm6154, %vm6922
        %vm7179 = vmor %vm6155, %vm6923
        %vm7180 = vmor %vm6156, %vm6924
        %vm7181 = vmor %vm6157, %vm6925
        %vm7182 = vmor %vm6158, %vm6926
        %vm7183 = vmor %vm6159, %vm6927
        %vm7184 = vmor %vm6160, %vm6928
        %vm7185 = vmor %vm6161, %vm6929
        %vm7186 = vmor %vm6162, %vm6930
        %vm7187 = vmor %vm6163, %vm6931
        %vm7188 = vmor %vm6164, %vm6932
        %vm7189 = vmor %vm6165, %vm6933
        %vm7190 = vmor %vm6166, %vm6934
        %vm7191 = vmor %vm6167, %vm6935
        %vm7192 = vmor %vm6168, %vm6936
        %vm7193 = vmor %vm6169, %vm6937
        %vm7194 = vmor %vm6170, %vm6938
        %vm7195 = vmor %vm6171, %vm6939
        %vm7196 = vmor %vm6172, %vm6940
        %vm7197 = vmor %vm6173, %vm6941
        %vm7198 = vmor %vm6174, %vm6942
        %vm7199 = vmor %vm6175, %vm6943
        %vm7200 = vmor %vm6176, %vm6944
        %vm7201 = vmor %vm6177, %vm6945
        %vm7202 = vmor %vm6178, %vm6946
        %vm7203 = vmor %vm6179, %vm6947
        %vm7204 = vmor %vm6180, %vm6948
        %vm7205 = vmor %vm6181, %vm6949
        %vm7206 = vmor %vm6182, %vm6950
        %vm7207 = vmor %vm6183, %vm6951
        %vm7208 = vmor %vm6184, %vm6952
        %vm7209 = vmor %vm6185, %vm6953
        %vm7210 = vmor %vm6186, %vm6954
        %vm7211 = vmor %vm6187, %vm6955
        %vm7212 = vmor %vm6188, %vm6956
        %vm7213 = vmor %vm6189, %vm6957
        %vm7214 = vmor %vm6190, %vm6958
        %vm7215 = vmor %vm6191, %vm6959
        %vm7216 = vmor %vm6192, %vm6960
        %vm7217 = vmor %vm6193, %vm6961
        %vm7218 = vmor %vm6194, %vm6962
        %vm7219 = vmor %vm6195, %vm6963
        %vm7220 = vmor %vm6196, %vm6964
        %vm7221 = vmor %vm6197, %vm6965
        %vm7222 = vmor %vm6198, %vm6966
        %vm7223 = vmor %vm6199, %vm6967
        %vm7224 = vmor %vm6200, %vm6968
        %vm7225 = vmor %vm6201, %vm6969
        %vm7226 = vmor %vm6202, %vm6970
        %vm7227 = vmor %vm6203, %vm6971
        %vm7228 = vmor %vm6204, %vm6972
        %vm7229 = vmor %vm6205, %vm6973
        %vm7230 = vmor %vm6206, %vm6974
        %vm7231 = vmor %vm6207, %vm6975
        %vm7232 = vmor %vm6208, %vm6976
        %vm7233 = vmor %vm6209, %vm6977
        %vm7234 = vmor %vm6210, %vm6978
        %vm7235 = vmor %vm6211, %vm6979
        %vm7236 = vmor %vm6212, %vm6980
        %vm7237 = vmor %vm6213, %vm6981
        %vm7238 = vmor %vm6214, %vm6982
        %vm7239 = vmor %vm6215, %vm6983
        %vm7240 = vmor %vm6216, %vm6984
        %vm7241 = vmor %vm6217, %vm6985
        %vm7242 = vmor %vm6218, %vm6986
        %vm7243 = vmor %vm6219, %vm6987
        %vm7244 = vmor %vm6220, %vm6988
        %vm7245 = vmor %vm6221, %vm6989
        %vm7246 = vmor %vm6222, %vm6990
        %vm7247 = vmor %vm6223, %vm6991
        %vm7248 = vmor %vm6224, %vm6992
        %vm7249 = vmor %vm6225, %vm6993
        %vm7250 = vmor %vm6226, %vm6994
        %vm7251 = vmor %vm6227, %vm6995
        %vm7252 = vmor %vm6228, %vm6996
        %vm7253 = vmor %vm6229, %vm6997
        %vm7254 = vmor %vm6230, %vm6998
        %vm7255 = vmor %vm6231, %vm6999
        %vm7256 = vmor %vm6232, %vm7000
        %vm7257 = vmor %vm6233, %vm7001
        %vm7258 = vmor %vm6234, %vm7002
        %vm7259 = vmor %vm6235, %vm7003
        %vm7260 = vmor %vm6236, %vm7004
        %vm7261 = vmor %vm6237, %vm7005
        %vm7262 = vmor %vm6238, %vm7006
        %vm7263 = vmor %vm6239, %vm7007
        %vm7264 = vmor %vm6240, %vm7008
        %vm7265 = vmor %vm6241, %vm7009
        %vm7266 = vmor %vm6242, %vm7010
        %vm7267 = vmor %vm6243, %vm7011
        %vm7268 = vmor %vm6244, %vm7012
        %vm7269 = vmor %vm6245, %vm7013
        %vm7270 = vmor %vm6246, %vm7014
        %vm7271 = vmor %vm6247, %vm7015
        %vm7272 = vmor %vm6248, %vm7016
        %vm7273 = vmor %vm6249, %vm7017
        %vm7274 = vmor %vm6250, %vm7018
        %vm7275 = vmor %vm6251, %vm7019
        %vm7276 = vmor %vm6252, %vm7020
        %vm7277 = vmor %vm6253, %vm7021
        %vm7278 = vmor %vm6254, %vm7022
        %vm7279 = vmor %vm6255, %vm7023
        %vm7280 = vmor %vm6256, %vm7024
        %vm7281 = vmor %vm6257, %vm7025
        %vm7282 = vmor %vm6258, %vm7026
        %vm7283 = vmor %vm6259, %vm7027
        %vm7284 = vmor %vm6260, %vm7028
        %vm7285 = vmor %vm6261, %vm7029
        %vm7286 = vmor %vm6262, %vm7030
        %vm7287 = vmor %vm6263, %vm7031
        %vm7288 = vmor %vm6264, %vm7032
        %vm7289 = vmor %vm6265, %vm7033
        %vm7290 = vmor %vm6266, %vm7034
        %vm7291 = vmor %vm6267, %vm7035
        %vm7292 = vmor %vm6268, %vm7036
        %vm7293 = vmor %vm6269, %vm7037
        %vm7294 = vmor %vm6270, %vm7038
        %vm7295 = vmor %vm6271, %vm7039
        %vm7296 = vmor %vm6272, %vm7040
        %vm7297 = vmor %vm6273, %vm7041
        %vm7298 = vmor %vm6274, %vm7042
        %vm7299 = vmor %vm6275, %vm7043
        %vm7300 = vmor %vm6276, %vm7044
        %vm7301 = vmor %vm6277, %vm7045
        %vm7302 = vmor %vm6278, %vm7046
        %vm7303 = vmor %vm6279, %vm7047
        %vm7304 = vmor %vm6280, %vm7048
        %vm7305 = vmor %vm6281, %vm7049
        %vm7306 = vmor %vm6282, %vm7050
        %vm7307 = vmor %vm6283, %vm7051
        %vm7308 = vmor %vm6284, %vm7052
        %vm7309 = vmor %vm6285, %vm7053
        %vm7310 = vmor %vm6286, %vm7054
        %vm7311 = vmor %vm6287, %vm7055
        %vm7312 = vmor %vm6288, %vm7056
        %vm7313 = vmor %vm6289, %vm7057
        %vm7314 = vmor %vm6290, %vm7058
        %vm7315 = vmor %vm6291, %vm7059
        %vm7316 = vmor %vm6292, %vm7060
        %vm7317 = vmor %vm6293, %vm7061
        %vm7318 = vmor %vm6294, %vm7062
        %vm7319 = vmor %vm6295, %vm7063
        %vm7320 = vmor %vm6296, %vm7064
        %v7321 = vsel %vm7065, 1.0, 0.0
        %v7322 = vsel %vm7066, 1.0, 0.0
        %v7323 = vsel %vm7067, 1.0, 0.0
        %v7324 = vsel %vm7068, 1.0, 0.0
        %v7325 = vsel %vm7069, 1.0, 0.0
        %v7326 = vsel %vm7070, 1.0, 0.0
        %v7327 = vsel %vm7071, 1.0, 0.0
        %v7328 = vsel %vm7072, 1.0, 0.0
        %v7329 = vsel %vm7073, 1.0, 0.0
        %v7330 = vsel %vm7074, 1.0, 0.0
        %v7331 = vsel %vm7075, 1.0, 0.0
        %v7332 = vsel %vm7076, 1.0, 0.0
        %v7333 = vsel %vm7077, 1.0, 0.0
        %v7334 = vsel %vm7078, 1.0, 0.0
        %v7335 = vsel %vm7079, 1.0, 0.0
        %v7336 = vsel %vm7080, 1.0, 0.0
        %v7337 = vsel %vm7081, 1.0, 0.0
        %v7338 = vsel %vm7082, 1.0, 0.0
        %v7339 = vsel %vm7083, 1.0, 0.0
        %v7340 = vsel %vm7084, 1.0, 0.0
        %v7341 = vsel %vm7085, 1.0, 0.0
        %v7342 = vsel %vm7086, 1.0, 0.0
        %v7343 = vsel %vm7087, 1.0, 0.0
        %v7344 = vsel %vm7088, 1.0, 0.0
        %v7345 = vsel %vm7089, 1.0, 0.0
        %v7346 = vsel %vm7090, 1.0, 0.0
        %v7347 = vsel %vm7091, 1.0, 0.0
        %v7348 = vsel %vm7092, 1.0, 0.0
        %v7349 = vsel %vm7093, 1.0, 0.0
        %v7350 = vsel %vm7094, 1.0, 0.0
        %v7351 = vsel %vm7095, 1.0, 0.0
        %v7352 = vsel %vm7096, 1.0, 0.0
        %v7353 = vsel %vm7097, 1.0, 0.0
        %v7354 = vsel %vm7098, 1.0, 0.0
        %v7355 = vsel %vm7099, 1.0, 0.0
        %v7356 = vsel %vm7100, 1.0, 0.0
        %v7357 = vsel %vm7101, 1.0, 0.0
        %v7358 = vsel %vm7102, 1.0, 0.0
        %v7359 = vsel %vm7103, 1.0, 0.0
        %v7360 = vsel %vm7104, 1.0, 0.0
        %v7361 = vsel %vm7105, 1.0, 0.0
        %v7362 = vsel %vm7106, 1.0, 0.0
        %v7363 = vsel %vm7107, 1.0, 0.0
        %v7364 = vsel %vm7108, 1.0, 0.0
        %v7365 = vsel %vm7109, 1.0, 0.0
        %v7366 = vsel %vm7110, 1.0, 0.0
        %v7367 = vsel %vm7111, 1.0, 0.0
        %v7368 = vsel %vm7112, 1.0, 0.0
        %v7369 = vsel %vm7113, 1.0, 0.0
        %v7370 = vsel %vm7114, 1.0, 0.0
        %v7371 = vsel %vm7115, 1.0, 0.0
        %v7372 = vsel %vm7116, 1.0, 0.0
        %v7373 = vsel %vm7117, 1.0, 0.0
        %v7374 = vsel %vm7118, 1.0, 0.0
        %v7375 = vsel %vm7119, 1.0, 0.0
        %v7376 = vsel %vm7120, 1.0, 0.0
        %v7377 = vsel %vm7121, 1.0, 0.0
        %v7378 = vsel %vm7122, 1.0, 0.0
        %v7379 = vsel %vm7123, 1.0, 0.0
        %v7380 = vsel %vm7124, 1.0, 0.0
        %v7381 = vsel %vm7125, 1.0, 0.0
        %v7382 = vsel %vm7126, 1.0, 0.0
        %v7383 = vsel %vm7127, 1.0, 0.0
        %v7384 = vsel %vm7128, 1.0, 0.0
        %v7385 = vsel %vm7129, 1.0, 0.0
        %v7386 = vsel %vm7130, 1.0, 0.0
        %v7387 = vsel %vm7131, 1.0, 0.0
        %v7388 = vsel %vm7132, 1.0, 0.0
        %v7389 = vsel %vm7133, 1.0, 0.0
        %v7390 = vsel %vm7134, 1.0, 0.0
        %v7391 = vsel %vm7135, 1.0, 0.0
        %v7392 = vsel %vm7136, 1.0, 0.0
        %v7393 = vsel %vm7137, 1.0, 0.0
        %v7394 = vsel %vm7138, 1.0, 0.0
        %v7395 = vsel %vm7139, 1.0, 0.0
        %v7396 = vsel %vm7140, 1.0, 0.0
        %v7397 = vsel %vm7141, 1.0, 0.0
        %v7398 = vsel %vm7142, 1.0, 0.0
        %v7399 = vsel %vm7143, 1.0, 0.0
        %v7400 = vsel %vm7144, 1.0, 0.0
        %v7401 = vsel %vm7145, 1.0, 0.0
        %v7402 = vsel %vm7146, 1.0, 0.0
        %v7403 = vsel %vm7147, 1.0, 0.0
        %v7404 = vsel %vm7148, 1.0, 0.0
        %v7405 = vsel %vm7149, 1.0, 0.0
        %v7406 = vsel %vm7150, 1.0, 0.0
        %v7407 = vsel %vm7151, 1.0, 0.0
        %v7408 = vsel %vm7152, 1.0, 0.0
        %v7409 = vsel %vm7153, 1.0, 0.0
        %v7410 = vsel %vm7154, 1.0, 0.0
        %v7411 = vsel %vm7155, 1.0, 0.0
        %v7412 = vsel %vm7156, 1.0, 0.0
        %v7413 = vsel %vm7157, 1.0, 0.0
        %v7414 = vsel %vm7158, 1.0, 0.0
        %v7415 = vsel %vm7159, 1.0, 0.0
        %v7416 = vsel %vm7160, 1.0, 0.0
        %v7417 = vsel %vm7161, 1.0, 0.0
        %v7418 = vsel %vm7162, 1.0, 0.0
        %v7419 = vsel %vm7163, 1.0, 0.0
        %v7420 = vsel %vm7164, 1.0, 0.0
        %v7421 = vsel %vm7165, 1.0, 0.0
        %v7422 = vsel %vm7166, 1.0, 0.0
        %v7423 = vsel %vm7167, 1.0, 0.0
        %v7424 = vsel %vm7168, 1.0, 0.0
        %v7425 = vsel %vm7169, 1.0, 0.0
        %v7426 = vsel %vm7170, 1.0, 0.0
        %v7427 = vsel %vm7171, 1.0, 0.0
        %v7428 = vsel %vm7172, 1.0, 0.0
        %v7429 = vsel %vm7173, 1.0, 0.0
        %v7430 = vsel %vm7174, 1.0, 0.0
        %v7431 = vsel %vm7175, 1.0, 0.0
        %v7432 = vsel %vm7176, 1.0, 0.0
        %v7433 = vsel %vm7177, 1.0, 0.0
        %v7434 = vsel %vm7178, 1.0, 0.0
        %v7435 = vsel %vm7179, 1.0, 0.0
        %v7436 = vsel %vm7180, 1.0, 0.0
        %v7437 = vsel %vm7181, 1.0, 0.0
        %v7438 = vsel %vm7182, 1.0, 0.0
        %v7439 = vsel %vm7183, 1.0, 0.0
        %v7440 = vsel %vm7184, 1.0, 0.0
        %v7441 = vsel %vm7185, 1.0, 0.0
        %v7442 = vsel %vm7186, 1.0, 0.0
        %v7443 = vsel %vm7187, 1.0, 0.0
        %v7444 = vsel %vm7188, 1.0, 0.0
        %v7445 = vsel %vm7189, 1.0, 0.0
        %v7446 = vsel %vm7190, 1.0, 0.0
        %v7447 = vsel %vm7191, 1.0, 0.0
        %v7448 = vsel %vm7192, 1.0, 0.0
        %v7449 = vsel %vm7193, 1.0, 0.0
        %v7450 = vsel %vm7194, 1.0, 0.0
        %v7451 = vsel %vm7195, 1.0, 0.0
        %v7452 = vsel %vm7196, 1.0, 0.0
        %v7453 = vsel %vm7197, 1.0, 0.0
        %v7454 = vsel %vm7198, 1.0, 0.0
        %v7455 = vsel %vm7199, 1.0, 0.0
        %v7456 = vsel %vm7200, 1.0, 0.0
        %v7457 = vsel %vm7201, 1.0, 0.0
        %v7458 = vsel %vm7202, 1.0, 0.0
        %v7459 = vsel %vm7203, 1.0, 0.0
        %v7460 = vsel %vm7204, 1.0, 0.0
        %v7461 = vsel %vm7205, 1.0, 0.0
        %v7462 = vsel %vm7206, 1.0, 0.0
        %v7463 = vsel %vm7207, 1.0, 0.0
        %v7464 = vsel %vm7208, 1.0, 0.0
        %v7465 = vsel %vm7209, 1.0, 0.0
        %v7466 = vsel %vm7210, 1.0, 0.0
        %v7467 = vsel %vm7211, 1.0, 0.0
        %v7468 = vsel %vm7212, 1.0, 0.0
        %v7469 = vsel %vm7213, 1.0, 0.0
        %v7470 = vsel %vm7214, 1.0, 0.0
        %v7471 = vsel %vm7215, 1.0, 0.0
        %v7472 = vsel %vm7216, 1.0, 0.0
        %v7473 = vsel %vm7217, 1.0, 0.0
        %v7474 = vsel %vm7218, 1.0, 0.0
        %v7475 = vsel %vm7219, 1.0, 0.0
        %v7476 = vsel %vm7220, 1.0, 0.0
        %v7477 = vsel %vm7221, 1.0, 0.0
        %v7478 = vsel %vm7222, 1.0, 0.0
        %v7479 = vsel %vm7223, 1.0, 0.0
        %v7480 = vsel %vm7224, 1.0, 0.0
        %v7481 = vsel %vm7225, 1.0, 0.0
        %v7482 = vsel %vm7226, 1.0, 0.0
        %v7483 = vsel %vm7227, 1.0, 0.0
        %v7484 = vsel %vm7228, 1.0, 0.0
        %v7485 = vsel %vm7229, 1.0, 0.0
        %v7486 = vsel %vm7230, 1.0, 0.0
        %v7487 = vsel %vm7231, 1.0, 0.0
        %v7488 = vsel %vm7232, 1.0, 0.0
        %v7489 = vsel %vm7233, 1.0, 0.0
        %v7490 = vsel %vm7234, 1.0, 0.0
        %v7491 = vsel %vm7235, 1.0, 0.0
        %v7492 = vsel %vm7236, 1.0, 0.0
        %v7493 = vsel %vm7237, 1.0, 0.0
        %v7494 = vsel %vm7238, 1.0, 0.0
        %v7495 = vsel %vm7239, 1.0, 0.0
        %v7496 = vsel %vm7240, 1.0, 0.0
        %v7497 = vsel %vm7241, 1.0, 0.0
        %v7498 = vsel %vm7242, 1.0, 0.0
        %v7499 = vsel %vm7243, 1.0, 0.0
        %v7500 = vsel %vm7244, 1.0, 0.0
        %v7501 = vsel %vm7245, 1.0, 0.0
        %v7502 = vsel %vm7246, 1.0, 0.0
        %v7503 = vsel %vm7247, 1.0, 0.0
        %v7504 = vsel %vm7248, 1.0, 0.0
        %v7505 = vsel %vm7249, 1.0, 0.0
        %v7506 = vsel %vm7250, 1.0, 0.0
        %v7507 = vsel %vm7251, 1.0, 0.0
        %v7508 = vsel %vm7252, 1.0, 0.0
        %v7509 = vsel %vm7253, 1.0, 0.0
        %v7510 = vsel %vm7254, 1.0, 0.0
        %v7511 = vsel %vm7255, 1.0, 0.0
        %v7512 = vsel %vm7256, 1.0, 0.0
        %v7513 = vsel %vm7257, 1.0, 0.0
        %v7514 = vsel %vm7258, 1.0, 0.0
        %v7515 = vsel %vm7259, 1.0, 0.0
        %v7516 = vsel %vm7260, 1.0, 0.0
        %v7517 = vsel %vm7261, 1.0, 0.0
        %v7518 = vsel %vm7262, 1.0, 0.0
        %v7519 = vsel %vm7263, 1.0, 0.0
        %v7520 = vsel %vm7264, 1.0, 0.0
        %v7521 = vsel %vm7265, 1.0, 0.0
        %v7522 = vsel %vm7266, 1.0, 0.0
        %v7523 = vsel %vm7267, 1.0, 0.0
        %v7524 = vsel %vm7268, 1.0, 0.0
        %v7525 = vsel %vm7269, 1.0, 0.0
        %v7526 = vsel %vm7270, 1.0, 0.0
        %v7527 = vsel %vm7271, 1.0, 0.0
        %v7528 = vsel %vm7272, 1.0, 0.0
        %v7529 = vsel %vm7273, 1.0, 0.0
        %v7530 = vsel %vm7274, 1.0, 0.0
        %v7531 = vsel %vm7275, 1.0, 0.0
        %v7532 = vsel %vm7276, 1.0, 0.0
        %v7533 = vsel %vm7277, 1.0, 0.0
        %v7534 = vsel %vm7278, 1.0, 0.0
        %v7535 = vsel %vm7279, 1.0, 0.0
        %v7536 = vsel %vm7280, 1.0, 0.0
        %v7537 = vsel %vm7281, 1.0, 0.0
        %v7538 = vsel %vm7282, 1.0, 0.0
        %v7539 = vsel %vm7283, 1.0, 0.0
        %v7540 = vsel %vm7284, 1.0, 0.0
        %v7541 = vsel %vm7285, 1.0, 0.0
        %v7542 = vsel %vm7286, 1.0, 0.0
        %v7543 = vsel %vm7287, 1.0, 0.0
        %v7544 = vsel %vm7288, 1.0, 0.0
        %v7545 = vsel %vm7289, 1.0, 0.0
        %v7546 = vsel %vm7290, 1.0, 0.0
        %v7547 = vsel %vm7291, 1.0, 0.0
        %v7548 = vsel %vm7292, 1.0, 0.0
        %v7549 = vsel %vm7293, 1.0, 0.0
        %v7550 = vsel %vm7294, 1.0, 0.0
        %v7551 = vsel %vm7295, 1.0, 0.0
        %v7552 = vsel %vm7296, 1.0, 0.0
        %v7553 = vsel %vm7297, 1.0, 0.0
        %v7554 = vsel %vm7298, 1.0, 0.0
        %v7555 = vsel %vm7299, 1.0, 0.0
        %v7556 = vsel %vm7300, 1.0, 0.0
        %v7557 = vsel %vm7301, 1.0, 0.0
        %v7558 = vsel %vm7302, 1.0, 0.0
        %v7559 = vsel %vm7303, 1.0, 0.0
        %v7560 = vsel %vm7304, 1.0, 0.0
        %v7561 = vsel %vm7305, 1.0, 0.0
        %v7562 = vsel %vm7306, 1.0, 0.0
        %v7563 = vsel %vm7307, 1.0, 0.0
        %v7564 = vsel %vm7308, 1.0, 0.0
        %v7565 = vsel %vm7309, 1.0, 0.0
        %v7566 = vsel %vm7310, 1.0, 0.0
        %v7567 = vsel %vm7311, 1.0, 0.0
        %v7568 = vsel %vm7312, 1.0, 0.0
        %v7569 = vsel %vm7313, 1.0, 0.0
        %v7570 = vsel %vm7314, 1.0, 0.0
        %v7571 = vsel %vm7315, 1.0, 0.0
        %v7572 = vsel %vm7316, 1.0, 0.0
        %v7573 = vsel %vm7317, 1.0, 0.0
        %v7574 = vsel %vm7318, 1.0, 0.0
        %v7575 = vsel %vm7319, 1.0, 0.0
        %v7576 = vsel %vm7320, 1.0, 0.0
        %v7577 = vld [vmem:[#allocation4] sm:$0xf]
        %v7578 = vadd.f32 %v7321, %v7325
        %v7579 = vadd.f32 %v7578, %v7329
        %v7580 = vadd.f32 %v7579, %v7333
        %v7581 = vadd.f32 %v7580, %v7337
        %v7582 = vadd.f32 %v7581, %v7341
        %v7583 = vadd.f32 %v7582, %v7345
        %v7584 = vadd.f32 %v7583, %v7349
        %v7585 = vadd.f32 %v7584, %v7353
        %v7586 = vadd.f32 %v7585, %v7357
        %v7587 = vadd.f32 %v7586, %v7361
        %v7588 = vadd.f32 %v7587, %v7365
        %v7589 = vadd.f32 %v7588, %v7369
        %v7590 = vadd.f32 %v7589, %v7373
        %v7591 = vadd.f32 %v7590, %v7377
        %v7592 = vadd.f32 %v7591, %v7381
        %v7593 = vadd.f32 %v7592, %v7385
        %v7594 = vadd.f32 %v7593, %v7389
        %v7595 = vadd.f32 %v7594, %v7393
        %v7596 = vadd.f32 %v7595, %v7397
        %v7597 = vadd.f32 %v7596, %v7401
        %v7598 = vadd.f32 %v7597, %v7405
        %v7599 = vadd.f32 %v7598, %v7409
        %v7600 = vadd.f32 %v7599, %v7413
        %v7601 = vadd.f32 %v7600, %v7417
        %v7602 = vadd.f32 %v7601, %v7421
        %v7603 = vadd.f32 %v7602, %v7425
        %v7604 = vadd.f32 %v7603, %v7429
        %v7605 = vadd.f32 %v7604, %v7433
        %v7606 = vadd.f32 %v7605, %v7437
        %v7607 = vadd.f32 %v7606, %v7441
        %v7608 = vadd.f32 %v7607, %v7445
        %v7609 = vadd.f32 %v7608, %v7449
        %v7610 = vadd.f32 %v7609, %v7453
        %v7611 = vadd.f32 %v7610, %v7457
        %v7612 = vadd.f32 %v7611, %v7461
        %v7613 = vadd.f32 %v7612, %v7465
        %v7614 = vadd.f32 %v7613, %v7469
        %v7615 = vadd.f32 %v7614, %v7473
        %v7616 = vadd.f32 %v7615, %v7477
        %v7617 = vadd.f32 %v7616, %v7481
        %v7618 = vadd.f32 %v7617, %v7485
        %v7619 = vadd.f32 %v7618, %v7489
        %v7620 = vadd.f32 %v7619, %v7493
        %v7621 = vadd.f32 %v7620, %v7497
        %v7622 = vadd.f32 %v7621, %v7501
        %v7623 = vadd.f32 %v7622, %v7505
        %v7624 = vadd.f32 %v7623, %v7509
        %v7625 = vadd.f32 %v7624, %v7513
        %v7626 = vadd.f32 %v7625, %v7517
        %v7627 = vadd.f32 %v7626, %v7521
        %v7628 = vadd.f32 %v7627, %v7525
        %v7629 = vadd.f32 %v7628, %v7529
        %v7630 = vadd.f32 %v7629, %v7533
        %v7631 = vadd.f32 %v7630, %v7537
        %v7632 = vadd.f32 %v7631, %v7541
        %v7633 = vadd.f32 %v7632, %v7545
        %v7634 = vadd.f32 %v7633, %v7549
        %v7635 = vadd.f32 %v7634, %v7553
        %v7636 = vadd.f32 %v7635, %v7557
        %v7637 = vadd.f32 %v7636, %v7561
        %v7638 = vadd.f32 %v7637, %v7565
        %v7639 = vadd.f32 %v7638, %v7569
        %v7640 = vadd.f32 %v7639, %v7573
        %v7641 = vrot.slane %v7640, 4
        %v7642 = vadd.f32 %v7640, %v7641
        %v7643 = vrot.slane %v7642, 2
        %v7644 = vadd.f32 %v7642, %v7643
        %v7645 = vrot.slane %v7644, 1
        %v7646 = vadd.f32 %v7644, %v7645
        %v7647 = vadd.f32 %v7322, %v7326
        %v7648 = vadd.f32 %v7647, %v7330
        %v7649 = vadd.f32 %v7648, %v7334
        %v7650 = vadd.f32 %v7649, %v7338
        %v7651 = vadd.f32 %v7650, %v7342
        %v7652 = vadd.f32 %v7651, %v7346
        %v7653 = vadd.f32 %v7652, %v7350
        %v7654 = vadd.f32 %v7653, %v7354
        %v7655 = vadd.f32 %v7654, %v7358
        %v7656 = vadd.f32 %v7655, %v7362
        %v7657 = vadd.f32 %v7656, %v7366
        %v7658 = vadd.f32 %v7657, %v7370
        %v7659 = vadd.f32 %v7658, %v7374
        %v7660 = vadd.f32 %v7659, %v7378
        %v7661 = vadd.f32 %v7660, %v7382
        %v7662 = vadd.f32 %v7661, %v7386
        %v7663 = vadd.f32 %v7662, %v7390
        %v7664 = vadd.f32 %v7663, %v7394
        %v7665 = vadd.f32 %v7664, %v7398
        %v7666 = vadd.f32 %v7665, %v7402
        %v7667 = vadd.f32 %v7666, %v7406
        %v7668 = vadd.f32 %v7667, %v7410
        %v7669 = vadd.f32 %v7668, %v7414
        %v7670 = vadd.f32 %v7669, %v7418
        %v7671 = vadd.f32 %v7670, %v7422
        %v7672 = vadd.f32 %v7671, %v7426
        %v7673 = vadd.f32 %v7672, %v7430
        %v7674 = vadd.f32 %v7673, %v7434
        %v7675 = vadd.f32 %v7674, %v7438
        %v7676 = vadd.f32 %v7675, %v7442
        %v7677 = vadd.f32 %v7676, %v7446
        %v7678 = vadd.f32 %v7677, %v7450
        %v7679 = vadd.f32 %v7678, %v7454
        %v7680 = vadd.f32 %v7679, %v7458
        %v7681 = vadd.f32 %v7680, %v7462
        %v7682 = vadd.f32 %v7681, %v7466
        %v7683 = vadd.f32 %v7682, %v7470
        %v7684 = vadd.f32 %v7683, %v7474
        %v7685 = vadd.f32 %v7684, %v7478
        %v7686 = vadd.f32 %v7685, %v7482
        %v7687 = vadd.f32 %v7686, %v7486
        %v7688 = vadd.f32 %v7687, %v7490
        %v7689 = vadd.f32 %v7688, %v7494
        %v7690 = vadd.f32 %v7689, %v7498
        %v7691 = vadd.f32 %v7690, %v7502
        %v7692 = vadd.f32 %v7691, %v7506
        %v7693 = vadd.f32 %v7692, %v7510
        %v7694 = vadd.f32 %v7693, %v7514
        %v7695 = vadd.f32 %v7694, %v7518
        %v7696 = vadd.f32 %v7695, %v7522
        %v7697 = vadd.f32 %v7696, %v7526
        %v7698 = vadd.f32 %v7697, %v7530
        %v7699 = vadd.f32 %v7698, %v7534
        %v7700 = vadd.f32 %v7699, %v7538
        %v7701 = vadd.f32 %v7700, %v7542
        %v7702 = vadd.f32 %v7701, %v7546
        %v7703 = vadd.f32 %v7702, %v7550
        %v7704 = vadd.f32 %v7703, %v7554
        %v7705 = vadd.f32 %v7704, %v7558
        %v7706 = vadd.f32 %v7705, %v7562
        %v7707 = vadd.f32 %v7706, %v7566
        %v7708 = vadd.f32 %v7707, %v7570
        %v7709 = vadd.f32 %v7708, %v7574
        %v7710 = vrot.slane %v7709, 4
        %v7711 = vadd.f32 %v7709, %v7710
        %v7712 = vrot.slane %v7711, 2
        %v7713 = vadd.f32 %v7711, %v7712
        %v7714 = vrot.slane %v7713, 1
        %v7715 = vadd.f32 %v7713, %v7714
        %v7716 = vadd.f32 %v7323, %v7327
        %v7717 = vadd.f32 %v7716, %v7331
        %v7718 = vadd.f32 %v7717, %v7335
        %v7719 = vadd.f32 %v7718, %v7339
        %v7720 = vadd.f32 %v7719, %v7343
        %v7721 = vadd.f32 %v7720, %v7347
        %v7722 = vadd.f32 %v7721, %v7351
        %v7723 = vadd.f32 %v7722, %v7355
        %v7724 = vadd.f32 %v7723, %v7359
        %v7725 = vadd.f32 %v7724, %v7363
        %v7726 = vadd.f32 %v7725, %v7367
        %v7727 = vadd.f32 %v7726, %v7371
        %v7728 = vadd.f32 %v7727, %v7375
        %v7729 = vadd.f32 %v7728, %v7379
        %v7730 = vadd.f32 %v7729, %v7383
        %v7731 = vadd.f32 %v7730, %v7387
        %v7732 = vadd.f32 %v7731, %v7391
        %v7733 = vadd.f32 %v7732, %v7395
        %v7734 = vadd.f32 %v7733, %v7399
        %v7735 = vadd.f32 %v7734, %v7403
        %v7736 = vadd.f32 %v7735, %v7407
        %v7737 = vadd.f32 %v7736, %v7411
        %v7738 = vadd.f32 %v7737, %v7415
        %v7739 = vadd.f32 %v7738, %v7419
        %v7740 = vadd.f32 %v7739, %v7423
        %v7741 = vadd.f32 %v7740, %v7427
        %v7742 = vadd.f32 %v7741, %v7431
        %v7743 = vadd.f32 %v7742, %v7435
        %v7744 = vadd.f32 %v7743, %v7439
        %v7745 = vadd.f32 %v7744, %v7443
        %v7746 = vadd.f32 %v7745, %v7447
        %v7747 = vadd.f32 %v7746, %v7451
        %v7748 = vadd.f32 %v7747, %v7455
        %v7749 = vadd.f32 %v7748, %v7459
        %v7750 = vadd.f32 %v7749, %v7463
        %v7751 = vadd.f32 %v7750, %v7467
        %v7752 = vadd.f32 %v7751, %v7471
        %v7753 = vadd.f32 %v7752, %v7475
        %v7754 = vadd.f32 %v7753, %v7479
        %v7755 = vadd.f32 %v7754, %v7483
        %v7756 = vadd.f32 %v7755, %v7487
        %v7757 = vadd.f32 %v7756, %v7491
        %v7758 = vadd.f32 %v7757, %v7495
        %v7759 = vadd.f32 %v7758, %v7499
        %v7760 = vadd.f32 %v7759, %v7503
        %v7761 = vadd.f32 %v7760, %v7507
        %v7762 = vadd.f32 %v7761, %v7511
        %v7763 = vadd.f32 %v7762, %v7515
        %v7764 = vadd.f32 %v7763, %v7519
        %v7765 = vadd.f32 %v7764, %v7523
        %v7766 = vadd.f32 %v7765, %v7527
        %v7767 = vadd.f32 %v7766, %v7531
        %v7768 = vadd.f32 %v7767, %v7535
        %v7769 = vadd.f32 %v7768, %v7539
        %v7770 = vadd.f32 %v7769, %v7543
        %v7771 = vadd.f32 %v7770, %v7547
        %v7772 = vadd.f32 %v7771, %v7551
        %v7773 = vadd.f32 %v7772, %v7555
        %v7774 = vadd.f32 %v7773, %v7559
        %v7775 = vadd.f32 %v7774, %v7563
        %v7776 = vadd.f32 %v7775, %v7567
        %v7777 = vadd.f32 %v7776, %v7571
        %v7778 = vadd.f32 %v7777, %v7575
        %v7779 = vrot.slane %v7778, 4
        %v7780 = vadd.f32 %v7778, %v7779
        %v7781 = vrot.slane %v7780, 2
        %v7782 = vadd.f32 %v7780, %v7781
        %v7783 = vrot.slane %v7782, 1
        %v7784 = vadd.f32 %v7782, %v7783
        %v7785 = vadd.f32 %v7324, %v7328
        %v7786 = vadd.f32 %v7785, %v7332
        %v7787 = vadd.f32 %v7786, %v7336
        %v7788 = vadd.f32 %v7787, %v7340
        %v7789 = vadd.f32 %v7788, %v7344
        %v7790 = vadd.f32 %v7789, %v7348
        %v7791 = vadd.f32 %v7790, %v7352
        %v7792 = vadd.f32 %v7791, %v7356
        %v7793 = vadd.f32 %v7792, %v7360
        %v7794 = vadd.f32 %v7793, %v7364
        %v7795 = vadd.f32 %v7794, %v7368
        %v7796 = vadd.f32 %v7795, %v7372
        %v7797 = vadd.f32 %v7796, %v7376
        %v7798 = vadd.f32 %v7797, %v7380
        %v7799 = vadd.f32 %v7798, %v7384
        %v7800 = vadd.f32 %v7799, %v7388
        %v7801 = vadd.f32 %v7800, %v7392
        %v7802 = vadd.f32 %v7801, %v7396
        %v7803 = vadd.f32 %v7802, %v7400
        %v7804 = vadd.f32 %v7803, %v7404
        %v7805 = vadd.f32 %v7804, %v7408
        %v7806 = vadd.f32 %v7805, %v7412
        %v7807 = vadd.f32 %v7806, %v7416
        %v7808 = vadd.f32 %v7807, %v7420
        %v7809 = vadd.f32 %v7808, %v7424
        %v7810 = vadd.f32 %v7809, %v7428
        %v7811 = vadd.f32 %v7810, %v7432
        %v7812 = vadd.f32 %v7811, %v7436
        %v7813 = vadd.f32 %v7812, %v7440
        %v7814 = vadd.f32 %v7813, %v7444
        %v7815 = vadd.f32 %v7814, %v7448
        %v7816 = vadd.f32 %v7815, %v7452
        %v7817 = vadd.f32 %v7816, %v7456
        %v7818 = vadd.f32 %v7817, %v7460
        %v7819 = vadd.f32 %v7818, %v7464
        %v7820 = vadd.f32 %v7819, %v7468
        %v7821 = vadd.f32 %v7820, %v7472
        %v7822 = vadd.f32 %v7821, %v7476
        %v7823 = vadd.f32 %v7822, %v7480
        %v7824 = vadd.f32 %v7823, %v7484
        %v7825 = vadd.f32 %v7824, %v7488
        %v7826 = vadd.f32 %v7825, %v7492
        %v7827 = vadd.f32 %v7826, %v7496
        %v7828 = vadd.f32 %v7827, %v7500
        %v7829 = vadd.f32 %v7828, %v7504
        %v7830 = vadd.f32 %v7829, %v7508
        %v7831 = vadd.f32 %v7830, %v7512
        %v7832 = vadd.f32 %v7831, %v7516
        %v7833 = vadd.f32 %v7832, %v7520
        %v7834 = vadd.f32 %v7833, %v7524
        %v7835 = vadd.f32 %v7834, %v7528
        %v7836 = vadd.f32 %v7835, %v7532
        %v7837 = vadd.f32 %v7836, %v7536
        %v7838 = vadd.f32 %v7837, %v7540
        %v7839 = vadd.f32 %v7838, %v7544
        %v7840 = vadd.f32 %v7839, %v7548
        %v7841 = vadd.f32 %v7840, %v7552
        %v7842 = vadd.f32 %v7841, %v7556
        %v7843 = vadd.f32 %v7842, %v7560
        %v7844 = vadd.f32 %v7843, %v7564
        %v7845 = vadd.f32 %v7844, %v7568
        %v7846 = vadd.f32 %v7845, %v7572
        %v7847 = vadd.f32 %v7846, %v7576
        %v7848 = vrot.slane %v7847, 4
        %v7849 = vadd.f32 %v7847, %v7848
        %v7850 = vrot.slane %v7849, 2
        %v7851 = vadd.f32 %v7849, %v7850
        %v7852 = vrot.slane %v7851, 1
        %v7853 = vadd.f32 %v7851, %v7852
        %v7858 = vcombine.low %v7646, %v7715
        %v7859 = vcombine.low %v7784, %v7853
        %v7861 = vunpack.c.l.s4 1966171168
        %v7862 = vunpack.c.0.s8 %v7861
        %v7863 = vlaneseq
        %v7864 = vshrl.u32 %v7863, 7
        %v7865 = vsub.s32 %v7862, %v7864
        %v7866 = vrot.slane %v7858, %v7865
        %v7868 = vunpack.c.l.s4 1966171168
        %v7869 = vunpack.c.0.s8 %v7868
        %v7870 = vlaneseq
        %v7871 = vshrl.u32 %v7870, 7
        %v7872 = vsub.s32 %v7869, %v7871
        %v7873 = vrot.slane %v7859, %v7872
        %v7874 = vcombine.low %v7866, %v7873
        %v7876 = vunpack.c.l.s4 1966171168
        %v7877 = vunpack.c.0.s8 %v7876
        %v7878 = vlaneseq
        %v7879 = vshrl.u32 %v7878, 7
        %v7880 = vsub.s32 %v7877, %v7879
        %v7881 = vrot.slane %v7874, %v7880
        %v7883 = vadd.f32 %v7577, %v7881
        %v7884 = vlaneseq
        %vm7885 = vcmp.ge.s32.totalorder %v7884, 0
        %vm7886 = vcmp.lt.s32.totalorder %v7884, 512
        %vm7887 = vmand %vm7885, %vm7886
        %7888 = vst.msk [vmem:[#allocation4] sm:$0xf] %vm7887, %v7883
        %v7889 = vld [vmem:[#allocation5] sm:$0xf]
        %7891 = vset.pattern.permute.xlu0 0
        %7892 = vperm.xlu0 %7891, %v5307
        %v7893 = vpop.permute.xlu0 %7892
        %7896 = vset.pattern.permute.xlu0 0
        %7897 = vperm.xlu0 %7896, %v5308
        %v7898 = vpop.permute.xlu0 %7897
        %7901 = vset.pattern.permute.xlu0 0
        %7902 = vperm.xlu0 %7901, %v5309
        %v7903 = vpop.permute.xlu0 %7902
        %7906 = vset.pattern.permute.xlu0 0
        %7907 = vperm.xlu0 %7906, %v5310
        %v7908 = vpop.permute.xlu0 %7907
        %7911 = vset.pattern.permute.xlu0 0
        %7912 = vperm.xlu0 %7911, %v5311
        %v7913 = vpop.permute.xlu0 %7912
        %7916 = vset.pattern.permute.xlu0 0
        %7917 = vperm.xlu0 %7916, %v5312
        %v7918 = vpop.permute.xlu0 %7917
        %7921 = vset.pattern.permute.xlu0 0
        %7922 = vperm.xlu0 %7921, %v5313
        %v7923 = vpop.permute.xlu0 %7922
        %7926 = vset.pattern.permute.xlu0 0
        %7927 = vperm.xlu0 %7926, %v5314
        %v7928 = vpop.permute.xlu0 %7927
        %7931 = vset.pattern.permute.xlu0 0
        %7932 = vperm.xlu0 %7931, %v5315
        %v7933 = vpop.permute.xlu0 %7932
        %7936 = vset.pattern.permute.xlu0 0
        %7937 = vperm.xlu0 %7936, %v5316
        %v7938 = vpop.permute.xlu0 %7937
        %7941 = vset.pattern.permute.xlu0 0
        %7942 = vperm.xlu0 %7941, %v5317
        %v7943 = vpop.permute.xlu0 %7942
        %7946 = vset.pattern.permute.xlu0 0
        %7947 = vperm.xlu0 %7946, %v5318
        %v7948 = vpop.permute.xlu0 %7947
        %7951 = vset.pattern.permute.xlu0 0
        %7952 = vperm.xlu0 %7951, %v5319
        %v7953 = vpop.permute.xlu0 %7952
        %7956 = vset.pattern.permute.xlu0 0
        %7957 = vperm.xlu0 %7956, %v5320
        %v7958 = vpop.permute.xlu0 %7957
        %7961 = vset.pattern.permute.xlu0 0
        %7962 = vperm.xlu0 %7961, %v5321
        %v7963 = vpop.permute.xlu0 %7962
        %7966 = vset.pattern.permute.xlu0 0
        %7967 = vperm.xlu0 %7966, %v5322
        %v7968 = vpop.permute.xlu0 %7967
        %7971 = vset.pattern.permute.xlu0 0
        %7972 = vperm.xlu0 %7971, %v5323
        %v7973 = vpop.permute.xlu0 %7972
        %7976 = vset.pattern.permute.xlu0 0
        %7977 = vperm.xlu0 %7976, %v5324
        %v7978 = vpop.permute.xlu0 %7977
        %7981 = vset.pattern.permute.xlu0 0
        %7982 = vperm.xlu0 %7981, %v5325
        %v7983 = vpop.permute.xlu0 %7982
        %7986 = vset.pattern.permute.xlu0 0
        %7987 = vperm.xlu0 %7986, %v5326
        %v7988 = vpop.permute.xlu0 %7987
        %7991 = vset.pattern.permute.xlu0 0
        %7992 = vperm.xlu0 %7991, %v5327
        %v7993 = vpop.permute.xlu0 %7992
        %7996 = vset.pattern.permute.xlu0 0
        %7997 = vperm.xlu0 %7996, %v5328
        %v7998 = vpop.permute.xlu0 %7997
        %8001 = vset.pattern.permute.xlu0 0
        %8002 = vperm.xlu0 %8001, %v5329
        %v8003 = vpop.permute.xlu0 %8002
        %8006 = vset.pattern.permute.xlu0 0
        %8007 = vperm.xlu0 %8006, %v5330
        %v8008 = vpop.permute.xlu0 %8007
        %8011 = vset.pattern.permute.xlu0 0
        %8012 = vperm.xlu0 %8011, %v5331
        %v8013 = vpop.permute.xlu0 %8012
        %8016 = vset.pattern.permute.xlu0 0
        %8017 = vperm.xlu0 %8016, %v5332
        %v8018 = vpop.permute.xlu0 %8017
        %8021 = vset.pattern.permute.xlu0 0
        %8022 = vperm.xlu0 %8021, %v5333
        %v8023 = vpop.permute.xlu0 %8022
        %8026 = vset.pattern.permute.xlu0 0
        %8027 = vperm.xlu0 %8026, %v5334
        %v8028 = vpop.permute.xlu0 %8027
        %8031 = vset.pattern.permute.xlu0 0
        %8032 = vperm.xlu0 %8031, %v5335
        %v8033 = vpop.permute.xlu0 %8032
        %8036 = vset.pattern.permute.xlu0 0
        %8037 = vperm.xlu0 %8036, %v5336
        %v8038 = vpop.permute.xlu0 %8037
        %8041 = vset.pattern.permute.xlu0 0
        %8042 = vperm.xlu0 %8041, %v5337
        %v8043 = vpop.permute.xlu0 %8042
        %8046 = vset.pattern.permute.xlu0 0
        %8047 = vperm.xlu0 %8046, %v5338
        %v8048 = vpop.permute.xlu0 %8047
        %8051 = vset.pattern.permute.xlu0 0
        %8052 = vperm.xlu0 %8051, %v5339
        %v8053 = vpop.permute.xlu0 %8052
        %8056 = vset.pattern.permute.xlu0 0
        %8057 = vperm.xlu0 %8056, %v5340
        %v8058 = vpop.permute.xlu0 %8057
        %8061 = vset.pattern.permute.xlu0 0
        %8062 = vperm.xlu0 %8061, %v5341
        %v8063 = vpop.permute.xlu0 %8062
        %8066 = vset.pattern.permute.xlu0 0
        %8067 = vperm.xlu0 %8066, %v5342
        %v8068 = vpop.permute.xlu0 %8067
        %8071 = vset.pattern.permute.xlu0 0
        %8072 = vperm.xlu0 %8071, %v5343
        %v8073 = vpop.permute.xlu0 %8072
        %8076 = vset.pattern.permute.xlu0 0
        %8077 = vperm.xlu0 %8076, %v5344
        %v8078 = vpop.permute.xlu0 %8077
        %8081 = vset.pattern.permute.xlu0 0
        %8082 = vperm.xlu0 %8081, %v5345
        %v8083 = vpop.permute.xlu0 %8082
        %8086 = vset.pattern.permute.xlu0 0
        %8087 = vperm.xlu0 %8086, %v5346
        %v8088 = vpop.permute.xlu0 %8087
        %8091 = vset.pattern.permute.xlu0 0
        %8092 = vperm.xlu0 %8091, %v5347
        %v8093 = vpop.permute.xlu0 %8092
        %8096 = vset.pattern.permute.xlu0 0
        %8097 = vperm.xlu0 %8096, %v5348
        %v8098 = vpop.permute.xlu0 %8097
        %8101 = vset.pattern.permute.xlu0 0
        %8102 = vperm.xlu0 %8101, %v5349
        %v8103 = vpop.permute.xlu0 %8102
        %8106 = vset.pattern.permute.xlu0 0
        %8107 = vperm.xlu0 %8106, %v5350
        %v8108 = vpop.permute.xlu0 %8107
        %8111 = vset.pattern.permute.xlu0 0
        %8112 = vperm.xlu0 %8111, %v5351
        %v8113 = vpop.permute.xlu0 %8112
        %8116 = vset.pattern.permute.xlu0 0
        %8117 = vperm.xlu0 %8116, %v5352
        %v8118 = vpop.permute.xlu0 %8117
        %8121 = vset.pattern.permute.xlu0 0
        %8122 = vperm.xlu0 %8121, %v5353
        %v8123 = vpop.permute.xlu0 %8122
        %8126 = vset.pattern.permute.xlu0 0
        %8127 = vperm.xlu0 %8126, %v5354
        %v8128 = vpop.permute.xlu0 %8127
        %8131 = vset.pattern.permute.xlu0 0
        %8132 = vperm.xlu0 %8131, %v5355
        %v8133 = vpop.permute.xlu0 %8132
        %8136 = vset.pattern.permute.xlu0 0
        %8137 = vperm.xlu0 %8136, %v5356
        %v8138 = vpop.permute.xlu0 %8137
        %8141 = vset.pattern.permute.xlu0 0
        %8142 = vperm.xlu0 %8141, %v5357
        %v8143 = vpop.permute.xlu0 %8142
        %8146 = vset.pattern.permute.xlu0 0
        %8147 = vperm.xlu0 %8146, %v5358
        %v8148 = vpop.permute.xlu0 %8147
        %8151 = vset.pattern.permute.xlu0 0
        %8152 = vperm.xlu0 %8151, %v5359
        %v8153 = vpop.permute.xlu0 %8152
        %8156 = vset.pattern.permute.xlu0 0
        %8157 = vperm.xlu0 %8156, %v5360
        %v8158 = vpop.permute.xlu0 %8157
        %8161 = vset.pattern.permute.xlu0 0
        %8162 = vperm.xlu0 %8161, %v5361
        %v8163 = vpop.permute.xlu0 %8162
        %8166 = vset.pattern.permute.xlu0 0
        %8167 = vperm.xlu0 %8166, %v5362
        %v8168 = vpop.permute.xlu0 %8167
        %8171 = vset.pattern.permute.xlu0 0
        %8172 = vperm.xlu0 %8171, %v5363
        %v8173 = vpop.permute.xlu0 %8172
        %8176 = vset.pattern.permute.xlu0 0
        %8177 = vperm.xlu0 %8176, %v5364
        %v8178 = vpop.permute.xlu0 %8177
        %8181 = vset.pattern.permute.xlu0 0
        %8182 = vperm.xlu0 %8181, %v5365
        %v8183 = vpop.permute.xlu0 %8182
        %8186 = vset.pattern.permute.xlu0 0
        %8187 = vperm.xlu0 %8186, %v5366
        %v8188 = vpop.permute.xlu0 %8187
        %8191 = vset.pattern.permute.xlu0 0
        %8192 = vperm.xlu0 %8191, %v5367
        %v8193 = vpop.permute.xlu0 %8192
        %8196 = vset.pattern.permute.xlu0 0
        %8197 = vperm.xlu0 %8196, %v5368
        %v8198 = vpop.permute.xlu0 %8197
        %8201 = vset.pattern.permute.xlu0 0
        %8202 = vperm.xlu0 %8201, %v5369
        %v8203 = vpop.permute.xlu0 %8202
        %8206 = vset.pattern.permute.xlu0 0
        %8207 = vperm.xlu0 %8206, %v5370
        %v8208 = vpop.permute.xlu0 %8207
        %v8210 = vmul.f32 %v7321, %v7893
        %v8211 = vmul.f32 %v7322, %v7893
        %v8212 = vmul.f32 %v7323, %v7893
        %v8213 = vmul.f32 %v7324, %v7893
        %v8214 = vmul.f32 %v7325, %v7898
        %v8215 = vmul.f32 %v7326, %v7898
        %v8216 = vmul.f32 %v7327, %v7898
        %v8217 = vmul.f32 %v7328, %v7898
        %v8218 = vmul.f32 %v7329, %v7903
        %v8219 = vmul.f32 %v7330, %v7903
        %v8220 = vmul.f32 %v7331, %v7903
        %v8221 = vmul.f32 %v7332, %v7903
        %v8222 = vmul.f32 %v7333, %v7908
        %v8223 = vmul.f32 %v7334, %v7908
        %v8224 = vmul.f32 %v7335, %v7908
        %v8225 = vmul.f32 %v7336, %v7908
        %v8226 = vmul.f32 %v7337, %v7913
        %v8227 = vmul.f32 %v7338, %v7913
        %v8228 = vmul.f32 %v7339, %v7913
        %v8229 = vmul.f32 %v7340, %v7913
        %v8230 = vmul.f32 %v7341, %v7918
        %v8231 = vmul.f32 %v7342, %v7918
        %v8232 = vmul.f32 %v7343, %v7918
        %v8233 = vmul.f32 %v7344, %v7918
        %v8234 = vmul.f32 %v7345, %v7923
        %v8235 = vmul.f32 %v7346, %v7923
        %v8236 = vmul.f32 %v7347, %v7923
        %v8237 = vmul.f32 %v7348, %v7923
        %v8238 = vmul.f32 %v7349, %v7928
        %v8239 = vmul.f32 %v7350, %v7928
        %v8240 = vmul.f32 %v7351, %v7928
        %v8241 = vmul.f32 %v7352, %v7928
        %v8242 = vmul.f32 %v7353, %v7933
        %v8243 = vmul.f32 %v7354, %v7933
        %v8244 = vmul.f32 %v7355, %v7933
        %v8245 = vmul.f32 %v7356, %v7933
        %v8246 = vmul.f32 %v7357, %v7938
        %v8247 = vmul.f32 %v7358, %v7938
        %v8248 = vmul.f32 %v7359, %v7938
        %v8249 = vmul.f32 %v7360, %v7938
        %v8250 = vmul.f32 %v7361, %v7943
        %v8251 = vmul.f32 %v7362, %v7943
        %v8252 = vmul.f32 %v7363, %v7943
        %v8253 = vmul.f32 %v7364, %v7943
        %v8254 = vmul.f32 %v7365, %v7948
        %v8255 = vmul.f32 %v7366, %v7948
        %v8256 = vmul.f32 %v7367, %v7948
        %v8257 = vmul.f32 %v7368, %v7948
        %v8258 = vmul.f32 %v7369, %v7953
        %v8259 = vmul.f32 %v7370, %v7953
        %v8260 = vmul.f32 %v7371, %v7953
        %v8261 = vmul.f32 %v7372, %v7953
        %v8262 = vmul.f32 %v7373, %v7958
        %v8263 = vmul.f32 %v7374, %v7958
        %v8264 = vmul.f32 %v7375, %v7958
        %v8265 = vmul.f32 %v7376, %v7958
        %v8266 = vmul.f32 %v7377, %v7963
        %v8267 = vmul.f32 %v7378, %v7963
        %v8268 = vmul.f32 %v7379, %v7963
        %v8269 = vmul.f32 %v7380, %v7963
        %v8270 = vmul.f32 %v7381, %v7968
        %v8271 = vmul.f32 %v7382, %v7968
        %v8272 = vmul.f32 %v7383, %v7968
        %v8273 = vmul.f32 %v7384, %v7968
        %v8274 = vmul.f32 %v7385, %v7973
        %v8275 = vmul.f32 %v7386, %v7973
        %v8276 = vmul.f32 %v7387, %v7973
        %v8277 = vmul.f32 %v7388, %v7973
        %v8278 = vmul.f32 %v7389, %v7978
        %v8279 = vmul.f32 %v7390, %v7978
        %v8280 = vmul.f32 %v7391, %v7978
        %v8281 = vmul.f32 %v7392, %v7978
        %v8282 = vmul.f32 %v7393, %v7983
        %v8283 = vmul.f32 %v7394, %v7983
        %v8284 = vmul.f32 %v7395, %v7983
        %v8285 = vmul.f32 %v7396, %v7983
        %v8286 = vmul.f32 %v7397, %v7988
        %v8287 = vmul.f32 %v7398, %v7988
        %v8288 = vmul.f32 %v7399, %v7988
        %v8289 = vmul.f32 %v7400, %v7988
        %v8290 = vmul.f32 %v7401, %v7993
        %v8291 = vmul.f32 %v7402, %v7993
        %v8292 = vmul.f32 %v7403, %v7993
        %v8293 = vmul.f32 %v7404, %v7993
        %v8294 = vmul.f32 %v7405, %v7998
        %v8295 = vmul.f32 %v7406, %v7998
        %v8296 = vmul.f32 %v7407, %v7998
        %v8297 = vmul.f32 %v7408, %v7998
        %v8298 = vmul.f32 %v7409, %v8003
        %v8299 = vmul.f32 %v7410, %v8003
        %v8300 = vmul.f32 %v7411, %v8003
        %v8301 = vmul.f32 %v7412, %v8003
        %v8302 = vmul.f32 %v7413, %v8008
        %v8303 = vmul.f32 %v7414, %v8008
        %v8304 = vmul.f32 %v7415, %v8008
        %v8305 = vmul.f32 %v7416, %v8008
        %v8306 = vmul.f32 %v7417, %v8013
        %v8307 = vmul.f32 %v7418, %v8013
        %v8308 = vmul.f32 %v7419, %v8013
        %v8309 = vmul.f32 %v7420, %v8013
        %v8310 = vmul.f32 %v7421, %v8018
        %v8311 = vmul.f32 %v7422, %v8018
        %v8312 = vmul.f32 %v7423, %v8018
        %v8313 = vmul.f32 %v7424, %v8018
        %v8314 = vmul.f32 %v7425, %v8023
        %v8315 = vmul.f32 %v7426, %v8023
        %v8316 = vmul.f32 %v7427, %v8023
        %v8317 = vmul.f32 %v7428, %v8023
        %v8318 = vmul.f32 %v7429, %v8028
        %v8319 = vmul.f32 %v7430, %v8028
        %v8320 = vmul.f32 %v7431, %v8028
        %v8321 = vmul.f32 %v7432, %v8028
        %v8322 = vmul.f32 %v7433, %v8033
        %v8323 = vmul.f32 %v7434, %v8033
        %v8324 = vmul.f32 %v7435, %v8033
        %v8325 = vmul.f32 %v7436, %v8033
        %v8326 = vmul.f32 %v7437, %v8038
        %v8327 = vmul.f32 %v7438, %v8038
        %v8328 = vmul.f32 %v7439, %v8038
        %v8329 = vmul.f32 %v7440, %v8038
        %v8330 = vmul.f32 %v7441, %v8043
        %v8331 = vmul.f32 %v7442, %v8043
        %v8332 = vmul.f32 %v7443, %v8043
        %v8333 = vmul.f32 %v7444, %v8043
        %v8334 = vmul.f32 %v7445, %v8048
        %v8335 = vmul.f32 %v7446, %v8048
        %v8336 = vmul.f32 %v7447, %v8048
        %v8337 = vmul.f32 %v7448, %v8048
        %v8338 = vmul.f32 %v7449, %v8053
        %v8339 = vmul.f32 %v7450, %v8053
        %v8340 = vmul.f32 %v7451, %v8053
        %v8341 = vmul.f32 %v7452, %v8053
        %v8342 = vmul.f32 %v7453, %v8058
        %v8343 = vmul.f32 %v7454, %v8058
        %v8344 = vmul.f32 %v7455, %v8058
        %v8345 = vmul.f32 %v7456, %v8058
        %v8346 = vmul.f32 %v7457, %v8063
        %v8347 = vmul.f32 %v7458, %v8063
        %v8348 = vmul.f32 %v7459, %v8063
        %v8349 = vmul.f32 %v7460, %v8063
        %v8350 = vmul.f32 %v7461, %v8068
        %v8351 = vmul.f32 %v7462, %v8068
        %v8352 = vmul.f32 %v7463, %v8068
        %v8353 = vmul.f32 %v7464, %v8068
        %v8354 = vmul.f32 %v7465, %v8073
        %v8355 = vmul.f32 %v7466, %v8073
        %v8356 = vmul.f32 %v7467, %v8073
        %v8357 = vmul.f32 %v7468, %v8073
        %v8358 = vmul.f32 %v7469, %v8078
        %v8359 = vmul.f32 %v7470, %v8078
        %v8360 = vmul.f32 %v7471, %v8078
        %v8361 = vmul.f32 %v7472, %v8078
        %v8362 = vmul.f32 %v7473, %v8083
        %v8363 = vmul.f32 %v7474, %v8083
        %v8364 = vmul.f32 %v7475, %v8083
        %v8365 = vmul.f32 %v7476, %v8083
        %v8366 = vmul.f32 %v7477, %v8088
        %v8367 = vmul.f32 %v7478, %v8088
        %v8368 = vmul.f32 %v7479, %v8088
        %v8369 = vmul.f32 %v7480, %v8088
        %v8370 = vmul.f32 %v7481, %v8093
        %v8371 = vmul.f32 %v7482, %v8093
        %v8372 = vmul.f32 %v7483, %v8093
        %v8373 = vmul.f32 %v7484, %v8093
        %v8374 = vmul.f32 %v7485, %v8098
        %v8375 = vmul.f32 %v7486, %v8098
        %v8376 = vmul.f32 %v7487, %v8098
        %v8377 = vmul.f32 %v7488, %v8098
        %v8378 = vmul.f32 %v7489, %v8103
        %v8379 = vmul.f32 %v7490, %v8103
        %v8380 = vmul.f32 %v7491, %v8103
        %v8381 = vmul.f32 %v7492, %v8103
        %v8382 = vmul.f32 %v7493, %v8108
        %v8383 = vmul.f32 %v7494, %v8108
        %v8384 = vmul.f32 %v7495, %v8108
        %v8385 = vmul.f32 %v7496, %v8108
        %v8386 = vmul.f32 %v7497, %v8113
        %v8387 = vmul.f32 %v7498, %v8113
        %v8388 = vmul.f32 %v7499, %v8113
        %v8389 = vmul.f32 %v7500, %v8113
        %v8390 = vmul.f32 %v7501, %v8118
        %v8391 = vmul.f32 %v7502, %v8118
        %v8392 = vmul.f32 %v7503, %v8118
        %v8393 = vmul.f32 %v7504, %v8118
        %v8394 = vmul.f32 %v7505, %v8123
        %v8395 = vmul.f32 %v7506, %v8123
        %v8396 = vmul.f32 %v7507, %v8123
        %v8397 = vmul.f32 %v7508, %v8123
        %v8398 = vmul.f32 %v7509, %v8128
        %v8399 = vmul.f32 %v7510, %v8128
        %v8400 = vmul.f32 %v7511, %v8128
        %v8401 = vmul.f32 %v7512, %v8128
        %v8402 = vmul.f32 %v7513, %v8133
        %v8403 = vmul.f32 %v7514, %v8133
        %v8404 = vmul.f32 %v7515, %v8133
        %v8405 = vmul.f32 %v7516, %v8133
        %v8406 = vmul.f32 %v7517, %v8138
        %v8407 = vmul.f32 %v7518, %v8138
        %v8408 = vmul.f32 %v7519, %v8138
        %v8409 = vmul.f32 %v7520, %v8138
        %v8410 = vmul.f32 %v7521, %v8143
        %v8411 = vmul.f32 %v7522, %v8143
        %v8412 = vmul.f32 %v7523, %v8143
        %v8413 = vmul.f32 %v7524, %v8143
        %v8414 = vmul.f32 %v7525, %v8148
        %v8415 = vmul.f32 %v7526, %v8148
        %v8416 = vmul.f32 %v7527, %v8148
        %v8417 = vmul.f32 %v7528, %v8148
        %v8418 = vmul.f32 %v7529, %v8153
        %v8419 = vmul.f32 %v7530, %v8153
        %v8420 = vmul.f32 %v7531, %v8153
        %v8421 = vmul.f32 %v7532, %v8153
        %v8422 = vmul.f32 %v7533, %v8158
        %v8423 = vmul.f32 %v7534, %v8158
        %v8424 = vmul.f32 %v7535, %v8158
        %v8425 = vmul.f32 %v7536, %v8158
        %v8426 = vmul.f32 %v7537, %v8163
        %v8427 = vmul.f32 %v7538, %v8163
        %v8428 = vmul.f32 %v7539, %v8163
        %v8429 = vmul.f32 %v7540, %v8163
        %v8430 = vmul.f32 %v7541, %v8168
        %v8431 = vmul.f32 %v7542, %v8168
        %v8432 = vmul.f32 %v7543, %v8168
        %v8433 = vmul.f32 %v7544, %v8168
        %v8434 = vmul.f32 %v7545, %v8173
        %v8435 = vmul.f32 %v7546, %v8173
        %v8436 = vmul.f32 %v7547, %v8173
        %v8437 = vmul.f32 %v7548, %v8173
        %v8438 = vmul.f32 %v7549, %v8178
        %v8439 = vmul.f32 %v7550, %v8178
        %v8440 = vmul.f32 %v7551, %v8178
        %v8441 = vmul.f32 %v7552, %v8178
        %v8442 = vmul.f32 %v7553, %v8183
        %v8443 = vmul.f32 %v7554, %v8183
        %v8444 = vmul.f32 %v7555, %v8183
        %v8445 = vmul.f32 %v7556, %v8183
        %v8446 = vmul.f32 %v7557, %v8188
        %v8447 = vmul.f32 %v7558, %v8188
        %v8448 = vmul.f32 %v7559, %v8188
        %v8449 = vmul.f32 %v7560, %v8188
        %v8450 = vmul.f32 %v7561, %v8193
        %v8451 = vmul.f32 %v7562, %v8193
        %v8452 = vmul.f32 %v7563, %v8193
        %v8453 = vmul.f32 %v7564, %v8193
        %v8454 = vmul.f32 %v7565, %v8198
        %v8455 = vmul.f32 %v7566, %v8198
        %v8456 = vmul.f32 %v7567, %v8198
        %v8457 = vmul.f32 %v7568, %v8198
        %v8458 = vmul.f32 %v7569, %v8203
        %v8459 = vmul.f32 %v7570, %v8203
        %v8460 = vmul.f32 %v7571, %v8203
        %v8461 = vmul.f32 %v7572, %v8203
        %v8462 = vmul.f32 %v7573, %v8208
        %v8463 = vmul.f32 %v7574, %v8208
        %v8464 = vmul.f32 %v7575, %v8208
        %v8465 = vmul.f32 %v7576, %v8208
        %v8466 = vadd.f32 %v8210, %v8214
        %v8467 = vadd.f32 %v8466, %v8218
        %v8468 = vadd.f32 %v8467, %v8222
        %v8469 = vadd.f32 %v8468, %v8226
        %v8470 = vadd.f32 %v8469, %v8230
        %v8471 = vadd.f32 %v8470, %v8234
        %v8472 = vadd.f32 %v8471, %v8238
        %v8473 = vadd.f32 %v8472, %v8242
        %v8474 = vadd.f32 %v8473, %v8246
        %v8475 = vadd.f32 %v8474, %v8250
        %v8476 = vadd.f32 %v8475, %v8254
        %v8477 = vadd.f32 %v8476, %v8258
        %v8478 = vadd.f32 %v8477, %v8262
        %v8479 = vadd.f32 %v8478, %v8266
        %v8480 = vadd.f32 %v8479, %v8270
        %v8481 = vadd.f32 %v8480, %v8274
        %v8482 = vadd.f32 %v8481, %v8278
        %v8483 = vadd.f32 %v8482, %v8282
        %v8484 = vadd.f32 %v8483, %v8286
        %v8485 = vadd.f32 %v8484, %v8290
        %v8486 = vadd.f32 %v8485, %v8294
        %v8487 = vadd.f32 %v8486, %v8298
        %v8488 = vadd.f32 %v8487, %v8302
        %v8489 = vadd.f32 %v8488, %v8306
        %v8490 = vadd.f32 %v8489, %v8310
        %v8491 = vadd.f32 %v8490, %v8314
        %v8492 = vadd.f32 %v8491, %v8318
        %v8493 = vadd.f32 %v8492, %v8322
        %v8494 = vadd.f32 %v8493, %v8326
        %v8495 = vadd.f32 %v8494, %v8330
        %v8496 = vadd.f32 %v8495, %v8334
        %v8497 = vadd.f32 %v8496, %v8338
        %v8498 = vadd.f32 %v8497, %v8342
        %v8499 = vadd.f32 %v8498, %v8346
        %v8500 = vadd.f32 %v8499, %v8350
        %v8501 = vadd.f32 %v8500, %v8354
        %v8502 = vadd.f32 %v8501, %v8358
        %v8503 = vadd.f32 %v8502, %v8362
        %v8504 = vadd.f32 %v8503, %v8366
        %v8505 = vadd.f32 %v8504, %v8370
        %v8506 = vadd.f32 %v8505, %v8374
        %v8507 = vadd.f32 %v8506, %v8378
        %v8508 = vadd.f32 %v8507, %v8382
        %v8509 = vadd.f32 %v8508, %v8386
        %v8510 = vadd.f32 %v8509, %v8390
        %v8511 = vadd.f32 %v8510, %v8394
        %v8512 = vadd.f32 %v8511, %v8398
        %v8513 = vadd.f32 %v8512, %v8402
        %v8514 = vadd.f32 %v8513, %v8406
        %v8515 = vadd.f32 %v8514, %v8410
        %v8516 = vadd.f32 %v8515, %v8414
        %v8517 = vadd.f32 %v8516, %v8418
        %v8518 = vadd.f32 %v8517, %v8422
        %v8519 = vadd.f32 %v8518, %v8426
        %v8520 = vadd.f32 %v8519, %v8430
        %v8521 = vadd.f32 %v8520, %v8434
        %v8522 = vadd.f32 %v8521, %v8438
        %v8523 = vadd.f32 %v8522, %v8442
        %v8524 = vadd.f32 %v8523, %v8446
        %v8525 = vadd.f32 %v8524, %v8450
        %v8526 = vadd.f32 %v8525, %v8454
        %v8527 = vadd.f32 %v8526, %v8458
        %v8528 = vadd.f32 %v8527, %v8462
        %v8529 = vrot.slane %v8528, 4
        %v8530 = vadd.f32 %v8528, %v8529
        %v8531 = vrot.slane %v8530, 2
        %v8532 = vadd.f32 %v8530, %v8531
        %v8533 = vrot.slane %v8532, 1
        %v8534 = vadd.f32 %v8532, %v8533
        %v8535 = vadd.f32 %v8211, %v8215
        %v8536 = vadd.f32 %v8535, %v8219
        %v8537 = vadd.f32 %v8536, %v8223
        %v8538 = vadd.f32 %v8537, %v8227
        %v8539 = vadd.f32 %v8538, %v8231
        %v8540 = vadd.f32 %v8539, %v8235
        %v8541 = vadd.f32 %v8540, %v8239
        %v8542 = vadd.f32 %v8541, %v8243
        %v8543 = vadd.f32 %v8542, %v8247
        %v8544 = vadd.f32 %v8543, %v8251
        %v8545 = vadd.f32 %v8544, %v8255
        %v8546 = vadd.f32 %v8545, %v8259
        %v8547 = vadd.f32 %v8546, %v8263
        %v8548 = vadd.f32 %v8547, %v8267
        %v8549 = vadd.f32 %v8548, %v8271
        %v8550 = vadd.f32 %v8549, %v8275
        %v8551 = vadd.f32 %v8550, %v8279
        %v8552 = vadd.f32 %v8551, %v8283
        %v8553 = vadd.f32 %v8552, %v8287
        %v8554 = vadd.f32 %v8553, %v8291
        %v8555 = vadd.f32 %v8554, %v8295
        %v8556 = vadd.f32 %v8555, %v8299
        %v8557 = vadd.f32 %v8556, %v8303
        %v8558 = vadd.f32 %v8557, %v8307
        %v8559 = vadd.f32 %v8558, %v8311
        %v8560 = vadd.f32 %v8559, %v8315
        %v8561 = vadd.f32 %v8560, %v8319
        %v8562 = vadd.f32 %v8561, %v8323
        %v8563 = vadd.f32 %v8562, %v8327
        %v8564 = vadd.f32 %v8563, %v8331
        %v8565 = vadd.f32 %v8564, %v8335
        %v8566 = vadd.f32 %v8565, %v8339
        %v8567 = vadd.f32 %v8566, %v8343
        %v8568 = vadd.f32 %v8567, %v8347
        %v8569 = vadd.f32 %v8568, %v8351
        %v8570 = vadd.f32 %v8569, %v8355
        %v8571 = vadd.f32 %v8570, %v8359
        %v8572 = vadd.f32 %v8571, %v8363
        %v8573 = vadd.f32 %v8572, %v8367
        %v8574 = vadd.f32 %v8573, %v8371
        %v8575 = vadd.f32 %v8574, %v8375
        %v8576 = vadd.f32 %v8575, %v8379
        %v8577 = vadd.f32 %v8576, %v8383
        %v8578 = vadd.f32 %v8577, %v8387
        %v8579 = vadd.f32 %v8578, %v8391
        %v8580 = vadd.f32 %v8579, %v8395
        %v8581 = vadd.f32 %v8580, %v8399
        %v8582 = vadd.f32 %v8581, %v8403
        %v8583 = vadd.f32 %v8582, %v8407
        %v8584 = vadd.f32 %v8583, %v8411
        %v8585 = vadd.f32 %v8584, %v8415
        %v8586 = vadd.f32 %v8585, %v8419
        %v8587 = vadd.f32 %v8586, %v8423
        %v8588 = vadd.f32 %v8587, %v8427
        %v8589 = vadd.f32 %v8588, %v8431
        %v8590 = vadd.f32 %v8589, %v8435
        %v8591 = vadd.f32 %v8590, %v8439
        %v8592 = vadd.f32 %v8591, %v8443
        %v8593 = vadd.f32 %v8592, %v8447
        %v8594 = vadd.f32 %v8593, %v8451
        %v8595 = vadd.f32 %v8594, %v8455
        %v8596 = vadd.f32 %v8595, %v8459
        %v8597 = vadd.f32 %v8596, %v8463
        %v8598 = vrot.slane %v8597, 4
        %v8599 = vadd.f32 %v8597, %v8598
        %v8600 = vrot.slane %v8599, 2
        %v8601 = vadd.f32 %v8599, %v8600
        %v8602 = vrot.slane %v8601, 1
        %v8603 = vadd.f32 %v8601, %v8602
        %v8604 = vadd.f32 %v8212, %v8216
        %v8605 = vadd.f32 %v8604, %v8220
        %v8606 = vadd.f32 %v8605, %v8224
        %v8607 = vadd.f32 %v8606, %v8228
        %v8608 = vadd.f32 %v8607, %v8232
        %v8609 = vadd.f32 %v8608, %v8236
        %v8610 = vadd.f32 %v8609, %v8240
        %v8611 = vadd.f32 %v8610, %v8244
        %v8612 = vadd.f32 %v8611, %v8248
        %v8613 = vadd.f32 %v8612, %v8252
        %v8614 = vadd.f32 %v8613, %v8256
        %v8615 = vadd.f32 %v8614, %v8260
        %v8616 = vadd.f32 %v8615, %v8264
        %v8617 = vadd.f32 %v8616, %v8268
        %v8618 = vadd.f32 %v8617, %v8272
        %v8619 = vadd.f32 %v8618, %v8276
        %v8620 = vadd.f32 %v8619, %v8280
        %v8621 = vadd.f32 %v8620, %v8284
        %v8622 = vadd.f32 %v8621, %v8288
        %v8623 = vadd.f32 %v8622, %v8292
        %v8624 = vadd.f32 %v8623, %v8296
        %v8625 = vadd.f32 %v8624, %v8300
        %v8626 = vadd.f32 %v8625, %v8304
        %v8627 = vadd.f32 %v8626, %v8308
        %v8628 = vadd.f32 %v8627, %v8312
        %v8629 = vadd.f32 %v8628, %v8316
        %v8630 = vadd.f32 %v8629, %v8320
        %v8631 = vadd.f32 %v8630, %v8324
        %v8632 = vadd.f32 %v8631, %v8328
        %v8633 = vadd.f32 %v8632, %v8332
        %v8634 = vadd.f32 %v8633, %v8336
        %v8635 = vadd.f32 %v8634, %v8340
        %v8636 = vadd.f32 %v8635, %v8344
        %v8637 = vadd.f32 %v8636, %v8348
        %v8638 = vadd.f32 %v8637, %v8352
        %v8639 = vadd.f32 %v8638, %v8356
        %v8640 = vadd.f32 %v8639, %v8360
        %v8641 = vadd.f32 %v8640, %v8364
        %v8642 = vadd.f32 %v8641, %v8368
        %v8643 = vadd.f32 %v8642, %v8372
        %v8644 = vadd.f32 %v8643, %v8376
        %v8645 = vadd.f32 %v8644, %v8380
        %v8646 = vadd.f32 %v8645, %v8384
        %v8647 = vadd.f32 %v8646, %v8388
        %v8648 = vadd.f32 %v8647, %v8392
        %v8649 = vadd.f32 %v8648, %v8396
        %v8650 = vadd.f32 %v8649, %v8400
        %v8651 = vadd.f32 %v8650, %v8404
        %v8652 = vadd.f32 %v8651, %v8408
        %v8653 = vadd.f32 %v8652, %v8412
        %v8654 = vadd.f32 %v8653, %v8416
        %v8655 = vadd.f32 %v8654, %v8420
        %v8656 = vadd.f32 %v8655, %v8424
        %v8657 = vadd.f32 %v8656, %v8428
        %v8658 = vadd.f32 %v8657, %v8432
        %v8659 = vadd.f32 %v8658, %v8436
        %v8660 = vadd.f32 %v8659, %v8440
        %v8661 = vadd.f32 %v8660, %v8444
        %v8662 = vadd.f32 %v8661, %v8448
        %v8663 = vadd.f32 %v8662, %v8452
        %v8664 = vadd.f32 %v8663, %v8456
        %v8665 = vadd.f32 %v8664, %v8460
        %v8666 = vadd.f32 %v8665, %v8464
        %v8667 = vrot.slane %v8666, 4
        %v8668 = vadd.f32 %v8666, %v8667
        %v8669 = vrot.slane %v8668, 2
        %v8670 = vadd.f32 %v8668, %v8669
        %v8671 = vrot.slane %v8670, 1
        %v8672 = vadd.f32 %v8670, %v8671
        %v8673 = vadd.f32 %v8213, %v8217
        %v8674 = vadd.f32 %v8673, %v8221
        %v8675 = vadd.f32 %v8674, %v8225
        %v8676 = vadd.f32 %v8675, %v8229
        %v8677 = vadd.f32 %v8676, %v8233
        %v8678 = vadd.f32 %v8677, %v8237
        %v8679 = vadd.f32 %v8678, %v8241
        %v8680 = vadd.f32 %v8679, %v8245
        %v8681 = vadd.f32 %v8680, %v8249
        %v8682 = vadd.f32 %v8681, %v8253
        %v8683 = vadd.f32 %v8682, %v8257
        %v8684 = vadd.f32 %v8683, %v8261
        %v8685 = vadd.f32 %v8684, %v8265
        %v8686 = vadd.f32 %v8685, %v8269
        %v8687 = vadd.f32 %v8686, %v8273
        %v8688 = vadd.f32 %v8687, %v8277
        %v8689 = vadd.f32 %v8688, %v8281
        %v8690 = vadd.f32 %v8689, %v8285
        %v8691 = vadd.f32 %v8690, %v8289
        %v8692 = vadd.f32 %v8691, %v8293
        %v8693 = vadd.f32 %v8692, %v8297
        %v8694 = vadd.f32 %v8693, %v8301
        %v8695 = vadd.f32 %v8694, %v8305
        %v8696 = vadd.f32 %v8695, %v8309
        %v8697 = vadd.f32 %v8696, %v8313
        %v8698 = vadd.f32 %v8697, %v8317
        %v8699 = vadd.f32 %v8698, %v8321
        %v8700 = vadd.f32 %v8699, %v8325
        %v8701 = vadd.f32 %v8700, %v8329
        %v8702 = vadd.f32 %v8701, %v8333
        %v8703 = vadd.f32 %v8702, %v8337
        %v8704 = vadd.f32 %v8703, %v8341
        %v8705 = vadd.f32 %v8704, %v8345
        %v8706 = vadd.f32 %v8705, %v8349
        %v8707 = vadd.f32 %v8706, %v8353
        %v8708 = vadd.f32 %v8707, %v8357
        %v8709 = vadd.f32 %v8708, %v8361
        %v8710 = vadd.f32 %v8709, %v8365
        %v8711 = vadd.f32 %v8710, %v8369
        %v8712 = vadd.f32 %v8711, %v8373
        %v8713 = vadd.f32 %v8712, %v8377
        %v8714 = vadd.f32 %v8713, %v8381
        %v8715 = vadd.f32 %v8714, %v8385
        %v8716 = vadd.f32 %v8715, %v8389
        %v8717 = vadd.f32 %v8716, %v8393
        %v8718 = vadd.f32 %v8717, %v8397
        %v8719 = vadd.f32 %v8718, %v8401
        %v8720 = vadd.f32 %v8719, %v8405
        %v8721 = vadd.f32 %v8720, %v8409
        %v8722 = vadd.f32 %v8721, %v8413
        %v8723 = vadd.f32 %v8722, %v8417
        %v8724 = vadd.f32 %v8723, %v8421
        %v8725 = vadd.f32 %v8724, %v8425
        %v8726 = vadd.f32 %v8725, %v8429
        %v8727 = vadd.f32 %v8726, %v8433
        %v8728 = vadd.f32 %v8727, %v8437
        %v8729 = vadd.f32 %v8728, %v8441
        %v8730 = vadd.f32 %v8729, %v8445
        %v8731 = vadd.f32 %v8730, %v8449
        %v8732 = vadd.f32 %v8731, %v8453
        %v8733 = vadd.f32 %v8732, %v8457
        %v8734 = vadd.f32 %v8733, %v8461
        %v8735 = vadd.f32 %v8734, %v8465
        %v8736 = vrot.slane %v8735, 4
        %v8737 = vadd.f32 %v8735, %v8736
        %v8738 = vrot.slane %v8737, 2
        %v8739 = vadd.f32 %v8737, %v8738
        %v8740 = vrot.slane %v8739, 1
        %v8741 = vadd.f32 %v8739, %v8740
        %v8746 = vcombine.low %v8534, %v8603
        %v8747 = vcombine.low %v8672, %v8741
        %v8749 = vunpack.c.l.s4 1966171168
        %v8750 = vunpack.c.0.s8 %v8749
        %v8751 = vlaneseq
        %v8752 = vshrl.u32 %v8751, 7
        %v8753 = vsub.s32 %v8750, %v8752
        %v8754 = vrot.slane %v8746, %v8753
        %v8756 = vunpack.c.l.s4 1966171168
        %v8757 = vunpack.c.0.s8 %v8756
        %v8758 = vlaneseq
        %v8759 = vshrl.u32 %v8758, 7
        %v8760 = vsub.s32 %v8757, %v8759
        %v8761 = vrot.slane %v8747, %v8760
        %v8762 = vcombine.low %v8754, %v8761
        %v8764 = vunpack.c.l.s4 1966171168
        %v8765 = vunpack.c.0.s8 %v8764
        %v8766 = vlaneseq
        %v8767 = vshrl.u32 %v8766, 7
        %v8768 = vsub.s32 %v8765, %v8767
        %v8769 = vrot.slane %v8762, %v8768
        %v8771 = vadd.f32 %v7889, %v8769
        %8772 = vst.msk [vmem:[#allocation5] sm:$0xf] %vm7887, %v8771
        // Predicated region
        $region45: #{tpu_custom_call.1} parent=35 // pred_check
          %p8773 = pneg %p221
        $region46: #{tpu_custom_call.1} parent=35 // pred_check_branch
          %8775 = sbr.rel (%p8773) target = $region48
        $region47: #{tpu_custom_call.1} parent=35 // pred_region
          %v8776 = vld [vmem:[#allocation2] sm:$0xf]
          %v8777 = vld [vmem:[#allocation3] sm:$0xf]
          %v8779 = vlaneseq
          %v8780 = vshrl.u32 %v8779, 7
          %v8781 = vsub.s32 0, %v8780
          %v8782 = vrot.slane %v8777, %v8781
          %v8783 = vlaneseq
          %v8784 = vshrl.u32 %v8783, 7
          %v8785 = vsub.s32 1, %v8784
          %v8786 = vrot.slane %v8777, %v8785
          %v8787 = vlaneseq
          %v8788 = vshrl.u32 %v8787, 7
          %v8789 = vsub.s32 2, %v8788
          %v8790 = vrot.slane %v8777, %v8789
          %v8791 = vlaneseq
          %v8792 = vshrl.u32 %v8791, 7
          %v8793 = vsub.s32 3, %v8792
          %v8794 = vrot.slane %v8777, %v8793
          %vm8799 = vcmask 1040384
          %v8800 = vsel %vm8799, %v8782, 0.0
          %v8801 = vsel %vm8799, %v8786, 0.0
          %v8802 = vadd.f32 %v8800, %v8801
          %v8803 = vsel %vm8799, %v8790, 0.0
          %v8804 = vadd.f32 %v8802, %v8803
          %v8805 = vsel %vm8799, %v8794, 0.0
          %v8806 = vadd.f32 %v8804, %v8805
          %8807 = vadd.xlane.f32.xlu0 %v8806
          %v8808 = vpop.xlane.xlu0 %8807
          %v8809 = vld [vmem:[#allocation4] sm:$0xf]
          %v8810 = vld [vmem:[#allocation5] sm:$0xf]
          %v8811 = vadd.f32 %v8810, %v8777
          %v8813 = vlaneseq
          %v8814 = vshrl.u32 %v8813, 7
          %v8815 = vsub.s32 0, %v8814
          %v8816 = vrot.slane %v8811, %v8815
          %v8817 = vlaneseq
          %v8818 = vshrl.u32 %v8817, 7
          %v8819 = vsub.s32 1, %v8818
          %v8820 = vrot.slane %v8811, %v8819
          %v8821 = vlaneseq
          %v8822 = vshrl.u32 %v8821, 7
          %v8823 = vsub.s32 2, %v8822
          %v8824 = vrot.slane %v8811, %v8823
          %v8825 = vlaneseq
          %v8826 = vshrl.u32 %v8825, 7
          %v8827 = vsub.s32 3, %v8826
          %v8828 = vrot.slane %v8811, %v8827
          %v8833 = vsub.f32 %v8808, %v8816
          %v8834 = vsub.f32 %v8808, %v8820
          %v8835 = vsub.f32 %v8808, %v8824
          %v8836 = vsub.f32 %v8808, %v8828
          %v8837 = vadd.f32 %v8809, 1.0
          %v8839 = vlaneseq
          %v8840 = vshrl.u32 %v8839, 7
          %v8841 = vsub.s32 0, %v8840
          %v8842 = vrot.slane %v8837, %v8841
          %v8843 = vlaneseq
          %v8844 = vshrl.u32 %v8843, 7
          %v8845 = vsub.s32 1, %v8844
          %v8846 = vrot.slane %v8837, %v8845
          %v8847 = vlaneseq
          %v8848 = vshrl.u32 %v8847, 7
          %v8849 = vsub.s32 2, %v8848
          %v8850 = vrot.slane %v8837, %v8849
          %v8851 = vlaneseq
          %v8852 = vshrl.u32 %v8851, 7
          %v8853 = vsub.s32 3, %v8852
          %v8854 = vrot.slane %v8837, %v8853
          %v8859 = vadd.f32 %v8808, %v8842
          %v8860 = vadd.f32 %v8808, %v8846
          %v8861 = vadd.f32 %v8808, %v8850
          %v8862 = vadd.f32 %v8808, %v8854
          %v8863 = vsub.f32 %v8859, %v8816
          %v8864 = vsub.f32 %v8860, %v8820
          %v8865 = vsub.f32 %v8861, %v8824
          %v8866 = vsub.f32 %v8862, %v8828
          %v8867 = vrcp.pop %v8863
          %v8868 = vmul.f32 %v8833, %v8867
          %v8869 = vrcp.pop %v8864
          %v8870 = vmul.f32 %v8834, %v8869
          %v8871 = vrcp.pop %v8865
          %v8872 = vmul.f32 %v8835, %v8871
          %v8873 = vrcp.pop %v8866
          %v8874 = vmul.f32 %v8836, %v8873
          %v8875 = vsub.f32 1.0, %v8868
          %v8876 = vsub.f32 1.0, %v8870
          %v8877 = vsub.f32 1.0, %v8872
          %v8878 = vsub.f32 1.0, %v8874
          %v8879 = vsub.f32 %v8811, %v8777
          %v8881 = vlaneseq
          %v8882 = vshrl.u32 %v8881, 7
          %v8883 = vsub.s32 0, %v8882
          %v8884 = vrot.slane %v8809, %v8883
          %v8885 = vlaneseq
          %v8886 = vshrl.u32 %v8885, 7
          %v8887 = vsub.s32 1, %v8886
          %v8888 = vrot.slane %v8809, %v8887
          %v8889 = vlaneseq
          %v8890 = vshrl.u32 %v8889, 7
          %v8891 = vsub.s32 2, %v8890
          %v8892 = vrot.slane %v8809, %v8891
          %v8893 = vlaneseq
          %v8894 = vshrl.u32 %v8893, 7
          %v8895 = vsub.s32 3, %v8894
          %v8896 = vrot.slane %v8809, %v8895
          %v8901 = vadd.f32 %v8808, %v8884
          %v8902 = vadd.f32 %v8808, %v8888
          %v8903 = vadd.f32 %v8808, %v8892
          %v8904 = vadd.f32 %v8808, %v8896
          %v8906 = vlaneseq
          %v8907 = vshrl.u32 %v8906, 7
          %v8908 = vsub.s32 0, %v8907
          %v8909 = vrot.slane %v8879, %v8908
          %v8910 = vlaneseq
          %v8911 = vshrl.u32 %v8910, 7
          %v8912 = vsub.s32 1, %v8911
          %v8913 = vrot.slane %v8879, %v8912
          %v8914 = vlaneseq
          %v8915 = vshrl.u32 %v8914, 7
          %v8916 = vsub.s32 2, %v8915
          %v8917 = vrot.slane %v8879, %v8916
          %v8918 = vlaneseq
          %v8919 = vshrl.u32 %v8918, 7
          %v8920 = vsub.s32 3, %v8919
          %v8921 = vrot.slane %v8879, %v8920
          %v8926 = vsub.f32 %v8901, %v8909
          %v8927 = vsub.f32 %v8902, %v8913
          %v8928 = vsub.f32 %v8903, %v8917
          %v8929 = vsub.f32 %v8904, %v8921
          %vm8930 = vcmp.gt.f32.partialorder %v8809, 0.0
          %v8931 = vsub.f32 %v8808, %v8909
          %v8932 = vsub.f32 %v8808, %v8913
          %v8933 = vsub.f32 %v8808, %v8917
          %v8934 = vsub.f32 %v8808, %v8921
          %v8935 = vrcp.pop %v8926
          %v8936 = vmul.f32 %v8931, %v8935
          %v8937 = vrcp.pop %v8927
          %v8938 = vmul.f32 %v8932, %v8937
          %v8939 = vrcp.pop %v8928
          %v8940 = vmul.f32 %v8933, %v8939
          %v8941 = vrcp.pop %v8929
          %v8942 = vmul.f32 %v8934, %v8941
          %v8943 = vsub.f32 1.0, %v8936
          %v8944 = vsub.f32 1.0, %v8938
          %v8945 = vsub.f32 1.0, %v8940
          %v8946 = vsub.f32 1.0, %v8942
          %v8951 = vcombine.low %v8943, %v8944
          %v8952 = vcombine.low %v8945, %v8946
          %v8954 = vunpack.c.l.s4 1966171168
          %v8955 = vunpack.c.0.s8 %v8954
          %v8956 = vlaneseq
          %v8957 = vshrl.u32 %v8956, 7
          %v8958 = vsub.s32 %v8955, %v8957
          %v8959 = vrot.slane %v8951, %v8958
          %v8961 = vunpack.c.l.s4 1966171168
          %v8962 = vunpack.c.0.s8 %v8961
          %v8963 = vlaneseq
          %v8964 = vshrl.u32 %v8963, 7
          %v8965 = vsub.s32 %v8962, %v8964
          %v8966 = vrot.slane %v8952, %v8965
          %v8967 = vcombine.low %v8959, %v8966
          %v8969 = vunpack.c.l.s4 1966171168
          %v8970 = vunpack.c.0.s8 %v8969
          %v8971 = vlaneseq
          %v8972 = vshrl.u32 %v8971, 7
          %v8973 = vsub.s32 %v8970, %v8972
          %v8974 = vrot.slane %v8967, %v8973
          %v8976 = vsel %vm8930, %v8974, 0.0
          %v8978 = vlaneseq
          %v8979 = vshrl.u32 %v8978, 7
          %v8980 = vsub.s32 0, %v8979
          %v8981 = vrot.slane %v8976, %v8980
          %v8982 = vlaneseq
          %v8983 = vshrl.u32 %v8982, 7
          %v8984 = vsub.s32 1, %v8983
          %v8985 = vrot.slane %v8976, %v8984
          %v8986 = vlaneseq
          %v8987 = vshrl.u32 %v8986, 7
          %v8988 = vsub.s32 2, %v8987
          %v8989 = vrot.slane %v8976, %v8988
          %v8990 = vlaneseq
          %v8991 = vshrl.u32 %v8990, 7
          %v8992 = vsub.s32 3, %v8991
          %v8993 = vrot.slane %v8976, %v8992
          %v8998 = vsub.f32 %v8875, %v8981
          %v8999 = vsub.f32 %v8876, %v8985
          %v9000 = vsub.f32 %v8877, %v8989
          %v9001 = vsub.f32 %v8878, %v8993
          %vm9002 = vcmp.ge.f32.partialorder %v8776, 0.0
          %v9003 = vsel %vm9002, %v8776, 0.0
          %v9008 = vcombine.low %v8998, %v8999
          %v9009 = vcombine.low %v9000, %v9001
          %v9011 = vunpack.c.l.s4 1966171168
          %v9012 = vunpack.c.0.s8 %v9011
          %v9013 = vlaneseq
          %v9014 = vshrl.u32 %v9013, 7
          %v9015 = vsub.s32 %v9012, %v9014
          %v9016 = vrot.slane %v9008, %v9015
          %v9018 = vunpack.c.l.s4 1966171168
          %v9019 = vunpack.c.0.s8 %v9018
          %v9020 = vlaneseq
          %v9021 = vshrl.u32 %v9020, 7
          %v9022 = vsub.s32 %v9019, %v9021
          %v9023 = vrot.slane %v9009, %v9022
          %v9024 = vcombine.low %v9016, %v9023
          %v9026 = vunpack.c.l.s4 1966171168
          %v9027 = vunpack.c.0.s8 %v9026
          %v9028 = vlaneseq
          %v9029 = vshrl.u32 %v9028, 7
          %v9030 = vsub.s32 %v9027, %v9029
          %v9031 = vrot.slane %v9024, %v9030
          %v9033 = vmul.f32 %v9003, %v9031
          %v9035 = vlaneseq
          %v9036 = vshrl.u32 %v9035, 7
          %v9037 = vsub.s32 0, %v9036
          %v9038 = vrot.slane %v9033, %v9037
          %v9039 = vlaneseq
          %v9040 = vshrl.u32 %v9039, 7
          %v9041 = vsub.s32 1, %v9040
          %v9042 = vrot.slane %v9033, %v9041
          %v9043 = vlaneseq
          %v9044 = vshrl.u32 %v9043, 7
          %v9045 = vsub.s32 2, %v9044
          %v9046 = vrot.slane %v9033, %v9045
          %v9047 = vlaneseq
          %v9048 = vshrl.u32 %v9047, 7
          %v9049 = vsub.s32 3, %v9048
          %v9050 = vrot.slane %v9033, %v9049
          %v9055 = vsel %vm8799, %v9038, 0.0
          %v9056 = vsel %vm8799, %v9042, 0.0
          %v9057 = vadd.f32 %v9055, %v9056
          %v9058 = vsel %vm8799, %v9046, 0.0
          %v9059 = vadd.f32 %v9057, %v9058
          %v9060 = vsel %vm8799, %v9050, 0.0
          %v9061 = vadd.f32 %v9059, %v9060
          %9062 = vadd.xlane.f32.xlu0 %v9061
          %v9063 = vpop.xlane.xlu0 %9062
          %vm9064 = vcmp.gt.f32.partialorder %v8808, 0.0
          %v9065 = vld [vmem:[#allocation6] sm:$0x1]
          %v9066 = vsel %vm9064, %v9063, 0.0
          %v9067 = vadd.f32 %v9065, %v9066
          %vm9068 = vcmask 0
          %9069 = vst.msk [vmem:[#allocation6] sm:$0x1] %vm9068, %v9067
          %v9070 = vld [vmem:[#allocation7] sm:$0x1]
          %v9071 = vsel %vm9064, 1.0, 0.0
          %v9072 = vadd.f32 %v9070, %v9071
          %9073 = vst.msk [vmem:[#allocation7] sm:$0x1] %vm9068, %v9072
        $region48: #{tpu_custom_call.1} parent=35 // pred_fallthru
          _
        %p9074 = pnand %p4598, %p221
        %p9075 = pneg %p9074
        // Predicated region
        $region49: #{tpu_custom_call.1} parent=35 // pred_check
          _
        $region50: #{tpu_custom_call.1} parent=35 // pred_check_branch
          %9077 = sbr.rel (%p9074) target = $region52
        $region51: #{tpu_custom_call.1} parent=35 // pred_region
          %v9078 = vld [vmem:[#allocation7] sm:$0x1]
          %vm9079 = vcmp.gt.f32.partialorder %v9078, 0.0
          %v9080 = vld [vmem:[#allocation6] sm:$0x1]
          %v9081 = vmax.f32 %v9078, 1.0
          %v9082 = vrcp.pop %v9081
          %v9083 = vmul.f32 %v9080, %v9082
          %v9084 = vsel %vm9079, %v9083, 0.0
          %vm9085 = vcmask 0
          %9086 = vst.msk [vmem:[#allocation8] sm:$0x1] %vm9085, %v9084
        $region52: #{tpu_custom_call.1} parent=35 // pred_fallthru
          _
        // Predicated region
        $region53: #{tpu_custom_call.1} parent=35 // pred_check
          %p9087 = pneg %p135
        $region54: #{tpu_custom_call.1} parent=35 // pred_check_branch
          %9089 = sbr.rel (%p9087) target = $region56
        $region55: #{tpu_custom_call.1} parent=35 // pred_region
          %s9091 = ssub.s32 16, 16
          %9092 = vsyncadd [#allocation9], %s9091
          %s9094 = sshll.u32 [#allocation8], 4
          %s9095 = int_to_ptr.vmem [resolvable:$true] %s9094
          %9097 = dma.vmem_to_hbm [thread:$0]  %s9095, 16, %s4, [#allocation9]
        $region56: #{tpu_custom_call.1} parent=35 // pred_fallthru
          _
        // Predicated region
        $region57: #{tpu_custom_call.1} parent=35 // pred_check
          %p9098 = pneg %p135
        $region58: #{tpu_custom_call.1} parent=35 // pred_check_branch
          %9100 = sbr.rel (%p9098) target = $region60
        $region59: #{tpu_custom_call.1} parent=35 // pred_region
          %9101 = dma.done [#allocation9], 16
        $region60: #{tpu_custom_call.1} parent=35 // pred_fallthru
          _
      $region36: #{tpu_custom_call.1} parent=5 // pred_fallthru
        _
      %p9102 = scmp.le.s32.totalorder 2, %s11
      // Predicated region
      $region61: #{tpu_custom_call.1} parent=5 // pred_check
        %p9103 = pneg %p9102
      $region62: #{tpu_custom_call.1} parent=5 // pred_check_branch
        %9105 = sbr.rel (%p9103) target = $region64
      $region63: #{tpu_custom_call.1} parent=5 // pred_region
        %s9106 = ssub.s32 %s11, 2
      $region64: #{tpu_custom_call.1} parent=5 // pred_fallthru
        _
    $region6: #{tpu_custom_call.1} parent=1 // loop_footer
      %s15 = sadd.s32 1, %s11
    $region7: #{tpu_custom_call.1} parent=1 // loop_footer_branch
      %10 = sbr.rel target = $region3
    $region8: #{tpu_custom_call.1} parent=1 // loop_exit
      _
    %9107 = vsyncpa [#allocation9], 1
    %s9108 = scalar_lea.sflag [#allocation9], 1
    %9109 = vsyncpa %s9108, 1

</llo_original>
